<compile_context>
chip_gen: v7x
topology: tpu7x:2x2x1
jax: 0.10.0
libtpu: 0.0.40
codegen_flags: <defaults>
</compile_context>

<pallas_src>
import functools
import math

import numpy as np
import jax
import jax.numpy as jnp
from jax import lax
from jax.experimental import pallas as pl
from jax.experimental.pallas import tpu as pltpu

NEG_SLOPE = 0.01  # torch.nn.LeakyReLU default negative_slope
# 3x3 tap offsets in HWIO flattening order: t = kh*3 + kw, (dh, dw) = (kh-1, kw-1)
_TAPS = tuple((dh, dw) for dh in (-1, 0, 1) for dw in (-1, 0, 1))


def _feature_extract_kernel(x_ref, w_ref, b_ref, m_ref, o_ref, xcol_ref, *, W):
    """Full FeatureExtract forward for one block of images.

    x_ref   : (1, C_pad, HW_blk)        VMEM activations (channels zero-padded)
    w_ref   : (9, C_pad, 9*C_pad)  f32  VMEM weights, row co / col t*C_pad+ci
    b_ref   : (9, C_pad, 1)        f32  VMEM biases (zero-padded)
    m_ref   : (9, C_pad, HW_blk)   f32  VMEM boundary masks, pre-broadcast
    o_ref   : (1, c_out, HW_blk)        VMEM output
    xcol_ref: (9*C_pad, HW_blk)    f32  VMEM im2col scratch
    """
    C = x_ref.shape[1]
    HW_blk = x_ref.shape[2]
    c_out = o_ref.shape[1]

    def conv3x3(x, idx):
        # Build the im2col slab in VMEM: row block t holds the input shifted by
        # tap t (out-of-image taps masked to 0).  Rolls run on the XLU; storing
        # each tap immediately keeps at most one shifted slab live in vregs.
        for t, (dh, dw) in enumerate(_TAPS):
            off = dh * W + dw
            if off == 0:
                tap = x                                   # center tap: no shift/mask
            else:
                tap = pltpu.roll(x, shift=(-off) % HW_blk, axis=1) * m_ref[t]
            xcol_ref[pl.ds(t * C, C), :] = tap
        # One MXU contraction replaces the scalar-weighted FMA triple loop.
        y = jnp.dot(w_ref[idx], xcol_ref[...],
                    preferred_element_type=jnp.float32,
                    precision=lax.Precision.HIGHEST)      # (C, HW_blk)
        return y + b_ref[idx]                             # bias as (C, 1) column

    y = x_ref[0].astype(jnp.float32)                      # (C, HW_blk)
    k = 0
    for _stage in range(3):
        # plain conv (no activation)
        y = conv3x3(y, k); k += 1
        # TinyResblock: x + conv2(leaky_relu(conv1(x)))
        r = y
        y = conv3x3(y, k); k += 1
        y = jnp.where(y >= 0.0, y, NEG_SLOPE * y)
        y = r + conv3x3(y, k); k += 1

    o_ref[0] = y[:c_out].astype(o_ref.dtype)


def _pack_params(params, c_pad):
    """Pad every conv's weights/bias to a uniform (c_pad, 9*c_pad)/(c_pad, 1)."""
    w_list, b_list = [], []
    for w, b in params:
        kh, kw, cin, cout = w.shape
        assert (kh, kw) == (3, 3), "FeatureExtract uses 3x3 convs"
        wt = jnp.transpose(w, (3, 0, 1, 2)).reshape(cout, 9, cin)   # [co, t, ci]
        wp = jnp.pad(wt, ((0, c_pad - cout), (0, 0), (0, c_pad - cin)))
        w_list.append(wp.reshape(c_pad, 9 * c_pad))
        b_list.append(jnp.pad(b, (0, c_pad - cout)).reshape(c_pad, 1))
    return (jnp.stack(w_list).astype(jnp.float32),
            jnp.stack(b_list).astype(jnp.float32))


def _boundary_masks(H, W, ipb, c_pad):
    """(9, c_pad, ipb*H*W) f32: 1 where the tap's neighbor lies inside its image."""
    HW = H * W
    pos = np.arange(HW)
    row, col = pos // W, pos % W
    m = np.zeros((len(_TAPS), HW), np.float32)
    for t, (dh, dw) in enumerate(_TAPS):
        ok = (row + dh >= 0) & (row + dh < H) & (col + dw >= 0) & (col + dw < W)
        m[t] = ok
    m = np.tile(m, (1, ipb))                                   # (9, ipb*HW)
    m = np.broadcast_to(m[:, None, :], (len(_TAPS), c_pad, ipb * HW)).copy()
    return jnp.asarray(m)


def feature_extract_forward(x_nchw, params):
    """FeatureExtract.forward.

    params: 9 (w_hwio, bias) pairs in forward order:
      [conv1, res1.conv1, res1.conv2, conv2, res2.conv1, res2.conv2,
       conv3, res3.conv1, res3.conv2]
    """
    N, C0, H, W = x_nchw.shape
    HW = H * W
    assert len(params) == 9
    chans = [C0] + [w.shape[3] for w, _ in params]
    c_out = chans[-1]
    c_pad = ((max(chans) + 7) // 8) * 8                        # sublane-aligned

    # Pack >=2 images per grid step along the lane axis when that still leaves a
    # grid of length >= 2 (keeps both v7x TensorCores fed).
    ipb = 2 if (N % 2 == 0 and N >= 4) else 1
    n_blk = N // ipb
    HW_blk = ipb * HW

    # NCHW -> (n_blk, C_pad, ipb*HW): images concatenated along lanes, channels
    # zero-padded to c_pad.
    x3 = x_nchw.reshape(n_blk, ipb, C0, HW)
    x3 = jnp.transpose(x3, (0, 2, 1, 3)).reshape(n_blk, C0, HW_blk)
    x3 = jnp.pad(x3, ((0, 0), (0, c_pad - C0), (0, 0)))

    w_all, b_all = _pack_params(params, c_pad)                 # (9,Cp,9Cp), (9,Cp,1)
    masks = _boundary_masks(H, W, ipb, c_pad)                  # (9,Cp,HW_blk)

    kernel = functools.partial(_feature_extract_kernel, W=W)

    out3 = pl.pallas_call(
        kernel,
        out_shape=jax.ShapeDtypeStruct((n_blk, c_out, HW_blk), x_nchw.dtype),
        grid=(n_blk,),
        in_specs=[
            pl.BlockSpec((1, c_pad, HW_blk), lambda n: (n, 0, 0)),       # activations
            pl.BlockSpec((9, c_pad, 9 * c_pad), lambda n: (0, 0, 0)),    # weights
            pl.BlockSpec((9, c_pad, 1), lambda n: (0, 0, 0)),            # biases
            pl.BlockSpec((9, c_pad, HW_blk), lambda n: (0, 0, 0)),       # masks
        ],
        out_specs=pl.BlockSpec((1, c_out, HW_blk), lambda n: (n, 0, 0)),
        scratch_shapes=[pltpu.VMEM((9 * c_pad, HW_blk), jnp.float32)],   # im2col
        compiler_params=pltpu.CompilerParams(
            dimension_semantics=("parallel",)),
    )(x3, w_all, b_all, masks)

    out = out3.reshape(n_blk, c_out, ipb, HW)
    out = jnp.transpose(out, (0, 2, 1, 3)).reshape(N, c_out, H, W)
    return out


def _ref_forward(x, params):
    """Pure-JAX reference mirroring the PyTorch FeatureExtract module."""
    def conv(x, w, b):
        y = lax.conv_general_dilated(
            x, w, window_strides=(1, 1), padding="SAME",
            dimension_numbers=("NCHW", "HWIO", "NCHW"),
            precision=lax.Precision.HIGHEST)
        return y + b.reshape(1, -1, 1, 1)

    def resblock(x, pa, pb):
        y = conv(x, *pa)
        y = jnp.where(y >= 0.0, y, NEG_SLOPE * y)
        return x + conv(y, *pb)

    p = list(params)
    y = conv(x, *p[0]); y = resblock(y, p[1], p[2])
    y = conv(y, *p[3]); y = resblock(y, p[4], p[5])
    y = conv(y, *p[6]); y = resblock(y, p[7], p[8])
    return y


if __name__ == "__main__":
    in_channel, out_channel = 4, 4
    N, H, W = 2, 16, 16
    mid1 = (2 * in_channel + out_channel) // 3
    mid2 = (in_channel + 2 * out_channel) // 3
    # (cin, cout) per conv, in FeatureExtract.forward order
    plan = [(in_channel, mid1), (mid1, mid1), (mid1, mid1),
            (mid1, mid2), (mid2, mid2), (mid2, mid2),
            (mid2, out_channel), (out_channel, out_channel), (out_channel, out_channel)]

    key = jax.random.PRNGKey(0)
    key, kx = jax.random.split(key)
    x = jax.random.normal(kx, (N, in_channel, H, W), jnp.float32)

    params = []
    for cin, cout in plan:
        key, kw_, kb_ = jax.random.split(key, 3)
        bound = 1.0 / math.sqrt(cin * 3 * 3)  # PyTorch Conv2d default init range
        w = jax.random.uniform(kw_, (3, 3, cin, cout), jnp.float32, -bound, bound)
        b = jax.random.uniform(kb_, (cout,), jnp.float32, -bound, bound)
        params.append((w, b))
    params = tuple(params)

    fwd = jax.jit(feature_extract_forward)
    out = jax.block_until_ready(fwd(x, params))
    ref = jax.block_until_ready(_ref_forward(x, params))

    assert out.shape == (N, out_channel, H, W) and out.dtype == x.dtype
    max_err = float(jnp.max(jnp.abs(out - ref)))
    assert jnp.allclose(out, ref, atol=1e-4, rtol=1e-4), max_err
    print("KERNEL_OK")
</pallas_src>

<mosaic_0001>
module attributes {stable_mosaic.version = 11 : i64} {
  func.func @_feature_extract_kernel(%arg0: i32, %arg1: memref<1x8x256xf32, #tpu.memory_space<vmem>>, %arg2: memref<9x8x72xf32, #tpu.memory_space<vmem>>, %arg3: memref<9x8x1xf32, #tpu.memory_space<vmem>>, %arg4: memref<9x8x256xf32, #tpu.memory_space<vmem>>, %arg5: memref<1x4x256xf32, #tpu.memory_space<vmem>>, %arg6: memref<72x256xf32, #tpu.memory_space<vmem>>) attributes {dimension_semantics = [#tpu.dimension_semantics<parallel>], iteration_bounds = array<i64: 2>, scalar_prefetch = 0 : i64, scratch_operands = 1 : i64, tpu.core_type = #tpu.core_type<tc>, window_params = [{transform_indices = @transform_0, window_bounds = array<i64: 1, 8, 256>}, {pipeline_mode = #tpu.pipeline_mode<synchronous>, transform_indices = @transform_1, window_bounds = array<i64: 9, 8, 72>}, {pipeline_mode = #tpu.pipeline_mode<synchronous>, transform_indices = @transform_2, window_bounds = array<i64: 9, 8, 1>}, {pipeline_mode = #tpu.pipeline_mode<synchronous>, transform_indices = @transform_3, window_bounds = array<i64: 9, 8, 256>}, {transform_indices = @transform_4, window_bounds = array<i64: 1, 4, 256>}]} {
    %c0 = arith.constant 0 : index
    %c0_0 = arith.constant 0 : index
    %c0_1 = arith.constant 0 : index
    %0 = vector.load %arg1[%c0, %c0_0, %c0_1] : memref<1x8x256xf32, #tpu.memory_space<vmem>>, vector<1x8x256xf32>
    %1 = vector.shape_cast %0 : vector<1x8x256xf32> to vector<8x256xf32>
    %c17_i32 = arith.constant 17 : i32
    %2 = tpu.dynamic_rotate %1 by %c17_i32 dim 1 : vector<8x256xf32>, i32 -> vector<8x256xf32>
    %c0_2 = arith.constant 0 : index
    %c0_3 = arith.constant 0 : index
    %c0_4 = arith.constant 0 : index
    %3 = vector.load %arg4[%c0_2, %c0_3, %c0_4] : memref<9x8x256xf32, #tpu.memory_space<vmem>>, vector<1x8x256xf32>
    %4 = vector.shape_cast %3 : vector<1x8x256xf32> to vector<8x256xf32>
    %5 = arith.mulf %2, %4 : vector<8x256xf32>
    %c0_5 = arith.constant 0 : index
    %c0_6 = arith.constant 0 : index
    %6 = vector.load %arg6[%c0_5, %c0_6] : memref<72x256xf32, #tpu.memory_space<vmem>>, vector<8x256xf32>
    tpu.vector_store %arg6[%c0_5, %c0_6], %5 {strides = array<i32>} : memref<72x256xf32, #tpu.memory_space<vmem>>, vector<8x256xf32>,
    %c16_i32 = arith.constant 16 : i32
    %7 = tpu.dynamic_rotate %1 by %c16_i32 dim 1 : vector<8x256xf32>, i32 -> vector<8x256xf32>
    %c1 = arith.constant 1 : index
    %c0_7 = arith.constant 0 : index
    %c0_8 = arith.constant 0 : index
    %8 = vector.load %arg4[%c1, %c0_7, %c0_8] : memref<9x8x256xf32, #tpu.memory_space<vmem>>, vector<1x8x256xf32>
    %9 = vector.shape_cast %8 : vector<1x8x256xf32> to vector<8x256xf32>
    %10 = arith.mulf %7, %9 : vector<8x256xf32>
    %c8 = arith.constant 8 : index
    %c0_9 = arith.constant 0 : index
    %11 = vector.load %arg6[%c8, %c0_9] : memref<72x256xf32, #tpu.memory_space<vmem>>, vector<8x256xf32>
    tpu.vector_store %arg6[%c8, %c0_9], %10 {strides = array<i32>} : memref<72x256xf32, #tpu.memory_space<vmem>>, vector<8x256xf32>,
    %c15_i32 = arith.constant 15 : i32
    %12 = tpu.dynamic_rotate %1 by %c15_i32 dim 1 : vector<8x256xf32>, i32 -> vector<8x256xf32>
    %c2 = arith.constant 2 : index
    %c0_10 = arith.constant 0 : index
    %c0_11 = arith.constant 0 : index
    %13 = vector.load %arg4[%c2, %c0_10, %c0_11] : memref<9x8x256xf32, #tpu.memory_space<vmem>>, vector<1x8x256xf32>
    %14 = vector.shape_cast %13 : vector<1x8x256xf32> to vector<8x256xf32>
    %15 = arith.mulf %12, %14 : vector<8x256xf32>
    %c16 = arith.constant 16 : index
    %c0_12 = arith.constant 0 : index
    %16 = vector.load %arg6[%c16, %c0_12] : memref<72x256xf32, #tpu.memory_space<vmem>>, vector<8x256xf32>
    tpu.vector_store %arg6[%c16, %c0_12], %15 {strides = array<i32>} : memref<72x256xf32, #tpu.memory_space<vmem>>, vector<8x256xf32>,
    %c1_i32 = arith.constant 1 : i32
    %17 = tpu.dynamic_rotate %1 by %c1_i32 dim 1 : vector<8x256xf32>, i32 -> vector<8x256xf32>
    %c3 = arith.constant 3 : index
    %c0_13 = arith.constant 0 : index
    %c0_14 = arith.constant 0 : index
    %18 = vector.load %arg4[%c3, %c0_13, %c0_14] : memref<9x8x256xf32, #tpu.memory_space<vmem>>, vector<1x8x256xf32>
    %19 = vector.shape_cast %18 : vector<1x8x256xf32> to vector<8x256xf32>
    %20 = arith.mulf %17, %19 : vector<8x256xf32>
    %c24 = arith.constant 24 : index
    %c0_15 = arith.constant 0 : index
    %21 = vector.load %arg6[%c24, %c0_15] : memref<72x256xf32, #tpu.memory_space<vmem>>, vector<8x256xf32>
    tpu.vector_store %arg6[%c24, %c0_15], %20 {strides = array<i32>} : memref<72x256xf32, #tpu.memory_space<vmem>>, vector<8x256xf32>,
    %c32 = arith.constant 32 : index
    %c0_16 = arith.constant 0 : index
    %22 = vector.load %arg6[%c32, %c0_16] : memref<72x256xf32, #tpu.memory_space<vmem>>, vector<8x256xf32>
    tpu.vector_store %arg6[%c32, %c0_16], %1 {strides = array<i32>} : memref<72x256xf32, #tpu.memory_space<vmem>>, vector<8x256xf32>,
    %c255_i32 = arith.constant 255 : i32
    %23 = tpu.dynamic_rotate %1 by %c255_i32 dim 1 : vector<8x256xf32>, i32 -> vector<8x256xf32>
    %c5 = arith.constant 5 : index
    %c0_17 = arith.constant 0 : index
    %c0_18 = arith.constant 0 : index
    %24 = vector.load %arg4[%c5, %c0_17, %c0_18] : memref<9x8x256xf32, #tpu.memory_space<vmem>>, vector<1x8x256xf32>
    %25 = vector.shape_cast %24 : vector<1x8x256xf32> to vector<8x256xf32>
    %26 = arith.mulf %23, %25 : vector<8x256xf32>
    %c40 = arith.constant 40 : index
    %c0_19 = arith.constant 0 : index
    %27 = vector.load %arg6[%c40, %c0_19] : memref<72x256xf32, #tpu.memory_space<vmem>>, vector<8x256xf32>
    tpu.vector_store %arg6[%c40, %c0_19], %26 {strides = array<i32>} : memref<72x256xf32, #tpu.memory_space<vmem>>, vector<8x256xf32>,
    %c241_i32 = arith.constant 241 : i32
    %28 = tpu.dynamic_rotate %1 by %c241_i32 dim 1 : vector<8x256xf32>, i32 -> vector<8x256xf32>
    %c6 = arith.constant 6 : index
    %c0_20 = arith.constant 0 : index
    %c0_21 = arith.constant 0 : index
    %29 = vector.load %arg4[%c6, %c0_20, %c0_21] : memref<9x8x256xf32, #tpu.memory_space<vmem>>, vector<1x8x256xf32>
    %30 = vector.shape_cast %29 : vector<1x8x256xf32> to vector<8x256xf32>
    %31 = arith.mulf %28, %30 : vector<8x256xf32>
    %c48 = arith.constant 48 : index
    %c0_22 = arith.constant 0 : index
    %32 = vector.load %arg6[%c48, %c0_22] : memref<72x256xf32, #tpu.memory_space<vmem>>, vector<8x256xf32>
    tpu.vector_store %arg6[%c48, %c0_22], %31 {strides = array<i32>} : memref<72x256xf32, #tpu.memory_space<vmem>>, vector<8x256xf32>,
    %c240_i32 = arith.constant 240 : i32
    %33 = tpu.dynamic_rotate %1 by %c240_i32 dim 1 : vector<8x256xf32>, i32 -> vector<8x256xf32>
    %c7 = arith.constant 7 : index
    %c0_23 = arith.constant 0 : index
    %c0_24 = arith.constant 0 : index
    %34 = vector.load %arg4[%c7, %c0_23, %c0_24] : memref<9x8x256xf32, #tpu.memory_space<vmem>>, vector<1x8x256xf32>
    %35 = vector.shape_cast %34 : vector<1x8x256xf32> to vector<8x256xf32>
    %36 = arith.mulf %33, %35 : vector<8x256xf32>
    %c56 = arith.constant 56 : index
    %c0_25 = arith.constant 0 : index
    %37 = vector.load %arg6[%c56, %c0_25] : memref<72x256xf32, #tpu.memory_space<vmem>>, vector<8x256xf32>
    tpu.vector_store %arg6[%c56, %c0_25], %36 {strides = array<i32>} : memref<72x256xf32, #tpu.memory_space<vmem>>, vector<8x256xf32>,
    %c239_i32 = arith.constant 239 : i32
    %38 = tpu.dynamic_rotate %1 by %c239_i32 dim 1 : vector<8x256xf32>, i32 -> vector<8x256xf32>
    %c8_26 = arith.constant 8 : index
    %c0_27 = arith.constant 0 : index
    %c0_28 = arith.constant 0 : index
    %39 = vector.load %arg4[%c8_26, %c0_27, %c0_28] : memref<9x8x256xf32, #tpu.memory_space<vmem>>, vector<1x8x256xf32>
    %40 = vector.shape_cast %39 : vector<1x8x256xf32> to vector<8x256xf32>
    %41 = arith.mulf %38, %40 : vector<8x256xf32>
    %c64 = arith.constant 64 : index
    %c0_29 = arith.constant 0 : index
    %42 = vector.load %arg6[%c64, %c0_29] : memref<72x256xf32, #tpu.memory_space<vmem>>, vector<8x256xf32>
    tpu.vector_store %arg6[%c64, %c0_29], %41 {strides = array<i32>} : memref<72x256xf32, #tpu.memory_space<vmem>>, vector<8x256xf32>,
    %c0_30 = arith.constant 0 : index
    %c0_31 = arith.constant 0 : index
    %c0_32 = arith.constant 0 : index
    %43 = vector.load %arg2[%c0_30, %c0_31, %c0_32] : memref<9x8x72xf32, #tpu.memory_space<vmem>>, vector<1x8x72xf32>
    %44 = vector.shape_cast %43 : vector<1x8x72xf32> to vector<8x72xf32>
    %c0_33 = arith.constant 0 : index
    %c0_34 = arith.constant 0 : index
    %45 = vector.load %arg6[%c0_33, %c0_34] : memref<72x256xf32, #tpu.memory_space<vmem>>, vector<72x256xf32>
    %cst = arith.constant dense<0.000000e+00> : vector<8x256xf32>
    %46 = tpu.matmul %44, %45, %cst {dimension_numbers = #tpu.dot_dimension_numbers<[1], [0], [0], [1], [0, 0, 1, 1], [], []>, precision = #tpu.contract_precision<fp32>} : vector<8x72xf32>, vector<72x256xf32>, vector<8x256xf32> -> vector<8x256xf32>
    %c0_35 = arith.constant 0 : index
    %c0_36 = arith.constant 0 : index
    %c0_37 = arith.constant 0 : index
    %47 = vector.load %arg3[%c0_35, %c0_36, %c0_37] : memref<9x8x1xf32, #tpu.memory_space<vmem>>, vector<1x8x1xf32>
    %48 = vector.shape_cast %47 : vector<1x8x1xf32> to vector<8x1xf32>
    %49 = vector.broadcast %48 : vector<8x1xf32> to vector<8x256xf32>
    %50 = arith.addf %46, %49 : vector<8x256xf32>
    %c17_i32_38 = arith.constant 17 : i32
    %51 = tpu.dynamic_rotate %50 by %c17_i32_38 dim 1 : vector<8x256xf32>, i32 -> vector<8x256xf32>
    %c0_39 = arith.constant 0 : index
    %c0_40 = arith.constant 0 : index
    %c0_41 = arith.constant 0 : index
    %52 = vector.load %arg4[%c0_39, %c0_40, %c0_41] : memref<9x8x256xf32, #tpu.memory_space<vmem>>, vector<1x8x256xf32>
    %53 = vector.shape_cast %52 : vector<1x8x256xf32> to vector<8x256xf32>
    %54 = arith.mulf %51, %53 : vector<8x256xf32>
    %c0_42 = arith.constant 0 : index
    %c0_43 = arith.constant 0 : index
    %55 = vector.load %arg6[%c0_42, %c0_43] : memref<72x256xf32, #tpu.memory_space<vmem>>, vector<8x256xf32>
    tpu.vector_store %arg6[%c0_42, %c0_43], %54 {strides = array<i32>} : memref<72x256xf32, #tpu.memory_space<vmem>>, vector<8x256xf32>,
    %c16_i32_44 = arith.constant 16 : i32
    %56 = tpu.dynamic_rotate %50 by %c16_i32_44 dim 1 : vector<8x256xf32>, i32 -> vector<8x256xf32>
    %c1_45 = arith.constant 1 : index
    %c0_46 = arith.constant 0 : index
    %c0_47 = arith.constant 0 : index
    %57 = vector.load %arg4[%c1_45, %c0_46, %c0_47] : memref<9x8x256xf32, #tpu.memory_space<vmem>>, vector<1x8x256xf32>
    %58 = vector.shape_cast %57 : vector<1x8x256xf32> to vector<8x256xf32>
    %59 = arith.mulf %56, %58 : vector<8x256xf32>
    %c8_48 = arith.constant 8 : index
    %c0_49 = arith.constant 0 : index
    %60 = vector.load %arg6[%c8_48, %c0_49] : memref<72x256xf32, #tpu.memory_space<vmem>>, vector<8x256xf32>
    tpu.vector_store %arg6[%c8_48, %c0_49], %59 {strides = array<i32>} : memref<72x256xf32, #tpu.memory_space<vmem>>, vector<8x256xf32>,
    %c15_i32_50 = arith.constant 15 : i32
    %61 = tpu.dynamic_rotate %50 by %c15_i32_50 dim 1 : vector<8x256xf32>, i32 -> vector<8x256xf32>
    %c2_51 = arith.constant 2 : index
    %c0_52 = arith.constant 0 : index
    %c0_53 = arith.constant 0 : index
    %62 = vector.load %arg4[%c2_51, %c0_52, %c0_53] : memref<9x8x256xf32, #tpu.memory_space<vmem>>, vector<1x8x256xf32>
    %63 = vector.shape_cast %62 : vector<1x8x256xf32> to vector<8x256xf32>
    %64 = arith.mulf %61, %63 : vector<8x256xf32>
    %c16_54 = arith.constant 16 : index
    %c0_55 = arith.constant 0 : index
    %65 = vector.load %arg6[%c16_54, %c0_55] : memref<72x256xf32, #tpu.memory_space<vmem>>, vector<8x256xf32>
    tpu.vector_store %arg6[%c16_54, %c0_55], %64 {strides = array<i32>} : memref<72x256xf32, #tpu.memory_space<vmem>>, vector<8x256xf32>,
    %c1_i32_56 = arith.constant 1 : i32
    %66 = tpu.dynamic_rotate %50 by %c1_i32_56 dim 1 : vector<8x256xf32>, i32 -> vector<8x256xf32>
    %c3_57 = arith.constant 3 : index
    %c0_58 = arith.constant 0 : index
    %c0_59 = arith.constant 0 : index
    %67 = vector.load %arg4[%c3_57, %c0_58, %c0_59] : memref<9x8x256xf32, #tpu.memory_space<vmem>>, vector<1x8x256xf32>
    %68 = vector.shape_cast %67 : vector<1x8x256xf32> to vector<8x256xf32>
    %69 = arith.mulf %66, %68 : vector<8x256xf32>
    %c24_60 = arith.constant 24 : index
    %c0_61 = arith.constant 0 : index
    %70 = vector.load %arg6[%c24_60, %c0_61] : memref<72x256xf32, #tpu.memory_space<vmem>>, vector<8x256xf32>
    tpu.vector_store %arg6[%c24_60, %c0_61], %69 {strides = array<i32>} : memref<72x256xf32, #tpu.memory_space<vmem>>, vector<8x256xf32>,
    %c32_62 = arith.constant 32 : index
    %c0_63 = arith.constant 0 : index
    %71 = vector.load %arg6[%c32_62, %c0_63] : memref<72x256xf32, #tpu.memory_space<vmem>>, vector<8x256xf32>
    tpu.vector_store %arg6[%c32_62, %c0_63], %50 {strides = array<i32>} : memref<72x256xf32, #tpu.memory_space<vmem>>, vector<8x256xf32>,
    %c255_i32_64 = arith.constant 255 : i32
    %72 = tpu.dynamic_rotate %50 by %c255_i32_64 dim 1 : vector<8x256xf32>, i32 -> vector<8x256xf32>
    %c5_65 = arith.constant 5 : index
    %c0_66 = arith.constant 0 : index
    %c0_67 = arith.constant 0 : index
    %73 = vector.load %arg4[%c5_65, %c0_66, %c0_67] : memref<9x8x256xf32, #tpu.memory_space<vmem>>, vector<1x8x256xf32>
    %74 = vector.shape_cast %73 : vector<1x8x256xf32> to vector<8x256xf32>
    %75 = arith.mulf %72, %74 : vector<8x256xf32>
    %c40_68 = arith.constant 40 : index
    %c0_69 = arith.constant 0 : index
    %76 = vector.load %arg6[%c40_68, %c0_69] : memref<72x256xf32, #tpu.memory_space<vmem>>, vector<8x256xf32>
    tpu.vector_store %arg6[%c40_68, %c0_69], %75 {strides = array<i32>} : memref<72x256xf32, #tpu.memory_space<vmem>>, vector<8x256xf32>,
    %c241_i32_70 = arith.constant 241 : i32
    %77 = tpu.dynamic_rotate %50 by %c241_i32_70 dim 1 : vector<8x256xf32>, i32 -> vector<8x256xf32>
    %c6_71 = arith.constant 6 : index
    %c0_72 = arith.constant 0 : index
    %c0_73 = arith.constant 0 : index
    %78 = vector.load %arg4[%c6_71, %c0_72, %c0_73] : memref<9x8x256xf32, #tpu.memory_space<vmem>>, vector<1x8x256xf32>
    %79 = vector.shape_cast %78 : vector<1x8x256xf32> to vector<8x256xf32>
    %80 = arith.mulf %77, %79 : vector<8x256xf32>
    %c48_74 = arith.constant 48 : index
    %c0_75 = arith.constant 0 : index
    %81 = vector.load %arg6[%c48_74, %c0_75] : memref<72x256xf32, #tpu.memory_space<vmem>>, vector<8x256xf32>
    tpu.vector_store %arg6[%c48_74, %c0_75], %80 {strides = array<i32>} : memref<72x256xf32, #tpu.memory_space<vmem>>, vector<8x256xf32>,
    %c240_i32_76 = arith.constant 240 : i32
    %82 = tpu.dynamic_rotate %50 by %c240_i32_76 dim 1 : vector<8x256xf32>, i32 -> vector<8x256xf32>
    %c7_77 = arith.constant 7 : index
    %c0_78 = arith.constant 0 : index
    %c0_79 = arith.constant 0 : index
    %83 = vector.load %arg4[%c7_77, %c0_78, %c0_79] : memref<9x8x256xf32, #tpu.memory_space<vmem>>, vector<1x8x256xf32>
    %84 = vector.shape_cast %83 : vector<1x8x256xf32> to vector<8x256xf32>
    %85 = arith.mulf %82, %84 : vector<8x256xf32>
    %c56_80 = arith.constant 56 : index
    %c0_81 = arith.constant 0 : index
    %86 = vector.load %arg6[%c56_80, %c0_81] : memref<72x256xf32, #tpu.memory_space<vmem>>, vector<8x256xf32>
    tpu.vector_store %arg6[%c56_80, %c0_81], %85 {strides = array<i32>} : memref<72x256xf32, #tpu.memory_space<vmem>>, vector<8x256xf32>,
    %c239_i32_82 = arith.constant 239 : i32
    %87 = tpu.dynamic_rotate %50 by %c239_i32_82 dim 1 : vector<8x256xf32>, i32 -> vector<8x256xf32>
    %c8_83 = arith.constant 8 : index
    %c0_84 = arith.constant 0 : index
    %c0_85 = arith.constant 0 : index
    %88 = vector.load %arg4[%c8_83, %c0_84, %c0_85] : memref<9x8x256xf32, #tpu.memory_space<vmem>>, vector<1x8x256xf32>
    %89 = vector.shape_cast %88 : vector<1x8x256xf32> to vector<8x256xf32>
    %90 = arith.mulf %87, %89 : vector<8x256xf32>
    %c64_86 = arith.constant 64 : index
    %c0_87 = arith.constant 0 : index
    %91 = vector.load %arg6[%c64_86, %c0_87] : memref<72x256xf32, #tpu.memory_space<vmem>>, vector<8x256xf32>
    tpu.vector_store %arg6[%c64_86, %c0_87], %90 {strides = array<i32>} : memref<72x256xf32, #tpu.memory_space<vmem>>, vector<8x256xf32>,
    %c1_88 = arith.constant 1 : index
    %c0_89 = arith.constant 0 : index
    %c0_90 = arith.constant 0 : index
    %92 = vector.load %arg2[%c1_88, %c0_89, %c0_90] : memref<9x8x72xf32, #tpu.memory_space<vmem>>, vector<1x8x72xf32>
    %93 = vector.shape_cast %92 : vector<1x8x72xf32> to vector<8x72xf32>
    %c0_91 = arith.constant 0 : index
    %c0_92 = arith.constant 0 : index
    %94 = vector.load %arg6[%c0_91, %c0_92] : memref<72x256xf32, #tpu.memory_space<vmem>>, vector<72x256xf32>
    %cst_93 = arith.constant dense<0.000000e+00> : vector<8x256xf32>
    %95 = tpu.matmul %93, %94, %cst_93 {dimension_numbers = #tpu.dot_dimension_numbers<[1], [0], [0], [1], [0, 0, 1, 1], [], []>, precision = #tpu.contract_precision<fp32>} : vector<8x72xf32>, vector<72x256xf32>, vector<8x256xf32> -> vector<8x256xf32>
    %c1_94 = arith.constant 1 : index
    %c0_95 = arith.constant 0 : index
    %c0_96 = arith.constant 0 : index
    %96 = vector.load %arg3[%c1_94, %c0_95, %c0_96] : memref<9x8x1xf32, #tpu.memory_space<vmem>>, vector<1x8x1xf32>
    %97 = vector.shape_cast %96 : vector<1x8x1xf32> to vector<8x1xf32>
    %98 = vector.broadcast %97 : vector<8x1xf32> to vector<8x256xf32>
    %99 = arith.addf %95, %98 : vector<8x256xf32>
    %cst_97 = arith.constant 0.000000e+00 : f32
    %100 = vector.broadcast %cst_97 : f32 to vector<8x256xf32>
    %101 = arith.cmpf oge, %99, %100 : vector<8x256xf32>
    %cst_98 = arith.constant 0.00999999977 : f32
    %102 = vector.broadcast %cst_98 : f32 to vector<8x256xf32>
    %103 = arith.mulf %102, %99 : vector<8x256xf32>
    %104 = arith.select %101, %99, %103 : vector<8x256xi1>, vector<8x256xf32>
    %c17_i32_99 = arith.constant 17 : i32
    %105 = tpu.dynamic_rotate %104 by %c17_i32_99 dim 1 : vector<8x256xf32>, i32 -> vector<8x256xf32>
    %c0_100 = arith.constant 0 : index
    %c0_101 = arith.constant 0 : index
    %c0_102 = arith.constant 0 : index
    %106 = vector.load %arg4[%c0_100, %c0_101, %c0_102] : memref<9x8x256xf32, #tpu.memory_space<vmem>>, vector<1x8x256xf32>
    %107 = vector.shape_cast %106 : vector<1x8x256xf32> to vector<8x256xf32>
    %108 = arith.mulf %105, %107 : vector<8x256xf32>
    %c0_103 = arith.constant 0 : index
    %c0_104 = arith.constant 0 : index
    %109 = vector.load %arg6[%c0_103, %c0_104] : memref<72x256xf32, #tpu.memory_space<vmem>>, vector<8x256xf32>
    tpu.vector_store %arg6[%c0_103, %c0_104], %108 {strides = array<i32>} : memref<72x256xf32, #tpu.memory_space<vmem>>, vector<8x256xf32>,
    %c16_i32_105 = arith.constant 16 : i32
    %110 = tpu.dynamic_rotate %104 by %c16_i32_105 dim 1 : vector<8x256xf32>, i32 -> vector<8x256xf32>
    %c1_106 = arith.constant 1 : index
    %c0_107 = arith.constant 0 : index
    %c0_108 = arith.constant 0 : index
    %111 = vector.load %arg4[%c1_106, %c0_107, %c0_108] : memref<9x8x256xf32, #tpu.memory_space<vmem>>, vector<1x8x256xf32>
    %112 = vector.shape_cast %111 : vector<1x8x256xf32> to vector<8x256xf32>
    %113 = arith.mulf %110, %112 : vector<8x256xf32>
    %c8_109 = arith.constant 8 : index
    %c0_110 = arith.constant 0 : index
    %114 = vector.load %arg6[%c8_109, %c0_110] : memref<72x256xf32, #tpu.memory_space<vmem>>, vector<8x256xf32>
    tpu.vector_store %arg6[%c8_109, %c0_110], %113 {strides = array<i32>} : memref<72x256xf32, #tpu.memory_space<vmem>>, vector<8x256xf32>,
    %c15_i32_111 = arith.constant 15 : i32
    %115 = tpu.dynamic_rotate %104 by %c15_i32_111 dim 1 : vector<8x256xf32>, i32 -> vector<8x256xf32>
    %c2_112 = arith.constant 2 : index
    %c0_113 = arith.constant 0 : index
    %c0_114 = arith.constant 0 : index
    %116 = vector.load %arg4[%c2_112, %c0_113, %c0_114] : memref<9x8x256xf32, #tpu.memory_space<vmem>>, vector<1x8x256xf32>
    %117 = vector.shape_cast %116 : vector<1x8x256xf32> to vector<8x256xf32>
    %118 = arith.mulf %115, %117 : vector<8x256xf32>
    %c16_115 = arith.constant 16 : index
    %c0_116 = arith.constant 0 : index
    %119 = vector.load %arg6[%c16_115, %c0_116] : memref<72x256xf32, #tpu.memory_space<vmem>>, vector<8x256xf32>
    tpu.vector_store %arg6[%c16_115, %c0_116], %118 {strides = array<i32>} : memref<72x256xf32, #tpu.memory_space<vmem>>, vector<8x256xf32>,
    %c1_i32_117 = arith.constant 1 : i32
    %120 = tpu.dynamic_rotate %104 by %c1_i32_117 dim 1 : vector<8x256xf32>, i32 -> vector<8x256xf32>
    %c3_118 = arith.constant 3 : index
    %c0_119 = arith.constant 0 : index
    %c0_120 = arith.constant 0 : index
    %121 = vector.load %arg4[%c3_118, %c0_119, %c0_120] : memref<9x8x256xf32, #tpu.memory_space<vmem>>, vector<1x8x256xf32>
    %122 = vector.shape_cast %121 : vector<1x8x256xf32> to vector<8x256xf32>
    %123 = arith.mulf %120, %122 : vector<8x256xf32>
    %c24_121 = arith.constant 24 : index
    %c0_122 = arith.constant 0 : index
    %124 = vector.load %arg6[%c24_121, %c0_122] : memref<72x256xf32, #tpu.memory_space<vmem>>, vector<8x256xf32>
    tpu.vector_store %arg6[%c24_121, %c0_122], %123 {strides = array<i32>} : memref<72x256xf32, #tpu.memory_space<vmem>>, vector<8x256xf32>,
    %c32_123 = arith.constant 32 : index
    %c0_124 = arith.constant 0 : index
    %125 = vector.load %arg6[%c32_123, %c0_124] : memref<72x256xf32, #tpu.memory_space<vmem>>, vector<8x256xf32>
    tpu.vector_store %arg6[%c32_123, %c0_124], %104 {strides = array<i32>} : memref<72x256xf32, #tpu.memory_space<vmem>>, vector<8x256xf32>,
    %c255_i32_125 = arith.constant 255 : i32
    %126 = tpu.dynamic_rotate %104 by %c255_i32_125 dim 1 : vector<8x256xf32>, i32 -> vector<8x256xf32>
    %c5_126 = arith.constant 5 : index
    %c0_127 = arith.constant 0 : index
    %c0_128 = arith.constant 0 : index
    %127 = vector.load %arg4[%c5_126, %c0_127, %c0_128] : memref<9x8x256xf32, #tpu.memory_space<vmem>>, vector<1x8x256xf32>
    %128 = vector.shape_cast %127 : vector<1x8x256xf32> to vector<8x256xf32>
    %129 = arith.mulf %126, %128 : vector<8x256xf32>
    %c40_129 = arith.constant 40 : index
    %c0_130 = arith.constant 0 : index
    %130 = vector.load %arg6[%c40_129, %c0_130] : memref<72x256xf32, #tpu.memory_space<vmem>>, vector<8x256xf32>
    tpu.vector_store %arg6[%c40_129, %c0_130], %129 {strides = array<i32>} : memref<72x256xf32, #tpu.memory_space<vmem>>, vector<8x256xf32>,
    %c241_i32_131 = arith.constant 241 : i32
    %131 = tpu.dynamic_rotate %104 by %c241_i32_131 dim 1 : vector<8x256xf32>, i32 -> vector<8x256xf32>
    %c6_132 = arith.constant 6 : index
    %c0_133 = arith.constant 0 : index
    %c0_134 = arith.constant 0 : index
    %132 = vector.load %arg4[%c6_132, %c0_133, %c0_134] : memref<9x8x256xf32, #tpu.memory_space<vmem>>, vector<1x8x256xf32>
    %133 = vector.shape_cast %132 : vector<1x8x256xf32> to vector<8x256xf32>
    %134 = arith.mulf %131, %133 : vector<8x256xf32>
    %c48_135 = arith.constant 48 : index
    %c0_136 = arith.constant 0 : index
    %135 = vector.load %arg6[%c48_135, %c0_136] : memref<72x256xf32, #tpu.memory_space<vmem>>, vector<8x256xf32>
    tpu.vector_store %arg6[%c48_135, %c0_136], %134 {strides = array<i32>} : memref<72x256xf32, #tpu.memory_space<vmem>>, vector<8x256xf32>,
    %c240_i32_137 = arith.constant 240 : i32
    %136 = tpu.dynamic_rotate %104 by %c240_i32_137 dim 1 : vector<8x256xf32>, i32 -> vector<8x256xf32>
    %c7_138 = arith.constant 7 : index
    %c0_139 = arith.constant 0 : index
    %c0_140 = arith.constant 0 : index
    %137 = vector.load %arg4[%c7_138, %c0_139, %c0_140] : memref<9x8x256xf32, #tpu.memory_space<vmem>>, vector<1x8x256xf32>
    %138 = vector.shape_cast %137 : vector<1x8x256xf32> to vector<8x256xf32>
    %139 = arith.mulf %136, %138 : vector<8x256xf32>
    %c56_141 = arith.constant 56 : index
    %c0_142 = arith.constant 0 : index
    %140 = vector.load %arg6[%c56_141, %c0_142] : memref<72x256xf32, #tpu.memory_space<vmem>>, vector<8x256xf32>
    tpu.vector_store %arg6[%c56_141, %c0_142], %139 {strides = array<i32>} : memref<72x256xf32, #tpu.memory_space<vmem>>, vector<8x256xf32>,
    %c239_i32_143 = arith.constant 239 : i32
    %141 = tpu.dynamic_rotate %104 by %c239_i32_143 dim 1 : vector<8x256xf32>, i32 -> vector<8x256xf32>
    %c8_144 = arith.constant 8 : index
    %c0_145 = arith.constant 0 : index
    %c0_146 = arith.constant 0 : index
    %142 = vector.load %arg4[%c8_144, %c0_145, %c0_146] : memref<9x8x256xf32, #tpu.memory_space<vmem>>, vector<1x8x256xf32>
    %143 = vector.shape_cast %142 : vector<1x8x256xf32> to vector<8x256xf32>
    %144 = arith.mulf %141, %143 : vector<8x256xf32>
    %c64_147 = arith.constant 64 : index
    %c0_148 = arith.constant 0 : index
    %145 = vector.load %arg6[%c64_147, %c0_148] : memref<72x256xf32, #tpu.memory_space<vmem>>, vector<8x256xf32>
    tpu.vector_store %arg6[%c64_147, %c0_148], %144 {strides = array<i32>} : memref<72x256xf32, #tpu.memory_space<vmem>>, vector<8x256xf32>,
    %c2_149 = arith.constant 2 : index
    %c0_150 = arith.constant 0 : index
    %c0_151 = arith.constant 0 : index
    %146 = vector.load %arg2[%c2_149, %c0_150, %c0_151] : memref<9x8x72xf32, #tpu.memory_space<vmem>>, vector<1x8x72xf32>
    %147 = vector.shape_cast %146 : vector<1x8x72xf32> to vector<8x72xf32>
    %c0_152 = arith.constant 0 : index
    %c0_153 = arith.constant 0 : index
    %148 = vector.load %arg6[%c0_152, %c0_153] : memref<72x256xf32, #tpu.memory_space<vmem>>, vector<72x256xf32>
    %cst_154 = arith.constant dense<0.000000e+00> : vector<8x256xf32>
    %149 = tpu.matmul %147, %148, %cst_154 {dimension_numbers = #tpu.dot_dimension_numbers<[1], [0], [0], [1], [0, 0, 1, 1], [], []>, precision = #tpu.contract_precision<fp32>} : vector<8x72xf32>, vector<72x256xf32>, vector<8x256xf32> -> vector<8x256xf32>
    %c2_155 = arith.constant 2 : index
    %c0_156 = arith.constant 0 : index
    %c0_157 = arith.constant 0 : index
    %150 = vector.load %arg3[%c2_155, %c0_156, %c0_157] : memref<9x8x1xf32, #tpu.memory_space<vmem>>, vector<1x8x1xf32>
    %151 = vector.shape_cast %150 : vector<1x8x1xf32> to vector<8x1xf32>
    %152 = vector.broadcast %151 : vector<8x1xf32> to vector<8x256xf32>
    %153 = arith.addf %149, %152 : vector<8x256xf32>
    %154 = arith.addf %50, %153 : vector<8x256xf32>
    %c17_i32_158 = arith.constant 17 : i32
    %155 = tpu.dynamic_rotate %154 by %c17_i32_158 dim 1 : vector<8x256xf32>, i32 -> vector<8x256xf32>
    %c0_159 = arith.constant 0 : index
    %c0_160 = arith.constant 0 : index
    %c0_161 = arith.constant 0 : index
    %156 = vector.load %arg4[%c0_159, %c0_160, %c0_161] : memref<9x8x256xf32, #tpu.memory_space<vmem>>, vector<1x8x256xf32>
    %157 = vector.shape_cast %156 : vector<1x8x256xf32> to vector<8x256xf32>
    %158 = arith.mulf %155, %157 : vector<8x256xf32>
    %c0_162 = arith.constant 0 : index
    %c0_163 = arith.constant 0 : index
    %159 = vector.load %arg6[%c0_162, %c0_163] : memref<72x256xf32, #tpu.memory_space<vmem>>, vector<8x256xf32>
    tpu.vector_store %arg6[%c0_162, %c0_163], %158 {strides = array<i32>} : memref<72x256xf32, #tpu.memory_space<vmem>>, vector<8x256xf32>,
    %c16_i32_164 = arith.constant 16 : i32
    %160 = tpu.dynamic_rotate %154 by %c16_i32_164 dim 1 : vector<8x256xf32>, i32 -> vector<8x256xf32>
    %c1_165 = arith.constant 1 : index
    %c0_166 = arith.constant 0 : index
    %c0_167 = arith.constant 0 : index
    %161 = vector.load %arg4[%c1_165, %c0_166, %c0_167] : memref<9x8x256xf32, #tpu.memory_space<vmem>>, vector<1x8x256xf32>
    %162 = vector.shape_cast %161 : vector<1x8x256xf32> to vector<8x256xf32>
    %163 = arith.mulf %160, %162 : vector<8x256xf32>
    %c8_168 = arith.constant 8 : index
    %c0_169 = arith.constant 0 : index
    %164 = vector.load %arg6[%c8_168, %c0_169] : memref<72x256xf32, #tpu.memory_space<vmem>>, vector<8x256xf32>
    tpu.vector_store %arg6[%c8_168, %c0_169], %163 {strides = array<i32>} : memref<72x256xf32, #tpu.memory_space<vmem>>, vector<8x256xf32>,
    %c15_i32_170 = arith.constant 15 : i32
    %165 = tpu.dynamic_rotate %154 by %c15_i32_170 dim 1 : vector<8x256xf32>, i32 -> vector<8x256xf32>
    %c2_171 = arith.constant 2 : index
    %c0_172 = arith.constant 0 : index
    %c0_173 = arith.constant 0 : index
    %166 = vector.load %arg4[%c2_171, %c0_172, %c0_173] : memref<9x8x256xf32, #tpu.memory_space<vmem>>, vector<1x8x256xf32>
    %167 = vector.shape_cast %166 : vector<1x8x256xf32> to vector<8x256xf32>
    %168 = arith.mulf %165, %167 : vector<8x256xf32>
    %c16_174 = arith.constant 16 : index
    %c0_175 = arith.constant 0 : index
    %169 = vector.load %arg6[%c16_174, %c0_175] : memref<72x256xf32, #tpu.memory_space<vmem>>, vector<8x256xf32>
    tpu.vector_store %arg6[%c16_174, %c0_175], %168 {strides = array<i32>} : memref<72x256xf32, #tpu.memory_space<vmem>>, vector<8x256xf32>,
    %c1_i32_176 = arith.constant 1 : i32
    %170 = tpu.dynamic_rotate %154 by %c1_i32_176 dim 1 : vector<8x256xf32>, i32 -> vector<8x256xf32>
    %c3_177 = arith.constant 3 : index
    %c0_178 = arith.constant 0 : index
    %c0_179 = arith.constant 0 : index
    %171 = vector.load %arg4[%c3_177, %c0_178, %c0_179] : memref<9x8x256xf32, #tpu.memory_space<vmem>>, vector<1x8x256xf32>
    %172 = vector.shape_cast %171 : vector<1x8x256xf32> to vector<8x256xf32>
    %173 = arith.mulf %170, %172 : vector<8x256xf32>
    %c24_180 = arith.constant 24 : index
    %c0_181 = arith.constant 0 : index
    %174 = vector.load %arg6[%c24_180, %c0_181] : memref<72x256xf32, #tpu.memory_space<vmem>>, vector<8x256xf32>
    tpu.vector_store %arg6[%c24_180, %c0_181], %173 {strides = array<i32>} : memref<72x256xf32, #tpu.memory_space<vmem>>, vector<8x256xf32>,
    %c32_182 = arith.constant 32 : index
    %c0_183 = arith.constant 0 : index
    %175 = vector.load %arg6[%c32_182, %c0_183] : memref<72x256xf32, #tpu.memory_space<vmem>>, vector<8x256xf32>
    tpu.vector_store %arg6[%c32_182, %c0_183], %154 {strides = array<i32>} : memref<72x256xf32, #tpu.memory_space<vmem>>, vector<8x256xf32>,
    %c255_i32_184 = arith.constant 255 : i32
    %176 = tpu.dynamic_rotate %154 by %c255_i32_184 dim 1 : vector<8x256xf32>, i32 -> vector<8x256xf32>
    %c5_185 = arith.constant 5 : index
    %c0_186 = arith.constant 0 : index
    %c0_187 = arith.constant 0 : index
    %177 = vector.load %arg4[%c5_185, %c0_186, %c0_187] : memref<9x8x256xf32, #tpu.memory_space<vmem>>, vector<1x8x256xf32>
    %178 = vector.shape_cast %177 : vector<1x8x256xf32> to vector<8x256xf32>
    %179 = arith.mulf %176, %178 : vector<8x256xf32>
    %c40_188 = arith.constant 40 : index
    %c0_189 = arith.constant 0 : index
    %180 = vector.load %arg6[%c40_188, %c0_189] : memref<72x256xf32, #tpu.memory_space<vmem>>, vector<8x256xf32>
    tpu.vector_store %arg6[%c40_188, %c0_189], %179 {strides = array<i32>} : memref<72x256xf32, #tpu.memory_space<vmem>>, vector<8x256xf32>,
    %c241_i32_190 = arith.constant 241 : i32
    %181 = tpu.dynamic_rotate %154 by %c241_i32_190 dim 1 : vector<8x256xf32>, i32 -> vector<8x256xf32>
    %c6_191 = arith.constant 6 : index
    %c0_192 = arith.constant 0 : index
    %c0_193 = arith.constant 0 : index
    %182 = vector.load %arg4[%c6_191, %c0_192, %c0_193] : memref<9x8x256xf32, #tpu.memory_space<vmem>>, vector<1x8x256xf32>
    %183 = vector.shape_cast %182 : vector<1x8x256xf32> to vector<8x256xf32>
    %184 = arith.mulf %181, %183 : vector<8x256xf32>
    %c48_194 = arith.constant 48 : index
    %c0_195 = arith.constant 0 : index
    %185 = vector.load %arg6[%c48_194, %c0_195] : memref<72x256xf32, #tpu.memory_space<vmem>>, vector<8x256xf32>
    tpu.vector_store %arg6[%c48_194, %c0_195], %184 {strides = array<i32>} : memref<72x256xf32, #tpu.memory_space<vmem>>, vector<8x256xf32>,
    %c240_i32_196 = arith.constant 240 : i32
    %186 = tpu.dynamic_rotate %154 by %c240_i32_196 dim 1 : vector<8x256xf32>, i32 -> vector<8x256xf32>
    %c7_197 = arith.constant 7 : index
    %c0_198 = arith.constant 0 : index
    %c0_199 = arith.constant 0 : index
    %187 = vector.load %arg4[%c7_197, %c0_198, %c0_199] : memref<9x8x256xf32, #tpu.memory_space<vmem>>, vector<1x8x256xf32>
    %188 = vector.shape_cast %187 : vector<1x8x256xf32> to vector<8x256xf32>
    %189 = arith.mulf %186, %188 : vector<8x256xf32>
    %c56_200 = arith.constant 56 : index
    %c0_201 = arith.constant 0 : index
    %190 = vector.load %arg6[%c56_200, %c0_201] : memref<72x256xf32, #tpu.memory_space<vmem>>, vector<8x256xf32>
    tpu.vector_store %arg6[%c56_200, %c0_201], %189 {strides = array<i32>} : memref<72x256xf32, #tpu.memory_space<vmem>>, vector<8x256xf32>,
    %c239_i32_202 = arith.constant 239 : i32
    %191 = tpu.dynamic_rotate %154 by %c239_i32_202 dim 1 : vector<8x256xf32>, i32 -> vector<8x256xf32>
    %c8_203 = arith.constant 8 : index
    %c0_204 = arith.constant 0 : index
    %c0_205 = arith.constant 0 : index
    %192 = vector.load %arg4[%c8_203, %c0_204, %c0_205] : memref<9x8x256xf32, #tpu.memory_space<vmem>>, vector<1x8x256xf32>
    %193 = vector.shape_cast %192 : vector<1x8x256xf32> to vector<8x256xf32>
    %194 = arith.mulf %191, %193 : vector<8x256xf32>
    %c64_206 = arith.constant 64 : index
    %c0_207 = arith.constant 0 : index
    %195 = vector.load %arg6[%c64_206, %c0_207] : memref<72x256xf32, #tpu.memory_space<vmem>>, vector<8x256xf32>
    tpu.vector_store %arg6[%c64_206, %c0_207], %194 {strides = array<i32>} : memref<72x256xf32, #tpu.memory_space<vmem>>, vector<8x256xf32>,
    %c3_208 = arith.constant 3 : index
    %c0_209 = arith.constant 0 : index
    %c0_210 = arith.constant 0 : index
    %196 = vector.load %arg2[%c3_208, %c0_209, %c0_210] : memref<9x8x72xf32, #tpu.memory_space<vmem>>, vector<1x8x72xf32>
    %197 = vector.shape_cast %196 : vector<1x8x72xf32> to vector<8x72xf32>
    %c0_211 = arith.constant 0 : index
    %c0_212 = arith.constant 0 : index
    %198 = vector.load %arg6[%c0_211, %c0_212] : memref<72x256xf32, #tpu.memory_space<vmem>>, vector<72x256xf32>
    %cst_213 = arith.constant dense<0.000000e+00> : vector<8x256xf32>
    %199 = tpu.matmul %197, %198, %cst_213 {dimension_numbers = #tpu.dot_dimension_numbers<[1], [0], [0], [1], [0, 0, 1, 1], [], []>, precision = #tpu.contract_precision<fp32>} : vector<8x72xf32>, vector<72x256xf32>, vector<8x256xf32> -> vector<8x256xf32>
    %c3_214 = arith.constant 3 : index
    %c0_215 = arith.constant 0 : index
    %c0_216 = arith.constant 0 : index
    %200 = vector.load %arg3[%c3_214, %c0_215, %c0_216] : memref<9x8x1xf32, #tpu.memory_space<vmem>>, vector<1x8x1xf32>
    %201 = vector.shape_cast %200 : vector<1x8x1xf32> to vector<8x1xf32>
    %202 = vector.broadcast %201 : vector<8x1xf32> to vector<8x256xf32>
    %203 = arith.addf %199, %202 : vector<8x256xf32>
    %c17_i32_217 = arith.constant 17 : i32
    %204 = tpu.dynamic_rotate %203 by %c17_i32_217 dim 1 : vector<8x256xf32>, i32 -> vector<8x256xf32>
    %c0_218 = arith.constant 0 : index
    %c0_219 = arith.constant 0 : index
    %c0_220 = arith.constant 0 : index
    %205 = vector.load %arg4[%c0_218, %c0_219, %c0_220] : memref<9x8x256xf32, #tpu.memory_space<vmem>>, vector<1x8x256xf32>
    %206 = vector.shape_cast %205 : vector<1x8x256xf32> to vector<8x256xf32>
    %207 = arith.mulf %204, %206 : vector<8x256xf32>
    %c0_221 = arith.constant 0 : index
    %c0_222 = arith.constant 0 : index
    %208 = vector.load %arg6[%c0_221, %c0_222] : memref<72x256xf32, #tpu.memory_space<vmem>>, vector<8x256xf32>
    tpu.vector_store %arg6[%c0_221, %c0_222], %207 {strides = array<i32>} : memref<72x256xf32, #tpu.memory_space<vmem>>, vector<8x256xf32>,
    %c16_i32_223 = arith.constant 16 : i32
    %209 = tpu.dynamic_rotate %203 by %c16_i32_223 dim 1 : vector<8x256xf32>, i32 -> vector<8x256xf32>
    %c1_224 = arith.constant 1 : index
    %c0_225 = arith.constant 0 : index
    %c0_226 = arith.constant 0 : index
    %210 = vector.load %arg4[%c1_224, %c0_225, %c0_226] : memref<9x8x256xf32, #tpu.memory_space<vmem>>, vector<1x8x256xf32>
    %211 = vector.shape_cast %210 : vector<1x8x256xf32> to vector<8x256xf32>
    %212 = arith.mulf %209, %211 : vector<8x256xf32>
    %c8_227 = arith.constant 8 : index
    %c0_228 = arith.constant 0 : index
    %213 = vector.load %arg6[%c8_227, %c0_228] : memref<72x256xf32, #tpu.memory_space<vmem>>, vector<8x256xf32>
    tpu.vector_store %arg6[%c8_227, %c0_228], %212 {strides = array<i32>} : memref<72x256xf32, #tpu.memory_space<vmem>>, vector<8x256xf32>,
    %c15_i32_229 = arith.constant 15 : i32
    %214 = tpu.dynamic_rotate %203 by %c15_i32_229 dim 1 : vector<8x256xf32>, i32 -> vector<8x256xf32>
    %c2_230 = arith.constant 2 : index
    %c0_231 = arith.constant 0 : index
    %c0_232 = arith.constant 0 : index
    %215 = vector.load %arg4[%c2_230, %c0_231, %c0_232] : memref<9x8x256xf32, #tpu.memory_space<vmem>>, vector<1x8x256xf32>
    %216 = vector.shape_cast %215 : vector<1x8x256xf32> to vector<8x256xf32>
    %217 = arith.mulf %214, %216 : vector<8x256xf32>
    %c16_233 = arith.constant 16 : index
    %c0_234 = arith.constant 0 : index
    %218 = vector.load %arg6[%c16_233, %c0_234] : memref<72x256xf32, #tpu.memory_space<vmem>>, vector<8x256xf32>
    tpu.vector_store %arg6[%c16_233, %c0_234], %217 {strides = array<i32>} : memref<72x256xf32, #tpu.memory_space<vmem>>, vector<8x256xf32>,
    %c1_i32_235 = arith.constant 1 : i32
    %219 = tpu.dynamic_rotate %203 by %c1_i32_235 dim 1 : vector<8x256xf32>, i32 -> vector<8x256xf32>
    %c3_236 = arith.constant 3 : index
    %c0_237 = arith.constant 0 : index
    %c0_238 = arith.constant 0 : index
    %220 = vector.load %arg4[%c3_236, %c0_237, %c0_238] : memref<9x8x256xf32, #tpu.memory_space<vmem>>, vector<1x8x256xf32>
    %221 = vector.shape_cast %220 : vector<1x8x256xf32> to vector<8x256xf32>
    %222 = arith.mulf %219, %221 : vector<8x256xf32>
    %c24_239 = arith.constant 24 : index
    %c0_240 = arith.constant 0 : index
    %223 = vector.load %arg6[%c24_239, %c0_240] : memref<72x256xf32, #tpu.memory_space<vmem>>, vector<8x256xf32>
    tpu.vector_store %arg6[%c24_239, %c0_240], %222 {strides = array<i32>} : memref<72x256xf32, #tpu.memory_space<vmem>>, vector<8x256xf32>,
    %c32_241 = arith.constant 32 : index
    %c0_242 = arith.constant 0 : index
    %224 = vector.load %arg6[%c32_241, %c0_242] : memref<72x256xf32, #tpu.memory_space<vmem>>, vector<8x256xf32>
    tpu.vector_store %arg6[%c32_241, %c0_242], %203 {strides = array<i32>} : memref<72x256xf32, #tpu.memory_space<vmem>>, vector<8x256xf32>,
    %c255_i32_243 = arith.constant 255 : i32
    %225 = tpu.dynamic_rotate %203 by %c255_i32_243 dim 1 : vector<8x256xf32>, i32 -> vector<8x256xf32>
    %c5_244 = arith.constant 5 : index
    %c0_245 = arith.constant 0 : index
    %c0_246 = arith.constant 0 : index
    %226 = vector.load %arg4[%c5_244, %c0_245, %c0_246] : memref<9x8x256xf32, #tpu.memory_space<vmem>>, vector<1x8x256xf32>
    %227 = vector.shape_cast %226 : vector<1x8x256xf32> to vector<8x256xf32>
    %228 = arith.mulf %225, %227 : vector<8x256xf32>
    %c40_247 = arith.constant 40 : index
    %c0_248 = arith.constant 0 : index
    %229 = vector.load %arg6[%c40_247, %c0_248] : memref<72x256xf32, #tpu.memory_space<vmem>>, vector<8x256xf32>
    tpu.vector_store %arg6[%c40_247, %c0_248], %228 {strides = array<i32>} : memref<72x256xf32, #tpu.memory_space<vmem>>, vector<8x256xf32>,
    %c241_i32_249 = arith.constant 241 : i32
    %230 = tpu.dynamic_rotate %203 by %c241_i32_249 dim 1 : vector<8x256xf32>, i32 -> vector<8x256xf32>
    %c6_250 = arith.constant 6 : index
    %c0_251 = arith.constant 0 : index
    %c0_252 = arith.constant 0 : index
    %231 = vector.load %arg4[%c6_250, %c0_251, %c0_252] : memref<9x8x256xf32, #tpu.memory_space<vmem>>, vector<1x8x256xf32>
    %232 = vector.shape_cast %231 : vector<1x8x256xf32> to vector<8x256xf32>
    %233 = arith.mulf %230, %232 : vector<8x256xf32>
    %c48_253 = arith.constant 48 : index
    %c0_254 = arith.constant 0 : index
    %234 = vector.load %arg6[%c48_253, %c0_254] : memref<72x256xf32, #tpu.memory_space<vmem>>, vector<8x256xf32>
    tpu.vector_store %arg6[%c48_253, %c0_254], %233 {strides = array<i32>} : memref<72x256xf32, #tpu.memory_space<vmem>>, vector<8x256xf32>,
    %c240_i32_255 = arith.constant 240 : i32
    %235 = tpu.dynamic_rotate %203 by %c240_i32_255 dim 1 : vector<8x256xf32>, i32 -> vector<8x256xf32>
    %c7_256 = arith.constant 7 : index
    %c0_257 = arith.constant 0 : index
    %c0_258 = arith.constant 0 : index
    %236 = vector.load %arg4[%c7_256, %c0_257, %c0_258] : memref<9x8x256xf32, #tpu.memory_space<vmem>>, vector<1x8x256xf32>
    %237 = vector.shape_cast %236 : vector<1x8x256xf32> to vector<8x256xf32>
    %238 = arith.mulf %235, %237 : vector<8x256xf32>
    %c56_259 = arith.constant 56 : index
    %c0_260 = arith.constant 0 : index
    %239 = vector.load %arg6[%c56_259, %c0_260] : memref<72x256xf32, #tpu.memory_space<vmem>>, vector<8x256xf32>
    tpu.vector_store %arg6[%c56_259, %c0_260], %238 {strides = array<i32>} : memref<72x256xf32, #tpu.memory_space<vmem>>, vector<8x256xf32>,
    %c239_i32_261 = arith.constant 239 : i32
    %240 = tpu.dynamic_rotate %203 by %c239_i32_261 dim 1 : vector<8x256xf32>, i32 -> vector<8x256xf32>
    %c8_262 = arith.constant 8 : index
    %c0_263 = arith.constant 0 : index
    %c0_264 = arith.constant 0 : index
    %241 = vector.load %arg4[%c8_262, %c0_263, %c0_264] : memref<9x8x256xf32, #tpu.memory_space<vmem>>, vector<1x8x256xf32>
    %242 = vector.shape_cast %241 : vector<1x8x256xf32> to vector<8x256xf32>
    %243 = arith.mulf %240, %242 : vector<8x256xf32>
    %c64_265 = arith.constant 64 : index
    %c0_266 = arith.constant 0 : index
    %244 = vector.load %arg6[%c64_265, %c0_266] : memref<72x256xf32, #tpu.memory_space<vmem>>, vector<8x256xf32>
    tpu.vector_store %arg6[%c64_265, %c0_266], %243 {strides = array<i32>} : memref<72x256xf32, #tpu.memory_space<vmem>>, vector<8x256xf32>,
    %c4 = arith.constant 4 : index
    %c0_267 = arith.constant 0 : index
    %c0_268 = arith.constant 0 : index
    %245 = vector.load %arg2[%c4, %c0_267, %c0_268] : memref<9x8x72xf32, #tpu.memory_space<vmem>>, vector<1x8x72xf32>
    %246 = vector.shape_cast %245 : vector<1x8x72xf32> to vector<8x72xf32>
    %c0_269 = arith.constant 0 : index
    %c0_270 = arith.constant 0 : index
    %247 = vector.load %arg6[%c0_269, %c0_270] : memref<72x256xf32, #tpu.memory_space<vmem>>, vector<72x256xf32>
    %cst_271 = arith.constant dense<0.000000e+00> : vector<8x256xf32>
    %248 = tpu.matmul %246, %247, %cst_271 {dimension_numbers = #tpu.dot_dimension_numbers<[1], [0], [0], [1], [0, 0, 1, 1], [], []>, precision = #tpu.contract_precision<fp32>} : vector<8x72xf32>, vector<72x256xf32>, vector<8x256xf32> -> vector<8x256xf32>
    %c4_272 = arith.constant 4 : index
    %c0_273 = arith.constant 0 : index
    %c0_274 = arith.constant 0 : index
    %249 = vector.load %arg3[%c4_272, %c0_273, %c0_274] : memref<9x8x1xf32, #tpu.memory_space<vmem>>, vector<1x8x1xf32>
    %250 = vector.shape_cast %249 : vector<1x8x1xf32> to vector<8x1xf32>
    %251 = vector.broadcast %250 : vector<8x1xf32> to vector<8x256xf32>
    %252 = arith.addf %248, %251 : vector<8x256xf32>
    %cst_275 = arith.constant 0.000000e+00 : f32
    %253 = vector.broadcast %cst_275 : f32 to vector<8x256xf32>
    %254 = arith.cmpf oge, %252, %253 : vector<8x256xf32>
    %cst_276 = arith.constant 0.00999999977 : f32
    %255 = vector.broadcast %cst_276 : f32 to vector<8x256xf32>
    %256 = arith.mulf %255, %252 : vector<8x256xf32>
    %257 = arith.select %254, %252, %256 : vector<8x256xi1>, vector<8x256xf32>
    %c17_i32_277 = arith.constant 17 : i32
    %258 = tpu.dynamic_rotate %257 by %c17_i32_277 dim 1 : vector<8x256xf32>, i32 -> vector<8x256xf32>
    %c0_278 = arith.constant 0 : index
    %c0_279 = arith.constant 0 : index
    %c0_280 = arith.constant 0 : index
    %259 = vector.load %arg4[%c0_278, %c0_279, %c0_280] : memref<9x8x256xf32, #tpu.memory_space<vmem>>, vector<1x8x256xf32>
    %260 = vector.shape_cast %259 : vector<1x8x256xf32> to vector<8x256xf32>
    %261 = arith.mulf %258, %260 : vector<8x256xf32>
    %c0_281 = arith.constant 0 : index
    %c0_282 = arith.constant 0 : index
    %262 = vector.load %arg6[%c0_281, %c0_282] : memref<72x256xf32, #tpu.memory_space<vmem>>, vector<8x256xf32>
    tpu.vector_store %arg6[%c0_281, %c0_282], %261 {strides = array<i32>} : memref<72x256xf32, #tpu.memory_space<vmem>>, vector<8x256xf32>,
    %c16_i32_283 = arith.constant 16 : i32
    %263 = tpu.dynamic_rotate %257 by %c16_i32_283 dim 1 : vector<8x256xf32>, i32 -> vector<8x256xf32>
    %c1_284 = arith.constant 1 : index
    %c0_285 = arith.constant 0 : index
    %c0_286 = arith.constant 0 : index
    %264 = vector.load %arg4[%c1_284, %c0_285, %c0_286] : memref<9x8x256xf32, #tpu.memory_space<vmem>>, vector<1x8x256xf32>
    %265 = vector.shape_cast %264 : vector<1x8x256xf32> to vector<8x256xf32>
    %266 = arith.mulf %263, %265 : vector<8x256xf32>
    %c8_287 = arith.constant 8 : index
    %c0_288 = arith.constant 0 : index
    %267 = vector.load %arg6[%c8_287, %c0_288] : memref<72x256xf32, #tpu.memory_space<vmem>>, vector<8x256xf32>
    tpu.vector_store %arg6[%c8_287, %c0_288], %266 {strides = array<i32>} : memref<72x256xf32, #tpu.memory_space<vmem>>, vector<8x256xf32>,
    %c15_i32_289 = arith.constant 15 : i32
    %268 = tpu.dynamic_rotate %257 by %c15_i32_289 dim 1 : vector<8x256xf32>, i32 -> vector<8x256xf32>
    %c2_290 = arith.constant 2 : index
    %c0_291 = arith.constant 0 : index
    %c0_292 = arith.constant 0 : index
    %269 = vector.load %arg4[%c2_290, %c0_291, %c0_292] : memref<9x8x256xf32, #tpu.memory_space<vmem>>, vector<1x8x256xf32>
    %270 = vector.shape_cast %269 : vector<1x8x256xf32> to vector<8x256xf32>
    %271 = arith.mulf %268, %270 : vector<8x256xf32>
    %c16_293 = arith.constant 16 : index
    %c0_294 = arith.constant 0 : index
    %272 = vector.load %arg6[%c16_293, %c0_294] : memref<72x256xf32, #tpu.memory_space<vmem>>, vector<8x256xf32>
    tpu.vector_store %arg6[%c16_293, %c0_294], %271 {strides = array<i32>} : memref<72x256xf32, #tpu.memory_space<vmem>>, vector<8x256xf32>,
    %c1_i32_295 = arith.constant 1 : i32
    %273 = tpu.dynamic_rotate %257 by %c1_i32_295 dim 1 : vector<8x256xf32>, i32 -> vector<8x256xf32>
    %c3_296 = arith.constant 3 : index
    %c0_297 = arith.constant 0 : index
    %c0_298 = arith.constant 0 : index
    %274 = vector.load %arg4[%c3_296, %c0_297, %c0_298] : memref<9x8x256xf32, #tpu.memory_space<vmem>>, vector<1x8x256xf32>
    %275 = vector.shape_cast %274 : vector<1x8x256xf32> to vector<8x256xf32>
    %276 = arith.mulf %273, %275 : vector<8x256xf32>
    %c24_299 = arith.constant 24 : index
    %c0_300 = arith.constant 0 : index
    %277 = vector.load %arg6[%c24_299, %c0_300] : memref<72x256xf32, #tpu.memory_space<vmem>>, vector<8x256xf32>
    tpu.vector_store %arg6[%c24_299, %c0_300], %276 {strides = array<i32>} : memref<72x256xf32, #tpu.memory_space<vmem>>, vector<8x256xf32>,
    %c32_301 = arith.constant 32 : index
    %c0_302 = arith.constant 0 : index
    %278 = vector.load %arg6[%c32_301, %c0_302] : memref<72x256xf32, #tpu.memory_space<vmem>>, vector<8x256xf32>
    tpu.vector_store %arg6[%c32_301, %c0_302], %257 {strides = array<i32>} : memref<72x256xf32, #tpu.memory_space<vmem>>, vector<8x256xf32>,
    %c255_i32_303 = arith.constant 255 : i32
    %279 = tpu.dynamic_rotate %257 by %c255_i32_303 dim 1 : vector<8x256xf32>, i32 -> vector<8x256xf32>
    %c5_304 = arith.constant 5 : index
    %c0_305 = arith.constant 0 : index
    %c0_306 = arith.constant 0 : index
    %280 = vector.load %arg4[%c5_304, %c0_305, %c0_306] : memref<9x8x256xf32, #tpu.memory_space<vmem>>, vector<1x8x256xf32>
    %281 = vector.shape_cast %280 : vector<1x8x256xf32> to vector<8x256xf32>
    %282 = arith.mulf %279, %281 : vector<8x256xf32>
    %c40_307 = arith.constant 40 : index
    %c0_308 = arith.constant 0 : index
    %283 = vector.load %arg6[%c40_307, %c0_308] : memref<72x256xf32, #tpu.memory_space<vmem>>, vector<8x256xf32>
    tpu.vector_store %arg6[%c40_307, %c0_308], %282 {strides = array<i32>} : memref<72x256xf32, #tpu.memory_space<vmem>>, vector<8x256xf32>,
    %c241_i32_309 = arith.constant 241 : i32
    %284 = tpu.dynamic_rotate %257 by %c241_i32_309 dim 1 : vector<8x256xf32>, i32 -> vector<8x256xf32>
    %c6_310 = arith.constant 6 : index
    %c0_311 = arith.constant 0 : index
    %c0_312 = arith.constant 0 : index
    %285 = vector.load %arg4[%c6_310, %c0_311, %c0_312] : memref<9x8x256xf32, #tpu.memory_space<vmem>>, vector<1x8x256xf32>
    %286 = vector.shape_cast %285 : vector<1x8x256xf32> to vector<8x256xf32>
    %287 = arith.mulf %284, %286 : vector<8x256xf32>
    %c48_313 = arith.constant 48 : index
    %c0_314 = arith.constant 0 : index
    %288 = vector.load %arg6[%c48_313, %c0_314] : memref<72x256xf32, #tpu.memory_space<vmem>>, vector<8x256xf32>
    tpu.vector_store %arg6[%c48_313, %c0_314], %287 {strides = array<i32>} : memref<72x256xf32, #tpu.memory_space<vmem>>, vector<8x256xf32>,
    %c240_i32_315 = arith.constant 240 : i32
    %289 = tpu.dynamic_rotate %257 by %c240_i32_315 dim 1 : vector<8x256xf32>, i32 -> vector<8x256xf32>
    %c7_316 = arith.constant 7 : index
    %c0_317 = arith.constant 0 : index
    %c0_318 = arith.constant 0 : index
    %290 = vector.load %arg4[%c7_316, %c0_317, %c0_318] : memref<9x8x256xf32, #tpu.memory_space<vmem>>, vector<1x8x256xf32>
    %291 = vector.shape_cast %290 : vector<1x8x256xf32> to vector<8x256xf32>
    %292 = arith.mulf %289, %291 : vector<8x256xf32>
    %c56_319 = arith.constant 56 : index
    %c0_320 = arith.constant 0 : index
    %293 = vector.load %arg6[%c56_319, %c0_320] : memref<72x256xf32, #tpu.memory_space<vmem>>, vector<8x256xf32>
    tpu.vector_store %arg6[%c56_319, %c0_320], %292 {strides = array<i32>} : memref<72x256xf32, #tpu.memory_space<vmem>>, vector<8x256xf32>,
    %c239_i32_321 = arith.constant 239 : i32
    %294 = tpu.dynamic_rotate %257 by %c239_i32_321 dim 1 : vector<8x256xf32>, i32 -> vector<8x256xf32>
    %c8_322 = arith.constant 8 : index
    %c0_323 = arith.constant 0 : index
    %c0_324 = arith.constant 0 : index
    %295 = vector.load %arg4[%c8_322, %c0_323, %c0_324] : memref<9x8x256xf32, #tpu.memory_space<vmem>>, vector<1x8x256xf32>
    %296 = vector.shape_cast %295 : vector<1x8x256xf32> to vector<8x256xf32>
    %297 = arith.mulf %294, %296 : vector<8x256xf32>
    %c64_325 = arith.constant 64 : index
    %c0_326 = arith.constant 0 : index
    %298 = vector.load %arg6[%c64_325, %c0_326] : memref<72x256xf32, #tpu.memory_space<vmem>>, vector<8x256xf32>
    tpu.vector_store %arg6[%c64_325, %c0_326], %297 {strides = array<i32>} : memref<72x256xf32, #tpu.memory_space<vmem>>, vector<8x256xf32>,
    %c5_327 = arith.constant 5 : index
    %c0_328 = arith.constant 0 : index
    %c0_329 = arith.constant 0 : index
    %299 = vector.load %arg2[%c5_327, %c0_328, %c0_329] : memref<9x8x72xf32, #tpu.memory_space<vmem>>, vector<1x8x72xf32>
    %300 = vector.shape_cast %299 : vector<1x8x72xf32> to vector<8x72xf32>
    %c0_330 = arith.constant 0 : index
    %c0_331 = arith.constant 0 : index
    %301 = vector.load %arg6[%c0_330, %c0_331] : memref<72x256xf32, #tpu.memory_space<vmem>>, vector<72x256xf32>
    %cst_332 = arith.constant dense<0.000000e+00> : vector<8x256xf32>
    %302 = tpu.matmul %300, %301, %cst_332 {dimension_numbers = #tpu.dot_dimension_numbers<[1], [0], [0], [1], [0, 0, 1, 1], [], []>, precision = #tpu.contract_precision<fp32>} : vector<8x72xf32>, vector<72x256xf32>, vector<8x256xf32> -> vector<8x256xf32>
    %c5_333 = arith.constant 5 : index
    %c0_334 = arith.constant 0 : index
    %c0_335 = arith.constant 0 : index
    %303 = vector.load %arg3[%c5_333, %c0_334, %c0_335] : memref<9x8x1xf32, #tpu.memory_space<vmem>>, vector<1x8x1xf32>
    %304 = vector.shape_cast %303 : vector<1x8x1xf32> to vector<8x1xf32>
    %305 = vector.broadcast %304 : vector<8x1xf32> to vector<8x256xf32>
    %306 = arith.addf %302, %305 : vector<8x256xf32>
    %307 = arith.addf %203, %306 : vector<8x256xf32>
    %c17_i32_336 = arith.constant 17 : i32
    %308 = tpu.dynamic_rotate %307 by %c17_i32_336 dim 1 : vector<8x256xf32>, i32 -> vector<8x256xf32>
    %c0_337 = arith.constant 0 : index
    %c0_338 = arith.constant 0 : index
    %c0_339 = arith.constant 0 : index
    %309 = vector.load %arg4[%c0_337, %c0_338, %c0_339] : memref<9x8x256xf32, #tpu.memory_space<vmem>>, vector<1x8x256xf32>
    %310 = vector.shape_cast %309 : vector<1x8x256xf32> to vector<8x256xf32>
    %311 = arith.mulf %308, %310 : vector<8x256xf32>
    %c0_340 = arith.constant 0 : index
    %c0_341 = arith.constant 0 : index
    %312 = vector.load %arg6[%c0_340, %c0_341] : memref<72x256xf32, #tpu.memory_space<vmem>>, vector<8x256xf32>
    tpu.vector_store %arg6[%c0_340, %c0_341], %311 {strides = array<i32>} : memref<72x256xf32, #tpu.memory_space<vmem>>, vector<8x256xf32>,
    %c16_i32_342 = arith.constant 16 : i32
    %313 = tpu.dynamic_rotate %307 by %c16_i32_342 dim 1 : vector<8x256xf32>, i32 -> vector<8x256xf32>
    %c1_343 = arith.constant 1 : index
    %c0_344 = arith.constant 0 : index
    %c0_345 = arith.constant 0 : index
    %314 = vector.load %arg4[%c1_343, %c0_344, %c0_345] : memref<9x8x256xf32, #tpu.memory_space<vmem>>, vector<1x8x256xf32>
    %315 = vector.shape_cast %314 : vector<1x8x256xf32> to vector<8x256xf32>
    %316 = arith.mulf %313, %315 : vector<8x256xf32>
    %c8_346 = arith.constant 8 : index
    %c0_347 = arith.constant 0 : index
    %317 = vector.load %arg6[%c8_346, %c0_347] : memref<72x256xf32, #tpu.memory_space<vmem>>, vector<8x256xf32>
    tpu.vector_store %arg6[%c8_346, %c0_347], %316 {strides = array<i32>} : memref<72x256xf32, #tpu.memory_space<vmem>>, vector<8x256xf32>,
    %c15_i32_348 = arith.constant 15 : i32
    %318 = tpu.dynamic_rotate %307 by %c15_i32_348 dim 1 : vector<8x256xf32>, i32 -> vector<8x256xf32>
    %c2_349 = arith.constant 2 : index
    %c0_350 = arith.constant 0 : index
    %c0_351 = arith.constant 0 : index
    %319 = vector.load %arg4[%c2_349, %c0_350, %c0_351] : memref<9x8x256xf32, #tpu.memory_space<vmem>>, vector<1x8x256xf32>
    %320 = vector.shape_cast %319 : vector<1x8x256xf32> to vector<8x256xf32>
    %321 = arith.mulf %318, %320 : vector<8x256xf32>
    %c16_352 = arith.constant 16 : index
    %c0_353 = arith.constant 0 : index
    %322 = vector.load %arg6[%c16_352, %c0_353] : memref<72x256xf32, #tpu.memory_space<vmem>>, vector<8x256xf32>
    tpu.vector_store %arg6[%c16_352, %c0_353], %321 {strides = array<i32>} : memref<72x256xf32, #tpu.memory_space<vmem>>, vector<8x256xf32>,
    %c1_i32_354 = arith.constant 1 : i32
    %323 = tpu.dynamic_rotate %307 by %c1_i32_354 dim 1 : vector<8x256xf32>, i32 -> vector<8x256xf32>
    %c3_355 = arith.constant 3 : index
    %c0_356 = arith.constant 0 : index
    %c0_357 = arith.constant 0 : index
    %324 = vector.load %arg4[%c3_355, %c0_356, %c0_357] : memref<9x8x256xf32, #tpu.memory_space<vmem>>, vector<1x8x256xf32>
    %325 = vector.shape_cast %324 : vector<1x8x256xf32> to vector<8x256xf32>
    %326 = arith.mulf %323, %325 : vector<8x256xf32>
    %c24_358 = arith.constant 24 : index
    %c0_359 = arith.constant 0 : index
    %327 = vector.load %arg6[%c24_358, %c0_359] : memref<72x256xf32, #tpu.memory_space<vmem>>, vector<8x256xf32>
    tpu.vector_store %arg6[%c24_358, %c0_359], %326 {strides = array<i32>} : memref<72x256xf32, #tpu.memory_space<vmem>>, vector<8x256xf32>,
    %c32_360 = arith.constant 32 : index
    %c0_361 = arith.constant 0 : index
    %328 = vector.load %arg6[%c32_360, %c0_361] : memref<72x256xf32, #tpu.memory_space<vmem>>, vector<8x256xf32>
    tpu.vector_store %arg6[%c32_360, %c0_361], %307 {strides = array<i32>} : memref<72x256xf32, #tpu.memory_space<vmem>>, vector<8x256xf32>,
    %c255_i32_362 = arith.constant 255 : i32
    %329 = tpu.dynamic_rotate %307 by %c255_i32_362 dim 1 : vector<8x256xf32>, i32 -> vector<8x256xf32>
    %c5_363 = arith.constant 5 : index
    %c0_364 = arith.constant 0 : index
    %c0_365 = arith.constant 0 : index
    %330 = vector.load %arg4[%c5_363, %c0_364, %c0_365] : memref<9x8x256xf32, #tpu.memory_space<vmem>>, vector<1x8x256xf32>
    %331 = vector.shape_cast %330 : vector<1x8x256xf32> to vector<8x256xf32>
    %332 = arith.mulf %329, %331 : vector<8x256xf32>
    %c40_366 = arith.constant 40 : index
    %c0_367 = arith.constant 0 : index
    %333 = vector.load %arg6[%c40_366, %c0_367] : memref<72x256xf32, #tpu.memory_space<vmem>>, vector<8x256xf32>
    tpu.vector_store %arg6[%c40_366, %c0_367], %332 {strides = array<i32>} : memref<72x256xf32, #tpu.memory_space<vmem>>, vector<8x256xf32>,
    %c241_i32_368 = arith.constant 241 : i32
    %334 = tpu.dynamic_rotate %307 by %c241_i32_368 dim 1 : vector<8x256xf32>, i32 -> vector<8x256xf32>
    %c6_369 = arith.constant 6 : index
    %c0_370 = arith.constant 0 : index
    %c0_371 = arith.constant 0 : index
    %335 = vector.load %arg4[%c6_369, %c0_370, %c0_371] : memref<9x8x256xf32, #tpu.memory_space<vmem>>, vector<1x8x256xf32>
    %336 = vector.shape_cast %335 : vector<1x8x256xf32> to vector<8x256xf32>
    %337 = arith.mulf %334, %336 : vector<8x256xf32>
    %c48_372 = arith.constant 48 : index
    %c0_373 = arith.constant 0 : index
    %338 = vector.load %arg6[%c48_372, %c0_373] : memref<72x256xf32, #tpu.memory_space<vmem>>, vector<8x256xf32>
    tpu.vector_store %arg6[%c48_372, %c0_373], %337 {strides = array<i32>} : memref<72x256xf32, #tpu.memory_space<vmem>>, vector<8x256xf32>,
    %c240_i32_374 = arith.constant 240 : i32
    %339 = tpu.dynamic_rotate %307 by %c240_i32_374 dim 1 : vector<8x256xf32>, i32 -> vector<8x256xf32>
    %c7_375 = arith.constant 7 : index
    %c0_376 = arith.constant 0 : index
    %c0_377 = arith.constant 0 : index
    %340 = vector.load %arg4[%c7_375, %c0_376, %c0_377] : memref<9x8x256xf32, #tpu.memory_space<vmem>>, vector<1x8x256xf32>
    %341 = vector.shape_cast %340 : vector<1x8x256xf32> to vector<8x256xf32>
    %342 = arith.mulf %339, %341 : vector<8x256xf32>
    %c56_378 = arith.constant 56 : index
    %c0_379 = arith.constant 0 : index
    %343 = vector.load %arg6[%c56_378, %c0_379] : memref<72x256xf32, #tpu.memory_space<vmem>>, vector<8x256xf32>
    tpu.vector_store %arg6[%c56_378, %c0_379], %342 {strides = array<i32>} : memref<72x256xf32, #tpu.memory_space<vmem>>, vector<8x256xf32>,
    %c239_i32_380 = arith.constant 239 : i32
    %344 = tpu.dynamic_rotate %307 by %c239_i32_380 dim 1 : vector<8x256xf32>, i32 -> vector<8x256xf32>
    %c8_381 = arith.constant 8 : index
    %c0_382 = arith.constant 0 : index
    %c0_383 = arith.constant 0 : index
    %345 = vector.load %arg4[%c8_381, %c0_382, %c0_383] : memref<9x8x256xf32, #tpu.memory_space<vmem>>, vector<1x8x256xf32>
    %346 = vector.shape_cast %345 : vector<1x8x256xf32> to vector<8x256xf32>
    %347 = arith.mulf %344, %346 : vector<8x256xf32>
    %c64_384 = arith.constant 64 : index
    %c0_385 = arith.constant 0 : index
    %348 = vector.load %arg6[%c64_384, %c0_385] : memref<72x256xf32, #tpu.memory_space<vmem>>, vector<8x256xf32>
    tpu.vector_store %arg6[%c64_384, %c0_385], %347 {strides = array<i32>} : memref<72x256xf32, #tpu.memory_space<vmem>>, vector<8x256xf32>,
    %c6_386 = arith.constant 6 : index
    %c0_387 = arith.constant 0 : index
    %c0_388 = arith.constant 0 : index
    %349 = vector.load %arg2[%c6_386, %c0_387, %c0_388] : memref<9x8x72xf32, #tpu.memory_space<vmem>>, vector<1x8x72xf32>
    %350 = vector.shape_cast %349 : vector<1x8x72xf32> to vector<8x72xf32>
    %c0_389 = arith.constant 0 : index
    %c0_390 = arith.constant 0 : index
    %351 = vector.load %arg6[%c0_389, %c0_390] : memref<72x256xf32, #tpu.memory_space<vmem>>, vector<72x256xf32>
    %cst_391 = arith.constant dense<0.000000e+00> : vector<8x256xf32>
    %352 = tpu.matmul %350, %351, %cst_391 {dimension_numbers = #tpu.dot_dimension_numbers<[1], [0], [0], [1], [0, 0, 1, 1], [], []>, precision = #tpu.contract_precision<fp32>} : vector<8x72xf32>, vector<72x256xf32>, vector<8x256xf32> -> vector<8x256xf32>
    %c6_392 = arith.constant 6 : index
    %c0_393 = arith.constant 0 : index
    %c0_394 = arith.constant 0 : index
    %353 = vector.load %arg3[%c6_392, %c0_393, %c0_394] : memref<9x8x1xf32, #tpu.memory_space<vmem>>, vector<1x8x1xf32>
    %354 = vector.shape_cast %353 : vector<1x8x1xf32> to vector<8x1xf32>
    %355 = vector.broadcast %354 : vector<8x1xf32> to vector<8x256xf32>
    %356 = arith.addf %352, %355 : vector<8x256xf32>
    %c17_i32_395 = arith.constant 17 : i32
    %357 = tpu.dynamic_rotate %356 by %c17_i32_395 dim 1 : vector<8x256xf32>, i32 -> vector<8x256xf32>
    %c0_396 = arith.constant 0 : index
    %c0_397 = arith.constant 0 : index
    %c0_398 = arith.constant 0 : index
    %358 = vector.load %arg4[%c0_396, %c0_397, %c0_398] : memref<9x8x256xf32, #tpu.memory_space<vmem>>, vector<1x8x256xf32>
    %359 = vector.shape_cast %358 : vector<1x8x256xf32> to vector<8x256xf32>
    %360 = arith.mulf %357, %359 : vector<8x256xf32>
    %c0_399 = arith.constant 0 : index
    %c0_400 = arith.constant 0 : index
    %361 = vector.load %arg6[%c0_399, %c0_400] : memref<72x256xf32, #tpu.memory_space<vmem>>, vector<8x256xf32>
    tpu.vector_store %arg6[%c0_399, %c0_400], %360 {strides = array<i32>} : memref<72x256xf32, #tpu.memory_space<vmem>>, vector<8x256xf32>,
    %c16_i32_401 = arith.constant 16 : i32
    %362 = tpu.dynamic_rotate %356 by %c16_i32_401 dim 1 : vector<8x256xf32>, i32 -> vector<8x256xf32>
    %c1_402 = arith.constant 1 : index
    %c0_403 = arith.constant 0 : index
    %c0_404 = arith.constant 0 : index
    %363 = vector.load %arg4[%c1_402, %c0_403, %c0_404] : memref<9x8x256xf32, #tpu.memory_space<vmem>>, vector<1x8x256xf32>
    %364 = vector.shape_cast %363 : vector<1x8x256xf32> to vector<8x256xf32>
    %365 = arith.mulf %362, %364 : vector<8x256xf32>
    %c8_405 = arith.constant 8 : index
    %c0_406 = arith.constant 0 : index
    %366 = vector.load %arg6[%c8_405, %c0_406] : memref<72x256xf32, #tpu.memory_space<vmem>>, vector<8x256xf32>
    tpu.vector_store %arg6[%c8_405, %c0_406], %365 {strides = array<i32>} : memref<72x256xf32, #tpu.memory_space<vmem>>, vector<8x256xf32>,
    %c15_i32_407 = arith.constant 15 : i32
    %367 = tpu.dynamic_rotate %356 by %c15_i32_407 dim 1 : vector<8x256xf32>, i32 -> vector<8x256xf32>
    %c2_408 = arith.constant 2 : index
    %c0_409 = arith.constant 0 : index
    %c0_410 = arith.constant 0 : index
    %368 = vector.load %arg4[%c2_408, %c0_409, %c0_410] : memref<9x8x256xf32, #tpu.memory_space<vmem>>, vector<1x8x256xf32>
    %369 = vector.shape_cast %368 : vector<1x8x256xf32> to vector<8x256xf32>
    %370 = arith.mulf %367, %369 : vector<8x256xf32>
    %c16_411 = arith.constant 16 : index
    %c0_412 = arith.constant 0 : index
    %371 = vector.load %arg6[%c16_411, %c0_412] : memref<72x256xf32, #tpu.memory_space<vmem>>, vector<8x256xf32>
    tpu.vector_store %arg6[%c16_411, %c0_412], %370 {strides = array<i32>} : memref<72x256xf32, #tpu.memory_space<vmem>>, vector<8x256xf32>,
    %c1_i32_413 = arith.constant 1 : i32
    %372 = tpu.dynamic_rotate %356 by %c1_i32_413 dim 1 : vector<8x256xf32>, i32 -> vector<8x256xf32>
    %c3_414 = arith.constant 3 : index
    %c0_415 = arith.constant 0 : index
    %c0_416 = arith.constant 0 : index
    %373 = vector.load %arg4[%c3_414, %c0_415, %c0_416] : memref<9x8x256xf32, #tpu.memory_space<vmem>>, vector<1x8x256xf32>
    %374 = vector.shape_cast %373 : vector<1x8x256xf32> to vector<8x256xf32>
    %375 = arith.mulf %372, %374 : vector<8x256xf32>
    %c24_417 = arith.constant 24 : index
    %c0_418 = arith.constant 0 : index
    %376 = vector.load %arg6[%c24_417, %c0_418] : memref<72x256xf32, #tpu.memory_space<vmem>>, vector<8x256xf32>
    tpu.vector_store %arg6[%c24_417, %c0_418], %375 {strides = array<i32>} : memref<72x256xf32, #tpu.memory_space<vmem>>, vector<8x256xf32>,
    %c32_419 = arith.constant 32 : index
    %c0_420 = arith.constant 0 : index
    %377 = vector.load %arg6[%c32_419, %c0_420] : memref<72x256xf32, #tpu.memory_space<vmem>>, vector<8x256xf32>
    tpu.vector_store %arg6[%c32_419, %c0_420], %356 {strides = array<i32>} : memref<72x256xf32, #tpu.memory_space<vmem>>, vector<8x256xf32>,
    %c255_i32_421 = arith.constant 255 : i32
    %378 = tpu.dynamic_rotate %356 by %c255_i32_421 dim 1 : vector<8x256xf32>, i32 -> vector<8x256xf32>
    %c5_422 = arith.constant 5 : index
    %c0_423 = arith.constant 0 : index
    %c0_424 = arith.constant 0 : index
    %379 = vector.load %arg4[%c5_422, %c0_423, %c0_424] : memref<9x8x256xf32, #tpu.memory_space<vmem>>, vector<1x8x256xf32>
    %380 = vector.shape_cast %379 : vector<1x8x256xf32> to vector<8x256xf32>
    %381 = arith.mulf %378, %380 : vector<8x256xf32>
    %c40_425 = arith.constant 40 : index
    %c0_426 = arith.constant 0 : index
    %382 = vector.load %arg6[%c40_425, %c0_426] : memref<72x256xf32, #tpu.memory_space<vmem>>, vector<8x256xf32>
    tpu.vector_store %arg6[%c40_425, %c0_426], %381 {strides = array<i32>} : memref<72x256xf32, #tpu.memory_space<vmem>>, vector<8x256xf32>,
    %c241_i32_427 = arith.constant 241 : i32
    %383 = tpu.dynamic_rotate %356 by %c241_i32_427 dim 1 : vector<8x256xf32>, i32 -> vector<8x256xf32>
    %c6_428 = arith.constant 6 : index
    %c0_429 = arith.constant 0 : index
    %c0_430 = arith.constant 0 : index
    %384 = vector.load %arg4[%c6_428, %c0_429, %c0_430] : memref<9x8x256xf32, #tpu.memory_space<vmem>>, vector<1x8x256xf32>
    %385 = vector.shape_cast %384 : vector<1x8x256xf32> to vector<8x256xf32>
    %386 = arith.mulf %383, %385 : vector<8x256xf32>
    %c48_431 = arith.constant 48 : index
    %c0_432 = arith.constant 0 : index
    %387 = vector.load %arg6[%c48_431, %c0_432] : memref<72x256xf32, #tpu.memory_space<vmem>>, vector<8x256xf32>
    tpu.vector_store %arg6[%c48_431, %c0_432], %386 {strides = array<i32>} : memref<72x256xf32, #tpu.memory_space<vmem>>, vector<8x256xf32>,
    %c240_i32_433 = arith.constant 240 : i32
    %388 = tpu.dynamic_rotate %356 by %c240_i32_433 dim 1 : vector<8x256xf32>, i32 -> vector<8x256xf32>
    %c7_434 = arith.constant 7 : index
    %c0_435 = arith.constant 0 : index
    %c0_436 = arith.constant 0 : index
    %389 = vector.load %arg4[%c7_434, %c0_435, %c0_436] : memref<9x8x256xf32, #tpu.memory_space<vmem>>, vector<1x8x256xf32>
    %390 = vector.shape_cast %389 : vector<1x8x256xf32> to vector<8x256xf32>
    %391 = arith.mulf %388, %390 : vector<8x256xf32>
    %c56_437 = arith.constant 56 : index
    %c0_438 = arith.constant 0 : index
    %392 = vector.load %arg6[%c56_437, %c0_438] : memref<72x256xf32, #tpu.memory_space<vmem>>, vector<8x256xf32>
    tpu.vector_store %arg6[%c56_437, %c0_438], %391 {strides = array<i32>} : memref<72x256xf32, #tpu.memory_space<vmem>>, vector<8x256xf32>,
    %c239_i32_439 = arith.constant 239 : i32
    %393 = tpu.dynamic_rotate %356 by %c239_i32_439 dim 1 : vector<8x256xf32>, i32 -> vector<8x256xf32>
    %c8_440 = arith.constant 8 : index
    %c0_441 = arith.constant 0 : index
    %c0_442 = arith.constant 0 : index
    %394 = vector.load %arg4[%c8_440, %c0_441, %c0_442] : memref<9x8x256xf32, #tpu.memory_space<vmem>>, vector<1x8x256xf32>
    %395 = vector.shape_cast %394 : vector<1x8x256xf32> to vector<8x256xf32>
    %396 = arith.mulf %393, %395 : vector<8x256xf32>
    %c64_443 = arith.constant 64 : index
    %c0_444 = arith.constant 0 : index
    %397 = vector.load %arg6[%c64_443, %c0_444] : memref<72x256xf32, #tpu.memory_space<vmem>>, vector<8x256xf32>
    tpu.vector_store %arg6[%c64_443, %c0_444], %396 {strides = array<i32>} : memref<72x256xf32, #tpu.memory_space<vmem>>, vector<8x256xf32>,
    %c7_445 = arith.constant 7 : index
    %c0_446 = arith.constant 0 : index
    %c0_447 = arith.constant 0 : index
    %398 = vector.load %arg2[%c7_445, %c0_446, %c0_447] : memref<9x8x72xf32, #tpu.memory_space<vmem>>, vector<1x8x72xf32>
    %399 = vector.shape_cast %398 : vector<1x8x72xf32> to vector<8x72xf32>
    %c0_448 = arith.constant 0 : index
    %c0_449 = arith.constant 0 : index
    %400 = vector.load %arg6[%c0_448, %c0_449] : memref<72x256xf32, #tpu.memory_space<vmem>>, vector<72x256xf32>
    %cst_450 = arith.constant dense<0.000000e+00> : vector<8x256xf32>
    %401 = tpu.matmul %399, %400, %cst_450 {dimension_numbers = #tpu.dot_dimension_numbers<[1], [0], [0], [1], [0, 0, 1, 1], [], []>, precision = #tpu.contract_precision<fp32>} : vector<8x72xf32>, vector<72x256xf32>, vector<8x256xf32> -> vector<8x256xf32>
    %c7_451 = arith.constant 7 : index
    %c0_452 = arith.constant 0 : index
    %c0_453 = arith.constant 0 : index
    %402 = vector.load %arg3[%c7_451, %c0_452, %c0_453] : memref<9x8x1xf32, #tpu.memory_space<vmem>>, vector<1x8x1xf32>
    %403 = vector.shape_cast %402 : vector<1x8x1xf32> to vector<8x1xf32>
    %404 = vector.broadcast %403 : vector<8x1xf32> to vector<8x256xf32>
    %405 = arith.addf %401, %404 : vector<8x256xf32>
    %cst_454 = arith.constant 0.000000e+00 : f32
    %406 = vector.broadcast %cst_454 : f32 to vector<8x256xf32>
    %407 = arith.cmpf oge, %405, %406 : vector<8x256xf32>
    %cst_455 = arith.constant 0.00999999977 : f32
    %408 = vector.broadcast %cst_455 : f32 to vector<8x256xf32>
    %409 = arith.mulf %408, %405 : vector<8x256xf32>
    %410 = arith.select %407, %405, %409 : vector<8x256xi1>, vector<8x256xf32>
    %c17_i32_456 = arith.constant 17 : i32
    %411 = tpu.dynamic_rotate %410 by %c17_i32_456 dim 1 : vector<8x256xf32>, i32 -> vector<8x256xf32>
    %c0_457 = arith.constant 0 : index
    %c0_458 = arith.constant 0 : index
    %c0_459 = arith.constant 0 : index
    %412 = vector.load %arg4[%c0_457, %c0_458, %c0_459] : memref<9x8x256xf32, #tpu.memory_space<vmem>>, vector<1x8x256xf32>
    %413 = vector.shape_cast %412 : vector<1x8x256xf32> to vector<8x256xf32>
    %414 = arith.mulf %411, %413 : vector<8x256xf32>
    %c0_460 = arith.constant 0 : index
    %c0_461 = arith.constant 0 : index
    %415 = vector.load %arg6[%c0_460, %c0_461] : memref<72x256xf32, #tpu.memory_space<vmem>>, vector<8x256xf32>
    tpu.vector_store %arg6[%c0_460, %c0_461], %414 {strides = array<i32>} : memref<72x256xf32, #tpu.memory_space<vmem>>, vector<8x256xf32>,
    %c16_i32_462 = arith.constant 16 : i32
    %416 = tpu.dynamic_rotate %410 by %c16_i32_462 dim 1 : vector<8x256xf32>, i32 -> vector<8x256xf32>
    %c1_463 = arith.constant 1 : index
    %c0_464 = arith.constant 0 : index
    %c0_465 = arith.constant 0 : index
    %417 = vector.load %arg4[%c1_463, %c0_464, %c0_465] : memref<9x8x256xf32, #tpu.memory_space<vmem>>, vector<1x8x256xf32>
    %418 = vector.shape_cast %417 : vector<1x8x256xf32> to vector<8x256xf32>
    %419 = arith.mulf %416, %418 : vector<8x256xf32>
    %c8_466 = arith.constant 8 : index
    %c0_467 = arith.constant 0 : index
    %420 = vector.load %arg6[%c8_466, %c0_467] : memref<72x256xf32, #tpu.memory_space<vmem>>, vector<8x256xf32>
    tpu.vector_store %arg6[%c8_466, %c0_467], %419 {strides = array<i32>} : memref<72x256xf32, #tpu.memory_space<vmem>>, vector<8x256xf32>,
    %c15_i32_468 = arith.constant 15 : i32
    %421 = tpu.dynamic_rotate %410 by %c15_i32_468 dim 1 : vector<8x256xf32>, i32 -> vector<8x256xf32>
    %c2_469 = arith.constant 2 : index
    %c0_470 = arith.constant 0 : index
    %c0_471 = arith.constant 0 : index
    %422 = vector.load %arg4[%c2_469, %c0_470, %c0_471] : memref<9x8x256xf32, #tpu.memory_space<vmem>>, vector<1x8x256xf32>
    %423 = vector.shape_cast %422 : vector<1x8x256xf32> to vector<8x256xf32>
    %424 = arith.mulf %421, %423 : vector<8x256xf32>
    %c16_472 = arith.constant 16 : index
    %c0_473 = arith.constant 0 : index
    %425 = vector.load %arg6[%c16_472, %c0_473] : memref<72x256xf32, #tpu.memory_space<vmem>>, vector<8x256xf32>
    tpu.vector_store %arg6[%c16_472, %c0_473], %424 {strides = array<i32>} : memref<72x256xf32, #tpu.memory_space<vmem>>, vector<8x256xf32>,
    %c1_i32_474 = arith.constant 1 : i32
    %426 = tpu.dynamic_rotate %410 by %c1_i32_474 dim 1 : vector<8x256xf32>, i32 -> vector<8x256xf32>
    %c3_475 = arith.constant 3 : index
    %c0_476 = arith.constant 0 : index
    %c0_477 = arith.constant 0 : index
    %427 = vector.load %arg4[%c3_475, %c0_476, %c0_477] : memref<9x8x256xf32, #tpu.memory_space<vmem>>, vector<1x8x256xf32>
    %428 = vector.shape_cast %427 : vector<1x8x256xf32> to vector<8x256xf32>
    %429 = arith.mulf %426, %428 : vector<8x256xf32>
    %c24_478 = arith.constant 24 : index
    %c0_479 = arith.constant 0 : index
    %430 = vector.load %arg6[%c24_478, %c0_479] : memref<72x256xf32, #tpu.memory_space<vmem>>, vector<8x256xf32>
    tpu.vector_store %arg6[%c24_478, %c0_479], %429 {strides = array<i32>} : memref<72x256xf32, #tpu.memory_space<vmem>>, vector<8x256xf32>,
    %c32_480 = arith.constant 32 : index
    %c0_481 = arith.constant 0 : index
    %431 = vector.load %arg6[%c32_480, %c0_481] : memref<72x256xf32, #tpu.memory_space<vmem>>, vector<8x256xf32>
    tpu.vector_store %arg6[%c32_480, %c0_481], %410 {strides = array<i32>} : memref<72x256xf32, #tpu.memory_space<vmem>>, vector<8x256xf32>,
    %c255_i32_482 = arith.constant 255 : i32
    %432 = tpu.dynamic_rotate %410 by %c255_i32_482 dim 1 : vector<8x256xf32>, i32 -> vector<8x256xf32>
    %c5_483 = arith.constant 5 : index
    %c0_484 = arith.constant 0 : index
    %c0_485 = arith.constant 0 : index
    %433 = vector.load %arg4[%c5_483, %c0_484, %c0_485] : memref<9x8x256xf32, #tpu.memory_space<vmem>>, vector<1x8x256xf32>
    %434 = vector.shape_cast %433 : vector<1x8x256xf32> to vector<8x256xf32>
    %435 = arith.mulf %432, %434 : vector<8x256xf32>
    %c40_486 = arith.constant 40 : index
    %c0_487 = arith.constant 0 : index
    %436 = vector.load %arg6[%c40_486, %c0_487] : memref<72x256xf32, #tpu.memory_space<vmem>>, vector<8x256xf32>
    tpu.vector_store %arg6[%c40_486, %c0_487], %435 {strides = array<i32>} : memref<72x256xf32, #tpu.memory_space<vmem>>, vector<8x256xf32>,
    %c241_i32_488 = arith.constant 241 : i32
    %437 = tpu.dynamic_rotate %410 by %c241_i32_488 dim 1 : vector<8x256xf32>, i32 -> vector<8x256xf32>
    %c6_489 = arith.constant 6 : index
    %c0_490 = arith.constant 0 : index
    %c0_491 = arith.constant 0 : index
    %438 = vector.load %arg4[%c6_489, %c0_490, %c0_491] : memref<9x8x256xf32, #tpu.memory_space<vmem>>, vector<1x8x256xf32>
    %439 = vector.shape_cast %438 : vector<1x8x256xf32> to vector<8x256xf32>
    %440 = arith.mulf %437, %439 : vector<8x256xf32>
    %c48_492 = arith.constant 48 : index
    %c0_493 = arith.constant 0 : index
    %441 = vector.load %arg6[%c48_492, %c0_493] : memref<72x256xf32, #tpu.memory_space<vmem>>, vector<8x256xf32>
    tpu.vector_store %arg6[%c48_492, %c0_493], %440 {strides = array<i32>} : memref<72x256xf32, #tpu.memory_space<vmem>>, vector<8x256xf32>,
    %c240_i32_494 = arith.constant 240 : i32
    %442 = tpu.dynamic_rotate %410 by %c240_i32_494 dim 1 : vector<8x256xf32>, i32 -> vector<8x256xf32>
    %c7_495 = arith.constant 7 : index
    %c0_496 = arith.constant 0 : index
    %c0_497 = arith.constant 0 : index
    %443 = vector.load %arg4[%c7_495, %c0_496, %c0_497] : memref<9x8x256xf32, #tpu.memory_space<vmem>>, vector<1x8x256xf32>
    %444 = vector.shape_cast %443 : vector<1x8x256xf32> to vector<8x256xf32>
    %445 = arith.mulf %442, %444 : vector<8x256xf32>
    %c56_498 = arith.constant 56 : index
    %c0_499 = arith.constant 0 : index
    %446 = vector.load %arg6[%c56_498, %c0_499] : memref<72x256xf32, #tpu.memory_space<vmem>>, vector<8x256xf32>
    tpu.vector_store %arg6[%c56_498, %c0_499], %445 {strides = array<i32>} : memref<72x256xf32, #tpu.memory_space<vmem>>, vector<8x256xf32>,
    %c239_i32_500 = arith.constant 239 : i32
    %447 = tpu.dynamic_rotate %410 by %c239_i32_500 dim 1 : vector<8x256xf32>, i32 -> vector<8x256xf32>
    %c8_501 = arith.constant 8 : index
    %c0_502 = arith.constant 0 : index
    %c0_503 = arith.constant 0 : index
    %448 = vector.load %arg4[%c8_501, %c0_502, %c0_503] : memref<9x8x256xf32, #tpu.memory_space<vmem>>, vector<1x8x256xf32>
    %449 = vector.shape_cast %448 : vector<1x8x256xf32> to vector<8x256xf32>
    %450 = arith.mulf %447, %449 : vector<8x256xf32>
    %c64_504 = arith.constant 64 : index
    %c0_505 = arith.constant 0 : index
    %451 = vector.load %arg6[%c64_504, %c0_505] : memref<72x256xf32, #tpu.memory_space<vmem>>, vector<8x256xf32>
    tpu.vector_store %arg6[%c64_504, %c0_505], %450 {strides = array<i32>} : memref<72x256xf32, #tpu.memory_space<vmem>>, vector<8x256xf32>,
    %c8_506 = arith.constant 8 : index
    %c0_507 = arith.constant 0 : index
    %c0_508 = arith.constant 0 : index
    %452 = vector.load %arg2[%c8_506, %c0_507, %c0_508] : memref<9x8x72xf32, #tpu.memory_space<vmem>>, vector<1x8x72xf32>
    %453 = vector.shape_cast %452 : vector<1x8x72xf32> to vector<8x72xf32>
    %c0_509 = arith.constant 0 : index
    %c0_510 = arith.constant 0 : index
    %454 = vector.load %arg6[%c0_509, %c0_510] : memref<72x256xf32, #tpu.memory_space<vmem>>, vector<72x256xf32>
    %cst_511 = arith.constant dense<0.000000e+00> : vector<8x256xf32>
    %455 = tpu.matmul %453, %454, %cst_511 {dimension_numbers = #tpu.dot_dimension_numbers<[1], [0], [0], [1], [0, 0, 1, 1], [], []>, precision = #tpu.contract_precision<fp32>} : vector<8x72xf32>, vector<72x256xf32>, vector<8x256xf32> -> vector<8x256xf32>
    %c8_512 = arith.constant 8 : index
    %c0_513 = arith.constant 0 : index
    %c0_514 = arith.constant 0 : index
    %456 = vector.load %arg3[%c8_512, %c0_513, %c0_514] : memref<9x8x1xf32, #tpu.memory_space<vmem>>, vector<1x8x1xf32>
    %457 = vector.shape_cast %456 : vector<1x8x1xf32> to vector<8x1xf32>
    %458 = vector.broadcast %457 : vector<8x1xf32> to vector<8x256xf32>
    %459 = arith.addf %455, %458 : vector<8x256xf32>
    %460 = arith.addf %356, %459 : vector<8x256xf32>
    %461 = vector.extract_strided_slice %460 {offsets = [0, 0], sizes = [4, 256], strides = [1, 1]} : vector<8x256xf32> to vector<4x256xf32>
    %c0_515 = arith.constant 0 : index
    %c0_516 = arith.constant 0 : index
    %c0_517 = arith.constant 0 : index
    %462 = vector.load %arg5[%c0_515, %c0_516, %c0_517] : memref<1x4x256xf32, #tpu.memory_space<vmem>>, vector<1x4x256xf32>
    %463 = vector.shape_cast %462 : vector<1x4x256xf32> to vector<4x256xf32>
    %464 = vector.shape_cast %461 : vector<4x256xf32> to vector<1x4x256xf32>
    tpu.vector_store %arg5[%c0_515, %c0_516, %c0_517], %464 {strides = array<i32>} : memref<1x4x256xf32, #tpu.memory_space<vmem>>, vector<1x4x256xf32>,
    return
  }
  func.func @transform_0(%arg0: i32) -> (i32, i32, i32) {
    %c0_i32 = arith.constant 0 : i32
    %c0_i32_0 = arith.constant 0 : i32
    %c0_i32_1 = arith.constant 0 : i32
    return %arg0, %c0_i32, %c0_i32_0 : i32, i32, i32
  }
  func.func @transform_1(%arg0: i32) -> (i32, i32, i32) {
    %c0_i32 = arith.constant 0 : i32
    %c0_i32_0 = arith.constant 0 : i32
    %c0_i32_1 = arith.constant 0 : i32
    %c0_i32_2 = arith.constant 0 : i32
    return %c0_i32, %c0_i32_0, %c0_i32_1 : i32, i32, i32
  }
  func.func @transform_2(%arg0: i32) -> (i32, i32, i32) {
    %c0_i32 = arith.constant 0 : i32
    %c0_i32_0 = arith.constant 0 : i32
    %c0_i32_1 = arith.constant 0 : i32
    %c0_i32_2 = arith.constant 0 : i32
    return %c0_i32, %c0_i32_0, %c0_i32_1 : i32, i32, i32
  }
  func.func @transform_3(%arg0: i32) -> (i32, i32, i32) {
    %c0_i32 = arith.constant 0 : i32
    %c0_i32_0 = arith.constant 0 : i32
    %c0_i32_1 = arith.constant 0 : i32
    %c0_i32_2 = arith.constant 0 : i32
    return %c0_i32, %c0_i32_0, %c0_i32_1 : i32, i32, i32
  }
  func.func @transform_4(%arg0: i32) -> (i32, i32, i32) {
    %c0_i32 = arith.constant 0 : i32
    %c0_i32_0 = arith.constant 0 : i32
    %c0_i32_1 = arith.constant 0 : i32
    return %arg0, %c0_i32, %c0_i32_0 : i32, i32, i32
  }
}

</mosaic_0001>

<llo_original>
// kernel: feature_extract_forward.1
$region0: #{feature_extract_forward.1}
  #allocation0 [shape = 'u32[]', space=smem, size = 0x4, offset = 0x4, fixed_abs, tag = 'smem constant byte address 0x4 - core index']
  #allocation1 [shape = 'u32[144,128]{1,0:T(1,128)}', space=vmem, size = 0x12000, scoped, tag = 'internal scratch']
  #allocation2 [shape = 'f32[72,256]{1,0:T(8,128)}', space=vmem, size = 0x12000, scoped, tag = 'scratch operand']
  %s0 = inlined_call_operand.vmem [shape: f32[2,8,256], index: 0, kind: input, shape index: {}]
  %s1 = inlined_call_operand.vmem [shape: f32[9,8,72], index: 1, kind: input, shape index: {}]
  %s2 = inlined_call_operand.vmem [shape: f32[9,8,1], index: 2, kind: input, shape index: {}]
  %s3 = inlined_call_operand.vmem [shape: f32[9,8,256], index: 3, kind: input, shape index: {}]
  %s4 = inlined_call_operand.vmem [shape: f32[2,4,256], index: 4, kind: output, shape index: {}]
  %s5 = sld [smem:[#allocation0]]
  $region49: #{feature_extract_forward.1} parent=0
    _
  %s7 = ssub.s32 1, %s5
  %s8 = scalar_select 0, %s7, %s5
  loop: start=0, step=1, limit=4
  $region2: #{feature_extract_forward.1} parent=0 // loop_pre_header
    _
  $region3: #{feature_extract_forward.1} parent=0 // loop_header
    %s10 = sphi 0, %s14
    %p11 = scmp.ge.s32.totalorder %s10, 4
    %s20 = sphi 0, %s22
    %s23 = sphi 0, %s20
    %s24 = sphi 0, %s23
    %s40 = sphi 0, %s24
    %s44 = sphi 0, %s44
    %s46 = sphi 0, %s44
    %s47 = sphi 0, %s46
    %s61 = sphi 0, %s47
    %s65 = sphi 0, %s65
    %s67 = sphi 0, %s65
    %s68 = sphi 0, %s67
    %s82 = sphi 0, %s68
    %s86 = sphi 0, %s86
    %s88 = sphi 0, %s86
    %s89 = sphi 0, %s88
    %s103 = sphi 0, %s89
    %s109 = sphi 0, %s111
    %s112 = sphi 0, %s109
    %s113 = sphi 0, %s112
    %s129 = sphi 0, %s113
  $region4: #{feature_extract_forward.1} parent=0 // loop_header_branch
    %13 = sbr.rel (%p11) target = $region8
  $region5: #{feature_extract_forward.1} parent=0 // loop_body
    %s15 = ssub.s32 %s10, 1
    %s16 = ssub.s32 %s10, 2
    %s17 = sadd.s32 %s10, 1
    %s18 = ssub.s32 %s10, %s17
    %p19 = scmp.eq.s32.totalorder %s18, 0
    %s21 = sadd.s32 %s20, 1
    %s22 = scalar_select %p19, %s20, %s21
    %p25 = pneg %p19
    %p26 = scmp.eq.s32.totalorder %s10, 1
    %p27 = por %p25, %p26
    %p28 = scmp.ne.s32.totalorder %s20, %s23
    %p29 = scmp.eq.s32.totalorder %s10, 0
    %p30 = por %p28, %p29
    %p31 = scmp.ne.s32.totalorder %s20, %s23
    %p32 = scmp.eq.s32.totalorder %s15, 1
    %p33 = por %p31, %p32
    %p34 = scmp.ne.s32.totalorder %s23, %s24
    %p35 = scmp.eq.s32.totalorder %s15, 0
    %p36 = por %p34, %p35
    %p37 = scmp.ne.s32.totalorder %s23, %s24
    %p38 = scmp.eq.s32.totalorder %s16, 1
    %p39 = por %p37, %p38
    %p41 = scmp.ne.s32.totalorder %s24, %s40
    %p42 = scmp.eq.s32.totalorder %s16, 0
    %p43 = por %p41, %p42
    %s45 = sadd.s32 %s44, 1
    %p48 = scmp.eq.s32.totalorder %s10, 1
    %p49 = scmp.ne.s32.totalorder %s44, %s46
    %p50 = scmp.eq.s32.totalorder %s10, 0
    %p51 = por %p49, %p50
    %p52 = scmp.ne.s32.totalorder %s44, %s46
    %p53 = scmp.eq.s32.totalorder %s15, 1
    %p54 = por %p52, %p53
    %p55 = scmp.ne.s32.totalorder %s46, %s47
    %p56 = scmp.eq.s32.totalorder %s15, 0
    %p57 = por %p55, %p56
    %p58 = scmp.ne.s32.totalorder %s46, %s47
    %p59 = scmp.eq.s32.totalorder %s16, 1
    %p60 = por %p58, %p59
    %p62 = scmp.ne.s32.totalorder %s47, %s61
    %p63 = scmp.eq.s32.totalorder %s16, 0
    %p64 = por %p62, %p63
    %s66 = sadd.s32 %s65, 1
    %p69 = scmp.eq.s32.totalorder %s10, 1
    %p70 = scmp.ne.s32.totalorder %s65, %s67
    %p71 = scmp.eq.s32.totalorder %s10, 0
    %p72 = por %p70, %p71
    %p73 = scmp.ne.s32.totalorder %s65, %s67
    %p74 = scmp.eq.s32.totalorder %s15, 1
    %p75 = por %p73, %p74
    %p76 = scmp.ne.s32.totalorder %s67, %s68
    %p77 = scmp.eq.s32.totalorder %s15, 0
    %p78 = por %p76, %p77
    %p79 = scmp.ne.s32.totalorder %s67, %s68
    %p80 = scmp.eq.s32.totalorder %s16, 1
    %p81 = por %p79, %p80
    %p83 = scmp.ne.s32.totalorder %s68, %s82
    %p84 = scmp.eq.s32.totalorder %s16, 0
    %p85 = por %p83, %p84
    %s87 = sadd.s32 %s86, 1
    %p90 = scmp.eq.s32.totalorder %s10, 1
    %p91 = scmp.ne.s32.totalorder %s86, %s88
    %p92 = scmp.eq.s32.totalorder %s10, 0
    %p93 = por %p91, %p92
    %p94 = scmp.ne.s32.totalorder %s86, %s88
    %p95 = scmp.eq.s32.totalorder %s15, 1
    %p96 = por %p94, %p95
    %p97 = scmp.ne.s32.totalorder %s88, %s89
    %p98 = scmp.eq.s32.totalorder %s15, 0
    %p99 = por %p97, %p98
    %p100 = scmp.ne.s32.totalorder %s88, %s89
    %p101 = scmp.eq.s32.totalorder %s16, 1
    %p102 = por %p100, %p101
    %p104 = scmp.ne.s32.totalorder %s89, %s103
    %p105 = scmp.eq.s32.totalorder %s16, 0
    %p106 = por %p104, %p105
    %s107 = ssub.s32 %s10, %s17
    %p108 = scmp.eq.s32.totalorder %s107, 0
    %s110 = sadd.s32 %s109, 1
    %s111 = scalar_select %p108, %s109, %s110
    %p114 = pneg %p108
    %p115 = scmp.eq.s32.totalorder %s10, 1
    %p116 = por %p114, %p115
    %p117 = scmp.ne.s32.totalorder %s109, %s112
    %p118 = scmp.eq.s32.totalorder %s10, 0
    %p119 = por %p117, %p118
    %p120 = scmp.ne.s32.totalorder %s109, %s112
    %p121 = scmp.eq.s32.totalorder %s15, 1
    %p122 = por %p120, %p121
    %p123 = scmp.ne.s32.totalorder %s112, %s113
    %p124 = scmp.eq.s32.totalorder %s15, 0
    %p125 = por %p123, %p124
    %p126 = scmp.ne.s32.totalorder %s112, %s113
    %p127 = scmp.eq.s32.totalorder %s16, 1
    %p128 = por %p126, %p127
    %p130 = scmp.ne.s32.totalorder %s113, %s129
    %p131 = scmp.eq.s32.totalorder %s16, 0
    %p132 = por %p130, %p131
    %p133 = scmp.le.s32.totalorder 1, %s10
    %p134 = scmp.lt.s32.totalorder %s10, 3
    %p135 = pnand %p133, %p134
    %p136 = pneg %p135
    // Predicated region
    $region9: #{feature_extract_forward.1} parent=5 // pred_check
      _
    $region10: #{feature_extract_forward.1} parent=5 // pred_check_branch
      %138 = sbr.rel (%p135) target = $region12
    $region11: #{feature_extract_forward.1} parent=5 // pred_region
      %s139 = ssub.s32 %s10, 1
      // Predicated region
      $region13: #{feature_extract_forward.1} parent=11 // pred_check
        %p140 = pneg %p57
      $region14: #{feature_extract_forward.1} parent=11 // pred_check_branch
        %142 = sbr.rel (%p140) target = $region16
      $region15: #{feature_extract_forward.1} parent=11 // pred_region
        _
      $region16: #{feature_extract_forward.1} parent=11 // pred_fallthru
        _
      // Predicated region
      $region17: #{feature_extract_forward.1} parent=11 // pred_check
        %p143 = pneg %p78
      $region18: #{feature_extract_forward.1} parent=11 // pred_check_branch
        %145 = sbr.rel (%p143) target = $region20
      $region19: #{feature_extract_forward.1} parent=11 // pred_region
        _
      $region20: #{feature_extract_forward.1} parent=11 // pred_fallthru
        _
      // Predicated region
      $region21: #{feature_extract_forward.1} parent=11 // pred_check
        %p146 = pneg %p99
      $region22: #{feature_extract_forward.1} parent=11 // pred_check_branch
        %148 = sbr.rel (%p146) target = $region24
      $region23: #{feature_extract_forward.1} parent=11 // pred_region
        _
      $region24: #{feature_extract_forward.1} parent=11 // pred_fallthru
        _
    $region12: #{feature_extract_forward.1} parent=5 // pred_fallthru
      _
    %p149 = scmp.lt.s32.totalorder %s10, 2
    // Predicated region
    $region25: #{feature_extract_forward.1} parent=5 // pred_check
      %p150 = pneg %p149
    $region26: #{feature_extract_forward.1} parent=5 // pred_check_branch
      %152 = sbr.rel (%p150) target = $region28
    $region27: #{feature_extract_forward.1} parent=5 // pred_region
      // Predicated region
      $region29: #{feature_extract_forward.1} parent=27 // pred_check
        %p153 = pneg %p30
      $region30: #{feature_extract_forward.1} parent=27 // pred_check_branch
        %155 = sbr.rel (%p153) target = $region32
      $region31: #{feature_extract_forward.1} parent=27 // pred_region
        %p156 = scmp.lt.s32.totalorder %s10, 1
        %s157 = scalar_select %p156, %s10, 1
        %s158 = smul.addr %s157, 2
        %s159 = smul.addr %s158, 8
        %s160 = scalar_lea.vmem %s0, %s159
      $region32: #{feature_extract_forward.1} parent=27 // pred_fallthru
        _
    $region28: #{feature_extract_forward.1} parent=5 // pred_fallthru
      _
    %p161 = scmp.le.s32.totalorder 1, %s10
    %p162 = scmp.lt.s32.totalorder %s10, 3
    %p163 = pnand %p161, %p162
    %p164 = pneg %p163
    // Predicated region
    $region33: #{feature_extract_forward.1} parent=5 // pred_check
      _
    $region34: #{feature_extract_forward.1} parent=5 // pred_check_branch
      %166 = sbr.rel (%p163) target = $region36
    $region35: #{feature_extract_forward.1} parent=5 // pred_region
      %s167 = ssub.s32 %s10, 1
      %p168 = scmp.lt.s32.totalorder %s15, 1
      %s169 = scalar_select %p168, %s15, 1
      %s170 = smul.addr %s169, 2
      %s171 = smul.addr %s170, 8
      %s172 = scalar_lea.vmem %s0, %s171
      %p173 = pneg %p36
      %p174 = pneg %p33
      %p175 = pneg %p57
      %p176 = pneg %p54
      %p177 = pneg %p78
      %p178 = pneg %p75
      %p179 = pneg %p99
      %p180 = pneg %p96
      %p181 = pneg %p125
      %p182 = pneg %p122
      %p183 = scmp.lt.s32.totalorder %s15, 1
      %s184 = scalar_select %p183, %s15, 1
      %s185 = smul.addr %s184, 2
      %s186 = smul.addr %s185, 4
      %s187 = scalar_lea.vmem %s4, %s186
      %p188 = scmp.lt.s32.totalorder %s15, 1
      %s189 = scalar_select %p188, %s15, 1
      %s190 = smul.addr %s189, 2
      %s191 = smul.addr %s190, 8
      %s192 = scalar_lea.vmem %s0, %s191
      %p193 = scmp.lt.s32.totalorder %s15, 1
      %s194 = scalar_select %p193, %s15, 1
      %s195 = smul.addr %s194, 2
      %s196 = smul.addr %s195, 4
      %s197 = scalar_lea.vmem %s4, %s196
      %v198 = vld [vmem:[%s192] sm:$0xff]
      %v199 = vld [vmem:[%s192 + $0x8] sm:$0xff]
      %200 = vrot.lane.b32.xlu0 %v198, 17
      %v201 = vpop.permute.xlu0 %200
      %202 = vrot.lane.b32.xlu0 %v199, 17
      %v203 = vpop.permute.xlu0 %202
      %v204 = vlaneseq
      %v205 = vand.u32 %v204, 127
      %vm206 = vcmp.lt.s32.totalorder %v205, 17
      %v207 = vsel %vm206, %v201, %v203
      %v208 = vsel %vm206, %v203, %v201
      %v209 = vld [vmem:[%s3] sm:$0xff]
      %v210 = vld [vmem:[%s3 + $0x8] sm:$0xff]
      %v211 = vmul.f32 %v208, %v209
      %v212 = vmul.f32 %v207, %v210
      %213 = vst [vmem:[#allocation2] sm:$0xff] %v211
      %214 = vst [vmem:[#allocation2 + $0x8] sm:$0xff] %v212
      %215 = vrot.lane.b32.xlu0 %v198, 16
      %v216 = vpop.permute.xlu0 %215
      %217 = vrot.lane.b32.xlu0 %v199, 16
      %v218 = vpop.permute.xlu0 %217
      %vm219 = vcmp.lt.s32.totalorder %v205, 16
      %v220 = vsel %vm219, %v216, %v218
      %v221 = vsel %vm219, %v218, %v216
      %s222 = scalar_lea.vmem %s3, 16
      %v223 = vld [vmem:[%s222] sm:$0xff]
      %v224 = vld [vmem:[%s222 + $0x8] sm:$0xff]
      %v225 = vmul.f32 %v221, %v223
      %v226 = vmul.f32 %v220, %v224
      %227 = vst [vmem:[#allocation2 + $0x10] sm:$0xff] %v225
      %228 = vst [vmem:[#allocation2 + $0x18] sm:$0xff] %v226
      %229 = vrot.lane.b32.xlu0 %v198, 15
      %v230 = vpop.permute.xlu0 %229
      %231 = vrot.lane.b32.xlu0 %v199, 15
      %v232 = vpop.permute.xlu0 %231
      %vm233 = vcmp.lt.s32.totalorder %v205, 15
      %v234 = vsel %vm233, %v230, %v232
      %v235 = vsel %vm233, %v232, %v230
      %s236 = scalar_lea.vmem %s3, 32
      %v237 = vld [vmem:[%s236] sm:$0xff]
      %v238 = vld [vmem:[%s236 + $0x8] sm:$0xff]
      %v239 = vmul.f32 %v235, %v237
      %v240 = vmul.f32 %v234, %v238
      %241 = vst [vmem:[#allocation2 + $0x20] sm:$0xff] %v239
      %242 = vst [vmem:[#allocation2 + $0x28] sm:$0xff] %v240
      %243 = vrot.lane.b32.xlu0 %v198, 1
      %v244 = vpop.permute.xlu0 %243
      %245 = vrot.lane.b32.xlu0 %v199, 1
      %v246 = vpop.permute.xlu0 %245
      %vm247 = vcmp.lt.s32.totalorder %v205, 1
      %v248 = vsel %vm247, %v244, %v246
      %v249 = vsel %vm247, %v246, %v244
      %s250 = scalar_lea.vmem %s3, 48
      %v251 = vld [vmem:[%s250] sm:$0xff]
      %v252 = vld [vmem:[%s250 + $0x8] sm:$0xff]
      %v253 = vmul.f32 %v249, %v251
      %v254 = vmul.f32 %v248, %v252
      %255 = vst [vmem:[#allocation2 + $0x30] sm:$0xff] %v253
      %256 = vst [vmem:[#allocation2 + $0x38] sm:$0xff] %v254
      %257 = vst [vmem:[#allocation2 + $0x40] sm:$0xff] %v198
      %258 = vst [vmem:[#allocation2 + $0x48] sm:$0xff] %v199
      %259 = vrot.lane.b32.xlu0 %v198, 127
      %v260 = vpop.permute.xlu0 %259
      %261 = vrot.lane.b32.xlu0 %v199, 127
      %v262 = vpop.permute.xlu0 %261
      %vm263 = vcmp.lt.s32.totalorder %v205, 127
      %v264 = vsel %vm263, %v260, %v262
      %v265 = vsel %vm263, %v262, %v260
      %s266 = scalar_lea.vmem %s3, 80
      %v267 = vld [vmem:[%s266] sm:$0xff]
      %v268 = vld [vmem:[%s266 + $0x8] sm:$0xff]
      %v269 = vmul.f32 %v264, %v267
      %v270 = vmul.f32 %v265, %v268
      %271 = vst [vmem:[#allocation2 + $0x50] sm:$0xff] %v269
      %272 = vst [vmem:[#allocation2 + $0x58] sm:$0xff] %v270
      %273 = vrot.lane.b32.xlu0 %v198, 113
      %v274 = vpop.permute.xlu0 %273
      %275 = vrot.lane.b32.xlu0 %v199, 113
      %v276 = vpop.permute.xlu0 %275
      %vm277 = vcmp.lt.s32.totalorder %v205, 113
      %v278 = vsel %vm277, %v274, %v276
      %v279 = vsel %vm277, %v276, %v274
      %s280 = scalar_lea.vmem %s3, 96
      %v281 = vld [vmem:[%s280] sm:$0xff]
      %v282 = vld [vmem:[%s280 + $0x8] sm:$0xff]
      %v283 = vmul.f32 %v278, %v281
      %v284 = vmul.f32 %v279, %v282
      %285 = vst [vmem:[#allocation2 + $0x60] sm:$0xff] %v283
      %286 = vst [vmem:[#allocation2 + $0x68] sm:$0xff] %v284
      %287 = vrot.lane.b32.xlu0 %v198, 112
      %v288 = vpop.permute.xlu0 %287
      %289 = vrot.lane.b32.xlu0 %v199, 112
      %v290 = vpop.permute.xlu0 %289
      %vm291 = vcmp.lt.s32.totalorder %v205, 112
      %v292 = vsel %vm291, %v288, %v290
      %v293 = vsel %vm291, %v290, %v288
      %s294 = scalar_lea.vmem %s3, 112
      %v295 = vld [vmem:[%s294] sm:$0xff]
      %v296 = vld [vmem:[%s294 + $0x8] sm:$0xff]
      %v297 = vmul.f32 %v292, %v295
      %v298 = vmul.f32 %v293, %v296
      %299 = vst [vmem:[#allocation2 + $0x70] sm:$0xff] %v297
      %300 = vst [vmem:[#allocation2 + $0x78] sm:$0xff] %v298
      %301 = vrot.lane.b32.xlu0 %v198, 111
      %v302 = vpop.permute.xlu0 %301
      %303 = vrot.lane.b32.xlu0 %v199, 111
      %v304 = vpop.permute.xlu0 %303
      %vm305 = vcmp.lt.s32.totalorder %v205, 111
      %v306 = vsel %vm305, %v302, %v304
      %v307 = vsel %vm305, %v304, %v302
      %s308 = scalar_lea.vmem %s3, 128
      %v309 = vld [vmem:[%s308] sm:$0xff]
      %v310 = vld [vmem:[%s308 + $0x8] sm:$0xff]
      %v311 = vmul.f32 %v306, %v309
      %v312 = vmul.f32 %v307, %v310
      %313 = vst [vmem:[#allocation2 + $0x80] sm:$0xff] %v311
      %314 = vst [vmem:[#allocation2 + $0x88] sm:$0xff] %v312
      %v315 = vld [vmem:[%s1] sm:$0xff]
      %v316 = vld [vmem:[#allocation2] sm:$0xff]
      %v317 = vld [vmem:[#allocation2 + $0x8] sm:$0xff]
      %v318 = vld [vmem:[#allocation2 + $0x10] sm:$0xff]
      %v319 = vld [vmem:[#allocation2 + $0x18] sm:$0xff]
      %v320 = vld [vmem:[#allocation2 + $0x20] sm:$0xff]
      %v321 = vld [vmem:[#allocation2 + $0x28] sm:$0xff]
      %v322 = vld [vmem:[#allocation2 + $0x30] sm:$0xff]
      %v323 = vld [vmem:[#allocation2 + $0x38] sm:$0xff]
      %v324 = vld [vmem:[#allocation2 + $0x40] sm:$0xff]
      %v325 = vld [vmem:[#allocation2 + $0x48] sm:$0xff]
      %v326 = vld [vmem:[#allocation2 + $0x50] sm:$0xff]
      %v327 = vld [vmem:[#allocation2 + $0x58] sm:$0xff]
      %v328 = vld [vmem:[#allocation2 + $0x60] sm:$0xff]
      %v329 = vld [vmem:[#allocation2 + $0x68] sm:$0xff]
      %v330 = vld [vmem:[#allocation2 + $0x70] sm:$0xff]
      %v331 = vld [vmem:[#allocation2 + $0x78] sm:$0xff]
      %v332 = vld [vmem:[#allocation2 + $0x80] sm:$0xff]
      %v333 = vld [vmem:[#allocation2 + $0x88] sm:$0xff]
      %v334 = vld [vmem:[%s2] sm:$0xff]
      %336 = vset.pattern.permute.xlu0 0
      %337 = vperm.xlu0 %336, %v334
      %v338 = vpop.permute.xlu0 %337
      %vm340 = vcmask 588800
      %v342 = vsel %vm340, %v315, 0
      %v344 = vand.u32 %v317, 4294901760
      %345 = vmatprep.subr.mxu0 %v344
      %v346 = vand.u32 %v316, 4294901760
      %347 = vmatpush1.msra.mxu0 %v346
      %v348 = vand.u32 %v319, 4294901760
      %349 = vmatprep.subr.mxu0 %v348
      %v350 = vand.u32 %v318, 4294901760
      %351 = vmatpush1.msra.mxu0 %v350
      %v352 = vand.u32 %v321, 4294901760
      %353 = vmatprep.subr.mxu0 %v352
      %v354 = vand.u32 %v320, 4294901760
      %355 = vmatpush1.msra.mxu0 %v354
      %v356 = vand.u32 %v323, 4294901760
      %357 = vmatprep.subr.mxu0 %v356
      %v358 = vand.u32 %v322, 4294901760
      %359 = vmatpush1.msra.mxu0 %v358
      %v360 = vand.u32 %v325, 4294901760
      %361 = vmatprep.subr.mxu0 %v360
      %v362 = vand.u32 %v324, 4294901760
      %363 = vmatpush1.msra.mxu0 %v362
      %v364 = vand.u32 %v327, 4294901760
      %365 = vmatprep.subr.mxu0 %v364
      %v366 = vand.u32 %v326, 4294901760
      %367 = vmatpush1.msra.mxu0 %v366
      %v368 = vand.u32 %v329, 4294901760
      %369 = vmatprep.subr.mxu0 %v368
      %v370 = vand.u32 %v328, 4294901760
      %371 = vmatpush1.msra.mxu0 %v370
      %v372 = vand.u32 %v331, 4294901760
      %373 = vmatprep.subr.mxu0 %v372
      %v374 = vand.u32 %v330, 4294901760
      %375 = vmatpush1.msra.mxu0 %v374
      %v376 = vand.u32 %v333, 4294901760
      %377 = vmatprep.subr.mxu0 %v376
      %v378 = vand.u32 %v332, 4294901760
      %379 = vmatpush1.msra.mxu0 %v378
      %380 = vmatprep.subr.mxu0 0.0
      %381 = vmatpush1.msra.mxu0 0.0
      %382 = vmatprep.subr.mxu0 0.0
      %383 = vmatpush1.msra.mxu0 0.0
      %384 = vmatprep.subr.mxu0 0.0
      %385 = vmatpush1.msra.mxu0 0.0
      %386 = vmatprep.subr.mxu0 0.0
      %387 = vmatpush1.msra.mxu0 0.0
      %388 = vmatprep.subr.mxu0 0.0
      %389 = vmatpush1.msra.mxu0 0.0
      %390 = vmatprep.subr.mxu0 0.0
      %391 = vmatpush1.msra.mxu0 0.0
      %392 = vmatprep.subr.mxu0 0.0
      %393 = vmatpush1.msra.mxu0 0.0
      %394 = vmatprep.subr.mxu0 0.0
      %395 = vmatpush1.msra.mxu0 0.0
      %396 = vmatprep.subr.mxu0 0.0
      %397 = vmatpush1.msra.mxu0 0.0
      %398 = vmatprep.subr.mxu0 0.0
      %399 = vmatpush1.msra.mxu0 0.0
      %400 = vmatprep.subr.mxu0 0.0
      %401 = vmatpush1.msra.mxu0 0.0
      %402 = vmatprep.subr.mxu0 0.0
      %403 = vmatpush1.msra.mxu0 0.0
      %404 = vmatprep.subr.mxu0 0.0
      %405 = vmatpush1.msra.mxu0 0.0
      %406 = vmatprep.subr.mxu0 0.0
      %407 = vmatpush1.msra.mxu0 0.0
      %408 = vmatprep.subr.mxu0 0.0
      %409 = vmatpush1.msra.mxu0 0.0
      %410 = vmatprep.subr.mxu0 0.0
      %411 = vmatpush1.msra.mxu0 0.0
      %412 = vmatprep.subr.mxu0 0.0
      %413 = vmatpush1.msra.mxu0 0.0
      %414 = vmatprep.subr.mxu0 0.0
      %415 = vmatpush1.msra.mxu0 0.0
      %416 = vmatprep.subr.mxu0 0.0
      %417 = vmatpush1.msra.mxu0 0.0
      %418 = vmatprep.subr.mxu0 0.0
      %419 = vmatpush1.msra.mxu0 0.0
      %420 = vmatprep.subr.mxu0 0.0
      %421 = vmatpush1.msra.mxu0 0.0
      %422 = vmatprep.subr.mxu0 0.0
      %423 = vmatpush1.msra.mxu0 0.0
      %424 = vmatprep.subr.mxu0 0.0
      %425 = vmatpush1.msra.mxu0 0.0
      %426 = vmatprep.mubr.f32.mxu0 0.0
      %v427 = vand.u32 %v342, 4294901760
      %v428 = vsub.f32 %v342, %v427
      %v429 = vand.u32 %v428, 4294901760
      %v430 = vsub.f32 %v428, %v429
      %v431 = vand.u32 %v430, 4294901760
      %432 = vmatmul.mubr.f32.gmra.mrb[0].mxu0 %v431
      %v433 = vpop.f32.mrb[0].mxu0
      %v434 = vadd.f32 %v338, %v433
      %v435 = vpop.f32.mrb[0].mxu0
      %v436 = vadd.f32 %v338, %v435
      %437 = vdwg.mxu0
      %v438 = vand.u32 %v317, 4294901760
      %v439 = vsub.f32 %v317, %v438
      %v440 = vand.u32 %v439, 4294901760
      %v441 = vsub.f32 %v439, %v440
      %v442 = vand.u32 %v441, 4294901760
      %443 = vmatprep.subr.mxu0 %v442
      %v444 = vand.u32 %v316, 4294901760
      %v445 = vsub.f32 %v316, %v444
      %v446 = vand.u32 %v445, 4294901760
      %v447 = vsub.f32 %v445, %v446
      %v448 = vand.u32 %v447, 4294901760
      %449 = vmatpush1.msra.mxu0 %v448
      %v450 = vand.u32 %v319, 4294901760
      %v451 = vsub.f32 %v319, %v450
      %v452 = vand.u32 %v451, 4294901760
      %v453 = vsub.f32 %v451, %v452
      %v454 = vand.u32 %v453, 4294901760
      %455 = vmatprep.subr.mxu0 %v454
      %v456 = vand.u32 %v318, 4294901760
      %v457 = vsub.f32 %v318, %v456
      %v458 = vand.u32 %v457, 4294901760
      %v459 = vsub.f32 %v457, %v458
      %v460 = vand.u32 %v459, 4294901760
      %461 = vmatpush1.msra.mxu0 %v460
      %v462 = vand.u32 %v321, 4294901760
      %v463 = vsub.f32 %v321, %v462
      %v464 = vand.u32 %v463, 4294901760
      %v465 = vsub.f32 %v463, %v464
      %v466 = vand.u32 %v465, 4294901760
      %467 = vmatprep.subr.mxu0 %v466
      %v468 = vand.u32 %v320, 4294901760
      %v469 = vsub.f32 %v320, %v468
      %v470 = vand.u32 %v469, 4294901760
      %v471 = vsub.f32 %v469, %v470
      %v472 = vand.u32 %v471, 4294901760
      %473 = vmatpush1.msra.mxu0 %v472
      %v474 = vand.u32 %v323, 4294901760
      %v475 = vsub.f32 %v323, %v474
      %v476 = vand.u32 %v475, 4294901760
      %v477 = vsub.f32 %v475, %v476
      %v478 = vand.u32 %v477, 4294901760
      %479 = vmatprep.subr.mxu0 %v478
      %v480 = vand.u32 %v322, 4294901760
      %v481 = vsub.f32 %v322, %v480
      %v482 = vand.u32 %v481, 4294901760
      %v483 = vsub.f32 %v481, %v482
      %v484 = vand.u32 %v483, 4294901760
      %485 = vmatpush1.msra.mxu0 %v484
      %v486 = vand.u32 %v325, 4294901760
      %v487 = vsub.f32 %v325, %v486
      %v488 = vand.u32 %v487, 4294901760
      %v489 = vsub.f32 %v487, %v488
      %v490 = vand.u32 %v489, 4294901760
      %491 = vmatprep.subr.mxu0 %v490
      %v492 = vand.u32 %v324, 4294901760
      %v493 = vsub.f32 %v324, %v492
      %v494 = vand.u32 %v493, 4294901760
      %v495 = vsub.f32 %v493, %v494
      %v496 = vand.u32 %v495, 4294901760
      %497 = vmatpush1.msra.mxu0 %v496
      %v498 = vand.u32 %v327, 4294901760
      %v499 = vsub.f32 %v327, %v498
      %v500 = vand.u32 %v499, 4294901760
      %v501 = vsub.f32 %v499, %v500
      %v502 = vand.u32 %v501, 4294901760
      %503 = vmatprep.subr.mxu0 %v502
      %v504 = vand.u32 %v326, 4294901760
      %v505 = vsub.f32 %v326, %v504
      %v506 = vand.u32 %v505, 4294901760
      %v507 = vsub.f32 %v505, %v506
      %v508 = vand.u32 %v507, 4294901760
      %509 = vmatpush1.msra.mxu0 %v508
      %v510 = vand.u32 %v329, 4294901760
      %v511 = vsub.f32 %v329, %v510
      %v512 = vand.u32 %v511, 4294901760
      %v513 = vsub.f32 %v511, %v512
      %v514 = vand.u32 %v513, 4294901760
      %515 = vmatprep.subr.mxu0 %v514
      %v516 = vand.u32 %v328, 4294901760
      %v517 = vsub.f32 %v328, %v516
      %v518 = vand.u32 %v517, 4294901760
      %v519 = vsub.f32 %v517, %v518
      %v520 = vand.u32 %v519, 4294901760
      %521 = vmatpush1.msra.mxu0 %v520
      %v522 = vand.u32 %v331, 4294901760
      %v523 = vsub.f32 %v331, %v522
      %v524 = vand.u32 %v523, 4294901760
      %v525 = vsub.f32 %v523, %v524
      %v526 = vand.u32 %v525, 4294901760
      %527 = vmatprep.subr.mxu0 %v526
      %v528 = vand.u32 %v330, 4294901760
      %v529 = vsub.f32 %v330, %v528
      %v530 = vand.u32 %v529, 4294901760
      %v531 = vsub.f32 %v529, %v530
      %v532 = vand.u32 %v531, 4294901760
      %533 = vmatpush1.msra.mxu0 %v532
      %v534 = vand.u32 %v333, 4294901760
      %v535 = vsub.f32 %v333, %v534
      %v536 = vand.u32 %v535, 4294901760
      %v537 = vsub.f32 %v535, %v536
      %v538 = vand.u32 %v537, 4294901760
      %539 = vmatprep.subr.mxu0 %v538
      %v540 = vand.u32 %v332, 4294901760
      %v541 = vsub.f32 %v332, %v540
      %v542 = vand.u32 %v541, 4294901760
      %v543 = vsub.f32 %v541, %v542
      %v544 = vand.u32 %v543, 4294901760
      %545 = vmatpush1.msra.mxu0 %v544
      %546 = vmatprep.subr.mxu0 0.0
      %547 = vmatpush1.msra.mxu0 0.0
      %548 = vmatprep.subr.mxu0 0.0
      %549 = vmatpush1.msra.mxu0 0.0
      %550 = vmatprep.subr.mxu0 0.0
      %551 = vmatpush1.msra.mxu0 0.0
      %552 = vmatprep.subr.mxu0 0.0
      %553 = vmatpush1.msra.mxu0 0.0
      %554 = vmatprep.subr.mxu0 0.0
      %555 = vmatpush1.msra.mxu0 0.0
      %556 = vmatprep.subr.mxu0 0.0
      %557 = vmatpush1.msra.mxu0 0.0
      %558 = vmatprep.subr.mxu0 0.0
      %559 = vmatpush1.msra.mxu0 0.0
      %560 = vmatprep.subr.mxu0 0.0
      %561 = vmatpush1.msra.mxu0 0.0
      %562 = vmatprep.subr.mxu0 0.0
      %563 = vmatpush1.msra.mxu0 0.0
      %564 = vmatprep.subr.mxu0 0.0
      %565 = vmatpush1.msra.mxu0 0.0
      %566 = vmatprep.subr.mxu0 0.0
      %567 = vmatpush1.msra.mxu0 0.0
      %568 = vmatprep.subr.mxu0 0.0
      %569 = vmatpush1.msra.mxu0 0.0
      %570 = vmatprep.subr.mxu0 0.0
      %571 = vmatpush1.msra.mxu0 0.0
      %572 = vmatprep.subr.mxu0 0.0
      %573 = vmatpush1.msra.mxu0 0.0
      %574 = vmatprep.subr.mxu0 0.0
      %575 = vmatpush1.msra.mxu0 0.0
      %576 = vmatprep.subr.mxu0 0.0
      %577 = vmatpush1.msra.mxu0 0.0
      %578 = vmatprep.subr.mxu0 0.0
      %579 = vmatpush1.msra.mxu0 0.0
      %580 = vmatprep.subr.mxu0 0.0
      %581 = vmatpush1.msra.mxu0 0.0
      %582 = vmatprep.subr.mxu0 0.0
      %583 = vmatpush1.msra.mxu0 0.0
      %584 = vmatprep.subr.mxu0 0.0
      %585 = vmatpush1.msra.mxu0 0.0
      %586 = vmatprep.subr.mxu0 0.0
      %587 = vmatpush1.msra.mxu0 0.0
      %588 = vmatprep.subr.mxu0 0.0
      %589 = vmatpush1.msra.mxu0 0.0
      %590 = vmatprep.subr.mxu0 0.0
      %591 = vmatpush1.msra.mxu0 0.0
      %592 = vmatprep.mubr.f32.mxu0 0.0
      %v593 = vand.u32 %v342, 4294901760
      %594 = vmatmul.mubr.f32.gmra.mrb[0].mxu0 %v593
      %v595 = vpop.f32.mrb[0].mxu0
      %v596 = vadd.f32 %v434, %v595
      %v597 = vpop.f32.mrb[0].mxu0
      %v598 = vadd.f32 %v436, %v597
      %599 = vdwg.mxu0
      %v600 = vand.u32 %v317, 4294901760
      %v601 = vsub.f32 %v317, %v600
      %602 = vmatprep.subr.mxu0 %v601
      %v603 = vand.u32 %v316, 4294901760
      %v604 = vsub.f32 %v316, %v603
      %605 = vmatpush1.msra.mxu0 %v604
      %v606 = vand.u32 %v319, 4294901760
      %v607 = vsub.f32 %v319, %v606
      %608 = vmatprep.subr.mxu0 %v607
      %v609 = vand.u32 %v318, 4294901760
      %v610 = vsub.f32 %v318, %v609
      %611 = vmatpush1.msra.mxu0 %v610
      %v612 = vand.u32 %v321, 4294901760
      %v613 = vsub.f32 %v321, %v612
      %614 = vmatprep.subr.mxu0 %v613
      %v615 = vand.u32 %v320, 4294901760
      %v616 = vsub.f32 %v320, %v615
      %617 = vmatpush1.msra.mxu0 %v616
      %v618 = vand.u32 %v323, 4294901760
      %v619 = vsub.f32 %v323, %v618
      %620 = vmatprep.subr.mxu0 %v619
      %v621 = vand.u32 %v322, 4294901760
      %v622 = vsub.f32 %v322, %v621
      %623 = vmatpush1.msra.mxu0 %v622
      %v624 = vand.u32 %v325, 4294901760
      %v625 = vsub.f32 %v325, %v624
      %626 = vmatprep.subr.mxu0 %v625
      %v627 = vand.u32 %v324, 4294901760
      %v628 = vsub.f32 %v324, %v627
      %629 = vmatpush1.msra.mxu0 %v628
      %v630 = vand.u32 %v327, 4294901760
      %v631 = vsub.f32 %v327, %v630
      %632 = vmatprep.subr.mxu0 %v631
      %v633 = vand.u32 %v326, 4294901760
      %v634 = vsub.f32 %v326, %v633
      %635 = vmatpush1.msra.mxu0 %v634
      %v636 = vand.u32 %v329, 4294901760
      %v637 = vsub.f32 %v329, %v636
      %638 = vmatprep.subr.mxu0 %v637
      %v639 = vand.u32 %v328, 4294901760
      %v640 = vsub.f32 %v328, %v639
      %641 = vmatpush1.msra.mxu0 %v640
      %v642 = vand.u32 %v331, 4294901760
      %v643 = vsub.f32 %v331, %v642
      %644 = vmatprep.subr.mxu0 %v643
      %v645 = vand.u32 %v330, 4294901760
      %v646 = vsub.f32 %v330, %v645
      %647 = vmatpush1.msra.mxu0 %v646
      %v648 = vand.u32 %v333, 4294901760
      %v649 = vsub.f32 %v333, %v648
      %650 = vmatprep.subr.mxu0 %v649
      %v651 = vand.u32 %v332, 4294901760
      %v652 = vsub.f32 %v332, %v651
      %653 = vmatpush1.msra.mxu0 %v652
      %654 = vmatprep.subr.mxu0 0.0
      %655 = vmatpush1.msra.mxu0 0.0
      %656 = vmatprep.subr.mxu0 0.0
      %657 = vmatpush1.msra.mxu0 0.0
      %658 = vmatprep.subr.mxu0 0.0
      %659 = vmatpush1.msra.mxu0 0.0
      %660 = vmatprep.subr.mxu0 0.0
      %661 = vmatpush1.msra.mxu0 0.0
      %662 = vmatprep.subr.mxu0 0.0
      %663 = vmatpush1.msra.mxu0 0.0
      %664 = vmatprep.subr.mxu0 0.0
      %665 = vmatpush1.msra.mxu0 0.0
      %666 = vmatprep.subr.mxu0 0.0
      %667 = vmatpush1.msra.mxu0 0.0
      %668 = vmatprep.subr.mxu0 0.0
      %669 = vmatpush1.msra.mxu0 0.0
      %670 = vmatprep.subr.mxu0 0.0
      %671 = vmatpush1.msra.mxu0 0.0
      %672 = vmatprep.subr.mxu0 0.0
      %673 = vmatpush1.msra.mxu0 0.0
      %674 = vmatprep.subr.mxu0 0.0
      %675 = vmatpush1.msra.mxu0 0.0
      %676 = vmatprep.subr.mxu0 0.0
      %677 = vmatpush1.msra.mxu0 0.0
      %678 = vmatprep.subr.mxu0 0.0
      %679 = vmatpush1.msra.mxu0 0.0
      %680 = vmatprep.subr.mxu0 0.0
      %681 = vmatpush1.msra.mxu0 0.0
      %682 = vmatprep.subr.mxu0 0.0
      %683 = vmatpush1.msra.mxu0 0.0
      %684 = vmatprep.subr.mxu0 0.0
      %685 = vmatpush1.msra.mxu0 0.0
      %686 = vmatprep.subr.mxu0 0.0
      %687 = vmatpush1.msra.mxu0 0.0
      %688 = vmatprep.subr.mxu0 0.0
      %689 = vmatpush1.msra.mxu0 0.0
      %690 = vmatprep.subr.mxu0 0.0
      %691 = vmatpush1.msra.mxu0 0.0
      %692 = vmatprep.subr.mxu0 0.0
      %693 = vmatpush1.msra.mxu0 0.0
      %694 = vmatprep.subr.mxu0 0.0
      %695 = vmatpush1.msra.mxu0 0.0
      %696 = vmatprep.subr.mxu0 0.0
      %697 = vmatpush1.msra.mxu0 0.0
      %698 = vmatprep.subr.mxu0 0.0
      %699 = vmatpush1.msra.mxu0 0.0
      %700 = vmatprep.mubr.f32.mxu0 0.0
      %v701 = vand.u32 %v342, 4294901760
      %v702 = vsub.f32 %v342, %v701
      %703 = vmatmul.mubr.f32.gmra.mrb[0].mxu0 %v702
      %v704 = vpop.f32.mrb[0].mxu0
      %v705 = vadd.f32 %v596, %v704
      %v706 = vpop.f32.mrb[0].mxu0
      %v707 = vadd.f32 %v598, %v706
      %708 = vdwg.mxu0
      %v709 = vand.u32 %v317, 4294901760
      %710 = vmatprep.subr.mxu0 %v709
      %v711 = vand.u32 %v316, 4294901760
      %712 = vmatpush1.msra.mxu0 %v711
      %v713 = vand.u32 %v319, 4294901760
      %714 = vmatprep.subr.mxu0 %v713
      %v715 = vand.u32 %v318, 4294901760
      %716 = vmatpush1.msra.mxu0 %v715
      %v717 = vand.u32 %v321, 4294901760
      %718 = vmatprep.subr.mxu0 %v717
      %v719 = vand.u32 %v320, 4294901760
      %720 = vmatpush1.msra.mxu0 %v719
      %v721 = vand.u32 %v323, 4294901760
      %722 = vmatprep.subr.mxu0 %v721
      %v723 = vand.u32 %v322, 4294901760
      %724 = vmatpush1.msra.mxu0 %v723
      %v725 = vand.u32 %v325, 4294901760
      %726 = vmatprep.subr.mxu0 %v725
      %v727 = vand.u32 %v324, 4294901760
      %728 = vmatpush1.msra.mxu0 %v727
      %v729 = vand.u32 %v327, 4294901760
      %730 = vmatprep.subr.mxu0 %v729
      %v731 = vand.u32 %v326, 4294901760
      %732 = vmatpush1.msra.mxu0 %v731
      %v733 = vand.u32 %v329, 4294901760
      %734 = vmatprep.subr.mxu0 %v733
      %v735 = vand.u32 %v328, 4294901760
      %736 = vmatpush1.msra.mxu0 %v735
      %v737 = vand.u32 %v331, 4294901760
      %738 = vmatprep.subr.mxu0 %v737
      %v739 = vand.u32 %v330, 4294901760
      %740 = vmatpush1.msra.mxu0 %v739
      %v741 = vand.u32 %v333, 4294901760
      %742 = vmatprep.subr.mxu0 %v741
      %v743 = vand.u32 %v332, 4294901760
      %744 = vmatpush1.msra.mxu0 %v743
      %745 = vmatprep.subr.mxu0 0.0
      %746 = vmatpush1.msra.mxu0 0.0
      %747 = vmatprep.subr.mxu0 0.0
      %748 = vmatpush1.msra.mxu0 0.0
      %749 = vmatprep.subr.mxu0 0.0
      %750 = vmatpush1.msra.mxu0 0.0
      %751 = vmatprep.subr.mxu0 0.0
      %752 = vmatpush1.msra.mxu0 0.0
      %753 = vmatprep.subr.mxu0 0.0
      %754 = vmatpush1.msra.mxu0 0.0
      %755 = vmatprep.subr.mxu0 0.0
      %756 = vmatpush1.msra.mxu0 0.0
      %757 = vmatprep.subr.mxu0 0.0
      %758 = vmatpush1.msra.mxu0 0.0
      %759 = vmatprep.subr.mxu0 0.0
      %760 = vmatpush1.msra.mxu0 0.0
      %761 = vmatprep.subr.mxu0 0.0
      %762 = vmatpush1.msra.mxu0 0.0
      %763 = vmatprep.subr.mxu0 0.0
      %764 = vmatpush1.msra.mxu0 0.0
      %765 = vmatprep.subr.mxu0 0.0
      %766 = vmatpush1.msra.mxu0 0.0
      %767 = vmatprep.subr.mxu0 0.0
      %768 = vmatpush1.msra.mxu0 0.0
      %769 = vmatprep.subr.mxu0 0.0
      %770 = vmatpush1.msra.mxu0 0.0
      %771 = vmatprep.subr.mxu0 0.0
      %772 = vmatpush1.msra.mxu0 0.0
      %773 = vmatprep.subr.mxu0 0.0
      %774 = vmatpush1.msra.mxu0 0.0
      %775 = vmatprep.subr.mxu0 0.0
      %776 = vmatpush1.msra.mxu0 0.0
      %777 = vmatprep.subr.mxu0 0.0
      %778 = vmatpush1.msra.mxu0 0.0
      %779 = vmatprep.subr.mxu0 0.0
      %780 = vmatpush1.msra.mxu0 0.0
      %781 = vmatprep.subr.mxu0 0.0
      %782 = vmatpush1.msra.mxu0 0.0
      %783 = vmatprep.subr.mxu0 0.0
      %784 = vmatpush1.msra.mxu0 0.0
      %785 = vmatprep.subr.mxu0 0.0
      %786 = vmatpush1.msra.mxu0 0.0
      %787 = vmatprep.subr.mxu0 0.0
      %788 = vmatpush1.msra.mxu0 0.0
      %789 = vmatprep.subr.mxu0 0.0
      %790 = vmatpush1.msra.mxu0 0.0
      %791 = vmatprep.mubr.f32.mxu0 0.0
      %v792 = vand.u32 %v342, 4294901760
      %v793 = vsub.f32 %v342, %v792
      %v794 = vand.u32 %v793, 4294901760
      %795 = vmatmul.mubr.f32.gmra.mrb[0].mxu0 %v794
      %v796 = vpop.f32.mrb[0].mxu0
      %v797 = vadd.f32 %v705, %v796
      %v798 = vpop.f32.mrb[0].mxu0
      %v799 = vadd.f32 %v707, %v798
      %800 = vdwg.mxu0
      %v801 = vand.u32 %v317, 4294901760
      %v802 = vsub.f32 %v317, %v801
      %v803 = vand.u32 %v802, 4294901760
      %804 = vmatprep.subr.mxu0 %v803
      %v805 = vand.u32 %v316, 4294901760
      %v806 = vsub.f32 %v316, %v805
      %v807 = vand.u32 %v806, 4294901760
      %808 = vmatpush1.msra.mxu0 %v807
      %v809 = vand.u32 %v319, 4294901760
      %v810 = vsub.f32 %v319, %v809
      %v811 = vand.u32 %v810, 4294901760
      %812 = vmatprep.subr.mxu0 %v811
      %v813 = vand.u32 %v318, 4294901760
      %v814 = vsub.f32 %v318, %v813
      %v815 = vand.u32 %v814, 4294901760
      %816 = vmatpush1.msra.mxu0 %v815
      %v817 = vand.u32 %v321, 4294901760
      %v818 = vsub.f32 %v321, %v817
      %v819 = vand.u32 %v818, 4294901760
      %820 = vmatprep.subr.mxu0 %v819
      %v821 = vand.u32 %v320, 4294901760
      %v822 = vsub.f32 %v320, %v821
      %v823 = vand.u32 %v822, 4294901760
      %824 = vmatpush1.msra.mxu0 %v823
      %v825 = vand.u32 %v323, 4294901760
      %v826 = vsub.f32 %v323, %v825
      %v827 = vand.u32 %v826, 4294901760
      %828 = vmatprep.subr.mxu0 %v827
      %v829 = vand.u32 %v322, 4294901760
      %v830 = vsub.f32 %v322, %v829
      %v831 = vand.u32 %v830, 4294901760
      %832 = vmatpush1.msra.mxu0 %v831
      %v833 = vand.u32 %v325, 4294901760
      %v834 = vsub.f32 %v325, %v833
      %v835 = vand.u32 %v834, 4294901760
      %836 = vmatprep.subr.mxu0 %v835
      %v837 = vand.u32 %v324, 4294901760
      %v838 = vsub.f32 %v324, %v837
      %v839 = vand.u32 %v838, 4294901760
      %840 = vmatpush1.msra.mxu0 %v839
      %v841 = vand.u32 %v327, 4294901760
      %v842 = vsub.f32 %v327, %v841
      %v843 = vand.u32 %v842, 4294901760
      %844 = vmatprep.subr.mxu0 %v843
      %v845 = vand.u32 %v326, 4294901760
      %v846 = vsub.f32 %v326, %v845
      %v847 = vand.u32 %v846, 4294901760
      %848 = vmatpush1.msra.mxu0 %v847
      %v849 = vand.u32 %v329, 4294901760
      %v850 = vsub.f32 %v329, %v849
      %v851 = vand.u32 %v850, 4294901760
      %852 = vmatprep.subr.mxu0 %v851
      %v853 = vand.u32 %v328, 4294901760
      %v854 = vsub.f32 %v328, %v853
      %v855 = vand.u32 %v854, 4294901760
      %856 = vmatpush1.msra.mxu0 %v855
      %v857 = vand.u32 %v331, 4294901760
      %v858 = vsub.f32 %v331, %v857
      %v859 = vand.u32 %v858, 4294901760
      %860 = vmatprep.subr.mxu0 %v859
      %v861 = vand.u32 %v330, 4294901760
      %v862 = vsub.f32 %v330, %v861
      %v863 = vand.u32 %v862, 4294901760
      %864 = vmatpush1.msra.mxu0 %v863
      %v865 = vand.u32 %v333, 4294901760
      %v866 = vsub.f32 %v333, %v865
      %v867 = vand.u32 %v866, 4294901760
      %868 = vmatprep.subr.mxu0 %v867
      %v869 = vand.u32 %v332, 4294901760
      %v870 = vsub.f32 %v332, %v869
      %v871 = vand.u32 %v870, 4294901760
      %872 = vmatpush1.msra.mxu0 %v871
      %873 = vmatprep.subr.mxu0 0.0
      %874 = vmatpush1.msra.mxu0 0.0
      %875 = vmatprep.subr.mxu0 0.0
      %876 = vmatpush1.msra.mxu0 0.0
      %877 = vmatprep.subr.mxu0 0.0
      %878 = vmatpush1.msra.mxu0 0.0
      %879 = vmatprep.subr.mxu0 0.0
      %880 = vmatpush1.msra.mxu0 0.0
      %881 = vmatprep.subr.mxu0 0.0
      %882 = vmatpush1.msra.mxu0 0.0
      %883 = vmatprep.subr.mxu0 0.0
      %884 = vmatpush1.msra.mxu0 0.0
      %885 = vmatprep.subr.mxu0 0.0
      %886 = vmatpush1.msra.mxu0 0.0
      %887 = vmatprep.subr.mxu0 0.0
      %888 = vmatpush1.msra.mxu0 0.0
      %889 = vmatprep.subr.mxu0 0.0
      %890 = vmatpush1.msra.mxu0 0.0
      %891 = vmatprep.subr.mxu0 0.0
      %892 = vmatpush1.msra.mxu0 0.0
      %893 = vmatprep.subr.mxu0 0.0
      %894 = vmatpush1.msra.mxu0 0.0
      %895 = vmatprep.subr.mxu0 0.0
      %896 = vmatpush1.msra.mxu0 0.0
      %897 = vmatprep.subr.mxu0 0.0
      %898 = vmatpush1.msra.mxu0 0.0
      %899 = vmatprep.subr.mxu0 0.0
      %900 = vmatpush1.msra.mxu0 0.0
      %901 = vmatprep.subr.mxu0 0.0
      %902 = vmatpush1.msra.mxu0 0.0
      %903 = vmatprep.subr.mxu0 0.0
      %904 = vmatpush1.msra.mxu0 0.0
      %905 = vmatprep.subr.mxu0 0.0
      %906 = vmatpush1.msra.mxu0 0.0
      %907 = vmatprep.subr.mxu0 0.0
      %908 = vmatpush1.msra.mxu0 0.0
      %909 = vmatprep.subr.mxu0 0.0
      %910 = vmatpush1.msra.mxu0 0.0
      %911 = vmatprep.subr.mxu0 0.0
      %912 = vmatpush1.msra.mxu0 0.0
      %913 = vmatprep.subr.mxu0 0.0
      %914 = vmatpush1.msra.mxu0 0.0
      %915 = vmatprep.subr.mxu0 0.0
      %916 = vmatpush1.msra.mxu0 0.0
      %917 = vmatprep.subr.mxu0 0.0
      %918 = vmatpush1.msra.mxu0 0.0
      %919 = vmatprep.mubr.f32.mxu0 0.0
      %v920 = vand.u32 %v342, 4294901760
      %921 = vmatmul.mubr.f32.gmra.mrb[0].mxu0 %v920
      %v922 = vpop.f32.mrb[0].mxu0
      %v923 = vadd.f32 %v797, %v922
      %v924 = vpop.f32.mrb[0].mxu0
      %v925 = vadd.f32 %v799, %v924
      %926 = vdwg.mxu0
      %v927 = vand.u32 %v317, 4294901760
      %928 = vmatprep.subr.mxu0 %v927
      %v929 = vand.u32 %v316, 4294901760
      %930 = vmatpush1.msra.mxu0 %v929
      %v931 = vand.u32 %v319, 4294901760
      %932 = vmatprep.subr.mxu0 %v931
      %v933 = vand.u32 %v318, 4294901760
      %934 = vmatpush1.msra.mxu0 %v933
      %v935 = vand.u32 %v321, 4294901760
      %936 = vmatprep.subr.mxu0 %v935
      %v937 = vand.u32 %v320, 4294901760
      %938 = vmatpush1.msra.mxu0 %v937
      %v939 = vand.u32 %v323, 4294901760
      %940 = vmatprep.subr.mxu0 %v939
      %v941 = vand.u32 %v322, 4294901760
      %942 = vmatpush1.msra.mxu0 %v941
      %v943 = vand.u32 %v325, 4294901760
      %944 = vmatprep.subr.mxu0 %v943
      %v945 = vand.u32 %v324, 4294901760
      %946 = vmatpush1.msra.mxu0 %v945
      %v947 = vand.u32 %v327, 4294901760
      %948 = vmatprep.subr.mxu0 %v947
      %v949 = vand.u32 %v326, 4294901760
      %950 = vmatpush1.msra.mxu0 %v949
      %v951 = vand.u32 %v329, 4294901760
      %952 = vmatprep.subr.mxu0 %v951
      %v953 = vand.u32 %v328, 4294901760
      %954 = vmatpush1.msra.mxu0 %v953
      %v955 = vand.u32 %v331, 4294901760
      %956 = vmatprep.subr.mxu0 %v955
      %v957 = vand.u32 %v330, 4294901760
      %958 = vmatpush1.msra.mxu0 %v957
      %v959 = vand.u32 %v333, 4294901760
      %960 = vmatprep.subr.mxu0 %v959
      %v961 = vand.u32 %v332, 4294901760
      %962 = vmatpush1.msra.mxu0 %v961
      %963 = vmatprep.subr.mxu0 0.0
      %964 = vmatpush1.msra.mxu0 0.0
      %965 = vmatprep.subr.mxu0 0.0
      %966 = vmatpush1.msra.mxu0 0.0
      %967 = vmatprep.subr.mxu0 0.0
      %968 = vmatpush1.msra.mxu0 0.0
      %969 = vmatprep.subr.mxu0 0.0
      %970 = vmatpush1.msra.mxu0 0.0
      %971 = vmatprep.subr.mxu0 0.0
      %972 = vmatpush1.msra.mxu0 0.0
      %973 = vmatprep.subr.mxu0 0.0
      %974 = vmatpush1.msra.mxu0 0.0
      %975 = vmatprep.subr.mxu0 0.0
      %976 = vmatpush1.msra.mxu0 0.0
      %977 = vmatprep.subr.mxu0 0.0
      %978 = vmatpush1.msra.mxu0 0.0
      %979 = vmatprep.subr.mxu0 0.0
      %980 = vmatpush1.msra.mxu0 0.0
      %981 = vmatprep.subr.mxu0 0.0
      %982 = vmatpush1.msra.mxu0 0.0
      %983 = vmatprep.subr.mxu0 0.0
      %984 = vmatpush1.msra.mxu0 0.0
      %985 = vmatprep.subr.mxu0 0.0
      %986 = vmatpush1.msra.mxu0 0.0
      %987 = vmatprep.subr.mxu0 0.0
      %988 = vmatpush1.msra.mxu0 0.0
      %989 = vmatprep.subr.mxu0 0.0
      %990 = vmatpush1.msra.mxu0 0.0
      %991 = vmatprep.subr.mxu0 0.0
      %992 = vmatpush1.msra.mxu0 0.0
      %993 = vmatprep.subr.mxu0 0.0
      %994 = vmatpush1.msra.mxu0 0.0
      %995 = vmatprep.subr.mxu0 0.0
      %996 = vmatpush1.msra.mxu0 0.0
      %997 = vmatprep.subr.mxu0 0.0
      %998 = vmatpush1.msra.mxu0 0.0
      %999 = vmatprep.subr.mxu0 0.0
      %1000 = vmatpush1.msra.mxu0 0.0
      %1001 = vmatprep.subr.mxu0 0.0
      %1002 = vmatpush1.msra.mxu0 0.0
      %1003 = vmatprep.subr.mxu0 0.0
      %1004 = vmatpush1.msra.mxu0 0.0
      %1005 = vmatprep.subr.mxu0 0.0
      %1006 = vmatpush1.msra.mxu0 0.0
      %1007 = vmatprep.subr.mxu0 0.0
      %1008 = vmatpush1.msra.mxu0 0.0
      %1009 = vmatprep.mubr.f32.mxu0 0.0
      %v1010 = vand.u32 %v342, 4294901760
      %1011 = vmatmul.mubr.f32.gmra.mrb[0].mxu0 %v1010
      %v1012 = vpop.f32.mrb[0].mxu0
      %v1013 = vadd.f32 %v923, %v1012
      %v1014 = vpop.f32.mrb[0].mxu0
      %v1015 = vadd.f32 %v925, %v1014
      %1016 = vdwg.mxu0
      %1017 = vrot.lane.b32.xlu0 %v1013, 17
      %v1018 = vpop.permute.xlu0 %1017
      %1019 = vrot.lane.b32.xlu0 %v1015, 17
      %v1020 = vpop.permute.xlu0 %1019
      %v1021 = vsel %vm206, %v1018, %v1020
      %v1022 = vsel %vm206, %v1020, %v1018
      %v1023 = vld [vmem:[%s3] sm:$0xff]
      %v1024 = vld [vmem:[%s3 + $0x8] sm:$0xff]
      %v1025 = vmul.f32 %v1022, %v1023
      %v1026 = vmul.f32 %v1021, %v1024
      %1027 = vst [vmem:[#allocation2] sm:$0xff] %v1025
      %1028 = vst [vmem:[#allocation2 + $0x8] sm:$0xff] %v1026
      %1029 = vrot.lane.b32.xlu0 %v1013, 16
      %v1030 = vpop.permute.xlu0 %1029
      %1031 = vrot.lane.b32.xlu0 %v1015, 16
      %v1032 = vpop.permute.xlu0 %1031
      %v1033 = vsel %vm219, %v1030, %v1032
      %v1034 = vsel %vm219, %v1032, %v1030
      %v1035 = vld [vmem:[%s222] sm:$0xff]
      %v1036 = vld [vmem:[%s222 + $0x8] sm:$0xff]
      %v1037 = vmul.f32 %v1034, %v1035
      %v1038 = vmul.f32 %v1033, %v1036
      %1039 = vst [vmem:[#allocation2 + $0x10] sm:$0xff] %v1037
      %1040 = vst [vmem:[#allocation2 + $0x18] sm:$0xff] %v1038
      %1041 = vrot.lane.b32.xlu0 %v1013, 15
      %v1042 = vpop.permute.xlu0 %1041
      %1043 = vrot.lane.b32.xlu0 %v1015, 15
      %v1044 = vpop.permute.xlu0 %1043
      %v1045 = vsel %vm233, %v1042, %v1044
      %v1046 = vsel %vm233, %v1044, %v1042
      %v1047 = vld [vmem:[%s236] sm:$0xff]
      %v1048 = vld [vmem:[%s236 + $0x8] sm:$0xff]
      %v1049 = vmul.f32 %v1046, %v1047
      %v1050 = vmul.f32 %v1045, %v1048
      %1051 = vst [vmem:[#allocation2 + $0x20] sm:$0xff] %v1049
      %1052 = vst [vmem:[#allocation2 + $0x28] sm:$0xff] %v1050
      %1053 = vrot.lane.b32.xlu0 %v1013, 1
      %v1054 = vpop.permute.xlu0 %1053
      %1055 = vrot.lane.b32.xlu0 %v1015, 1
      %v1056 = vpop.permute.xlu0 %1055
      %v1057 = vsel %vm247, %v1054, %v1056
      %v1058 = vsel %vm247, %v1056, %v1054
      %v1059 = vld [vmem:[%s250] sm:$0xff]
      %v1060 = vld [vmem:[%s250 + $0x8] sm:$0xff]
      %v1061 = vmul.f32 %v1058, %v1059
      %v1062 = vmul.f32 %v1057, %v1060
      %1063 = vst [vmem:[#allocation2 + $0x30] sm:$0xff] %v1061
      %1064 = vst [vmem:[#allocation2 + $0x38] sm:$0xff] %v1062
      %1065 = vst [vmem:[#allocation2 + $0x40] sm:$0xff] %v1013
      %1066 = vst [vmem:[#allocation2 + $0x48] sm:$0xff] %v1015
      %1067 = vrot.lane.b32.xlu0 %v1013, 127
      %v1068 = vpop.permute.xlu0 %1067
      %1069 = vrot.lane.b32.xlu0 %v1015, 127
      %v1070 = vpop.permute.xlu0 %1069
      %v1071 = vsel %vm263, %v1068, %v1070
      %v1072 = vsel %vm263, %v1070, %v1068
      %v1073 = vld [vmem:[%s266] sm:$0xff]
      %v1074 = vld [vmem:[%s266 + $0x8] sm:$0xff]
      %v1075 = vmul.f32 %v1071, %v1073
      %v1076 = vmul.f32 %v1072, %v1074
      %1077 = vst [vmem:[#allocation2 + $0x50] sm:$0xff] %v1075
      %1078 = vst [vmem:[#allocation2 + $0x58] sm:$0xff] %v1076
      %1079 = vrot.lane.b32.xlu0 %v1013, 113
      %v1080 = vpop.permute.xlu0 %1079
      %1081 = vrot.lane.b32.xlu0 %v1015, 113
      %v1082 = vpop.permute.xlu0 %1081
      %v1083 = vsel %vm277, %v1080, %v1082
      %v1084 = vsel %vm277, %v1082, %v1080
      %v1085 = vld [vmem:[%s280] sm:$0xff]
      %v1086 = vld [vmem:[%s280 + $0x8] sm:$0xff]
      %v1087 = vmul.f32 %v1083, %v1085
      %v1088 = vmul.f32 %v1084, %v1086
      %1089 = vst [vmem:[#allocation2 + $0x60] sm:$0xff] %v1087
      %1090 = vst [vmem:[#allocation2 + $0x68] sm:$0xff] %v1088
      %1091 = vrot.lane.b32.xlu0 %v1013, 112
      %v1092 = vpop.permute.xlu0 %1091
      %1093 = vrot.lane.b32.xlu0 %v1015, 112
      %v1094 = vpop.permute.xlu0 %1093
      %v1095 = vsel %vm291, %v1092, %v1094
      %v1096 = vsel %vm291, %v1094, %v1092
      %v1097 = vld [vmem:[%s294] sm:$0xff]
      %v1098 = vld [vmem:[%s294 + $0x8] sm:$0xff]
      %v1099 = vmul.f32 %v1095, %v1097
      %v1100 = vmul.f32 %v1096, %v1098
      %1101 = vst [vmem:[#allocation2 + $0x70] sm:$0xff] %v1099
      %1102 = vst [vmem:[#allocation2 + $0x78] sm:$0xff] %v1100
      %1103 = vrot.lane.b32.xlu0 %v1013, 111
      %v1104 = vpop.permute.xlu0 %1103
      %1105 = vrot.lane.b32.xlu0 %v1015, 111
      %v1106 = vpop.permute.xlu0 %1105
      %v1107 = vsel %vm305, %v1104, %v1106
      %v1108 = vsel %vm305, %v1106, %v1104
      %v1109 = vld [vmem:[%s308] sm:$0xff]
      %v1110 = vld [vmem:[%s308 + $0x8] sm:$0xff]
      %v1111 = vmul.f32 %v1107, %v1109
      %v1112 = vmul.f32 %v1108, %v1110
      %1113 = vst [vmem:[#allocation2 + $0x80] sm:$0xff] %v1111
      %1114 = vst [vmem:[#allocation2 + $0x88] sm:$0xff] %v1112
      %s1115 = scalar_lea.vmem %s1, 8
      %v1116 = vld [vmem:[%s1115] sm:$0xff]
      %v1117 = vld [vmem:[#allocation2] sm:$0xff]
      %v1118 = vld [vmem:[#allocation2 + $0x8] sm:$0xff]
      %v1119 = vld [vmem:[#allocation2 + $0x10] sm:$0xff]
      %v1120 = vld [vmem:[#allocation2 + $0x18] sm:$0xff]
      %v1121 = vld [vmem:[#allocation2 + $0x20] sm:$0xff]
      %v1122 = vld [vmem:[#allocation2 + $0x28] sm:$0xff]
      %v1123 = vld [vmem:[#allocation2 + $0x30] sm:$0xff]
      %v1124 = vld [vmem:[#allocation2 + $0x38] sm:$0xff]
      %v1125 = vld [vmem:[#allocation2 + $0x40] sm:$0xff]
      %v1126 = vld [vmem:[#allocation2 + $0x48] sm:$0xff]
      %v1127 = vld [vmem:[#allocation2 + $0x50] sm:$0xff]
      %v1128 = vld [vmem:[#allocation2 + $0x58] sm:$0xff]
      %v1129 = vld [vmem:[#allocation2 + $0x60] sm:$0xff]
      %v1130 = vld [vmem:[#allocation2 + $0x68] sm:$0xff]
      %v1131 = vld [vmem:[#allocation2 + $0x70] sm:$0xff]
      %v1132 = vld [vmem:[#allocation2 + $0x78] sm:$0xff]
      %v1133 = vld [vmem:[#allocation2 + $0x80] sm:$0xff]
      %v1134 = vld [vmem:[#allocation2 + $0x88] sm:$0xff]
      %s1135 = scalar_lea.vmem %s2, 8
      %v1136 = vld [vmem:[%s1135] sm:$0xff]
      %1138 = vset.pattern.permute.xlu0 0
      %1139 = vperm.xlu0 %1138, %v1136
      %v1140 = vpop.permute.xlu0 %1139
      %v1143 = vsel %vm340, %v1116, 0
      %v1145 = vand.u32 %v1118, 4294901760
      %1146 = vmatprep.subr.mxu0 %v1145
      %v1147 = vand.u32 %v1117, 4294901760
      %1148 = vmatpush1.msra.mxu0 %v1147
      %v1149 = vand.u32 %v1120, 4294901760
      %1150 = vmatprep.subr.mxu0 %v1149
      %v1151 = vand.u32 %v1119, 4294901760
      %1152 = vmatpush1.msra.mxu0 %v1151
      %v1153 = vand.u32 %v1122, 4294901760
      %1154 = vmatprep.subr.mxu0 %v1153
      %v1155 = vand.u32 %v1121, 4294901760
      %1156 = vmatpush1.msra.mxu0 %v1155
      %v1157 = vand.u32 %v1124, 4294901760
      %1158 = vmatprep.subr.mxu0 %v1157
      %v1159 = vand.u32 %v1123, 4294901760
      %1160 = vmatpush1.msra.mxu0 %v1159
      %v1161 = vand.u32 %v1126, 4294901760
      %1162 = vmatprep.subr.mxu0 %v1161
      %v1163 = vand.u32 %v1125, 4294901760
      %1164 = vmatpush1.msra.mxu0 %v1163
      %v1165 = vand.u32 %v1128, 4294901760
      %1166 = vmatprep.subr.mxu0 %v1165
      %v1167 = vand.u32 %v1127, 4294901760
      %1168 = vmatpush1.msra.mxu0 %v1167
      %v1169 = vand.u32 %v1130, 4294901760
      %1170 = vmatprep.subr.mxu0 %v1169
      %v1171 = vand.u32 %v1129, 4294901760
      %1172 = vmatpush1.msra.mxu0 %v1171
      %v1173 = vand.u32 %v1132, 4294901760
      %1174 = vmatprep.subr.mxu0 %v1173
      %v1175 = vand.u32 %v1131, 4294901760
      %1176 = vmatpush1.msra.mxu0 %v1175
      %v1177 = vand.u32 %v1134, 4294901760
      %1178 = vmatprep.subr.mxu0 %v1177
      %v1179 = vand.u32 %v1133, 4294901760
      %1180 = vmatpush1.msra.mxu0 %v1179
      %1181 = vmatprep.subr.mxu0 0.0
      %1182 = vmatpush1.msra.mxu0 0.0
      %1183 = vmatprep.subr.mxu0 0.0
      %1184 = vmatpush1.msra.mxu0 0.0
      %1185 = vmatprep.subr.mxu0 0.0
      %1186 = vmatpush1.msra.mxu0 0.0
      %1187 = vmatprep.subr.mxu0 0.0
      %1188 = vmatpush1.msra.mxu0 0.0
      %1189 = vmatprep.subr.mxu0 0.0
      %1190 = vmatpush1.msra.mxu0 0.0
      %1191 = vmatprep.subr.mxu0 0.0
      %1192 = vmatpush1.msra.mxu0 0.0
      %1193 = vmatprep.subr.mxu0 0.0
      %1194 = vmatpush1.msra.mxu0 0.0
      %1195 = vmatprep.subr.mxu0 0.0
      %1196 = vmatpush1.msra.mxu0 0.0
      %1197 = vmatprep.subr.mxu0 0.0
      %1198 = vmatpush1.msra.mxu0 0.0
      %1199 = vmatprep.subr.mxu0 0.0
      %1200 = vmatpush1.msra.mxu0 0.0
      %1201 = vmatprep.subr.mxu0 0.0
      %1202 = vmatpush1.msra.mxu0 0.0
      %1203 = vmatprep.subr.mxu0 0.0
      %1204 = vmatpush1.msra.mxu0 0.0
      %1205 = vmatprep.subr.mxu0 0.0
      %1206 = vmatpush1.msra.mxu0 0.0
      %1207 = vmatprep.subr.mxu0 0.0
      %1208 = vmatpush1.msra.mxu0 0.0
      %1209 = vmatprep.subr.mxu0 0.0
      %1210 = vmatpush1.msra.mxu0 0.0
      %1211 = vmatprep.subr.mxu0 0.0
      %1212 = vmatpush1.msra.mxu0 0.0
      %1213 = vmatprep.subr.mxu0 0.0
      %1214 = vmatpush1.msra.mxu0 0.0
      %1215 = vmatprep.subr.mxu0 0.0
      %1216 = vmatpush1.msra.mxu0 0.0
      %1217 = vmatprep.subr.mxu0 0.0
      %1218 = vmatpush1.msra.mxu0 0.0
      %1219 = vmatprep.subr.mxu0 0.0
      %1220 = vmatpush1.msra.mxu0 0.0
      %1221 = vmatprep.subr.mxu0 0.0
      %1222 = vmatpush1.msra.mxu0 0.0
      %1223 = vmatprep.subr.mxu0 0.0
      %1224 = vmatpush1.msra.mxu0 0.0
      %1225 = vmatprep.subr.mxu0 0.0
      %1226 = vmatpush1.msra.mxu0 0.0
      %1227 = vmatprep.mubr.f32.mxu0 0.0
      %v1228 = vand.u32 %v1143, 4294901760
      %v1229 = vsub.f32 %v1143, %v1228
      %v1230 = vand.u32 %v1229, 4294901760
      %v1231 = vsub.f32 %v1229, %v1230
      %v1232 = vand.u32 %v1231, 4294901760
      %1233 = vmatmul.mubr.f32.gmra.mrb[0].mxu0 %v1232
      %v1234 = vpop.f32.mrb[0].mxu0
      %v1235 = vadd.f32 %v1140, %v1234
      %v1236 = vpop.f32.mrb[0].mxu0
      %v1237 = vadd.f32 %v1140, %v1236
      %1238 = vdwg.mxu0
      %v1239 = vand.u32 %v1118, 4294901760
      %v1240 = vsub.f32 %v1118, %v1239
      %v1241 = vand.u32 %v1240, 4294901760
      %v1242 = vsub.f32 %v1240, %v1241
      %v1243 = vand.u32 %v1242, 4294901760
      %1244 = vmatprep.subr.mxu0 %v1243
      %v1245 = vand.u32 %v1117, 4294901760
      %v1246 = vsub.f32 %v1117, %v1245
      %v1247 = vand.u32 %v1246, 4294901760
      %v1248 = vsub.f32 %v1246, %v1247
      %v1249 = vand.u32 %v1248, 4294901760
      %1250 = vmatpush1.msra.mxu0 %v1249
      %v1251 = vand.u32 %v1120, 4294901760
      %v1252 = vsub.f32 %v1120, %v1251
      %v1253 = vand.u32 %v1252, 4294901760
      %v1254 = vsub.f32 %v1252, %v1253
      %v1255 = vand.u32 %v1254, 4294901760
      %1256 = vmatprep.subr.mxu0 %v1255
      %v1257 = vand.u32 %v1119, 4294901760
      %v1258 = vsub.f32 %v1119, %v1257
      %v1259 = vand.u32 %v1258, 4294901760
      %v1260 = vsub.f32 %v1258, %v1259
      %v1261 = vand.u32 %v1260, 4294901760
      %1262 = vmatpush1.msra.mxu0 %v1261
      %v1263 = vand.u32 %v1122, 4294901760
      %v1264 = vsub.f32 %v1122, %v1263
      %v1265 = vand.u32 %v1264, 4294901760
      %v1266 = vsub.f32 %v1264, %v1265
      %v1267 = vand.u32 %v1266, 4294901760
      %1268 = vmatprep.subr.mxu0 %v1267
      %v1269 = vand.u32 %v1121, 4294901760
      %v1270 = vsub.f32 %v1121, %v1269
      %v1271 = vand.u32 %v1270, 4294901760
      %v1272 = vsub.f32 %v1270, %v1271
      %v1273 = vand.u32 %v1272, 4294901760
      %1274 = vmatpush1.msra.mxu0 %v1273
      %v1275 = vand.u32 %v1124, 4294901760
      %v1276 = vsub.f32 %v1124, %v1275
      %v1277 = vand.u32 %v1276, 4294901760
      %v1278 = vsub.f32 %v1276, %v1277
      %v1279 = vand.u32 %v1278, 4294901760
      %1280 = vmatprep.subr.mxu0 %v1279
      %v1281 = vand.u32 %v1123, 4294901760
      %v1282 = vsub.f32 %v1123, %v1281
      %v1283 = vand.u32 %v1282, 4294901760
      %v1284 = vsub.f32 %v1282, %v1283
      %v1285 = vand.u32 %v1284, 4294901760
      %1286 = vmatpush1.msra.mxu0 %v1285
      %v1287 = vand.u32 %v1126, 4294901760
      %v1288 = vsub.f32 %v1126, %v1287
      %v1289 = vand.u32 %v1288, 4294901760
      %v1290 = vsub.f32 %v1288, %v1289
      %v1291 = vand.u32 %v1290, 4294901760
      %1292 = vmatprep.subr.mxu0 %v1291
      %v1293 = vand.u32 %v1125, 4294901760
      %v1294 = vsub.f32 %v1125, %v1293
      %v1295 = vand.u32 %v1294, 4294901760
      %v1296 = vsub.f32 %v1294, %v1295
      %v1297 = vand.u32 %v1296, 4294901760
      %1298 = vmatpush1.msra.mxu0 %v1297
      %v1299 = vand.u32 %v1128, 4294901760
      %v1300 = vsub.f32 %v1128, %v1299
      %v1301 = vand.u32 %v1300, 4294901760
      %v1302 = vsub.f32 %v1300, %v1301
      %v1303 = vand.u32 %v1302, 4294901760
      %1304 = vmatprep.subr.mxu0 %v1303
      %v1305 = vand.u32 %v1127, 4294901760
      %v1306 = vsub.f32 %v1127, %v1305
      %v1307 = vand.u32 %v1306, 4294901760
      %v1308 = vsub.f32 %v1306, %v1307
      %v1309 = vand.u32 %v1308, 4294901760
      %1310 = vmatpush1.msra.mxu0 %v1309
      %v1311 = vand.u32 %v1130, 4294901760
      %v1312 = vsub.f32 %v1130, %v1311
      %v1313 = vand.u32 %v1312, 4294901760
      %v1314 = vsub.f32 %v1312, %v1313
      %v1315 = vand.u32 %v1314, 4294901760
      %1316 = vmatprep.subr.mxu0 %v1315
      %v1317 = vand.u32 %v1129, 4294901760
      %v1318 = vsub.f32 %v1129, %v1317
      %v1319 = vand.u32 %v1318, 4294901760
      %v1320 = vsub.f32 %v1318, %v1319
      %v1321 = vand.u32 %v1320, 4294901760
      %1322 = vmatpush1.msra.mxu0 %v1321
      %v1323 = vand.u32 %v1132, 4294901760
      %v1324 = vsub.f32 %v1132, %v1323
      %v1325 = vand.u32 %v1324, 4294901760
      %v1326 = vsub.f32 %v1324, %v1325
      %v1327 = vand.u32 %v1326, 4294901760
      %1328 = vmatprep.subr.mxu0 %v1327
      %v1329 = vand.u32 %v1131, 4294901760
      %v1330 = vsub.f32 %v1131, %v1329
      %v1331 = vand.u32 %v1330, 4294901760
      %v1332 = vsub.f32 %v1330, %v1331
      %v1333 = vand.u32 %v1332, 4294901760
      %1334 = vmatpush1.msra.mxu0 %v1333
      %v1335 = vand.u32 %v1134, 4294901760
      %v1336 = vsub.f32 %v1134, %v1335
      %v1337 = vand.u32 %v1336, 4294901760
      %v1338 = vsub.f32 %v1336, %v1337
      %v1339 = vand.u32 %v1338, 4294901760
      %1340 = vmatprep.subr.mxu0 %v1339
      %v1341 = vand.u32 %v1133, 4294901760
      %v1342 = vsub.f32 %v1133, %v1341
      %v1343 = vand.u32 %v1342, 4294901760
      %v1344 = vsub.f32 %v1342, %v1343
      %v1345 = vand.u32 %v1344, 4294901760
      %1346 = vmatpush1.msra.mxu0 %v1345
      %1347 = vmatprep.subr.mxu0 0.0
      %1348 = vmatpush1.msra.mxu0 0.0
      %1349 = vmatprep.subr.mxu0 0.0
      %1350 = vmatpush1.msra.mxu0 0.0
      %1351 = vmatprep.subr.mxu0 0.0
      %1352 = vmatpush1.msra.mxu0 0.0
      %1353 = vmatprep.subr.mxu0 0.0
      %1354 = vmatpush1.msra.mxu0 0.0
      %1355 = vmatprep.subr.mxu0 0.0
      %1356 = vmatpush1.msra.mxu0 0.0
      %1357 = vmatprep.subr.mxu0 0.0
      %1358 = vmatpush1.msra.mxu0 0.0
      %1359 = vmatprep.subr.mxu0 0.0
      %1360 = vmatpush1.msra.mxu0 0.0
      %1361 = vmatprep.subr.mxu0 0.0
      %1362 = vmatpush1.msra.mxu0 0.0
      %1363 = vmatprep.subr.mxu0 0.0
      %1364 = vmatpush1.msra.mxu0 0.0
      %1365 = vmatprep.subr.mxu0 0.0
      %1366 = vmatpush1.msra.mxu0 0.0
      %1367 = vmatprep.subr.mxu0 0.0
      %1368 = vmatpush1.msra.mxu0 0.0
      %1369 = vmatprep.subr.mxu0 0.0
      %1370 = vmatpush1.msra.mxu0 0.0
      %1371 = vmatprep.subr.mxu0 0.0
      %1372 = vmatpush1.msra.mxu0 0.0
      %1373 = vmatprep.subr.mxu0 0.0
      %1374 = vmatpush1.msra.mxu0 0.0
      %1375 = vmatprep.subr.mxu0 0.0
      %1376 = vmatpush1.msra.mxu0 0.0
      %1377 = vmatprep.subr.mxu0 0.0
      %1378 = vmatpush1.msra.mxu0 0.0
      %1379 = vmatprep.subr.mxu0 0.0
      %1380 = vmatpush1.msra.mxu0 0.0
      %1381 = vmatprep.subr.mxu0 0.0
      %1382 = vmatpush1.msra.mxu0 0.0
      %1383 = vmatprep.subr.mxu0 0.0
      %1384 = vmatpush1.msra.mxu0 0.0
      %1385 = vmatprep.subr.mxu0 0.0
      %1386 = vmatpush1.msra.mxu0 0.0
      %1387 = vmatprep.subr.mxu0 0.0
      %1388 = vmatpush1.msra.mxu0 0.0
      %1389 = vmatprep.subr.mxu0 0.0
      %1390 = vmatpush1.msra.mxu0 0.0
      %1391 = vmatprep.subr.mxu0 0.0
      %1392 = vmatpush1.msra.mxu0 0.0
      %1393 = vmatprep.mubr.f32.mxu0 0.0
      %v1394 = vand.u32 %v1143, 4294901760
      %1395 = vmatmul.mubr.f32.gmra.mrb[0].mxu0 %v1394
      %v1396 = vpop.f32.mrb[0].mxu0
      %v1397 = vadd.f32 %v1235, %v1396
      %v1398 = vpop.f32.mrb[0].mxu0
      %v1399 = vadd.f32 %v1237, %v1398
      %1400 = vdwg.mxu0
      %v1401 = vand.u32 %v1118, 4294901760
      %v1402 = vsub.f32 %v1118, %v1401
      %1403 = vmatprep.subr.mxu0 %v1402
      %v1404 = vand.u32 %v1117, 4294901760
      %v1405 = vsub.f32 %v1117, %v1404
      %1406 = vmatpush1.msra.mxu0 %v1405
      %v1407 = vand.u32 %v1120, 4294901760
      %v1408 = vsub.f32 %v1120, %v1407
      %1409 = vmatprep.subr.mxu0 %v1408
      %v1410 = vand.u32 %v1119, 4294901760
      %v1411 = vsub.f32 %v1119, %v1410
      %1412 = vmatpush1.msra.mxu0 %v1411
      %v1413 = vand.u32 %v1122, 4294901760
      %v1414 = vsub.f32 %v1122, %v1413
      %1415 = vmatprep.subr.mxu0 %v1414
      %v1416 = vand.u32 %v1121, 4294901760
      %v1417 = vsub.f32 %v1121, %v1416
      %1418 = vmatpush1.msra.mxu0 %v1417
      %v1419 = vand.u32 %v1124, 4294901760
      %v1420 = vsub.f32 %v1124, %v1419
      %1421 = vmatprep.subr.mxu0 %v1420
      %v1422 = vand.u32 %v1123, 4294901760
      %v1423 = vsub.f32 %v1123, %v1422
      %1424 = vmatpush1.msra.mxu0 %v1423
      %v1425 = vand.u32 %v1126, 4294901760
      %v1426 = vsub.f32 %v1126, %v1425
      %1427 = vmatprep.subr.mxu0 %v1426
      %v1428 = vand.u32 %v1125, 4294901760
      %v1429 = vsub.f32 %v1125, %v1428
      %1430 = vmatpush1.msra.mxu0 %v1429
      %v1431 = vand.u32 %v1128, 4294901760
      %v1432 = vsub.f32 %v1128, %v1431
      %1433 = vmatprep.subr.mxu0 %v1432
      %v1434 = vand.u32 %v1127, 4294901760
      %v1435 = vsub.f32 %v1127, %v1434
      %1436 = vmatpush1.msra.mxu0 %v1435
      %v1437 = vand.u32 %v1130, 4294901760
      %v1438 = vsub.f32 %v1130, %v1437
      %1439 = vmatprep.subr.mxu0 %v1438
      %v1440 = vand.u32 %v1129, 4294901760
      %v1441 = vsub.f32 %v1129, %v1440
      %1442 = vmatpush1.msra.mxu0 %v1441
      %v1443 = vand.u32 %v1132, 4294901760
      %v1444 = vsub.f32 %v1132, %v1443
      %1445 = vmatprep.subr.mxu0 %v1444
      %v1446 = vand.u32 %v1131, 4294901760
      %v1447 = vsub.f32 %v1131, %v1446
      %1448 = vmatpush1.msra.mxu0 %v1447
      %v1449 = vand.u32 %v1134, 4294901760
      %v1450 = vsub.f32 %v1134, %v1449
      %1451 = vmatprep.subr.mxu0 %v1450
      %v1452 = vand.u32 %v1133, 4294901760
      %v1453 = vsub.f32 %v1133, %v1452
      %1454 = vmatpush1.msra.mxu0 %v1453
      %1455 = vmatprep.subr.mxu0 0.0
      %1456 = vmatpush1.msra.mxu0 0.0
      %1457 = vmatprep.subr.mxu0 0.0
      %1458 = vmatpush1.msra.mxu0 0.0
      %1459 = vmatprep.subr.mxu0 0.0
      %1460 = vmatpush1.msra.mxu0 0.0
      %1461 = vmatprep.subr.mxu0 0.0
      %1462 = vmatpush1.msra.mxu0 0.0
      %1463 = vmatprep.subr.mxu0 0.0
      %1464 = vmatpush1.msra.mxu0 0.0
      %1465 = vmatprep.subr.mxu0 0.0
      %1466 = vmatpush1.msra.mxu0 0.0
      %1467 = vmatprep.subr.mxu0 0.0
      %1468 = vmatpush1.msra.mxu0 0.0
      %1469 = vmatprep.subr.mxu0 0.0
      %1470 = vmatpush1.msra.mxu0 0.0
      %1471 = vmatprep.subr.mxu0 0.0
      %1472 = vmatpush1.msra.mxu0 0.0
      %1473 = vmatprep.subr.mxu0 0.0
      %1474 = vmatpush1.msra.mxu0 0.0
      %1475 = vmatprep.subr.mxu0 0.0
      %1476 = vmatpush1.msra.mxu0 0.0
      %1477 = vmatprep.subr.mxu0 0.0
      %1478 = vmatpush1.msra.mxu0 0.0
      %1479 = vmatprep.subr.mxu0 0.0
      %1480 = vmatpush1.msra.mxu0 0.0
      %1481 = vmatprep.subr.mxu0 0.0
      %1482 = vmatpush1.msra.mxu0 0.0
      %1483 = vmatprep.subr.mxu0 0.0
      %1484 = vmatpush1.msra.mxu0 0.0
      %1485 = vmatprep.subr.mxu0 0.0
      %1486 = vmatpush1.msra.mxu0 0.0
      %1487 = vmatprep.subr.mxu0 0.0
      %1488 = vmatpush1.msra.mxu0 0.0
      %1489 = vmatprep.subr.mxu0 0.0
      %1490 = vmatpush1.msra.mxu0 0.0
      %1491 = vmatprep.subr.mxu0 0.0
      %1492 = vmatpush1.msra.mxu0 0.0
      %1493 = vmatprep.subr.mxu0 0.0
      %1494 = vmatpush1.msra.mxu0 0.0
      %1495 = vmatprep.subr.mxu0 0.0
      %1496 = vmatpush1.msra.mxu0 0.0
      %1497 = vmatprep.subr.mxu0 0.0
      %1498 = vmatpush1.msra.mxu0 0.0
      %1499 = vmatprep.subr.mxu0 0.0
      %1500 = vmatpush1.msra.mxu0 0.0
      %1501 = vmatprep.mubr.f32.mxu0 0.0
      %v1502 = vand.u32 %v1143, 4294901760
      %v1503 = vsub.f32 %v1143, %v1502
      %1504 = vmatmul.mubr.f32.gmra.mrb[0].mxu0 %v1503
      %v1505 = vpop.f32.mrb[0].mxu0
      %v1506 = vadd.f32 %v1397, %v1505
      %v1507 = vpop.f32.mrb[0].mxu0
      %v1508 = vadd.f32 %v1399, %v1507
      %1509 = vdwg.mxu0
      %v1510 = vand.u32 %v1118, 4294901760
      %1511 = vmatprep.subr.mxu0 %v1510
      %v1512 = vand.u32 %v1117, 4294901760
      %1513 = vmatpush1.msra.mxu0 %v1512
      %v1514 = vand.u32 %v1120, 4294901760
      %1515 = vmatprep.subr.mxu0 %v1514
      %v1516 = vand.u32 %v1119, 4294901760
      %1517 = vmatpush1.msra.mxu0 %v1516
      %v1518 = vand.u32 %v1122, 4294901760
      %1519 = vmatprep.subr.mxu0 %v1518
      %v1520 = vand.u32 %v1121, 4294901760
      %1521 = vmatpush1.msra.mxu0 %v1520
      %v1522 = vand.u32 %v1124, 4294901760
      %1523 = vmatprep.subr.mxu0 %v1522
      %v1524 = vand.u32 %v1123, 4294901760
      %1525 = vmatpush1.msra.mxu0 %v1524
      %v1526 = vand.u32 %v1126, 4294901760
      %1527 = vmatprep.subr.mxu0 %v1526
      %v1528 = vand.u32 %v1125, 4294901760
      %1529 = vmatpush1.msra.mxu0 %v1528
      %v1530 = vand.u32 %v1128, 4294901760
      %1531 = vmatprep.subr.mxu0 %v1530
      %v1532 = vand.u32 %v1127, 4294901760
      %1533 = vmatpush1.msra.mxu0 %v1532
      %v1534 = vand.u32 %v1130, 4294901760
      %1535 = vmatprep.subr.mxu0 %v1534
      %v1536 = vand.u32 %v1129, 4294901760
      %1537 = vmatpush1.msra.mxu0 %v1536
      %v1538 = vand.u32 %v1132, 4294901760
      %1539 = vmatprep.subr.mxu0 %v1538
      %v1540 = vand.u32 %v1131, 4294901760
      %1541 = vmatpush1.msra.mxu0 %v1540
      %v1542 = vand.u32 %v1134, 4294901760
      %1543 = vmatprep.subr.mxu0 %v1542
      %v1544 = vand.u32 %v1133, 4294901760
      %1545 = vmatpush1.msra.mxu0 %v1544
      %1546 = vmatprep.subr.mxu0 0.0
      %1547 = vmatpush1.msra.mxu0 0.0
      %1548 = vmatprep.subr.mxu0 0.0
      %1549 = vmatpush1.msra.mxu0 0.0
      %1550 = vmatprep.subr.mxu0 0.0
      %1551 = vmatpush1.msra.mxu0 0.0
      %1552 = vmatprep.subr.mxu0 0.0
      %1553 = vmatpush1.msra.mxu0 0.0
      %1554 = vmatprep.subr.mxu0 0.0
      %1555 = vmatpush1.msra.mxu0 0.0
      %1556 = vmatprep.subr.mxu0 0.0
      %1557 = vmatpush1.msra.mxu0 0.0
      %1558 = vmatprep.subr.mxu0 0.0
      %1559 = vmatpush1.msra.mxu0 0.0
      %1560 = vmatprep.subr.mxu0 0.0
      %1561 = vmatpush1.msra.mxu0 0.0
      %1562 = vmatprep.subr.mxu0 0.0
      %1563 = vmatpush1.msra.mxu0 0.0
      %1564 = vmatprep.subr.mxu0 0.0
      %1565 = vmatpush1.msra.mxu0 0.0
      %1566 = vmatprep.subr.mxu0 0.0
      %1567 = vmatpush1.msra.mxu0 0.0
      %1568 = vmatprep.subr.mxu0 0.0
      %1569 = vmatpush1.msra.mxu0 0.0
      %1570 = vmatprep.subr.mxu0 0.0
      %1571 = vmatpush1.msra.mxu0 0.0
      %1572 = vmatprep.subr.mxu0 0.0
      %1573 = vmatpush1.msra.mxu0 0.0
      %1574 = vmatprep.subr.mxu0 0.0
      %1575 = vmatpush1.msra.mxu0 0.0
      %1576 = vmatprep.subr.mxu0 0.0
      %1577 = vmatpush1.msra.mxu0 0.0
      %1578 = vmatprep.subr.mxu0 0.0
      %1579 = vmatpush1.msra.mxu0 0.0
      %1580 = vmatprep.subr.mxu0 0.0
      %1581 = vmatpush1.msra.mxu0 0.0
      %1582 = vmatprep.subr.mxu0 0.0
      %1583 = vmatpush1.msra.mxu0 0.0
      %1584 = vmatprep.subr.mxu0 0.0
      %1585 = vmatpush1.msra.mxu0 0.0
      %1586 = vmatprep.subr.mxu0 0.0
      %1587 = vmatpush1.msra.mxu0 0.0
      %1588 = vmatprep.subr.mxu0 0.0
      %1589 = vmatpush1.msra.mxu0 0.0
      %1590 = vmatprep.subr.mxu0 0.0
      %1591 = vmatpush1.msra.mxu0 0.0
      %1592 = vmatprep.mubr.f32.mxu0 0.0
      %v1593 = vand.u32 %v1143, 4294901760
      %v1594 = vsub.f32 %v1143, %v1593
      %v1595 = vand.u32 %v1594, 4294901760
      %1596 = vmatmul.mubr.f32.gmra.mrb[0].mxu0 %v1595
      %v1597 = vpop.f32.mrb[0].mxu0
      %v1598 = vadd.f32 %v1506, %v1597
      %v1599 = vpop.f32.mrb[0].mxu0
      %v1600 = vadd.f32 %v1508, %v1599
      %1601 = vdwg.mxu0
      %v1602 = vand.u32 %v1118, 4294901760
      %v1603 = vsub.f32 %v1118, %v1602
      %v1604 = vand.u32 %v1603, 4294901760
      %1605 = vmatprep.subr.mxu0 %v1604
      %v1606 = vand.u32 %v1117, 4294901760
      %v1607 = vsub.f32 %v1117, %v1606
      %v1608 = vand.u32 %v1607, 4294901760
      %1609 = vmatpush1.msra.mxu0 %v1608
      %v1610 = vand.u32 %v1120, 4294901760
      %v1611 = vsub.f32 %v1120, %v1610
      %v1612 = vand.u32 %v1611, 4294901760
      %1613 = vmatprep.subr.mxu0 %v1612
      %v1614 = vand.u32 %v1119, 4294901760
      %v1615 = vsub.f32 %v1119, %v1614
      %v1616 = vand.u32 %v1615, 4294901760
      %1617 = vmatpush1.msra.mxu0 %v1616
      %v1618 = vand.u32 %v1122, 4294901760
      %v1619 = vsub.f32 %v1122, %v1618
      %v1620 = vand.u32 %v1619, 4294901760
      %1621 = vmatprep.subr.mxu0 %v1620
      %v1622 = vand.u32 %v1121, 4294901760
      %v1623 = vsub.f32 %v1121, %v1622
      %v1624 = vand.u32 %v1623, 4294901760
      %1625 = vmatpush1.msra.mxu0 %v1624
      %v1626 = vand.u32 %v1124, 4294901760
      %v1627 = vsub.f32 %v1124, %v1626
      %v1628 = vand.u32 %v1627, 4294901760
      %1629 = vmatprep.subr.mxu0 %v1628
      %v1630 = vand.u32 %v1123, 4294901760
      %v1631 = vsub.f32 %v1123, %v1630
      %v1632 = vand.u32 %v1631, 4294901760
      %1633 = vmatpush1.msra.mxu0 %v1632
      %v1634 = vand.u32 %v1126, 4294901760
      %v1635 = vsub.f32 %v1126, %v1634
      %v1636 = vand.u32 %v1635, 4294901760
      %1637 = vmatprep.subr.mxu0 %v1636
      %v1638 = vand.u32 %v1125, 4294901760
      %v1639 = vsub.f32 %v1125, %v1638
      %v1640 = vand.u32 %v1639, 4294901760
      %1641 = vmatpush1.msra.mxu0 %v1640
      %v1642 = vand.u32 %v1128, 4294901760
      %v1643 = vsub.f32 %v1128, %v1642
      %v1644 = vand.u32 %v1643, 4294901760
      %1645 = vmatprep.subr.mxu0 %v1644
      %v1646 = vand.u32 %v1127, 4294901760
      %v1647 = vsub.f32 %v1127, %v1646
      %v1648 = vand.u32 %v1647, 4294901760
      %1649 = vmatpush1.msra.mxu0 %v1648
      %v1650 = vand.u32 %v1130, 4294901760
      %v1651 = vsub.f32 %v1130, %v1650
      %v1652 = vand.u32 %v1651, 4294901760
      %1653 = vmatprep.subr.mxu0 %v1652
      %v1654 = vand.u32 %v1129, 4294901760
      %v1655 = vsub.f32 %v1129, %v1654
      %v1656 = vand.u32 %v1655, 4294901760
      %1657 = vmatpush1.msra.mxu0 %v1656
      %v1658 = vand.u32 %v1132, 4294901760
      %v1659 = vsub.f32 %v1132, %v1658
      %v1660 = vand.u32 %v1659, 4294901760
      %1661 = vmatprep.subr.mxu0 %v1660
      %v1662 = vand.u32 %v1131, 4294901760
      %v1663 = vsub.f32 %v1131, %v1662
      %v1664 = vand.u32 %v1663, 4294901760
      %1665 = vmatpush1.msra.mxu0 %v1664
      %v1666 = vand.u32 %v1134, 4294901760
      %v1667 = vsub.f32 %v1134, %v1666
      %v1668 = vand.u32 %v1667, 4294901760
      %1669 = vmatprep.subr.mxu0 %v1668
      %v1670 = vand.u32 %v1133, 4294901760
      %v1671 = vsub.f32 %v1133, %v1670
      %v1672 = vand.u32 %v1671, 4294901760
      %1673 = vmatpush1.msra.mxu0 %v1672
      %1674 = vmatprep.subr.mxu0 0.0
      %1675 = vmatpush1.msra.mxu0 0.0
      %1676 = vmatprep.subr.mxu0 0.0
      %1677 = vmatpush1.msra.mxu0 0.0
      %1678 = vmatprep.subr.mxu0 0.0
      %1679 = vmatpush1.msra.mxu0 0.0
      %1680 = vmatprep.subr.mxu0 0.0
      %1681 = vmatpush1.msra.mxu0 0.0
      %1682 = vmatprep.subr.mxu0 0.0
      %1683 = vmatpush1.msra.mxu0 0.0
      %1684 = vmatprep.subr.mxu0 0.0
      %1685 = vmatpush1.msra.mxu0 0.0
      %1686 = vmatprep.subr.mxu0 0.0
      %1687 = vmatpush1.msra.mxu0 0.0
      %1688 = vmatprep.subr.mxu0 0.0
      %1689 = vmatpush1.msra.mxu0 0.0
      %1690 = vmatprep.subr.mxu0 0.0
      %1691 = vmatpush1.msra.mxu0 0.0
      %1692 = vmatprep.subr.mxu0 0.0
      %1693 = vmatpush1.msra.mxu0 0.0
      %1694 = vmatprep.subr.mxu0 0.0
      %1695 = vmatpush1.msra.mxu0 0.0
      %1696 = vmatprep.subr.mxu0 0.0
      %1697 = vmatpush1.msra.mxu0 0.0
      %1698 = vmatprep.subr.mxu0 0.0
      %1699 = vmatpush1.msra.mxu0 0.0
      %1700 = vmatprep.subr.mxu0 0.0
      %1701 = vmatpush1.msra.mxu0 0.0
      %1702 = vmatprep.subr.mxu0 0.0
      %1703 = vmatpush1.msra.mxu0 0.0
      %1704 = vmatprep.subr.mxu0 0.0
      %1705 = vmatpush1.msra.mxu0 0.0
      %1706 = vmatprep.subr.mxu0 0.0
      %1707 = vmatpush1.msra.mxu0 0.0
      %1708 = vmatprep.subr.mxu0 0.0
      %1709 = vmatpush1.msra.mxu0 0.0
      %1710 = vmatprep.subr.mxu0 0.0
      %1711 = vmatpush1.msra.mxu0 0.0
      %1712 = vmatprep.subr.mxu0 0.0
      %1713 = vmatpush1.msra.mxu0 0.0
      %1714 = vmatprep.subr.mxu0 0.0
      %1715 = vmatpush1.msra.mxu0 0.0
      %1716 = vmatprep.subr.mxu0 0.0
      %1717 = vmatpush1.msra.mxu0 0.0
      %1718 = vmatprep.subr.mxu0 0.0
      %1719 = vmatpush1.msra.mxu0 0.0
      %1720 = vmatprep.mubr.f32.mxu0 0.0
      %v1721 = vand.u32 %v1143, 4294901760
      %1722 = vmatmul.mubr.f32.gmra.mrb[0].mxu0 %v1721
      %v1723 = vpop.f32.mrb[0].mxu0
      %v1724 = vadd.f32 %v1598, %v1723
      %v1725 = vpop.f32.mrb[0].mxu0
      %v1726 = vadd.f32 %v1600, %v1725
      %1727 = vdwg.mxu0
      %v1728 = vand.u32 %v1118, 4294901760
      %1729 = vmatprep.subr.mxu0 %v1728
      %v1730 = vand.u32 %v1117, 4294901760
      %1731 = vmatpush1.msra.mxu0 %v1730
      %v1732 = vand.u32 %v1120, 4294901760
      %1733 = vmatprep.subr.mxu0 %v1732
      %v1734 = vand.u32 %v1119, 4294901760
      %1735 = vmatpush1.msra.mxu0 %v1734
      %v1736 = vand.u32 %v1122, 4294901760
      %1737 = vmatprep.subr.mxu0 %v1736
      %v1738 = vand.u32 %v1121, 4294901760
      %1739 = vmatpush1.msra.mxu0 %v1738
      %v1740 = vand.u32 %v1124, 4294901760
      %1741 = vmatprep.subr.mxu0 %v1740
      %v1742 = vand.u32 %v1123, 4294901760
      %1743 = vmatpush1.msra.mxu0 %v1742
      %v1744 = vand.u32 %v1126, 4294901760
      %1745 = vmatprep.subr.mxu0 %v1744
      %v1746 = vand.u32 %v1125, 4294901760
      %1747 = vmatpush1.msra.mxu0 %v1746
      %v1748 = vand.u32 %v1128, 4294901760
      %1749 = vmatprep.subr.mxu0 %v1748
      %v1750 = vand.u32 %v1127, 4294901760
      %1751 = vmatpush1.msra.mxu0 %v1750
      %v1752 = vand.u32 %v1130, 4294901760
      %1753 = vmatprep.subr.mxu0 %v1752
      %v1754 = vand.u32 %v1129, 4294901760
      %1755 = vmatpush1.msra.mxu0 %v1754
      %v1756 = vand.u32 %v1132, 4294901760
      %1757 = vmatprep.subr.mxu0 %v1756
      %v1758 = vand.u32 %v1131, 4294901760
      %1759 = vmatpush1.msra.mxu0 %v1758
      %v1760 = vand.u32 %v1134, 4294901760
      %1761 = vmatprep.subr.mxu0 %v1760
      %v1762 = vand.u32 %v1133, 4294901760
      %1763 = vmatpush1.msra.mxu0 %v1762
      %1764 = vmatprep.subr.mxu0 0.0
      %1765 = vmatpush1.msra.mxu0 0.0
      %1766 = vmatprep.subr.mxu0 0.0
      %1767 = vmatpush1.msra.mxu0 0.0
      %1768 = vmatprep.subr.mxu0 0.0
      %1769 = vmatpush1.msra.mxu0 0.0
      %1770 = vmatprep.subr.mxu0 0.0
      %1771 = vmatpush1.msra.mxu0 0.0
      %1772 = vmatprep.subr.mxu0 0.0
      %1773 = vmatpush1.msra.mxu0 0.0
      %1774 = vmatprep.subr.mxu0 0.0
      %1775 = vmatpush1.msra.mxu0 0.0
      %1776 = vmatprep.subr.mxu0 0.0
      %1777 = vmatpush1.msra.mxu0 0.0
      %1778 = vmatprep.subr.mxu0 0.0
      %1779 = vmatpush1.msra.mxu0 0.0
      %1780 = vmatprep.subr.mxu0 0.0
      %1781 = vmatpush1.msra.mxu0 0.0
      %1782 = vmatprep.subr.mxu0 0.0
      %1783 = vmatpush1.msra.mxu0 0.0
      %1784 = vmatprep.subr.mxu0 0.0
      %1785 = vmatpush1.msra.mxu0 0.0
      %1786 = vmatprep.subr.mxu0 0.0
      %1787 = vmatpush1.msra.mxu0 0.0
      %1788 = vmatprep.subr.mxu0 0.0
      %1789 = vmatpush1.msra.mxu0 0.0
      %1790 = vmatprep.subr.mxu0 0.0
      %1791 = vmatpush1.msra.mxu0 0.0
      %1792 = vmatprep.subr.mxu0 0.0
      %1793 = vmatpush1.msra.mxu0 0.0
      %1794 = vmatprep.subr.mxu0 0.0
      %1795 = vmatpush1.msra.mxu0 0.0
      %1796 = vmatprep.subr.mxu0 0.0
      %1797 = vmatpush1.msra.mxu0 0.0
      %1798 = vmatprep.subr.mxu0 0.0
      %1799 = vmatpush1.msra.mxu0 0.0
      %1800 = vmatprep.subr.mxu0 0.0
      %1801 = vmatpush1.msra.mxu0 0.0
      %1802 = vmatprep.subr.mxu0 0.0
      %1803 = vmatpush1.msra.mxu0 0.0
      %1804 = vmatprep.subr.mxu0 0.0
      %1805 = vmatpush1.msra.mxu0 0.0
      %1806 = vmatprep.subr.mxu0 0.0
      %1807 = vmatpush1.msra.mxu0 0.0
      %1808 = vmatprep.subr.mxu0 0.0
      %1809 = vmatpush1.msra.mxu0 0.0
      %1810 = vmatprep.mubr.f32.mxu0 0.0
      %v1811 = vand.u32 %v1143, 4294901760
      %1812 = vmatmul.mubr.f32.gmra.mrb[0].mxu0 %v1811
      %v1813 = vpop.f32.mrb[0].mxu0
      %v1814 = vadd.f32 %v1724, %v1813
      %v1815 = vpop.f32.mrb[0].mxu0
      %v1816 = vadd.f32 %v1726, %v1815
      %1817 = vdwg.mxu0
      %vm1818 = vcmp.ge.f32.partialorder %v1814, 0.0
      %vm1819 = vcmp.ge.f32.partialorder %v1816, 0.0
      %v1820 = vmul.f32 %v1814, 0.01
      %v1821 = vmul.f32 %v1816, 0.01
      %v1822 = vsel %vm1818, %v1814, %v1820
      %v1823 = vsel %vm1819, %v1816, %v1821
      %1824 = vrot.lane.b32.xlu0 %v1822, 17
      %v1825 = vpop.permute.xlu0 %1824
      %1826 = vrot.lane.b32.xlu0 %v1823, 17
      %v1827 = vpop.permute.xlu0 %1826
      %v1828 = vsel %vm206, %v1825, %v1827
      %v1829 = vsel %vm206, %v1827, %v1825
      %v1830 = vld [vmem:[%s3] sm:$0xff]
      %v1831 = vld [vmem:[%s3 + $0x8] sm:$0xff]
      %v1832 = vmul.f32 %v1829, %v1830
      %v1833 = vmul.f32 %v1828, %v1831
      %1834 = vst [vmem:[#allocation2] sm:$0xff] %v1832
      %1835 = vst [vmem:[#allocation2 + $0x8] sm:$0xff] %v1833
      %1836 = vrot.lane.b32.xlu0 %v1822, 16
      %v1837 = vpop.permute.xlu0 %1836
      %1838 = vrot.lane.b32.xlu0 %v1823, 16
      %v1839 = vpop.permute.xlu0 %1838
      %v1840 = vsel %vm219, %v1837, %v1839
      %v1841 = vsel %vm219, %v1839, %v1837
      %v1842 = vld [vmem:[%s222] sm:$0xff]
      %v1843 = vld [vmem:[%s222 + $0x8] sm:$0xff]
      %v1844 = vmul.f32 %v1841, %v1842
      %v1845 = vmul.f32 %v1840, %v1843
      %1846 = vst [vmem:[#allocation2 + $0x10] sm:$0xff] %v1844
      %1847 = vst [vmem:[#allocation2 + $0x18] sm:$0xff] %v1845
      %1848 = vrot.lane.b32.xlu0 %v1822, 15
      %v1849 = vpop.permute.xlu0 %1848
      %1850 = vrot.lane.b32.xlu0 %v1823, 15
      %v1851 = vpop.permute.xlu0 %1850
      %v1852 = vsel %vm233, %v1849, %v1851
      %v1853 = vsel %vm233, %v1851, %v1849
      %v1854 = vld [vmem:[%s236] sm:$0xff]
      %v1855 = vld [vmem:[%s236 + $0x8] sm:$0xff]
      %v1856 = vmul.f32 %v1853, %v1854
      %v1857 = vmul.f32 %v1852, %v1855
      %1858 = vst [vmem:[#allocation2 + $0x20] sm:$0xff] %v1856
      %1859 = vst [vmem:[#allocation2 + $0x28] sm:$0xff] %v1857
      %1860 = vrot.lane.b32.xlu0 %v1822, 1
      %v1861 = vpop.permute.xlu0 %1860
      %1862 = vrot.lane.b32.xlu0 %v1823, 1
      %v1863 = vpop.permute.xlu0 %1862
      %v1864 = vsel %vm247, %v1861, %v1863
      %v1865 = vsel %vm247, %v1863, %v1861
      %v1866 = vld [vmem:[%s250] sm:$0xff]
      %v1867 = vld [vmem:[%s250 + $0x8] sm:$0xff]
      %v1868 = vmul.f32 %v1865, %v1866
      %v1869 = vmul.f32 %v1864, %v1867
      %1870 = vst [vmem:[#allocation2 + $0x30] sm:$0xff] %v1868
      %1871 = vst [vmem:[#allocation2 + $0x38] sm:$0xff] %v1869
      %1872 = vst [vmem:[#allocation2 + $0x40] sm:$0xff] %v1822
      %1873 = vst [vmem:[#allocation2 + $0x48] sm:$0xff] %v1823
      %1874 = vrot.lane.b32.xlu0 %v1822, 127
      %v1875 = vpop.permute.xlu0 %1874
      %1876 = vrot.lane.b32.xlu0 %v1823, 127
      %v1877 = vpop.permute.xlu0 %1876
      %v1878 = vsel %vm263, %v1875, %v1877
      %v1879 = vsel %vm263, %v1877, %v1875
      %v1880 = vld [vmem:[%s266] sm:$0xff]
      %v1881 = vld [vmem:[%s266 + $0x8] sm:$0xff]
      %v1882 = vmul.f32 %v1878, %v1880
      %v1883 = vmul.f32 %v1879, %v1881
      %1884 = vst [vmem:[#allocation2 + $0x50] sm:$0xff] %v1882
      %1885 = vst [vmem:[#allocation2 + $0x58] sm:$0xff] %v1883
      %1886 = vrot.lane.b32.xlu0 %v1822, 113
      %v1887 = vpop.permute.xlu0 %1886
      %1888 = vrot.lane.b32.xlu0 %v1823, 113
      %v1889 = vpop.permute.xlu0 %1888
      %v1890 = vsel %vm277, %v1887, %v1889
      %v1891 = vsel %vm277, %v1889, %v1887
      %v1892 = vld [vmem:[%s280] sm:$0xff]
      %v1893 = vld [vmem:[%s280 + $0x8] sm:$0xff]
      %v1894 = vmul.f32 %v1890, %v1892
      %v1895 = vmul.f32 %v1891, %v1893
      %1896 = vst [vmem:[#allocation2 + $0x60] sm:$0xff] %v1894
      %1897 = vst [vmem:[#allocation2 + $0x68] sm:$0xff] %v1895
      %1898 = vrot.lane.b32.xlu0 %v1822, 112
      %v1899 = vpop.permute.xlu0 %1898
      %1900 = vrot.lane.b32.xlu0 %v1823, 112
      %v1901 = vpop.permute.xlu0 %1900
      %v1902 = vsel %vm291, %v1899, %v1901
      %v1903 = vsel %vm291, %v1901, %v1899
      %v1904 = vld [vmem:[%s294] sm:$0xff]
      %v1905 = vld [vmem:[%s294 + $0x8] sm:$0xff]
      %v1906 = vmul.f32 %v1902, %v1904
      %v1907 = vmul.f32 %v1903, %v1905
      %1908 = vst [vmem:[#allocation2 + $0x70] sm:$0xff] %v1906
      %1909 = vst [vmem:[#allocation2 + $0x78] sm:$0xff] %v1907
      %1910 = vrot.lane.b32.xlu0 %v1822, 111
      %v1911 = vpop.permute.xlu0 %1910
      %1912 = vrot.lane.b32.xlu0 %v1823, 111
      %v1913 = vpop.permute.xlu0 %1912
      %v1914 = vsel %vm305, %v1911, %v1913
      %v1915 = vsel %vm305, %v1913, %v1911
      %v1916 = vld [vmem:[%s308] sm:$0xff]
      %v1917 = vld [vmem:[%s308 + $0x8] sm:$0xff]
      %v1918 = vmul.f32 %v1914, %v1916
      %v1919 = vmul.f32 %v1915, %v1917
      %1920 = vst [vmem:[#allocation2 + $0x80] sm:$0xff] %v1918
      %1921 = vst [vmem:[#allocation2 + $0x88] sm:$0xff] %v1919
      %s1922 = scalar_lea.vmem %s1, 16
      %v1923 = vld [vmem:[%s1922] sm:$0xff]
      %v1924 = vld [vmem:[#allocation2] sm:$0xff]
      %v1925 = vld [vmem:[#allocation2 + $0x8] sm:$0xff]
      %v1926 = vld [vmem:[#allocation2 + $0x10] sm:$0xff]
      %v1927 = vld [vmem:[#allocation2 + $0x18] sm:$0xff]
      %v1928 = vld [vmem:[#allocation2 + $0x20] sm:$0xff]
      %v1929 = vld [vmem:[#allocation2 + $0x28] sm:$0xff]
      %v1930 = vld [vmem:[#allocation2 + $0x30] sm:$0xff]
      %v1931 = vld [vmem:[#allocation2 + $0x38] sm:$0xff]
      %v1932 = vld [vmem:[#allocation2 + $0x40] sm:$0xff]
      %v1933 = vld [vmem:[#allocation2 + $0x48] sm:$0xff]
      %v1934 = vld [vmem:[#allocation2 + $0x50] sm:$0xff]
      %v1935 = vld [vmem:[#allocation2 + $0x58] sm:$0xff]
      %v1936 = vld [vmem:[#allocation2 + $0x60] sm:$0xff]
      %v1937 = vld [vmem:[#allocation2 + $0x68] sm:$0xff]
      %v1938 = vld [vmem:[#allocation2 + $0x70] sm:$0xff]
      %v1939 = vld [vmem:[#allocation2 + $0x78] sm:$0xff]
      %v1940 = vld [vmem:[#allocation2 + $0x80] sm:$0xff]
      %v1941 = vld [vmem:[#allocation2 + $0x88] sm:$0xff]
      %s1942 = scalar_lea.vmem %s2, 16
      %v1943 = vld [vmem:[%s1942] sm:$0xff]
      %1945 = vset.pattern.permute.xlu0 0
      %1946 = vperm.xlu0 %1945, %v1943
      %v1947 = vpop.permute.xlu0 %1946
      %v1950 = vsel %vm340, %v1923, 0
      %v1952 = vand.u32 %v1925, 4294901760
      %1953 = vmatprep.subr.mxu0 %v1952
      %v1954 = vand.u32 %v1924, 4294901760
      %1955 = vmatpush1.msra.mxu0 %v1954
      %v1956 = vand.u32 %v1927, 4294901760
      %1957 = vmatprep.subr.mxu0 %v1956
      %v1958 = vand.u32 %v1926, 4294901760
      %1959 = vmatpush1.msra.mxu0 %v1958
      %v1960 = vand.u32 %v1929, 4294901760
      %1961 = vmatprep.subr.mxu0 %v1960
      %v1962 = vand.u32 %v1928, 4294901760
      %1963 = vmatpush1.msra.mxu0 %v1962
      %v1964 = vand.u32 %v1931, 4294901760
      %1965 = vmatprep.subr.mxu0 %v1964
      %v1966 = vand.u32 %v1930, 4294901760
      %1967 = vmatpush1.msra.mxu0 %v1966
      %v1968 = vand.u32 %v1933, 4294901760
      %1969 = vmatprep.subr.mxu0 %v1968
      %v1970 = vand.u32 %v1932, 4294901760
      %1971 = vmatpush1.msra.mxu0 %v1970
      %v1972 = vand.u32 %v1935, 4294901760
      %1973 = vmatprep.subr.mxu0 %v1972
      %v1974 = vand.u32 %v1934, 4294901760
      %1975 = vmatpush1.msra.mxu0 %v1974
      %v1976 = vand.u32 %v1937, 4294901760
      %1977 = vmatprep.subr.mxu0 %v1976
      %v1978 = vand.u32 %v1936, 4294901760
      %1979 = vmatpush1.msra.mxu0 %v1978
      %v1980 = vand.u32 %v1939, 4294901760
      %1981 = vmatprep.subr.mxu0 %v1980
      %v1982 = vand.u32 %v1938, 4294901760
      %1983 = vmatpush1.msra.mxu0 %v1982
      %v1984 = vand.u32 %v1941, 4294901760
      %1985 = vmatprep.subr.mxu0 %v1984
      %v1986 = vand.u32 %v1940, 4294901760
      %1987 = vmatpush1.msra.mxu0 %v1986
      %1988 = vmatprep.subr.mxu0 0.0
      %1989 = vmatpush1.msra.mxu0 0.0
      %1990 = vmatprep.subr.mxu0 0.0
      %1991 = vmatpush1.msra.mxu0 0.0
      %1992 = vmatprep.subr.mxu0 0.0
      %1993 = vmatpush1.msra.mxu0 0.0
      %1994 = vmatprep.subr.mxu0 0.0
      %1995 = vmatpush1.msra.mxu0 0.0
      %1996 = vmatprep.subr.mxu0 0.0
      %1997 = vmatpush1.msra.mxu0 0.0
      %1998 = vmatprep.subr.mxu0 0.0
      %1999 = vmatpush1.msra.mxu0 0.0
      %2000 = vmatprep.subr.mxu0 0.0
      %2001 = vmatpush1.msra.mxu0 0.0
      %2002 = vmatprep.subr.mxu0 0.0
      %2003 = vmatpush1.msra.mxu0 0.0
      %2004 = vmatprep.subr.mxu0 0.0
      %2005 = vmatpush1.msra.mxu0 0.0
      %2006 = vmatprep.subr.mxu0 0.0
      %2007 = vmatpush1.msra.mxu0 0.0
      %2008 = vmatprep.subr.mxu0 0.0
      %2009 = vmatpush1.msra.mxu0 0.0
      %2010 = vmatprep.subr.mxu0 0.0
      %2011 = vmatpush1.msra.mxu0 0.0
      %2012 = vmatprep.subr.mxu0 0.0
      %2013 = vmatpush1.msra.mxu0 0.0
      %2014 = vmatprep.subr.mxu0 0.0
      %2015 = vmatpush1.msra.mxu0 0.0
      %2016 = vmatprep.subr.mxu0 0.0
      %2017 = vmatpush1.msra.mxu0 0.0
      %2018 = vmatprep.subr.mxu0 0.0
      %2019 = vmatpush1.msra.mxu0 0.0
      %2020 = vmatprep.subr.mxu0 0.0
      %2021 = vmatpush1.msra.mxu0 0.0
      %2022 = vmatprep.subr.mxu0 0.0
      %2023 = vmatpush1.msra.mxu0 0.0
      %2024 = vmatprep.subr.mxu0 0.0
      %2025 = vmatpush1.msra.mxu0 0.0
      %2026 = vmatprep.subr.mxu0 0.0
      %2027 = vmatpush1.msra.mxu0 0.0
      %2028 = vmatprep.subr.mxu0 0.0
      %2029 = vmatpush1.msra.mxu0 0.0
      %2030 = vmatprep.subr.mxu0 0.0
      %2031 = vmatpush1.msra.mxu0 0.0
      %2032 = vmatprep.subr.mxu0 0.0
      %2033 = vmatpush1.msra.mxu0 0.0
      %2034 = vmatprep.mubr.f32.mxu0 0.0
      %v2035 = vand.u32 %v1950, 4294901760
      %v2036 = vsub.f32 %v1950, %v2035
      %v2037 = vand.u32 %v2036, 4294901760
      %v2038 = vsub.f32 %v2036, %v2037
      %v2039 = vand.u32 %v2038, 4294901760
      %2040 = vmatmul.mubr.f32.gmra.mrb[0].mxu0 %v2039
      %v2041 = vpop.f32.mrb[0].mxu0
      %v2042 = vadd.f32 %v1947, %v2041
      %v2043 = vpop.f32.mrb[0].mxu0
      %v2044 = vadd.f32 %v1947, %v2043
      %2045 = vdwg.mxu0
      %v2046 = vand.u32 %v1925, 4294901760
      %v2047 = vsub.f32 %v1925, %v2046
      %v2048 = vand.u32 %v2047, 4294901760
      %v2049 = vsub.f32 %v2047, %v2048
      %v2050 = vand.u32 %v2049, 4294901760
      %2051 = vmatprep.subr.mxu0 %v2050
      %v2052 = vand.u32 %v1924, 4294901760
      %v2053 = vsub.f32 %v1924, %v2052
      %v2054 = vand.u32 %v2053, 4294901760
      %v2055 = vsub.f32 %v2053, %v2054
      %v2056 = vand.u32 %v2055, 4294901760
      %2057 = vmatpush1.msra.mxu0 %v2056
      %v2058 = vand.u32 %v1927, 4294901760
      %v2059 = vsub.f32 %v1927, %v2058
      %v2060 = vand.u32 %v2059, 4294901760
      %v2061 = vsub.f32 %v2059, %v2060
      %v2062 = vand.u32 %v2061, 4294901760
      %2063 = vmatprep.subr.mxu0 %v2062
      %v2064 = vand.u32 %v1926, 4294901760
      %v2065 = vsub.f32 %v1926, %v2064
      %v2066 = vand.u32 %v2065, 4294901760
      %v2067 = vsub.f32 %v2065, %v2066
      %v2068 = vand.u32 %v2067, 4294901760
      %2069 = vmatpush1.msra.mxu0 %v2068
      %v2070 = vand.u32 %v1929, 4294901760
      %v2071 = vsub.f32 %v1929, %v2070
      %v2072 = vand.u32 %v2071, 4294901760
      %v2073 = vsub.f32 %v2071, %v2072
      %v2074 = vand.u32 %v2073, 4294901760
      %2075 = vmatprep.subr.mxu0 %v2074
      %v2076 = vand.u32 %v1928, 4294901760
      %v2077 = vsub.f32 %v1928, %v2076
      %v2078 = vand.u32 %v2077, 4294901760
      %v2079 = vsub.f32 %v2077, %v2078
      %v2080 = vand.u32 %v2079, 4294901760
      %2081 = vmatpush1.msra.mxu0 %v2080
      %v2082 = vand.u32 %v1931, 4294901760
      %v2083 = vsub.f32 %v1931, %v2082
      %v2084 = vand.u32 %v2083, 4294901760
      %v2085 = vsub.f32 %v2083, %v2084
      %v2086 = vand.u32 %v2085, 4294901760
      %2087 = vmatprep.subr.mxu0 %v2086
      %v2088 = vand.u32 %v1930, 4294901760
      %v2089 = vsub.f32 %v1930, %v2088
      %v2090 = vand.u32 %v2089, 4294901760
      %v2091 = vsub.f32 %v2089, %v2090
      %v2092 = vand.u32 %v2091, 4294901760
      %2093 = vmatpush1.msra.mxu0 %v2092
      %v2094 = vand.u32 %v1933, 4294901760
      %v2095 = vsub.f32 %v1933, %v2094
      %v2096 = vand.u32 %v2095, 4294901760
      %v2097 = vsub.f32 %v2095, %v2096
      %v2098 = vand.u32 %v2097, 4294901760
      %2099 = vmatprep.subr.mxu0 %v2098
      %v2100 = vand.u32 %v1932, 4294901760
      %v2101 = vsub.f32 %v1932, %v2100
      %v2102 = vand.u32 %v2101, 4294901760
      %v2103 = vsub.f32 %v2101, %v2102
      %v2104 = vand.u32 %v2103, 4294901760
      %2105 = vmatpush1.msra.mxu0 %v2104
      %v2106 = vand.u32 %v1935, 4294901760
      %v2107 = vsub.f32 %v1935, %v2106
      %v2108 = vand.u32 %v2107, 4294901760
      %v2109 = vsub.f32 %v2107, %v2108
      %v2110 = vand.u32 %v2109, 4294901760
      %2111 = vmatprep.subr.mxu0 %v2110
      %v2112 = vand.u32 %v1934, 4294901760
      %v2113 = vsub.f32 %v1934, %v2112
      %v2114 = vand.u32 %v2113, 4294901760
      %v2115 = vsub.f32 %v2113, %v2114
      %v2116 = vand.u32 %v2115, 4294901760
      %2117 = vmatpush1.msra.mxu0 %v2116
      %v2118 = vand.u32 %v1937, 4294901760
      %v2119 = vsub.f32 %v1937, %v2118
      %v2120 = vand.u32 %v2119, 4294901760
      %v2121 = vsub.f32 %v2119, %v2120
      %v2122 = vand.u32 %v2121, 4294901760
      %2123 = vmatprep.subr.mxu0 %v2122
      %v2124 = vand.u32 %v1936, 4294901760
      %v2125 = vsub.f32 %v1936, %v2124
      %v2126 = vand.u32 %v2125, 4294901760
      %v2127 = vsub.f32 %v2125, %v2126
      %v2128 = vand.u32 %v2127, 4294901760
      %2129 = vmatpush1.msra.mxu0 %v2128
      %v2130 = vand.u32 %v1939, 4294901760
      %v2131 = vsub.f32 %v1939, %v2130
      %v2132 = vand.u32 %v2131, 4294901760
      %v2133 = vsub.f32 %v2131, %v2132
      %v2134 = vand.u32 %v2133, 4294901760
      %2135 = vmatprep.subr.mxu0 %v2134
      %v2136 = vand.u32 %v1938, 4294901760
      %v2137 = vsub.f32 %v1938, %v2136
      %v2138 = vand.u32 %v2137, 4294901760
      %v2139 = vsub.f32 %v2137, %v2138
      %v2140 = vand.u32 %v2139, 4294901760
      %2141 = vmatpush1.msra.mxu0 %v2140
      %v2142 = vand.u32 %v1941, 4294901760
      %v2143 = vsub.f32 %v1941, %v2142
      %v2144 = vand.u32 %v2143, 4294901760
      %v2145 = vsub.f32 %v2143, %v2144
      %v2146 = vand.u32 %v2145, 4294901760
      %2147 = vmatprep.subr.mxu0 %v2146
      %v2148 = vand.u32 %v1940, 4294901760
      %v2149 = vsub.f32 %v1940, %v2148
      %v2150 = vand.u32 %v2149, 4294901760
      %v2151 = vsub.f32 %v2149, %v2150
      %v2152 = vand.u32 %v2151, 4294901760
      %2153 = vmatpush1.msra.mxu0 %v2152
      %2154 = vmatprep.subr.mxu0 0.0
      %2155 = vmatpush1.msra.mxu0 0.0
      %2156 = vmatprep.subr.mxu0 0.0
      %2157 = vmatpush1.msra.mxu0 0.0
      %2158 = vmatprep.subr.mxu0 0.0
      %2159 = vmatpush1.msra.mxu0 0.0
      %2160 = vmatprep.subr.mxu0 0.0
      %2161 = vmatpush1.msra.mxu0 0.0
      %2162 = vmatprep.subr.mxu0 0.0
      %2163 = vmatpush1.msra.mxu0 0.0
      %2164 = vmatprep.subr.mxu0 0.0
      %2165 = vmatpush1.msra.mxu0 0.0
      %2166 = vmatprep.subr.mxu0 0.0
      %2167 = vmatpush1.msra.mxu0 0.0
      %2168 = vmatprep.subr.mxu0 0.0
      %2169 = vmatpush1.msra.mxu0 0.0
      %2170 = vmatprep.subr.mxu0 0.0
      %2171 = vmatpush1.msra.mxu0 0.0
      %2172 = vmatprep.subr.mxu0 0.0
      %2173 = vmatpush1.msra.mxu0 0.0
      %2174 = vmatprep.subr.mxu0 0.0
      %2175 = vmatpush1.msra.mxu0 0.0
      %2176 = vmatprep.subr.mxu0 0.0
      %2177 = vmatpush1.msra.mxu0 0.0
      %2178 = vmatprep.subr.mxu0 0.0
      %2179 = vmatpush1.msra.mxu0 0.0
      %2180 = vmatprep.subr.mxu0 0.0
      %2181 = vmatpush1.msra.mxu0 0.0
      %2182 = vmatprep.subr.mxu0 0.0
      %2183 = vmatpush1.msra.mxu0 0.0
      %2184 = vmatprep.subr.mxu0 0.0
      %2185 = vmatpush1.msra.mxu0 0.0
      %2186 = vmatprep.subr.mxu0 0.0
      %2187 = vmatpush1.msra.mxu0 0.0
      %2188 = vmatprep.subr.mxu0 0.0
      %2189 = vmatpush1.msra.mxu0 0.0
      %2190 = vmatprep.subr.mxu0 0.0
      %2191 = vmatpush1.msra.mxu0 0.0
      %2192 = vmatprep.subr.mxu0 0.0
      %2193 = vmatpush1.msra.mxu0 0.0
      %2194 = vmatprep.subr.mxu0 0.0
      %2195 = vmatpush1.msra.mxu0 0.0
      %2196 = vmatprep.subr.mxu0 0.0
      %2197 = vmatpush1.msra.mxu0 0.0
      %2198 = vmatprep.subr.mxu0 0.0
      %2199 = vmatpush1.msra.mxu0 0.0
      %2200 = vmatprep.mubr.f32.mxu0 0.0
      %v2201 = vand.u32 %v1950, 4294901760
      %2202 = vmatmul.mubr.f32.gmra.mrb[0].mxu0 %v2201
      %v2203 = vpop.f32.mrb[0].mxu0
      %v2204 = vadd.f32 %v2042, %v2203
      %v2205 = vpop.f32.mrb[0].mxu0
      %v2206 = vadd.f32 %v2044, %v2205
      %2207 = vdwg.mxu0
      %v2208 = vand.u32 %v1925, 4294901760
      %v2209 = vsub.f32 %v1925, %v2208
      %2210 = vmatprep.subr.mxu0 %v2209
      %v2211 = vand.u32 %v1924, 4294901760
      %v2212 = vsub.f32 %v1924, %v2211
      %2213 = vmatpush1.msra.mxu0 %v2212
      %v2214 = vand.u32 %v1927, 4294901760
      %v2215 = vsub.f32 %v1927, %v2214
      %2216 = vmatprep.subr.mxu0 %v2215
      %v2217 = vand.u32 %v1926, 4294901760
      %v2218 = vsub.f32 %v1926, %v2217
      %2219 = vmatpush1.msra.mxu0 %v2218
      %v2220 = vand.u32 %v1929, 4294901760
      %v2221 = vsub.f32 %v1929, %v2220
      %2222 = vmatprep.subr.mxu0 %v2221
      %v2223 = vand.u32 %v1928, 4294901760
      %v2224 = vsub.f32 %v1928, %v2223
      %2225 = vmatpush1.msra.mxu0 %v2224
      %v2226 = vand.u32 %v1931, 4294901760
      %v2227 = vsub.f32 %v1931, %v2226
      %2228 = vmatprep.subr.mxu0 %v2227
      %v2229 = vand.u32 %v1930, 4294901760
      %v2230 = vsub.f32 %v1930, %v2229
      %2231 = vmatpush1.msra.mxu0 %v2230
      %v2232 = vand.u32 %v1933, 4294901760
      %v2233 = vsub.f32 %v1933, %v2232
      %2234 = vmatprep.subr.mxu0 %v2233
      %v2235 = vand.u32 %v1932, 4294901760
      %v2236 = vsub.f32 %v1932, %v2235
      %2237 = vmatpush1.msra.mxu0 %v2236
      %v2238 = vand.u32 %v1935, 4294901760
      %v2239 = vsub.f32 %v1935, %v2238
      %2240 = vmatprep.subr.mxu0 %v2239
      %v2241 = vand.u32 %v1934, 4294901760
      %v2242 = vsub.f32 %v1934, %v2241
      %2243 = vmatpush1.msra.mxu0 %v2242
      %v2244 = vand.u32 %v1937, 4294901760
      %v2245 = vsub.f32 %v1937, %v2244
      %2246 = vmatprep.subr.mxu0 %v2245
      %v2247 = vand.u32 %v1936, 4294901760
      %v2248 = vsub.f32 %v1936, %v2247
      %2249 = vmatpush1.msra.mxu0 %v2248
      %v2250 = vand.u32 %v1939, 4294901760
      %v2251 = vsub.f32 %v1939, %v2250
      %2252 = vmatprep.subr.mxu0 %v2251
      %v2253 = vand.u32 %v1938, 4294901760
      %v2254 = vsub.f32 %v1938, %v2253
      %2255 = vmatpush1.msra.mxu0 %v2254
      %v2256 = vand.u32 %v1941, 4294901760
      %v2257 = vsub.f32 %v1941, %v2256
      %2258 = vmatprep.subr.mxu0 %v2257
      %v2259 = vand.u32 %v1940, 4294901760
      %v2260 = vsub.f32 %v1940, %v2259
      %2261 = vmatpush1.msra.mxu0 %v2260
      %2262 = vmatprep.subr.mxu0 0.0
      %2263 = vmatpush1.msra.mxu0 0.0
      %2264 = vmatprep.subr.mxu0 0.0
      %2265 = vmatpush1.msra.mxu0 0.0
      %2266 = vmatprep.subr.mxu0 0.0
      %2267 = vmatpush1.msra.mxu0 0.0
      %2268 = vmatprep.subr.mxu0 0.0
      %2269 = vmatpush1.msra.mxu0 0.0
      %2270 = vmatprep.subr.mxu0 0.0
      %2271 = vmatpush1.msra.mxu0 0.0
      %2272 = vmatprep.subr.mxu0 0.0
      %2273 = vmatpush1.msra.mxu0 0.0
      %2274 = vmatprep.subr.mxu0 0.0
      %2275 = vmatpush1.msra.mxu0 0.0
      %2276 = vmatprep.subr.mxu0 0.0
      %2277 = vmatpush1.msra.mxu0 0.0
      %2278 = vmatprep.subr.mxu0 0.0
      %2279 = vmatpush1.msra.mxu0 0.0
      %2280 = vmatprep.subr.mxu0 0.0
      %2281 = vmatpush1.msra.mxu0 0.0
      %2282 = vmatprep.subr.mxu0 0.0
      %2283 = vmatpush1.msra.mxu0 0.0
      %2284 = vmatprep.subr.mxu0 0.0
      %2285 = vmatpush1.msra.mxu0 0.0
      %2286 = vmatprep.subr.mxu0 0.0
      %2287 = vmatpush1.msra.mxu0 0.0
      %2288 = vmatprep.subr.mxu0 0.0
      %2289 = vmatpush1.msra.mxu0 0.0
      %2290 = vmatprep.subr.mxu0 0.0
      %2291 = vmatpush1.msra.mxu0 0.0
      %2292 = vmatprep.subr.mxu0 0.0
      %2293 = vmatpush1.msra.mxu0 0.0
      %2294 = vmatprep.subr.mxu0 0.0
      %2295 = vmatpush1.msra.mxu0 0.0
      %2296 = vmatprep.subr.mxu0 0.0
      %2297 = vmatpush1.msra.mxu0 0.0
      %2298 = vmatprep.subr.mxu0 0.0
      %2299 = vmatpush1.msra.mxu0 0.0
      %2300 = vmatprep.subr.mxu0 0.0
      %2301 = vmatpush1.msra.mxu0 0.0
      %2302 = vmatprep.subr.mxu0 0.0
      %2303 = vmatpush1.msra.mxu0 0.0
      %2304 = vmatprep.subr.mxu0 0.0
      %2305 = vmatpush1.msra.mxu0 0.0
      %2306 = vmatprep.subr.mxu0 0.0
      %2307 = vmatpush1.msra.mxu0 0.0
      %2308 = vmatprep.mubr.f32.mxu0 0.0
      %v2309 = vand.u32 %v1950, 4294901760
      %v2310 = vsub.f32 %v1950, %v2309
      %2311 = vmatmul.mubr.f32.gmra.mrb[0].mxu0 %v2310
      %v2312 = vpop.f32.mrb[0].mxu0
      %v2313 = vadd.f32 %v2204, %v2312
      %v2314 = vpop.f32.mrb[0].mxu0
      %v2315 = vadd.f32 %v2206, %v2314
      %2316 = vdwg.mxu0
      %v2317 = vand.u32 %v1925, 4294901760
      %2318 = vmatprep.subr.mxu0 %v2317
      %v2319 = vand.u32 %v1924, 4294901760
      %2320 = vmatpush1.msra.mxu0 %v2319
      %v2321 = vand.u32 %v1927, 4294901760
      %2322 = vmatprep.subr.mxu0 %v2321
      %v2323 = vand.u32 %v1926, 4294901760
      %2324 = vmatpush1.msra.mxu0 %v2323
      %v2325 = vand.u32 %v1929, 4294901760
      %2326 = vmatprep.subr.mxu0 %v2325
      %v2327 = vand.u32 %v1928, 4294901760
      %2328 = vmatpush1.msra.mxu0 %v2327
      %v2329 = vand.u32 %v1931, 4294901760
      %2330 = vmatprep.subr.mxu0 %v2329
      %v2331 = vand.u32 %v1930, 4294901760
      %2332 = vmatpush1.msra.mxu0 %v2331
      %v2333 = vand.u32 %v1933, 4294901760
      %2334 = vmatprep.subr.mxu0 %v2333
      %v2335 = vand.u32 %v1932, 4294901760
      %2336 = vmatpush1.msra.mxu0 %v2335
      %v2337 = vand.u32 %v1935, 4294901760
      %2338 = vmatprep.subr.mxu0 %v2337
      %v2339 = vand.u32 %v1934, 4294901760
      %2340 = vmatpush1.msra.mxu0 %v2339
      %v2341 = vand.u32 %v1937, 4294901760
      %2342 = vmatprep.subr.mxu0 %v2341
      %v2343 = vand.u32 %v1936, 4294901760
      %2344 = vmatpush1.msra.mxu0 %v2343
      %v2345 = vand.u32 %v1939, 4294901760
      %2346 = vmatprep.subr.mxu0 %v2345
      %v2347 = vand.u32 %v1938, 4294901760
      %2348 = vmatpush1.msra.mxu0 %v2347
      %v2349 = vand.u32 %v1941, 4294901760
      %2350 = vmatprep.subr.mxu0 %v2349
      %v2351 = vand.u32 %v1940, 4294901760
      %2352 = vmatpush1.msra.mxu0 %v2351
      %2353 = vmatprep.subr.mxu0 0.0
      %2354 = vmatpush1.msra.mxu0 0.0
      %2355 = vmatprep.subr.mxu0 0.0
      %2356 = vmatpush1.msra.mxu0 0.0
      %2357 = vmatprep.subr.mxu0 0.0
      %2358 = vmatpush1.msra.mxu0 0.0
      %2359 = vmatprep.subr.mxu0 0.0
      %2360 = vmatpush1.msra.mxu0 0.0
      %2361 = vmatprep.subr.mxu0 0.0
      %2362 = vmatpush1.msra.mxu0 0.0
      %2363 = vmatprep.subr.mxu0 0.0
      %2364 = vmatpush1.msra.mxu0 0.0
      %2365 = vmatprep.subr.mxu0 0.0
      %2366 = vmatpush1.msra.mxu0 0.0
      %2367 = vmatprep.subr.mxu0 0.0
      %2368 = vmatpush1.msra.mxu0 0.0
      %2369 = vmatprep.subr.mxu0 0.0
      %2370 = vmatpush1.msra.mxu0 0.0
      %2371 = vmatprep.subr.mxu0 0.0
      %2372 = vmatpush1.msra.mxu0 0.0
      %2373 = vmatprep.subr.mxu0 0.0
      %2374 = vmatpush1.msra.mxu0 0.0
      %2375 = vmatprep.subr.mxu0 0.0
      %2376 = vmatpush1.msra.mxu0 0.0
      %2377 = vmatprep.subr.mxu0 0.0
      %2378 = vmatpush1.msra.mxu0 0.0
      %2379 = vmatprep.subr.mxu0 0.0
      %2380 = vmatpush1.msra.mxu0 0.0
      %2381 = vmatprep.subr.mxu0 0.0
      %2382 = vmatpush1.msra.mxu0 0.0
      %2383 = vmatprep.subr.mxu0 0.0
      %2384 = vmatpush1.msra.mxu0 0.0
      %2385 = vmatprep.subr.mxu0 0.0
      %2386 = vmatpush1.msra.mxu0 0.0
      %2387 = vmatprep.subr.mxu0 0.0
      %2388 = vmatpush1.msra.mxu0 0.0
      %2389 = vmatprep.subr.mxu0 0.0
      %2390 = vmatpush1.msra.mxu0 0.0
      %2391 = vmatprep.subr.mxu0 0.0
      %2392 = vmatpush1.msra.mxu0 0.0
      %2393 = vmatprep.subr.mxu0 0.0
      %2394 = vmatpush1.msra.mxu0 0.0
      %2395 = vmatprep.subr.mxu0 0.0
      %2396 = vmatpush1.msra.mxu0 0.0
      %2397 = vmatprep.subr.mxu0 0.0
      %2398 = vmatpush1.msra.mxu0 0.0
      %2399 = vmatprep.mubr.f32.mxu0 0.0
      %v2400 = vand.u32 %v1950, 4294901760
      %v2401 = vsub.f32 %v1950, %v2400
      %v2402 = vand.u32 %v2401, 4294901760
      %2403 = vmatmul.mubr.f32.gmra.mrb[0].mxu0 %v2402
      %v2404 = vpop.f32.mrb[0].mxu0
      %v2405 = vadd.f32 %v2313, %v2404
      %v2406 = vpop.f32.mrb[0].mxu0
      %v2407 = vadd.f32 %v2315, %v2406
      %2408 = vdwg.mxu0
      %v2409 = vand.u32 %v1925, 4294901760
      %v2410 = vsub.f32 %v1925, %v2409
      %v2411 = vand.u32 %v2410, 4294901760
      %2412 = vmatprep.subr.mxu0 %v2411
      %v2413 = vand.u32 %v1924, 4294901760
      %v2414 = vsub.f32 %v1924, %v2413
      %v2415 = vand.u32 %v2414, 4294901760
      %2416 = vmatpush1.msra.mxu0 %v2415
      %v2417 = vand.u32 %v1927, 4294901760
      %v2418 = vsub.f32 %v1927, %v2417
      %v2419 = vand.u32 %v2418, 4294901760
      %2420 = vmatprep.subr.mxu0 %v2419
      %v2421 = vand.u32 %v1926, 4294901760
      %v2422 = vsub.f32 %v1926, %v2421
      %v2423 = vand.u32 %v2422, 4294901760
      %2424 = vmatpush1.msra.mxu0 %v2423
      %v2425 = vand.u32 %v1929, 4294901760
      %v2426 = vsub.f32 %v1929, %v2425
      %v2427 = vand.u32 %v2426, 4294901760
      %2428 = vmatprep.subr.mxu0 %v2427
      %v2429 = vand.u32 %v1928, 4294901760
      %v2430 = vsub.f32 %v1928, %v2429
      %v2431 = vand.u32 %v2430, 4294901760
      %2432 = vmatpush1.msra.mxu0 %v2431
      %v2433 = vand.u32 %v1931, 4294901760
      %v2434 = vsub.f32 %v1931, %v2433
      %v2435 = vand.u32 %v2434, 4294901760
      %2436 = vmatprep.subr.mxu0 %v2435
      %v2437 = vand.u32 %v1930, 4294901760
      %v2438 = vsub.f32 %v1930, %v2437
      %v2439 = vand.u32 %v2438, 4294901760
      %2440 = vmatpush1.msra.mxu0 %v2439
      %v2441 = vand.u32 %v1933, 4294901760
      %v2442 = vsub.f32 %v1933, %v2441
      %v2443 = vand.u32 %v2442, 4294901760
      %2444 = vmatprep.subr.mxu0 %v2443
      %v2445 = vand.u32 %v1932, 4294901760
      %v2446 = vsub.f32 %v1932, %v2445
      %v2447 = vand.u32 %v2446, 4294901760
      %2448 = vmatpush1.msra.mxu0 %v2447
      %v2449 = vand.u32 %v1935, 4294901760
      %v2450 = vsub.f32 %v1935, %v2449
      %v2451 = vand.u32 %v2450, 4294901760
      %2452 = vmatprep.subr.mxu0 %v2451
      %v2453 = vand.u32 %v1934, 4294901760
      %v2454 = vsub.f32 %v1934, %v2453
      %v2455 = vand.u32 %v2454, 4294901760
      %2456 = vmatpush1.msra.mxu0 %v2455
      %v2457 = vand.u32 %v1937, 4294901760
      %v2458 = vsub.f32 %v1937, %v2457
      %v2459 = vand.u32 %v2458, 4294901760
      %2460 = vmatprep.subr.mxu0 %v2459
      %v2461 = vand.u32 %v1936, 4294901760
      %v2462 = vsub.f32 %v1936, %v2461
      %v2463 = vand.u32 %v2462, 4294901760
      %2464 = vmatpush1.msra.mxu0 %v2463
      %v2465 = vand.u32 %v1939, 4294901760
      %v2466 = vsub.f32 %v1939, %v2465
      %v2467 = vand.u32 %v2466, 4294901760
      %2468 = vmatprep.subr.mxu0 %v2467
      %v2469 = vand.u32 %v1938, 4294901760
      %v2470 = vsub.f32 %v1938, %v2469
      %v2471 = vand.u32 %v2470, 4294901760
      %2472 = vmatpush1.msra.mxu0 %v2471
      %v2473 = vand.u32 %v1941, 4294901760
      %v2474 = vsub.f32 %v1941, %v2473
      %v2475 = vand.u32 %v2474, 4294901760
      %2476 = vmatprep.subr.mxu0 %v2475
      %v2477 = vand.u32 %v1940, 4294901760
      %v2478 = vsub.f32 %v1940, %v2477
      %v2479 = vand.u32 %v2478, 4294901760
      %2480 = vmatpush1.msra.mxu0 %v2479
      %2481 = vmatprep.subr.mxu0 0.0
      %2482 = vmatpush1.msra.mxu0 0.0
      %2483 = vmatprep.subr.mxu0 0.0
      %2484 = vmatpush1.msra.mxu0 0.0
      %2485 = vmatprep.subr.mxu0 0.0
      %2486 = vmatpush1.msra.mxu0 0.0
      %2487 = vmatprep.subr.mxu0 0.0
      %2488 = vmatpush1.msra.mxu0 0.0
      %2489 = vmatprep.subr.mxu0 0.0
      %2490 = vmatpush1.msra.mxu0 0.0
      %2491 = vmatprep.subr.mxu0 0.0
      %2492 = vmatpush1.msra.mxu0 0.0
      %2493 = vmatprep.subr.mxu0 0.0
      %2494 = vmatpush1.msra.mxu0 0.0
      %2495 = vmatprep.subr.mxu0 0.0
      %2496 = vmatpush1.msra.mxu0 0.0
      %2497 = vmatprep.subr.mxu0 0.0
      %2498 = vmatpush1.msra.mxu0 0.0
      %2499 = vmatprep.subr.mxu0 0.0
      %2500 = vmatpush1.msra.mxu0 0.0
      %2501 = vmatprep.subr.mxu0 0.0
      %2502 = vmatpush1.msra.mxu0 0.0
      %2503 = vmatprep.subr.mxu0 0.0
      %2504 = vmatpush1.msra.mxu0 0.0
      %2505 = vmatprep.subr.mxu0 0.0
      %2506 = vmatpush1.msra.mxu0 0.0
      %2507 = vmatprep.subr.mxu0 0.0
      %2508 = vmatpush1.msra.mxu0 0.0
      %2509 = vmatprep.subr.mxu0 0.0
      %2510 = vmatpush1.msra.mxu0 0.0
      %2511 = vmatprep.subr.mxu0 0.0
      %2512 = vmatpush1.msra.mxu0 0.0
      %2513 = vmatprep.subr.mxu0 0.0
      %2514 = vmatpush1.msra.mxu0 0.0
      %2515 = vmatprep.subr.mxu0 0.0
      %2516 = vmatpush1.msra.mxu0 0.0
      %2517 = vmatprep.subr.mxu0 0.0
      %2518 = vmatpush1.msra.mxu0 0.0
      %2519 = vmatprep.subr.mxu0 0.0
      %2520 = vmatpush1.msra.mxu0 0.0
      %2521 = vmatprep.subr.mxu0 0.0
      %2522 = vmatpush1.msra.mxu0 0.0
      %2523 = vmatprep.subr.mxu0 0.0
      %2524 = vmatpush1.msra.mxu0 0.0
      %2525 = vmatprep.subr.mxu0 0.0
      %2526 = vmatpush1.msra.mxu0 0.0
      %2527 = vmatprep.mubr.f32.mxu0 0.0
      %v2528 = vand.u32 %v1950, 4294901760
      %2529 = vmatmul.mubr.f32.gmra.mrb[0].mxu0 %v2528
      %v2530 = vpop.f32.mrb[0].mxu0
      %v2531 = vadd.f32 %v2405, %v2530
      %v2532 = vpop.f32.mrb[0].mxu0
      %v2533 = vadd.f32 %v2407, %v2532
      %2534 = vdwg.mxu0
      %v2535 = vand.u32 %v1925, 4294901760
      %2536 = vmatprep.subr.mxu0 %v2535
      %v2537 = vand.u32 %v1924, 4294901760
      %2538 = vmatpush1.msra.mxu0 %v2537
      %v2539 = vand.u32 %v1927, 4294901760
      %2540 = vmatprep.subr.mxu0 %v2539
      %v2541 = vand.u32 %v1926, 4294901760
      %2542 = vmatpush1.msra.mxu0 %v2541
      %v2543 = vand.u32 %v1929, 4294901760
      %2544 = vmatprep.subr.mxu0 %v2543
      %v2545 = vand.u32 %v1928, 4294901760
      %2546 = vmatpush1.msra.mxu0 %v2545
      %v2547 = vand.u32 %v1931, 4294901760
      %2548 = vmatprep.subr.mxu0 %v2547
      %v2549 = vand.u32 %v1930, 4294901760
      %2550 = vmatpush1.msra.mxu0 %v2549
      %v2551 = vand.u32 %v1933, 4294901760
      %2552 = vmatprep.subr.mxu0 %v2551
      %v2553 = vand.u32 %v1932, 4294901760
      %2554 = vmatpush1.msra.mxu0 %v2553
      %v2555 = vand.u32 %v1935, 4294901760
      %2556 = vmatprep.subr.mxu0 %v2555
      %v2557 = vand.u32 %v1934, 4294901760
      %2558 = vmatpush1.msra.mxu0 %v2557
      %v2559 = vand.u32 %v1937, 4294901760
      %2560 = vmatprep.subr.mxu0 %v2559
      %v2561 = vand.u32 %v1936, 4294901760
      %2562 = vmatpush1.msra.mxu0 %v2561
      %v2563 = vand.u32 %v1939, 4294901760
      %2564 = vmatprep.subr.mxu0 %v2563
      %v2565 = vand.u32 %v1938, 4294901760
      %2566 = vmatpush1.msra.mxu0 %v2565
      %v2567 = vand.u32 %v1941, 4294901760
      %2568 = vmatprep.subr.mxu0 %v2567
      %v2569 = vand.u32 %v1940, 4294901760
      %2570 = vmatpush1.msra.mxu0 %v2569
      %2571 = vmatprep.subr.mxu0 0.0
      %2572 = vmatpush1.msra.mxu0 0.0
      %2573 = vmatprep.subr.mxu0 0.0
      %2574 = vmatpush1.msra.mxu0 0.0
      %2575 = vmatprep.subr.mxu0 0.0
      %2576 = vmatpush1.msra.mxu0 0.0
      %2577 = vmatprep.subr.mxu0 0.0
      %2578 = vmatpush1.msra.mxu0 0.0
      %2579 = vmatprep.subr.mxu0 0.0
      %2580 = vmatpush1.msra.mxu0 0.0
      %2581 = vmatprep.subr.mxu0 0.0
      %2582 = vmatpush1.msra.mxu0 0.0
      %2583 = vmatprep.subr.mxu0 0.0
      %2584 = vmatpush1.msra.mxu0 0.0
      %2585 = vmatprep.subr.mxu0 0.0
      %2586 = vmatpush1.msra.mxu0 0.0
      %2587 = vmatprep.subr.mxu0 0.0
      %2588 = vmatpush1.msra.mxu0 0.0
      %2589 = vmatprep.subr.mxu0 0.0
      %2590 = vmatpush1.msra.mxu0 0.0
      %2591 = vmatprep.subr.mxu0 0.0
      %2592 = vmatpush1.msra.mxu0 0.0
      %2593 = vmatprep.subr.mxu0 0.0
      %2594 = vmatpush1.msra.mxu0 0.0
      %2595 = vmatprep.subr.mxu0 0.0
      %2596 = vmatpush1.msra.mxu0 0.0
      %2597 = vmatprep.subr.mxu0 0.0
      %2598 = vmatpush1.msra.mxu0 0.0
      %2599 = vmatprep.subr.mxu0 0.0
      %2600 = vmatpush1.msra.mxu0 0.0
      %2601 = vmatprep.subr.mxu0 0.0
      %2602 = vmatpush1.msra.mxu0 0.0
      %2603 = vmatprep.subr.mxu0 0.0
      %2604 = vmatpush1.msra.mxu0 0.0
      %2605 = vmatprep.subr.mxu0 0.0
      %2606 = vmatpush1.msra.mxu0 0.0
      %2607 = vmatprep.subr.mxu0 0.0
      %2608 = vmatpush1.msra.mxu0 0.0
      %2609 = vmatprep.subr.mxu0 0.0
      %2610 = vmatpush1.msra.mxu0 0.0
      %2611 = vmatprep.subr.mxu0 0.0
      %2612 = vmatpush1.msra.mxu0 0.0
      %2613 = vmatprep.subr.mxu0 0.0
      %2614 = vmatpush1.msra.mxu0 0.0
      %2615 = vmatprep.subr.mxu0 0.0
      %2616 = vmatpush1.msra.mxu0 0.0
      %2617 = vmatprep.mubr.f32.mxu0 0.0
      %v2618 = vand.u32 %v1950, 4294901760
      %2619 = vmatmul.mubr.f32.gmra.mrb[0].mxu0 %v2618
      %v2620 = vpop.f32.mrb[0].mxu0
      %v2621 = vadd.f32 %v2531, %v2620
      %v2622 = vpop.f32.mrb[0].mxu0
      %v2623 = vadd.f32 %v2533, %v2622
      %2624 = vdwg.mxu0
      %v2625 = vadd.f32 %v1013, %v2621
      %v2626 = vadd.f32 %v1015, %v2623
      %2627 = vrot.lane.b32.xlu0 %v2625, 17
      %v2628 = vpop.permute.xlu0 %2627
      %2629 = vrot.lane.b32.xlu0 %v2626, 17
      %v2630 = vpop.permute.xlu0 %2629
      %v2631 = vsel %vm206, %v2628, %v2630
      %v2632 = vsel %vm206, %v2630, %v2628
      %v2633 = vld [vmem:[%s3] sm:$0xff]
      %v2634 = vld [vmem:[%s3 + $0x8] sm:$0xff]
      %v2635 = vmul.f32 %v2632, %v2633
      %v2636 = vmul.f32 %v2631, %v2634
      %2637 = vst [vmem:[#allocation2] sm:$0xff] %v2635
      %2638 = vst [vmem:[#allocation2 + $0x8] sm:$0xff] %v2636
      %2639 = vrot.lane.b32.xlu0 %v2625, 16
      %v2640 = vpop.permute.xlu0 %2639
      %2641 = vrot.lane.b32.xlu0 %v2626, 16
      %v2642 = vpop.permute.xlu0 %2641
      %v2643 = vsel %vm219, %v2640, %v2642
      %v2644 = vsel %vm219, %v2642, %v2640
      %v2645 = vld [vmem:[%s222] sm:$0xff]
      %v2646 = vld [vmem:[%s222 + $0x8] sm:$0xff]
      %v2647 = vmul.f32 %v2644, %v2645
      %v2648 = vmul.f32 %v2643, %v2646
      %2649 = vst [vmem:[#allocation2 + $0x10] sm:$0xff] %v2647
      %2650 = vst [vmem:[#allocation2 + $0x18] sm:$0xff] %v2648
      %2651 = vrot.lane.b32.xlu0 %v2625, 15
      %v2652 = vpop.permute.xlu0 %2651
      %2653 = vrot.lane.b32.xlu0 %v2626, 15
      %v2654 = vpop.permute.xlu0 %2653
      %v2655 = vsel %vm233, %v2652, %v2654
      %v2656 = vsel %vm233, %v2654, %v2652
      %v2657 = vld [vmem:[%s236] sm:$0xff]
      %v2658 = vld [vmem:[%s236 + $0x8] sm:$0xff]
      %v2659 = vmul.f32 %v2656, %v2657
      %v2660 = vmul.f32 %v2655, %v2658
      %2661 = vst [vmem:[#allocation2 + $0x20] sm:$0xff] %v2659
      %2662 = vst [vmem:[#allocation2 + $0x28] sm:$0xff] %v2660
      %2663 = vrot.lane.b32.xlu0 %v2625, 1
      %v2664 = vpop.permute.xlu0 %2663
      %2665 = vrot.lane.b32.xlu0 %v2626, 1
      %v2666 = vpop.permute.xlu0 %2665
      %v2667 = vsel %vm247, %v2664, %v2666
      %v2668 = vsel %vm247, %v2666, %v2664
      %v2669 = vld [vmem:[%s250] sm:$0xff]
      %v2670 = vld [vmem:[%s250 + $0x8] sm:$0xff]
      %v2671 = vmul.f32 %v2668, %v2669
      %v2672 = vmul.f32 %v2667, %v2670
      %2673 = vst [vmem:[#allocation2 + $0x30] sm:$0xff] %v2671
      %2674 = vst [vmem:[#allocation2 + $0x38] sm:$0xff] %v2672
      %2675 = vst [vmem:[#allocation2 + $0x40] sm:$0xff] %v2625
      %2676 = vst [vmem:[#allocation2 + $0x48] sm:$0xff] %v2626
      %2677 = vrot.lane.b32.xlu0 %v2625, 127
      %v2678 = vpop.permute.xlu0 %2677
      %2679 = vrot.lane.b32.xlu0 %v2626, 127
      %v2680 = vpop.permute.xlu0 %2679
      %v2681 = vsel %vm263, %v2678, %v2680
      %v2682 = vsel %vm263, %v2680, %v2678
      %v2683 = vld [vmem:[%s266] sm:$0xff]
      %v2684 = vld [vmem:[%s266 + $0x8] sm:$0xff]
      %v2685 = vmul.f32 %v2681, %v2683
      %v2686 = vmul.f32 %v2682, %v2684
      %2687 = vst [vmem:[#allocation2 + $0x50] sm:$0xff] %v2685
      %2688 = vst [vmem:[#allocation2 + $0x58] sm:$0xff] %v2686
      %2689 = vrot.lane.b32.xlu0 %v2625, 113
      %v2690 = vpop.permute.xlu0 %2689
      %2691 = vrot.lane.b32.xlu0 %v2626, 113
      %v2692 = vpop.permute.xlu0 %2691
      %v2693 = vsel %vm277, %v2690, %v2692
      %v2694 = vsel %vm277, %v2692, %v2690
      %v2695 = vld [vmem:[%s280] sm:$0xff]
      %v2696 = vld [vmem:[%s280 + $0x8] sm:$0xff]
      %v2697 = vmul.f32 %v2693, %v2695
      %v2698 = vmul.f32 %v2694, %v2696
      %2699 = vst [vmem:[#allocation2 + $0x60] sm:$0xff] %v2697
      %2700 = vst [vmem:[#allocation2 + $0x68] sm:$0xff] %v2698
      %2701 = vrot.lane.b32.xlu0 %v2625, 112
      %v2702 = vpop.permute.xlu0 %2701
      %2703 = vrot.lane.b32.xlu0 %v2626, 112
      %v2704 = vpop.permute.xlu0 %2703
      %v2705 = vsel %vm291, %v2702, %v2704
      %v2706 = vsel %vm291, %v2704, %v2702
      %v2707 = vld [vmem:[%s294] sm:$0xff]
      %v2708 = vld [vmem:[%s294 + $0x8] sm:$0xff]
      %v2709 = vmul.f32 %v2705, %v2707
      %v2710 = vmul.f32 %v2706, %v2708
      %2711 = vst [vmem:[#allocation2 + $0x70] sm:$0xff] %v2709
      %2712 = vst [vmem:[#allocation2 + $0x78] sm:$0xff] %v2710
      %2713 = vrot.lane.b32.xlu0 %v2625, 111
      %v2714 = vpop.permute.xlu0 %2713
      %2715 = vrot.lane.b32.xlu0 %v2626, 111
      %v2716 = vpop.permute.xlu0 %2715
      %v2717 = vsel %vm305, %v2714, %v2716
      %v2718 = vsel %vm305, %v2716, %v2714
      %v2719 = vld [vmem:[%s308] sm:$0xff]
      %v2720 = vld [vmem:[%s308 + $0x8] sm:$0xff]
      %v2721 = vmul.f32 %v2717, %v2719
      %v2722 = vmul.f32 %v2718, %v2720
      %2723 = vst [vmem:[#allocation2 + $0x80] sm:$0xff] %v2721
      %2724 = vst [vmem:[#allocation2 + $0x88] sm:$0xff] %v2722
      %s2725 = scalar_lea.vmem %s1, 24
      %v2726 = vld [vmem:[%s2725] sm:$0xff]
      %v2727 = vld [vmem:[#allocation2] sm:$0xff]
      %v2728 = vld [vmem:[#allocation2 + $0x8] sm:$0xff]
      %v2729 = vld [vmem:[#allocation2 + $0x10] sm:$0xff]
      %v2730 = vld [vmem:[#allocation2 + $0x18] sm:$0xff]
      %v2731 = vld [vmem:[#allocation2 + $0x20] sm:$0xff]
      %v2732 = vld [vmem:[#allocation2 + $0x28] sm:$0xff]
      %v2733 = vld [vmem:[#allocation2 + $0x30] sm:$0xff]
      %v2734 = vld [vmem:[#allocation2 + $0x38] sm:$0xff]
      %v2735 = vld [vmem:[#allocation2 + $0x40] sm:$0xff]
      %v2736 = vld [vmem:[#allocation2 + $0x48] sm:$0xff]
      %v2737 = vld [vmem:[#allocation2 + $0x50] sm:$0xff]
      %v2738 = vld [vmem:[#allocation2 + $0x58] sm:$0xff]
      %v2739 = vld [vmem:[#allocation2 + $0x60] sm:$0xff]
      %v2740 = vld [vmem:[#allocation2 + $0x68] sm:$0xff]
      %v2741 = vld [vmem:[#allocation2 + $0x70] sm:$0xff]
      %v2742 = vld [vmem:[#allocation2 + $0x78] sm:$0xff]
      %v2743 = vld [vmem:[#allocation2 + $0x80] sm:$0xff]
      %v2744 = vld [vmem:[#allocation2 + $0x88] sm:$0xff]
      %s2745 = scalar_lea.vmem %s2, 24
      %v2746 = vld [vmem:[%s2745] sm:$0xff]
      %2748 = vset.pattern.permute.xlu0 0
      %2749 = vperm.xlu0 %2748, %v2746
      %v2750 = vpop.permute.xlu0 %2749
      %v2753 = vsel %vm340, %v2726, 0
      %v2755 = vand.u32 %v2728, 4294901760
      %2756 = vmatprep.subr.mxu0 %v2755
      %v2757 = vand.u32 %v2727, 4294901760
      %2758 = vmatpush1.msra.mxu0 %v2757
      %v2759 = vand.u32 %v2730, 4294901760
      %2760 = vmatprep.subr.mxu0 %v2759
      %v2761 = vand.u32 %v2729, 4294901760
      %2762 = vmatpush1.msra.mxu0 %v2761
      %v2763 = vand.u32 %v2732, 4294901760
      %2764 = vmatprep.subr.mxu0 %v2763
      %v2765 = vand.u32 %v2731, 4294901760
      %2766 = vmatpush1.msra.mxu0 %v2765
      %v2767 = vand.u32 %v2734, 4294901760
      %2768 = vmatprep.subr.mxu0 %v2767
      %v2769 = vand.u32 %v2733, 4294901760
      %2770 = vmatpush1.msra.mxu0 %v2769
      %v2771 = vand.u32 %v2736, 4294901760
      %2772 = vmatprep.subr.mxu0 %v2771
      %v2773 = vand.u32 %v2735, 4294901760
      %2774 = vmatpush1.msra.mxu0 %v2773
      %v2775 = vand.u32 %v2738, 4294901760
      %2776 = vmatprep.subr.mxu0 %v2775
      %v2777 = vand.u32 %v2737, 4294901760
      %2778 = vmatpush1.msra.mxu0 %v2777
      %v2779 = vand.u32 %v2740, 4294901760
      %2780 = vmatprep.subr.mxu0 %v2779
      %v2781 = vand.u32 %v2739, 4294901760
      %2782 = vmatpush1.msra.mxu0 %v2781
      %v2783 = vand.u32 %v2742, 4294901760
      %2784 = vmatprep.subr.mxu0 %v2783
      %v2785 = vand.u32 %v2741, 4294901760
      %2786 = vmatpush1.msra.mxu0 %v2785
      %v2787 = vand.u32 %v2744, 4294901760
      %2788 = vmatprep.subr.mxu0 %v2787
      %v2789 = vand.u32 %v2743, 4294901760
      %2790 = vmatpush1.msra.mxu0 %v2789
      %2791 = vmatprep.subr.mxu0 0.0
      %2792 = vmatpush1.msra.mxu0 0.0
      %2793 = vmatprep.subr.mxu0 0.0
      %2794 = vmatpush1.msra.mxu0 0.0
      %2795 = vmatprep.subr.mxu0 0.0
      %2796 = vmatpush1.msra.mxu0 0.0
      %2797 = vmatprep.subr.mxu0 0.0
      %2798 = vmatpush1.msra.mxu0 0.0
      %2799 = vmatprep.subr.mxu0 0.0
      %2800 = vmatpush1.msra.mxu0 0.0
      %2801 = vmatprep.subr.mxu0 0.0
      %2802 = vmatpush1.msra.mxu0 0.0
      %2803 = vmatprep.subr.mxu0 0.0
      %2804 = vmatpush1.msra.mxu0 0.0
      %2805 = vmatprep.subr.mxu0 0.0
      %2806 = vmatpush1.msra.mxu0 0.0
      %2807 = vmatprep.subr.mxu0 0.0
      %2808 = vmatpush1.msra.mxu0 0.0
      %2809 = vmatprep.subr.mxu0 0.0
      %2810 = vmatpush1.msra.mxu0 0.0
      %2811 = vmatprep.subr.mxu0 0.0
      %2812 = vmatpush1.msra.mxu0 0.0
      %2813 = vmatprep.subr.mxu0 0.0
      %2814 = vmatpush1.msra.mxu0 0.0
      %2815 = vmatprep.subr.mxu0 0.0
      %2816 = vmatpush1.msra.mxu0 0.0
      %2817 = vmatprep.subr.mxu0 0.0
      %2818 = vmatpush1.msra.mxu0 0.0
      %2819 = vmatprep.subr.mxu0 0.0
      %2820 = vmatpush1.msra.mxu0 0.0
      %2821 = vmatprep.subr.mxu0 0.0
      %2822 = vmatpush1.msra.mxu0 0.0
      %2823 = vmatprep.subr.mxu0 0.0
      %2824 = vmatpush1.msra.mxu0 0.0
      %2825 = vmatprep.subr.mxu0 0.0
      %2826 = vmatpush1.msra.mxu0 0.0
      %2827 = vmatprep.subr.mxu0 0.0
      %2828 = vmatpush1.msra.mxu0 0.0
      %2829 = vmatprep.subr.mxu0 0.0
      %2830 = vmatpush1.msra.mxu0 0.0
      %2831 = vmatprep.subr.mxu0 0.0
      %2832 = vmatpush1.msra.mxu0 0.0
      %2833 = vmatprep.subr.mxu0 0.0
      %2834 = vmatpush1.msra.mxu0 0.0
      %2835 = vmatprep.subr.mxu0 0.0
      %2836 = vmatpush1.msra.mxu0 0.0
      %2837 = vmatprep.mubr.f32.mxu0 0.0
      %v2838 = vand.u32 %v2753, 4294901760
      %v2839 = vsub.f32 %v2753, %v2838
      %v2840 = vand.u32 %v2839, 4294901760
      %v2841 = vsub.f32 %v2839, %v2840
      %v2842 = vand.u32 %v2841, 4294901760
      %2843 = vmatmul.mubr.f32.gmra.mrb[0].mxu0 %v2842
      %v2844 = vpop.f32.mrb[0].mxu0
      %v2845 = vadd.f32 %v2750, %v2844
      %v2846 = vpop.f32.mrb[0].mxu0
      %v2847 = vadd.f32 %v2750, %v2846
      %2848 = vdwg.mxu0
      %v2849 = vand.u32 %v2728, 4294901760
      %v2850 = vsub.f32 %v2728, %v2849
      %v2851 = vand.u32 %v2850, 4294901760
      %v2852 = vsub.f32 %v2850, %v2851
      %v2853 = vand.u32 %v2852, 4294901760
      %2854 = vmatprep.subr.mxu0 %v2853
      %v2855 = vand.u32 %v2727, 4294901760
      %v2856 = vsub.f32 %v2727, %v2855
      %v2857 = vand.u32 %v2856, 4294901760
      %v2858 = vsub.f32 %v2856, %v2857
      %v2859 = vand.u32 %v2858, 4294901760
      %2860 = vmatpush1.msra.mxu0 %v2859
      %v2861 = vand.u32 %v2730, 4294901760
      %v2862 = vsub.f32 %v2730, %v2861
      %v2863 = vand.u32 %v2862, 4294901760
      %v2864 = vsub.f32 %v2862, %v2863
      %v2865 = vand.u32 %v2864, 4294901760
      %2866 = vmatprep.subr.mxu0 %v2865
      %v2867 = vand.u32 %v2729, 4294901760
      %v2868 = vsub.f32 %v2729, %v2867
      %v2869 = vand.u32 %v2868, 4294901760
      %v2870 = vsub.f32 %v2868, %v2869
      %v2871 = vand.u32 %v2870, 4294901760
      %2872 = vmatpush1.msra.mxu0 %v2871
      %v2873 = vand.u32 %v2732, 4294901760
      %v2874 = vsub.f32 %v2732, %v2873
      %v2875 = vand.u32 %v2874, 4294901760
      %v2876 = vsub.f32 %v2874, %v2875
      %v2877 = vand.u32 %v2876, 4294901760
      %2878 = vmatprep.subr.mxu0 %v2877
      %v2879 = vand.u32 %v2731, 4294901760
      %v2880 = vsub.f32 %v2731, %v2879
      %v2881 = vand.u32 %v2880, 4294901760
      %v2882 = vsub.f32 %v2880, %v2881
      %v2883 = vand.u32 %v2882, 4294901760
      %2884 = vmatpush1.msra.mxu0 %v2883
      %v2885 = vand.u32 %v2734, 4294901760
      %v2886 = vsub.f32 %v2734, %v2885
      %v2887 = vand.u32 %v2886, 4294901760
      %v2888 = vsub.f32 %v2886, %v2887
      %v2889 = vand.u32 %v2888, 4294901760
      %2890 = vmatprep.subr.mxu0 %v2889
      %v2891 = vand.u32 %v2733, 4294901760
      %v2892 = vsub.f32 %v2733, %v2891
      %v2893 = vand.u32 %v2892, 4294901760
      %v2894 = vsub.f32 %v2892, %v2893
      %v2895 = vand.u32 %v2894, 4294901760
      %2896 = vmatpush1.msra.mxu0 %v2895
      %v2897 = vand.u32 %v2736, 4294901760
      %v2898 = vsub.f32 %v2736, %v2897
      %v2899 = vand.u32 %v2898, 4294901760
      %v2900 = vsub.f32 %v2898, %v2899
      %v2901 = vand.u32 %v2900, 4294901760
      %2902 = vmatprep.subr.mxu0 %v2901
      %v2903 = vand.u32 %v2735, 4294901760
      %v2904 = vsub.f32 %v2735, %v2903
      %v2905 = vand.u32 %v2904, 4294901760
      %v2906 = vsub.f32 %v2904, %v2905
      %v2907 = vand.u32 %v2906, 4294901760
      %2908 = vmatpush1.msra.mxu0 %v2907
      %v2909 = vand.u32 %v2738, 4294901760
      %v2910 = vsub.f32 %v2738, %v2909
      %v2911 = vand.u32 %v2910, 4294901760
      %v2912 = vsub.f32 %v2910, %v2911
      %v2913 = vand.u32 %v2912, 4294901760
      %2914 = vmatprep.subr.mxu0 %v2913
      %v2915 = vand.u32 %v2737, 4294901760
      %v2916 = vsub.f32 %v2737, %v2915
      %v2917 = vand.u32 %v2916, 4294901760
      %v2918 = vsub.f32 %v2916, %v2917
      %v2919 = vand.u32 %v2918, 4294901760
      %2920 = vmatpush1.msra.mxu0 %v2919
      %v2921 = vand.u32 %v2740, 4294901760
      %v2922 = vsub.f32 %v2740, %v2921
      %v2923 = vand.u32 %v2922, 4294901760
      %v2924 = vsub.f32 %v2922, %v2923
      %v2925 = vand.u32 %v2924, 4294901760
      %2926 = vmatprep.subr.mxu0 %v2925
      %v2927 = vand.u32 %v2739, 4294901760
      %v2928 = vsub.f32 %v2739, %v2927
      %v2929 = vand.u32 %v2928, 4294901760
      %v2930 = vsub.f32 %v2928, %v2929
      %v2931 = vand.u32 %v2930, 4294901760
      %2932 = vmatpush1.msra.mxu0 %v2931
      %v2933 = vand.u32 %v2742, 4294901760
      %v2934 = vsub.f32 %v2742, %v2933
      %v2935 = vand.u32 %v2934, 4294901760
      %v2936 = vsub.f32 %v2934, %v2935
      %v2937 = vand.u32 %v2936, 4294901760
      %2938 = vmatprep.subr.mxu0 %v2937
      %v2939 = vand.u32 %v2741, 4294901760
      %v2940 = vsub.f32 %v2741, %v2939
      %v2941 = vand.u32 %v2940, 4294901760
      %v2942 = vsub.f32 %v2940, %v2941
      %v2943 = vand.u32 %v2942, 4294901760
      %2944 = vmatpush1.msra.mxu0 %v2943
      %v2945 = vand.u32 %v2744, 4294901760
      %v2946 = vsub.f32 %v2744, %v2945
      %v2947 = vand.u32 %v2946, 4294901760
      %v2948 = vsub.f32 %v2946, %v2947
      %v2949 = vand.u32 %v2948, 4294901760
      %2950 = vmatprep.subr.mxu0 %v2949
      %v2951 = vand.u32 %v2743, 4294901760
      %v2952 = vsub.f32 %v2743, %v2951
      %v2953 = vand.u32 %v2952, 4294901760
      %v2954 = vsub.f32 %v2952, %v2953
      %v2955 = vand.u32 %v2954, 4294901760
      %2956 = vmatpush1.msra.mxu0 %v2955
      %2957 = vmatprep.subr.mxu0 0.0
      %2958 = vmatpush1.msra.mxu0 0.0
      %2959 = vmatprep.subr.mxu0 0.0
      %2960 = vmatpush1.msra.mxu0 0.0
      %2961 = vmatprep.subr.mxu0 0.0
      %2962 = vmatpush1.msra.mxu0 0.0
      %2963 = vmatprep.subr.mxu0 0.0
      %2964 = vmatpush1.msra.mxu0 0.0
      %2965 = vmatprep.subr.mxu0 0.0
      %2966 = vmatpush1.msra.mxu0 0.0
      %2967 = vmatprep.subr.mxu0 0.0
      %2968 = vmatpush1.msra.mxu0 0.0
      %2969 = vmatprep.subr.mxu0 0.0
      %2970 = vmatpush1.msra.mxu0 0.0
      %2971 = vmatprep.subr.mxu0 0.0
      %2972 = vmatpush1.msra.mxu0 0.0
      %2973 = vmatprep.subr.mxu0 0.0
      %2974 = vmatpush1.msra.mxu0 0.0
      %2975 = vmatprep.subr.mxu0 0.0
      %2976 = vmatpush1.msra.mxu0 0.0
      %2977 = vmatprep.subr.mxu0 0.0
      %2978 = vmatpush1.msra.mxu0 0.0
      %2979 = vmatprep.subr.mxu0 0.0
      %2980 = vmatpush1.msra.mxu0 0.0
      %2981 = vmatprep.subr.mxu0 0.0
      %2982 = vmatpush1.msra.mxu0 0.0
      %2983 = vmatprep.subr.mxu0 0.0
      %2984 = vmatpush1.msra.mxu0 0.0
      %2985 = vmatprep.subr.mxu0 0.0
      %2986 = vmatpush1.msra.mxu0 0.0
      %2987 = vmatprep.subr.mxu0 0.0
      %2988 = vmatpush1.msra.mxu0 0.0
      %2989 = vmatprep.subr.mxu0 0.0
      %2990 = vmatpush1.msra.mxu0 0.0
      %2991 = vmatprep.subr.mxu0 0.0
      %2992 = vmatpush1.msra.mxu0 0.0
      %2993 = vmatprep.subr.mxu0 0.0
      %2994 = vmatpush1.msra.mxu0 0.0
      %2995 = vmatprep.subr.mxu0 0.0
      %2996 = vmatpush1.msra.mxu0 0.0
      %2997 = vmatprep.subr.mxu0 0.0
      %2998 = vmatpush1.msra.mxu0 0.0
      %2999 = vmatprep.subr.mxu0 0.0
      %3000 = vmatpush1.msra.mxu0 0.0
      %3001 = vmatprep.subr.mxu0 0.0
      %3002 = vmatpush1.msra.mxu0 0.0
      %3003 = vmatprep.mubr.f32.mxu0 0.0
      %v3004 = vand.u32 %v2753, 4294901760
      %3005 = vmatmul.mubr.f32.gmra.mrb[0].mxu0 %v3004
      %v3006 = vpop.f32.mrb[0].mxu0
      %v3007 = vadd.f32 %v2845, %v3006
      %v3008 = vpop.f32.mrb[0].mxu0
      %v3009 = vadd.f32 %v2847, %v3008
      %3010 = vdwg.mxu0
      %v3011 = vand.u32 %v2728, 4294901760
      %v3012 = vsub.f32 %v2728, %v3011
      %3013 = vmatprep.subr.mxu0 %v3012
      %v3014 = vand.u32 %v2727, 4294901760
      %v3015 = vsub.f32 %v2727, %v3014
      %3016 = vmatpush1.msra.mxu0 %v3015
      %v3017 = vand.u32 %v2730, 4294901760
      %v3018 = vsub.f32 %v2730, %v3017
      %3019 = vmatprep.subr.mxu0 %v3018
      %v3020 = vand.u32 %v2729, 4294901760
      %v3021 = vsub.f32 %v2729, %v3020
      %3022 = vmatpush1.msra.mxu0 %v3021
      %v3023 = vand.u32 %v2732, 4294901760
      %v3024 = vsub.f32 %v2732, %v3023
      %3025 = vmatprep.subr.mxu0 %v3024
      %v3026 = vand.u32 %v2731, 4294901760
      %v3027 = vsub.f32 %v2731, %v3026
      %3028 = vmatpush1.msra.mxu0 %v3027
      %v3029 = vand.u32 %v2734, 4294901760
      %v3030 = vsub.f32 %v2734, %v3029
      %3031 = vmatprep.subr.mxu0 %v3030
      %v3032 = vand.u32 %v2733, 4294901760
      %v3033 = vsub.f32 %v2733, %v3032
      %3034 = vmatpush1.msra.mxu0 %v3033
      %v3035 = vand.u32 %v2736, 4294901760
      %v3036 = vsub.f32 %v2736, %v3035
      %3037 = vmatprep.subr.mxu0 %v3036
      %v3038 = vand.u32 %v2735, 4294901760
      %v3039 = vsub.f32 %v2735, %v3038
      %3040 = vmatpush1.msra.mxu0 %v3039
      %v3041 = vand.u32 %v2738, 4294901760
      %v3042 = vsub.f32 %v2738, %v3041
      %3043 = vmatprep.subr.mxu0 %v3042
      %v3044 = vand.u32 %v2737, 4294901760
      %v3045 = vsub.f32 %v2737, %v3044
      %3046 = vmatpush1.msra.mxu0 %v3045
      %v3047 = vand.u32 %v2740, 4294901760
      %v3048 = vsub.f32 %v2740, %v3047
      %3049 = vmatprep.subr.mxu0 %v3048
      %v3050 = vand.u32 %v2739, 4294901760
      %v3051 = vsub.f32 %v2739, %v3050
      %3052 = vmatpush1.msra.mxu0 %v3051
      %v3053 = vand.u32 %v2742, 4294901760
      %v3054 = vsub.f32 %v2742, %v3053
      %3055 = vmatprep.subr.mxu0 %v3054
      %v3056 = vand.u32 %v2741, 4294901760
      %v3057 = vsub.f32 %v2741, %v3056
      %3058 = vmatpush1.msra.mxu0 %v3057
      %v3059 = vand.u32 %v2744, 4294901760
      %v3060 = vsub.f32 %v2744, %v3059
      %3061 = vmatprep.subr.mxu0 %v3060
      %v3062 = vand.u32 %v2743, 4294901760
      %v3063 = vsub.f32 %v2743, %v3062
      %3064 = vmatpush1.msra.mxu0 %v3063
      %3065 = vmatprep.subr.mxu0 0.0
      %3066 = vmatpush1.msra.mxu0 0.0
      %3067 = vmatprep.subr.mxu0 0.0
      %3068 = vmatpush1.msra.mxu0 0.0
      %3069 = vmatprep.subr.mxu0 0.0
      %3070 = vmatpush1.msra.mxu0 0.0
      %3071 = vmatprep.subr.mxu0 0.0
      %3072 = vmatpush1.msra.mxu0 0.0
      %3073 = vmatprep.subr.mxu0 0.0
      %3074 = vmatpush1.msra.mxu0 0.0
      %3075 = vmatprep.subr.mxu0 0.0
      %3076 = vmatpush1.msra.mxu0 0.0
      %3077 = vmatprep.subr.mxu0 0.0
      %3078 = vmatpush1.msra.mxu0 0.0
      %3079 = vmatprep.subr.mxu0 0.0
      %3080 = vmatpush1.msra.mxu0 0.0
      %3081 = vmatprep.subr.mxu0 0.0
      %3082 = vmatpush1.msra.mxu0 0.0
      %3083 = vmatprep.subr.mxu0 0.0
      %3084 = vmatpush1.msra.mxu0 0.0
      %3085 = vmatprep.subr.mxu0 0.0
      %3086 = vmatpush1.msra.mxu0 0.0
      %3087 = vmatprep.subr.mxu0 0.0
      %3088 = vmatpush1.msra.mxu0 0.0
      %3089 = vmatprep.subr.mxu0 0.0
      %3090 = vmatpush1.msra.mxu0 0.0
      %3091 = vmatprep.subr.mxu0 0.0
      %3092 = vmatpush1.msra.mxu0 0.0
      %3093 = vmatprep.subr.mxu0 0.0
      %3094 = vmatpush1.msra.mxu0 0.0
      %3095 = vmatprep.subr.mxu0 0.0
      %3096 = vmatpush1.msra.mxu0 0.0
      %3097 = vmatprep.subr.mxu0 0.0
      %3098 = vmatpush1.msra.mxu0 0.0
      %3099 = vmatprep.subr.mxu0 0.0
      %3100 = vmatpush1.msra.mxu0 0.0
      %3101 = vmatprep.subr.mxu0 0.0
      %3102 = vmatpush1.msra.mxu0 0.0
      %3103 = vmatprep.subr.mxu0 0.0
      %3104 = vmatpush1.msra.mxu0 0.0
      %3105 = vmatprep.subr.mxu0 0.0
      %3106 = vmatpush1.msra.mxu0 0.0
      %3107 = vmatprep.subr.mxu0 0.0
      %3108 = vmatpush1.msra.mxu0 0.0
      %3109 = vmatprep.subr.mxu0 0.0
      %3110 = vmatpush1.msra.mxu0 0.0
      %3111 = vmatprep.mubr.f32.mxu0 0.0
      %v3112 = vand.u32 %v2753, 4294901760
      %v3113 = vsub.f32 %v2753, %v3112
      %3114 = vmatmul.mubr.f32.gmra.mrb[0].mxu0 %v3113
      %v3115 = vpop.f32.mrb[0].mxu0
      %v3116 = vadd.f32 %v3007, %v3115
      %v3117 = vpop.f32.mrb[0].mxu0
      %v3118 = vadd.f32 %v3009, %v3117
      %3119 = vdwg.mxu0
      %v3120 = vand.u32 %v2728, 4294901760
      %3121 = vmatprep.subr.mxu0 %v3120
      %v3122 = vand.u32 %v2727, 4294901760
      %3123 = vmatpush1.msra.mxu0 %v3122
      %v3124 = vand.u32 %v2730, 4294901760
      %3125 = vmatprep.subr.mxu0 %v3124
      %v3126 = vand.u32 %v2729, 4294901760
      %3127 = vmatpush1.msra.mxu0 %v3126
      %v3128 = vand.u32 %v2732, 4294901760
      %3129 = vmatprep.subr.mxu0 %v3128
      %v3130 = vand.u32 %v2731, 4294901760
      %3131 = vmatpush1.msra.mxu0 %v3130
      %v3132 = vand.u32 %v2734, 4294901760
      %3133 = vmatprep.subr.mxu0 %v3132
      %v3134 = vand.u32 %v2733, 4294901760
      %3135 = vmatpush1.msra.mxu0 %v3134
      %v3136 = vand.u32 %v2736, 4294901760
      %3137 = vmatprep.subr.mxu0 %v3136
      %v3138 = vand.u32 %v2735, 4294901760
      %3139 = vmatpush1.msra.mxu0 %v3138
      %v3140 = vand.u32 %v2738, 4294901760
      %3141 = vmatprep.subr.mxu0 %v3140
      %v3142 = vand.u32 %v2737, 4294901760
      %3143 = vmatpush1.msra.mxu0 %v3142
      %v3144 = vand.u32 %v2740, 4294901760
      %3145 = vmatprep.subr.mxu0 %v3144
      %v3146 = vand.u32 %v2739, 4294901760
      %3147 = vmatpush1.msra.mxu0 %v3146
      %v3148 = vand.u32 %v2742, 4294901760
      %3149 = vmatprep.subr.mxu0 %v3148
      %v3150 = vand.u32 %v2741, 4294901760
      %3151 = vmatpush1.msra.mxu0 %v3150
      %v3152 = vand.u32 %v2744, 4294901760
      %3153 = vmatprep.subr.mxu0 %v3152
      %v3154 = vand.u32 %v2743, 4294901760
      %3155 = vmatpush1.msra.mxu0 %v3154
      %3156 = vmatprep.subr.mxu0 0.0
      %3157 = vmatpush1.msra.mxu0 0.0
      %3158 = vmatprep.subr.mxu0 0.0
      %3159 = vmatpush1.msra.mxu0 0.0
      %3160 = vmatprep.subr.mxu0 0.0
      %3161 = vmatpush1.msra.mxu0 0.0
      %3162 = vmatprep.subr.mxu0 0.0
      %3163 = vmatpush1.msra.mxu0 0.0
      %3164 = vmatprep.subr.mxu0 0.0
      %3165 = vmatpush1.msra.mxu0 0.0
      %3166 = vmatprep.subr.mxu0 0.0
      %3167 = vmatpush1.msra.mxu0 0.0
      %3168 = vmatprep.subr.mxu0 0.0
      %3169 = vmatpush1.msra.mxu0 0.0
      %3170 = vmatprep.subr.mxu0 0.0
      %3171 = vmatpush1.msra.mxu0 0.0
      %3172 = vmatprep.subr.mxu0 0.0
      %3173 = vmatpush1.msra.mxu0 0.0
      %3174 = vmatprep.subr.mxu0 0.0
      %3175 = vmatpush1.msra.mxu0 0.0
      %3176 = vmatprep.subr.mxu0 0.0
      %3177 = vmatpush1.msra.mxu0 0.0
      %3178 = vmatprep.subr.mxu0 0.0
      %3179 = vmatpush1.msra.mxu0 0.0
      %3180 = vmatprep.subr.mxu0 0.0
      %3181 = vmatpush1.msra.mxu0 0.0
      %3182 = vmatprep.subr.mxu0 0.0
      %3183 = vmatpush1.msra.mxu0 0.0
      %3184 = vmatprep.subr.mxu0 0.0
      %3185 = vmatpush1.msra.mxu0 0.0
      %3186 = vmatprep.subr.mxu0 0.0
      %3187 = vmatpush1.msra.mxu0 0.0
      %3188 = vmatprep.subr.mxu0 0.0
      %3189 = vmatpush1.msra.mxu0 0.0
      %3190 = vmatprep.subr.mxu0 0.0
      %3191 = vmatpush1.msra.mxu0 0.0
      %3192 = vmatprep.subr.mxu0 0.0
      %3193 = vmatpush1.msra.mxu0 0.0
      %3194 = vmatprep.subr.mxu0 0.0
      %3195 = vmatpush1.msra.mxu0 0.0
      %3196 = vmatprep.subr.mxu0 0.0
      %3197 = vmatpush1.msra.mxu0 0.0
      %3198 = vmatprep.subr.mxu0 0.0
      %3199 = vmatpush1.msra.mxu0 0.0
      %3200 = vmatprep.subr.mxu0 0.0
      %3201 = vmatpush1.msra.mxu0 0.0
      %3202 = vmatprep.mubr.f32.mxu0 0.0
      %v3203 = vand.u32 %v2753, 4294901760
      %v3204 = vsub.f32 %v2753, %v3203
      %v3205 = vand.u32 %v3204, 4294901760
      %3206 = vmatmul.mubr.f32.gmra.mrb[0].mxu0 %v3205
      %v3207 = vpop.f32.mrb[0].mxu0
      %v3208 = vadd.f32 %v3116, %v3207
      %v3209 = vpop.f32.mrb[0].mxu0
      %v3210 = vadd.f32 %v3118, %v3209
      %3211 = vdwg.mxu0
      %v3212 = vand.u32 %v2728, 4294901760
      %v3213 = vsub.f32 %v2728, %v3212
      %v3214 = vand.u32 %v3213, 4294901760
      %3215 = vmatprep.subr.mxu0 %v3214
      %v3216 = vand.u32 %v2727, 4294901760
      %v3217 = vsub.f32 %v2727, %v3216
      %v3218 = vand.u32 %v3217, 4294901760
      %3219 = vmatpush1.msra.mxu0 %v3218
      %v3220 = vand.u32 %v2730, 4294901760
      %v3221 = vsub.f32 %v2730, %v3220
      %v3222 = vand.u32 %v3221, 4294901760
      %3223 = vmatprep.subr.mxu0 %v3222
      %v3224 = vand.u32 %v2729, 4294901760
      %v3225 = vsub.f32 %v2729, %v3224
      %v3226 = vand.u32 %v3225, 4294901760
      %3227 = vmatpush1.msra.mxu0 %v3226
      %v3228 = vand.u32 %v2732, 4294901760
      %v3229 = vsub.f32 %v2732, %v3228
      %v3230 = vand.u32 %v3229, 4294901760
      %3231 = vmatprep.subr.mxu0 %v3230
      %v3232 = vand.u32 %v2731, 4294901760
      %v3233 = vsub.f32 %v2731, %v3232
      %v3234 = vand.u32 %v3233, 4294901760
      %3235 = vmatpush1.msra.mxu0 %v3234
      %v3236 = vand.u32 %v2734, 4294901760
      %v3237 = vsub.f32 %v2734, %v3236
      %v3238 = vand.u32 %v3237, 4294901760
      %3239 = vmatprep.subr.mxu0 %v3238
      %v3240 = vand.u32 %v2733, 4294901760
      %v3241 = vsub.f32 %v2733, %v3240
      %v3242 = vand.u32 %v3241, 4294901760
      %3243 = vmatpush1.msra.mxu0 %v3242
      %v3244 = vand.u32 %v2736, 4294901760
      %v3245 = vsub.f32 %v2736, %v3244
      %v3246 = vand.u32 %v3245, 4294901760
      %3247 = vmatprep.subr.mxu0 %v3246
      %v3248 = vand.u32 %v2735, 4294901760
      %v3249 = vsub.f32 %v2735, %v3248
      %v3250 = vand.u32 %v3249, 4294901760
      %3251 = vmatpush1.msra.mxu0 %v3250
      %v3252 = vand.u32 %v2738, 4294901760
      %v3253 = vsub.f32 %v2738, %v3252
      %v3254 = vand.u32 %v3253, 4294901760
      %3255 = vmatprep.subr.mxu0 %v3254
      %v3256 = vand.u32 %v2737, 4294901760
      %v3257 = vsub.f32 %v2737, %v3256
      %v3258 = vand.u32 %v3257, 4294901760
      %3259 = vmatpush1.msra.mxu0 %v3258
      %v3260 = vand.u32 %v2740, 4294901760
      %v3261 = vsub.f32 %v2740, %v3260
      %v3262 = vand.u32 %v3261, 4294901760
      %3263 = vmatprep.subr.mxu0 %v3262
      %v3264 = vand.u32 %v2739, 4294901760
      %v3265 = vsub.f32 %v2739, %v3264
      %v3266 = vand.u32 %v3265, 4294901760
      %3267 = vmatpush1.msra.mxu0 %v3266
      %v3268 = vand.u32 %v2742, 4294901760
      %v3269 = vsub.f32 %v2742, %v3268
      %v3270 = vand.u32 %v3269, 4294901760
      %3271 = vmatprep.subr.mxu0 %v3270
      %v3272 = vand.u32 %v2741, 4294901760
      %v3273 = vsub.f32 %v2741, %v3272
      %v3274 = vand.u32 %v3273, 4294901760
      %3275 = vmatpush1.msra.mxu0 %v3274
      %v3276 = vand.u32 %v2744, 4294901760
      %v3277 = vsub.f32 %v2744, %v3276
      %v3278 = vand.u32 %v3277, 4294901760
      %3279 = vmatprep.subr.mxu0 %v3278
      %v3280 = vand.u32 %v2743, 4294901760
      %v3281 = vsub.f32 %v2743, %v3280
      %v3282 = vand.u32 %v3281, 4294901760
      %3283 = vmatpush1.msra.mxu0 %v3282
      %3284 = vmatprep.subr.mxu0 0.0
      %3285 = vmatpush1.msra.mxu0 0.0
      %3286 = vmatprep.subr.mxu0 0.0
      %3287 = vmatpush1.msra.mxu0 0.0
      %3288 = vmatprep.subr.mxu0 0.0
      %3289 = vmatpush1.msra.mxu0 0.0
      %3290 = vmatprep.subr.mxu0 0.0
      %3291 = vmatpush1.msra.mxu0 0.0
      %3292 = vmatprep.subr.mxu0 0.0
      %3293 = vmatpush1.msra.mxu0 0.0
      %3294 = vmatprep.subr.mxu0 0.0
      %3295 = vmatpush1.msra.mxu0 0.0
      %3296 = vmatprep.subr.mxu0 0.0
      %3297 = vmatpush1.msra.mxu0 0.0
      %3298 = vmatprep.subr.mxu0 0.0
      %3299 = vmatpush1.msra.mxu0 0.0
      %3300 = vmatprep.subr.mxu0 0.0
      %3301 = vmatpush1.msra.mxu0 0.0
      %3302 = vmatprep.subr.mxu0 0.0
      %3303 = vmatpush1.msra.mxu0 0.0
      %3304 = vmatprep.subr.mxu0 0.0
      %3305 = vmatpush1.msra.mxu0 0.0
      %3306 = vmatprep.subr.mxu0 0.0
      %3307 = vmatpush1.msra.mxu0 0.0
      %3308 = vmatprep.subr.mxu0 0.0
      %3309 = vmatpush1.msra.mxu0 0.0
      %3310 = vmatprep.subr.mxu0 0.0
      %3311 = vmatpush1.msra.mxu0 0.0
      %3312 = vmatprep.subr.mxu0 0.0
      %3313 = vmatpush1.msra.mxu0 0.0
      %3314 = vmatprep.subr.mxu0 0.0
      %3315 = vmatpush1.msra.mxu0 0.0
      %3316 = vmatprep.subr.mxu0 0.0
      %3317 = vmatpush1.msra.mxu0 0.0
      %3318 = vmatprep.subr.mxu0 0.0
      %3319 = vmatpush1.msra.mxu0 0.0
      %3320 = vmatprep.subr.mxu0 0.0
      %3321 = vmatpush1.msra.mxu0 0.0
      %3322 = vmatprep.subr.mxu0 0.0
      %3323 = vmatpush1.msra.mxu0 0.0
      %3324 = vmatprep.subr.mxu0 0.0
      %3325 = vmatpush1.msra.mxu0 0.0
      %3326 = vmatprep.subr.mxu0 0.0
      %3327 = vmatpush1.msra.mxu0 0.0
      %3328 = vmatprep.subr.mxu0 0.0
      %3329 = vmatpush1.msra.mxu0 0.0
      %3330 = vmatprep.mubr.f32.mxu0 0.0
      %v3331 = vand.u32 %v2753, 4294901760
      %3332 = vmatmul.mubr.f32.gmra.mrb[0].mxu0 %v3331
      %v3333 = vpop.f32.mrb[0].mxu0
      %v3334 = vadd.f32 %v3208, %v3333
      %v3335 = vpop.f32.mrb[0].mxu0
      %v3336 = vadd.f32 %v3210, %v3335
      %3337 = vdwg.mxu0
      %v3338 = vand.u32 %v2728, 4294901760
      %3339 = vmatprep.subr.mxu0 %v3338
      %v3340 = vand.u32 %v2727, 4294901760
      %3341 = vmatpush1.msra.mxu0 %v3340
      %v3342 = vand.u32 %v2730, 4294901760
      %3343 = vmatprep.subr.mxu0 %v3342
      %v3344 = vand.u32 %v2729, 4294901760
      %3345 = vmatpush1.msra.mxu0 %v3344
      %v3346 = vand.u32 %v2732, 4294901760
      %3347 = vmatprep.subr.mxu0 %v3346
      %v3348 = vand.u32 %v2731, 4294901760
      %3349 = vmatpush1.msra.mxu0 %v3348
      %v3350 = vand.u32 %v2734, 4294901760
      %3351 = vmatprep.subr.mxu0 %v3350
      %v3352 = vand.u32 %v2733, 4294901760
      %3353 = vmatpush1.msra.mxu0 %v3352
      %v3354 = vand.u32 %v2736, 4294901760
      %3355 = vmatprep.subr.mxu0 %v3354
      %v3356 = vand.u32 %v2735, 4294901760
      %3357 = vmatpush1.msra.mxu0 %v3356
      %v3358 = vand.u32 %v2738, 4294901760
      %3359 = vmatprep.subr.mxu0 %v3358
      %v3360 = vand.u32 %v2737, 4294901760
      %3361 = vmatpush1.msra.mxu0 %v3360
      %v3362 = vand.u32 %v2740, 4294901760
      %3363 = vmatprep.subr.mxu0 %v3362
      %v3364 = vand.u32 %v2739, 4294901760
      %3365 = vmatpush1.msra.mxu0 %v3364
      %v3366 = vand.u32 %v2742, 4294901760
      %3367 = vmatprep.subr.mxu0 %v3366
      %v3368 = vand.u32 %v2741, 4294901760
      %3369 = vmatpush1.msra.mxu0 %v3368
      %v3370 = vand.u32 %v2744, 4294901760
      %3371 = vmatprep.subr.mxu0 %v3370
      %v3372 = vand.u32 %v2743, 4294901760
      %3373 = vmatpush1.msra.mxu0 %v3372
      %3374 = vmatprep.subr.mxu0 0.0
      %3375 = vmatpush1.msra.mxu0 0.0
      %3376 = vmatprep.subr.mxu0 0.0
      %3377 = vmatpush1.msra.mxu0 0.0
      %3378 = vmatprep.subr.mxu0 0.0
      %3379 = vmatpush1.msra.mxu0 0.0
      %3380 = vmatprep.subr.mxu0 0.0
      %3381 = vmatpush1.msra.mxu0 0.0
      %3382 = vmatprep.subr.mxu0 0.0
      %3383 = vmatpush1.msra.mxu0 0.0
      %3384 = vmatprep.subr.mxu0 0.0
      %3385 = vmatpush1.msra.mxu0 0.0
      %3386 = vmatprep.subr.mxu0 0.0
      %3387 = vmatpush1.msra.mxu0 0.0
      %3388 = vmatprep.subr.mxu0 0.0
      %3389 = vmatpush1.msra.mxu0 0.0
      %3390 = vmatprep.subr.mxu0 0.0
      %3391 = vmatpush1.msra.mxu0 0.0
      %3392 = vmatprep.subr.mxu0 0.0
      %3393 = vmatpush1.msra.mxu0 0.0
      %3394 = vmatprep.subr.mxu0 0.0
      %3395 = vmatpush1.msra.mxu0 0.0
      %3396 = vmatprep.subr.mxu0 0.0
      %3397 = vmatpush1.msra.mxu0 0.0
      %3398 = vmatprep.subr.mxu0 0.0
      %3399 = vmatpush1.msra.mxu0 0.0
      %3400 = vmatprep.subr.mxu0 0.0
      %3401 = vmatpush1.msra.mxu0 0.0
      %3402 = vmatprep.subr.mxu0 0.0
      %3403 = vmatpush1.msra.mxu0 0.0
      %3404 = vmatprep.subr.mxu0 0.0
      %3405 = vmatpush1.msra.mxu0 0.0
      %3406 = vmatprep.subr.mxu0 0.0
      %3407 = vmatpush1.msra.mxu0 0.0
      %3408 = vmatprep.subr.mxu0 0.0
      %3409 = vmatpush1.msra.mxu0 0.0
      %3410 = vmatprep.subr.mxu0 0.0
      %3411 = vmatpush1.msra.mxu0 0.0
      %3412 = vmatprep.subr.mxu0 0.0
      %3413 = vmatpush1.msra.mxu0 0.0
      %3414 = vmatprep.subr.mxu0 0.0
      %3415 = vmatpush1.msra.mxu0 0.0
      %3416 = vmatprep.subr.mxu0 0.0
      %3417 = vmatpush1.msra.mxu0 0.0
      %3418 = vmatprep.subr.mxu0 0.0
      %3419 = vmatpush1.msra.mxu0 0.0
      %3420 = vmatprep.mubr.f32.mxu0 0.0
      %v3421 = vand.u32 %v2753, 4294901760
      %3422 = vmatmul.mubr.f32.gmra.mrb[0].mxu0 %v3421
      %v3423 = vpop.f32.mrb[0].mxu0
      %v3424 = vadd.f32 %v3334, %v3423
      %v3425 = vpop.f32.mrb[0].mxu0
      %v3426 = vadd.f32 %v3336, %v3425
      %3427 = vdwg.mxu0
      %3428 = vrot.lane.b32.xlu0 %v3424, 17
      %v3429 = vpop.permute.xlu0 %3428
      %3430 = vrot.lane.b32.xlu0 %v3426, 17
      %v3431 = vpop.permute.xlu0 %3430
      %v3432 = vsel %vm206, %v3429, %v3431
      %v3433 = vsel %vm206, %v3431, %v3429
      %v3434 = vld [vmem:[%s3] sm:$0xff]
      %v3435 = vld [vmem:[%s3 + $0x8] sm:$0xff]
      %v3436 = vmul.f32 %v3433, %v3434
      %v3437 = vmul.f32 %v3432, %v3435
      %3438 = vst [vmem:[#allocation2] sm:$0xff] %v3436
      %3439 = vst [vmem:[#allocation2 + $0x8] sm:$0xff] %v3437
      %3440 = vrot.lane.b32.xlu0 %v3424, 16
      %v3441 = vpop.permute.xlu0 %3440
      %3442 = vrot.lane.b32.xlu0 %v3426, 16
      %v3443 = vpop.permute.xlu0 %3442
      %v3444 = vsel %vm219, %v3441, %v3443
      %v3445 = vsel %vm219, %v3443, %v3441
      %v3446 = vld [vmem:[%s222] sm:$0xff]
      %v3447 = vld [vmem:[%s222 + $0x8] sm:$0xff]
      %v3448 = vmul.f32 %v3445, %v3446
      %v3449 = vmul.f32 %v3444, %v3447
      %3450 = vst [vmem:[#allocation2 + $0x10] sm:$0xff] %v3448
      %3451 = vst [vmem:[#allocation2 + $0x18] sm:$0xff] %v3449
      %3452 = vrot.lane.b32.xlu0 %v3424, 15
      %v3453 = vpop.permute.xlu0 %3452
      %3454 = vrot.lane.b32.xlu0 %v3426, 15
      %v3455 = vpop.permute.xlu0 %3454
      %v3456 = vsel %vm233, %v3453, %v3455
      %v3457 = vsel %vm233, %v3455, %v3453
      %v3458 = vld [vmem:[%s236] sm:$0xff]
      %v3459 = vld [vmem:[%s236 + $0x8] sm:$0xff]
      %v3460 = vmul.f32 %v3457, %v3458
      %v3461 = vmul.f32 %v3456, %v3459
      %3462 = vst [vmem:[#allocation2 + $0x20] sm:$0xff] %v3460
      %3463 = vst [vmem:[#allocation2 + $0x28] sm:$0xff] %v3461
      %3464 = vrot.lane.b32.xlu0 %v3424, 1
      %v3465 = vpop.permute.xlu0 %3464
      %3466 = vrot.lane.b32.xlu0 %v3426, 1
      %v3467 = vpop.permute.xlu0 %3466
      %v3468 = vsel %vm247, %v3465, %v3467
      %v3469 = vsel %vm247, %v3467, %v3465
      %v3470 = vld [vmem:[%s250] sm:$0xff]
      %v3471 = vld [vmem:[%s250 + $0x8] sm:$0xff]
      %v3472 = vmul.f32 %v3469, %v3470
      %v3473 = vmul.f32 %v3468, %v3471
      %3474 = vst [vmem:[#allocation2 + $0x30] sm:$0xff] %v3472
      %3475 = vst [vmem:[#allocation2 + $0x38] sm:$0xff] %v3473
      %3476 = vst [vmem:[#allocation2 + $0x40] sm:$0xff] %v3424
      %3477 = vst [vmem:[#allocation2 + $0x48] sm:$0xff] %v3426
      %3478 = vrot.lane.b32.xlu0 %v3424, 127
      %v3479 = vpop.permute.xlu0 %3478
      %3480 = vrot.lane.b32.xlu0 %v3426, 127
      %v3481 = vpop.permute.xlu0 %3480
      %v3482 = vsel %vm263, %v3479, %v3481
      %v3483 = vsel %vm263, %v3481, %v3479
      %v3484 = vld [vmem:[%s266] sm:$0xff]
      %v3485 = vld [vmem:[%s266 + $0x8] sm:$0xff]
      %v3486 = vmul.f32 %v3482, %v3484
      %v3487 = vmul.f32 %v3483, %v3485
      %3488 = vst [vmem:[#allocation2 + $0x50] sm:$0xff] %v3486
      %3489 = vst [vmem:[#allocation2 + $0x58] sm:$0xff] %v3487
      %3490 = vrot.lane.b32.xlu0 %v3424, 113
      %v3491 = vpop.permute.xlu0 %3490
      %3492 = vrot.lane.b32.xlu0 %v3426, 113
      %v3493 = vpop.permute.xlu0 %3492
      %v3494 = vsel %vm277, %v3491, %v3493
      %v3495 = vsel %vm277, %v3493, %v3491
      %v3496 = vld [vmem:[%s280] sm:$0xff]
      %v3497 = vld [vmem:[%s280 + $0x8] sm:$0xff]
      %v3498 = vmul.f32 %v3494, %v3496
      %v3499 = vmul.f32 %v3495, %v3497
      %3500 = vst [vmem:[#allocation2 + $0x60] sm:$0xff] %v3498
      %3501 = vst [vmem:[#allocation2 + $0x68] sm:$0xff] %v3499
      %3502 = vrot.lane.b32.xlu0 %v3424, 112
      %v3503 = vpop.permute.xlu0 %3502
      %3504 = vrot.lane.b32.xlu0 %v3426, 112
      %v3505 = vpop.permute.xlu0 %3504
      %v3506 = vsel %vm291, %v3503, %v3505
      %v3507 = vsel %vm291, %v3505, %v3503
      %v3508 = vld [vmem:[%s294] sm:$0xff]
      %v3509 = vld [vmem:[%s294 + $0x8] sm:$0xff]
      %v3510 = vmul.f32 %v3506, %v3508
      %v3511 = vmul.f32 %v3507, %v3509
      %3512 = vst [vmem:[#allocation2 + $0x70] sm:$0xff] %v3510
      %3513 = vst [vmem:[#allocation2 + $0x78] sm:$0xff] %v3511
      %3514 = vrot.lane.b32.xlu0 %v3424, 111
      %v3515 = vpop.permute.xlu0 %3514
      %3516 = vrot.lane.b32.xlu0 %v3426, 111
      %v3517 = vpop.permute.xlu0 %3516
      %v3518 = vsel %vm305, %v3515, %v3517
      %v3519 = vsel %vm305, %v3517, %v3515
      %v3520 = vld [vmem:[%s308] sm:$0xff]
      %v3521 = vld [vmem:[%s308 + $0x8] sm:$0xff]
      %v3522 = vmul.f32 %v3518, %v3520
      %v3523 = vmul.f32 %v3519, %v3521
      %3524 = vst [vmem:[#allocation2 + $0x80] sm:$0xff] %v3522
      %3525 = vst [vmem:[#allocation2 + $0x88] sm:$0xff] %v3523
      %s3526 = scalar_lea.vmem %s1, 32
      %v3527 = vld [vmem:[%s3526] sm:$0xff]
      %v3528 = vld [vmem:[#allocation2] sm:$0xff]
      %v3529 = vld [vmem:[#allocation2 + $0x8] sm:$0xff]
      %v3530 = vld [vmem:[#allocation2 + $0x10] sm:$0xff]
      %v3531 = vld [vmem:[#allocation2 + $0x18] sm:$0xff]
      %v3532 = vld [vmem:[#allocation2 + $0x20] sm:$0xff]
      %v3533 = vld [vmem:[#allocation2 + $0x28] sm:$0xff]
      %v3534 = vld [vmem:[#allocation2 + $0x30] sm:$0xff]
      %v3535 = vld [vmem:[#allocation2 + $0x38] sm:$0xff]
      %v3536 = vld [vmem:[#allocation2 + $0x40] sm:$0xff]
      %v3537 = vld [vmem:[#allocation2 + $0x48] sm:$0xff]
      %v3538 = vld [vmem:[#allocation2 + $0x50] sm:$0xff]
      %v3539 = vld [vmem:[#allocation2 + $0x58] sm:$0xff]
      %v3540 = vld [vmem:[#allocation2 + $0x60] sm:$0xff]
      %v3541 = vld [vmem:[#allocation2 + $0x68] sm:$0xff]
      %v3542 = vld [vmem:[#allocation2 + $0x70] sm:$0xff]
      %v3543 = vld [vmem:[#allocation2 + $0x78] sm:$0xff]
      %v3544 = vld [vmem:[#allocation2 + $0x80] sm:$0xff]
      %v3545 = vld [vmem:[#allocation2 + $0x88] sm:$0xff]
      %s3546 = scalar_lea.vmem %s2, 32
      %v3547 = vld [vmem:[%s3546] sm:$0xff]
      %3549 = vset.pattern.permute.xlu0 0
      %3550 = vperm.xlu0 %3549, %v3547
      %v3551 = vpop.permute.xlu0 %3550
      %v3554 = vsel %vm340, %v3527, 0
      %v3556 = vand.u32 %v3529, 4294901760
      %3557 = vmatprep.subr.mxu0 %v3556
      %v3558 = vand.u32 %v3528, 4294901760
      %3559 = vmatpush1.msra.mxu0 %v3558
      %v3560 = vand.u32 %v3531, 4294901760
      %3561 = vmatprep.subr.mxu0 %v3560
      %v3562 = vand.u32 %v3530, 4294901760
      %3563 = vmatpush1.msra.mxu0 %v3562
      %v3564 = vand.u32 %v3533, 4294901760
      %3565 = vmatprep.subr.mxu0 %v3564
      %v3566 = vand.u32 %v3532, 4294901760
      %3567 = vmatpush1.msra.mxu0 %v3566
      %v3568 = vand.u32 %v3535, 4294901760
      %3569 = vmatprep.subr.mxu0 %v3568
      %v3570 = vand.u32 %v3534, 4294901760
      %3571 = vmatpush1.msra.mxu0 %v3570
      %v3572 = vand.u32 %v3537, 4294901760
      %3573 = vmatprep.subr.mxu0 %v3572
      %v3574 = vand.u32 %v3536, 4294901760
      %3575 = vmatpush1.msra.mxu0 %v3574
      %v3576 = vand.u32 %v3539, 4294901760
      %3577 = vmatprep.subr.mxu0 %v3576
      %v3578 = vand.u32 %v3538, 4294901760
      %3579 = vmatpush1.msra.mxu0 %v3578
      %v3580 = vand.u32 %v3541, 4294901760
      %3581 = vmatprep.subr.mxu0 %v3580
      %v3582 = vand.u32 %v3540, 4294901760
      %3583 = vmatpush1.msra.mxu0 %v3582
      %v3584 = vand.u32 %v3543, 4294901760
      %3585 = vmatprep.subr.mxu0 %v3584
      %v3586 = vand.u32 %v3542, 4294901760
      %3587 = vmatpush1.msra.mxu0 %v3586
      %v3588 = vand.u32 %v3545, 4294901760
      %3589 = vmatprep.subr.mxu0 %v3588
      %v3590 = vand.u32 %v3544, 4294901760
      %3591 = vmatpush1.msra.mxu0 %v3590
      %3592 = vmatprep.subr.mxu0 0.0
      %3593 = vmatpush1.msra.mxu0 0.0
      %3594 = vmatprep.subr.mxu0 0.0
      %3595 = vmatpush1.msra.mxu0 0.0
      %3596 = vmatprep.subr.mxu0 0.0
      %3597 = vmatpush1.msra.mxu0 0.0
      %3598 = vmatprep.subr.mxu0 0.0
      %3599 = vmatpush1.msra.mxu0 0.0
      %3600 = vmatprep.subr.mxu0 0.0
      %3601 = vmatpush1.msra.mxu0 0.0
      %3602 = vmatprep.subr.mxu0 0.0
      %3603 = vmatpush1.msra.mxu0 0.0
      %3604 = vmatprep.subr.mxu0 0.0
      %3605 = vmatpush1.msra.mxu0 0.0
      %3606 = vmatprep.subr.mxu0 0.0
      %3607 = vmatpush1.msra.mxu0 0.0
      %3608 = vmatprep.subr.mxu0 0.0
      %3609 = vmatpush1.msra.mxu0 0.0
      %3610 = vmatprep.subr.mxu0 0.0
      %3611 = vmatpush1.msra.mxu0 0.0
      %3612 = vmatprep.subr.mxu0 0.0
      %3613 = vmatpush1.msra.mxu0 0.0
      %3614 = vmatprep.subr.mxu0 0.0
      %3615 = vmatpush1.msra.mxu0 0.0
      %3616 = vmatprep.subr.mxu0 0.0
      %3617 = vmatpush1.msra.mxu0 0.0
      %3618 = vmatprep.subr.mxu0 0.0
      %3619 = vmatpush1.msra.mxu0 0.0
      %3620 = vmatprep.subr.mxu0 0.0
      %3621 = vmatpush1.msra.mxu0 0.0
      %3622 = vmatprep.subr.mxu0 0.0
      %3623 = vmatpush1.msra.mxu0 0.0
      %3624 = vmatprep.subr.mxu0 0.0
      %3625 = vmatpush1.msra.mxu0 0.0
      %3626 = vmatprep.subr.mxu0 0.0
      %3627 = vmatpush1.msra.mxu0 0.0
      %3628 = vmatprep.subr.mxu0 0.0
      %3629 = vmatpush1.msra.mxu0 0.0
      %3630 = vmatprep.subr.mxu0 0.0
      %3631 = vmatpush1.msra.mxu0 0.0
      %3632 = vmatprep.subr.mxu0 0.0
      %3633 = vmatpush1.msra.mxu0 0.0
      %3634 = vmatprep.subr.mxu0 0.0
      %3635 = vmatpush1.msra.mxu0 0.0
      %3636 = vmatprep.subr.mxu0 0.0
      %3637 = vmatpush1.msra.mxu0 0.0
      %3638 = vmatprep.mubr.f32.mxu0 0.0
      %v3639 = vand.u32 %v3554, 4294901760
      %v3640 = vsub.f32 %v3554, %v3639
      %v3641 = vand.u32 %v3640, 4294901760
      %v3642 = vsub.f32 %v3640, %v3641
      %v3643 = vand.u32 %v3642, 4294901760
      %3644 = vmatmul.mubr.f32.gmra.mrb[0].mxu0 %v3643
      %v3645 = vpop.f32.mrb[0].mxu0
      %v3646 = vadd.f32 %v3551, %v3645
      %v3647 = vpop.f32.mrb[0].mxu0
      %v3648 = vadd.f32 %v3551, %v3647
      %3649 = vdwg.mxu0
      %v3650 = vand.u32 %v3529, 4294901760
      %v3651 = vsub.f32 %v3529, %v3650
      %v3652 = vand.u32 %v3651, 4294901760
      %v3653 = vsub.f32 %v3651, %v3652
      %v3654 = vand.u32 %v3653, 4294901760
      %3655 = vmatprep.subr.mxu0 %v3654
      %v3656 = vand.u32 %v3528, 4294901760
      %v3657 = vsub.f32 %v3528, %v3656
      %v3658 = vand.u32 %v3657, 4294901760
      %v3659 = vsub.f32 %v3657, %v3658
      %v3660 = vand.u32 %v3659, 4294901760
      %3661 = vmatpush1.msra.mxu0 %v3660
      %v3662 = vand.u32 %v3531, 4294901760
      %v3663 = vsub.f32 %v3531, %v3662
      %v3664 = vand.u32 %v3663, 4294901760
      %v3665 = vsub.f32 %v3663, %v3664
      %v3666 = vand.u32 %v3665, 4294901760
      %3667 = vmatprep.subr.mxu0 %v3666
      %v3668 = vand.u32 %v3530, 4294901760
      %v3669 = vsub.f32 %v3530, %v3668
      %v3670 = vand.u32 %v3669, 4294901760
      %v3671 = vsub.f32 %v3669, %v3670
      %v3672 = vand.u32 %v3671, 4294901760
      %3673 = vmatpush1.msra.mxu0 %v3672
      %v3674 = vand.u32 %v3533, 4294901760
      %v3675 = vsub.f32 %v3533, %v3674
      %v3676 = vand.u32 %v3675, 4294901760
      %v3677 = vsub.f32 %v3675, %v3676
      %v3678 = vand.u32 %v3677, 4294901760
      %3679 = vmatprep.subr.mxu0 %v3678
      %v3680 = vand.u32 %v3532, 4294901760
      %v3681 = vsub.f32 %v3532, %v3680
      %v3682 = vand.u32 %v3681, 4294901760
      %v3683 = vsub.f32 %v3681, %v3682
      %v3684 = vand.u32 %v3683, 4294901760
      %3685 = vmatpush1.msra.mxu0 %v3684
      %v3686 = vand.u32 %v3535, 4294901760
      %v3687 = vsub.f32 %v3535, %v3686
      %v3688 = vand.u32 %v3687, 4294901760
      %v3689 = vsub.f32 %v3687, %v3688
      %v3690 = vand.u32 %v3689, 4294901760
      %3691 = vmatprep.subr.mxu0 %v3690
      %v3692 = vand.u32 %v3534, 4294901760
      %v3693 = vsub.f32 %v3534, %v3692
      %v3694 = vand.u32 %v3693, 4294901760
      %v3695 = vsub.f32 %v3693, %v3694
      %v3696 = vand.u32 %v3695, 4294901760
      %3697 = vmatpush1.msra.mxu0 %v3696
      %v3698 = vand.u32 %v3537, 4294901760
      %v3699 = vsub.f32 %v3537, %v3698
      %v3700 = vand.u32 %v3699, 4294901760
      %v3701 = vsub.f32 %v3699, %v3700
      %v3702 = vand.u32 %v3701, 4294901760
      %3703 = vmatprep.subr.mxu0 %v3702
      %v3704 = vand.u32 %v3536, 4294901760
      %v3705 = vsub.f32 %v3536, %v3704
      %v3706 = vand.u32 %v3705, 4294901760
      %v3707 = vsub.f32 %v3705, %v3706
      %v3708 = vand.u32 %v3707, 4294901760
      %3709 = vmatpush1.msra.mxu0 %v3708
      %v3710 = vand.u32 %v3539, 4294901760
      %v3711 = vsub.f32 %v3539, %v3710
      %v3712 = vand.u32 %v3711, 4294901760
      %v3713 = vsub.f32 %v3711, %v3712
      %v3714 = vand.u32 %v3713, 4294901760
      %3715 = vmatprep.subr.mxu0 %v3714
      %v3716 = vand.u32 %v3538, 4294901760
      %v3717 = vsub.f32 %v3538, %v3716
      %v3718 = vand.u32 %v3717, 4294901760
      %v3719 = vsub.f32 %v3717, %v3718
      %v3720 = vand.u32 %v3719, 4294901760
      %3721 = vmatpush1.msra.mxu0 %v3720
      %v3722 = vand.u32 %v3541, 4294901760
      %v3723 = vsub.f32 %v3541, %v3722
      %v3724 = vand.u32 %v3723, 4294901760
      %v3725 = vsub.f32 %v3723, %v3724
      %v3726 = vand.u32 %v3725, 4294901760
      %3727 = vmatprep.subr.mxu0 %v3726
      %v3728 = vand.u32 %v3540, 4294901760
      %v3729 = vsub.f32 %v3540, %v3728
      %v3730 = vand.u32 %v3729, 4294901760
      %v3731 = vsub.f32 %v3729, %v3730
      %v3732 = vand.u32 %v3731, 4294901760
      %3733 = vmatpush1.msra.mxu0 %v3732
      %v3734 = vand.u32 %v3543, 4294901760
      %v3735 = vsub.f32 %v3543, %v3734
      %v3736 = vand.u32 %v3735, 4294901760
      %v3737 = vsub.f32 %v3735, %v3736
      %v3738 = vand.u32 %v3737, 4294901760
      %3739 = vmatprep.subr.mxu0 %v3738
      %v3740 = vand.u32 %v3542, 4294901760
      %v3741 = vsub.f32 %v3542, %v3740
      %v3742 = vand.u32 %v3741, 4294901760
      %v3743 = vsub.f32 %v3741, %v3742
      %v3744 = vand.u32 %v3743, 4294901760
      %3745 = vmatpush1.msra.mxu0 %v3744
      %v3746 = vand.u32 %v3545, 4294901760
      %v3747 = vsub.f32 %v3545, %v3746
      %v3748 = vand.u32 %v3747, 4294901760
      %v3749 = vsub.f32 %v3747, %v3748
      %v3750 = vand.u32 %v3749, 4294901760
      %3751 = vmatprep.subr.mxu0 %v3750
      %v3752 = vand.u32 %v3544, 4294901760
      %v3753 = vsub.f32 %v3544, %v3752
      %v3754 = vand.u32 %v3753, 4294901760
      %v3755 = vsub.f32 %v3753, %v3754
      %v3756 = vand.u32 %v3755, 4294901760
      %3757 = vmatpush1.msra.mxu0 %v3756
      %3758 = vmatprep.subr.mxu0 0.0
      %3759 = vmatpush1.msra.mxu0 0.0
      %3760 = vmatprep.subr.mxu0 0.0
      %3761 = vmatpush1.msra.mxu0 0.0
      %3762 = vmatprep.subr.mxu0 0.0
      %3763 = vmatpush1.msra.mxu0 0.0
      %3764 = vmatprep.subr.mxu0 0.0
      %3765 = vmatpush1.msra.mxu0 0.0
      %3766 = vmatprep.subr.mxu0 0.0
      %3767 = vmatpush1.msra.mxu0 0.0
      %3768 = vmatprep.subr.mxu0 0.0
      %3769 = vmatpush1.msra.mxu0 0.0
      %3770 = vmatprep.subr.mxu0 0.0
      %3771 = vmatpush1.msra.mxu0 0.0
      %3772 = vmatprep.subr.mxu0 0.0
      %3773 = vmatpush1.msra.mxu0 0.0
      %3774 = vmatprep.subr.mxu0 0.0
      %3775 = vmatpush1.msra.mxu0 0.0
      %3776 = vmatprep.subr.mxu0 0.0
      %3777 = vmatpush1.msra.mxu0 0.0
      %3778 = vmatprep.subr.mxu0 0.0
      %3779 = vmatpush1.msra.mxu0 0.0
      %3780 = vmatprep.subr.mxu0 0.0
      %3781 = vmatpush1.msra.mxu0 0.0
      %3782 = vmatprep.subr.mxu0 0.0
      %3783 = vmatpush1.msra.mxu0 0.0
      %3784 = vmatprep.subr.mxu0 0.0
      %3785 = vmatpush1.msra.mxu0 0.0
      %3786 = vmatprep.subr.mxu0 0.0
      %3787 = vmatpush1.msra.mxu0 0.0
      %3788 = vmatprep.subr.mxu0 0.0
      %3789 = vmatpush1.msra.mxu0 0.0
      %3790 = vmatprep.subr.mxu0 0.0
      %3791 = vmatpush1.msra.mxu0 0.0
      %3792 = vmatprep.subr.mxu0 0.0
      %3793 = vmatpush1.msra.mxu0 0.0
      %3794 = vmatprep.subr.mxu0 0.0
      %3795 = vmatpush1.msra.mxu0 0.0
      %3796 = vmatprep.subr.mxu0 0.0
      %3797 = vmatpush1.msra.mxu0 0.0
      %3798 = vmatprep.subr.mxu0 0.0
      %3799 = vmatpush1.msra.mxu0 0.0
      %3800 = vmatprep.subr.mxu0 0.0
      %3801 = vmatpush1.msra.mxu0 0.0
      %3802 = vmatprep.subr.mxu0 0.0
      %3803 = vmatpush1.msra.mxu0 0.0
      %3804 = vmatprep.mubr.f32.mxu0 0.0
      %v3805 = vand.u32 %v3554, 4294901760
      %3806 = vmatmul.mubr.f32.gmra.mrb[0].mxu0 %v3805
      %v3807 = vpop.f32.mrb[0].mxu0
      %v3808 = vadd.f32 %v3646, %v3807
      %v3809 = vpop.f32.mrb[0].mxu0
      %v3810 = vadd.f32 %v3648, %v3809
      %3811 = vdwg.mxu0
      %v3812 = vand.u32 %v3529, 4294901760
      %v3813 = vsub.f32 %v3529, %v3812
      %3814 = vmatprep.subr.mxu0 %v3813
      %v3815 = vand.u32 %v3528, 4294901760
      %v3816 = vsub.f32 %v3528, %v3815
      %3817 = vmatpush1.msra.mxu0 %v3816
      %v3818 = vand.u32 %v3531, 4294901760
      %v3819 = vsub.f32 %v3531, %v3818
      %3820 = vmatprep.subr.mxu0 %v3819
      %v3821 = vand.u32 %v3530, 4294901760
      %v3822 = vsub.f32 %v3530, %v3821
      %3823 = vmatpush1.msra.mxu0 %v3822
      %v3824 = vand.u32 %v3533, 4294901760
      %v3825 = vsub.f32 %v3533, %v3824
      %3826 = vmatprep.subr.mxu0 %v3825
      %v3827 = vand.u32 %v3532, 4294901760
      %v3828 = vsub.f32 %v3532, %v3827
      %3829 = vmatpush1.msra.mxu0 %v3828
      %v3830 = vand.u32 %v3535, 4294901760
      %v3831 = vsub.f32 %v3535, %v3830
      %3832 = vmatprep.subr.mxu0 %v3831
      %v3833 = vand.u32 %v3534, 4294901760
      %v3834 = vsub.f32 %v3534, %v3833
      %3835 = vmatpush1.msra.mxu0 %v3834
      %v3836 = vand.u32 %v3537, 4294901760
      %v3837 = vsub.f32 %v3537, %v3836
      %3838 = vmatprep.subr.mxu0 %v3837
      %v3839 = vand.u32 %v3536, 4294901760
      %v3840 = vsub.f32 %v3536, %v3839
      %3841 = vmatpush1.msra.mxu0 %v3840
      %v3842 = vand.u32 %v3539, 4294901760
      %v3843 = vsub.f32 %v3539, %v3842
      %3844 = vmatprep.subr.mxu0 %v3843
      %v3845 = vand.u32 %v3538, 4294901760
      %v3846 = vsub.f32 %v3538, %v3845
      %3847 = vmatpush1.msra.mxu0 %v3846
      %v3848 = vand.u32 %v3541, 4294901760
      %v3849 = vsub.f32 %v3541, %v3848
      %3850 = vmatprep.subr.mxu0 %v3849
      %v3851 = vand.u32 %v3540, 4294901760
      %v3852 = vsub.f32 %v3540, %v3851
      %3853 = vmatpush1.msra.mxu0 %v3852
      %v3854 = vand.u32 %v3543, 4294901760
      %v3855 = vsub.f32 %v3543, %v3854
      %3856 = vmatprep.subr.mxu0 %v3855
      %v3857 = vand.u32 %v3542, 4294901760
      %v3858 = vsub.f32 %v3542, %v3857
      %3859 = vmatpush1.msra.mxu0 %v3858
      %v3860 = vand.u32 %v3545, 4294901760
      %v3861 = vsub.f32 %v3545, %v3860
      %3862 = vmatprep.subr.mxu0 %v3861
      %v3863 = vand.u32 %v3544, 4294901760
      %v3864 = vsub.f32 %v3544, %v3863
      %3865 = vmatpush1.msra.mxu0 %v3864
      %3866 = vmatprep.subr.mxu0 0.0
      %3867 = vmatpush1.msra.mxu0 0.0
      %3868 = vmatprep.subr.mxu0 0.0
      %3869 = vmatpush1.msra.mxu0 0.0
      %3870 = vmatprep.subr.mxu0 0.0
      %3871 = vmatpush1.msra.mxu0 0.0
      %3872 = vmatprep.subr.mxu0 0.0
      %3873 = vmatpush1.msra.mxu0 0.0
      %3874 = vmatprep.subr.mxu0 0.0
      %3875 = vmatpush1.msra.mxu0 0.0
      %3876 = vmatprep.subr.mxu0 0.0
      %3877 = vmatpush1.msra.mxu0 0.0
      %3878 = vmatprep.subr.mxu0 0.0
      %3879 = vmatpush1.msra.mxu0 0.0
      %3880 = vmatprep.subr.mxu0 0.0
      %3881 = vmatpush1.msra.mxu0 0.0
      %3882 = vmatprep.subr.mxu0 0.0
      %3883 = vmatpush1.msra.mxu0 0.0
      %3884 = vmatprep.subr.mxu0 0.0
      %3885 = vmatpush1.msra.mxu0 0.0
      %3886 = vmatprep.subr.mxu0 0.0
      %3887 = vmatpush1.msra.mxu0 0.0
      %3888 = vmatprep.subr.mxu0 0.0
      %3889 = vmatpush1.msra.mxu0 0.0
      %3890 = vmatprep.subr.mxu0 0.0
      %3891 = vmatpush1.msra.mxu0 0.0
      %3892 = vmatprep.subr.mxu0 0.0
      %3893 = vmatpush1.msra.mxu0 0.0
      %3894 = vmatprep.subr.mxu0 0.0
      %3895 = vmatpush1.msra.mxu0 0.0
      %3896 = vmatprep.subr.mxu0 0.0
      %3897 = vmatpush1.msra.mxu0 0.0
      %3898 = vmatprep.subr.mxu0 0.0
      %3899 = vmatpush1.msra.mxu0 0.0
      %3900 = vmatprep.subr.mxu0 0.0
      %3901 = vmatpush1.msra.mxu0 0.0
      %3902 = vmatprep.subr.mxu0 0.0
      %3903 = vmatpush1.msra.mxu0 0.0
      %3904 = vmatprep.subr.mxu0 0.0
      %3905 = vmatpush1.msra.mxu0 0.0
      %3906 = vmatprep.subr.mxu0 0.0
      %3907 = vmatpush1.msra.mxu0 0.0
      %3908 = vmatprep.subr.mxu0 0.0
      %3909 = vmatpush1.msra.mxu0 0.0
      %3910 = vmatprep.subr.mxu0 0.0
      %3911 = vmatpush1.msra.mxu0 0.0
      %3912 = vmatprep.mubr.f32.mxu0 0.0
      %v3913 = vand.u32 %v3554, 4294901760
      %v3914 = vsub.f32 %v3554, %v3913
      %3915 = vmatmul.mubr.f32.gmra.mrb[0].mxu0 %v3914
      %v3916 = vpop.f32.mrb[0].mxu0
      %v3917 = vadd.f32 %v3808, %v3916
      %v3918 = vpop.f32.mrb[0].mxu0
      %v3919 = vadd.f32 %v3810, %v3918
      %3920 = vdwg.mxu0
      %v3921 = vand.u32 %v3529, 4294901760
      %3922 = vmatprep.subr.mxu0 %v3921
      %v3923 = vand.u32 %v3528, 4294901760
      %3924 = vmatpush1.msra.mxu0 %v3923
      %v3925 = vand.u32 %v3531, 4294901760
      %3926 = vmatprep.subr.mxu0 %v3925
      %v3927 = vand.u32 %v3530, 4294901760
      %3928 = vmatpush1.msra.mxu0 %v3927
      %v3929 = vand.u32 %v3533, 4294901760
      %3930 = vmatprep.subr.mxu0 %v3929
      %v3931 = vand.u32 %v3532, 4294901760
      %3932 = vmatpush1.msra.mxu0 %v3931
      %v3933 = vand.u32 %v3535, 4294901760
      %3934 = vmatprep.subr.mxu0 %v3933
      %v3935 = vand.u32 %v3534, 4294901760
      %3936 = vmatpush1.msra.mxu0 %v3935
      %v3937 = vand.u32 %v3537, 4294901760
      %3938 = vmatprep.subr.mxu0 %v3937
      %v3939 = vand.u32 %v3536, 4294901760
      %3940 = vmatpush1.msra.mxu0 %v3939
      %v3941 = vand.u32 %v3539, 4294901760
      %3942 = vmatprep.subr.mxu0 %v3941
      %v3943 = vand.u32 %v3538, 4294901760
      %3944 = vmatpush1.msra.mxu0 %v3943
      %v3945 = vand.u32 %v3541, 4294901760
      %3946 = vmatprep.subr.mxu0 %v3945
      %v3947 = vand.u32 %v3540, 4294901760
      %3948 = vmatpush1.msra.mxu0 %v3947
      %v3949 = vand.u32 %v3543, 4294901760
      %3950 = vmatprep.subr.mxu0 %v3949
      %v3951 = vand.u32 %v3542, 4294901760
      %3952 = vmatpush1.msra.mxu0 %v3951
      %v3953 = vand.u32 %v3545, 4294901760
      %3954 = vmatprep.subr.mxu0 %v3953
      %v3955 = vand.u32 %v3544, 4294901760
      %3956 = vmatpush1.msra.mxu0 %v3955
      %3957 = vmatprep.subr.mxu0 0.0
      %3958 = vmatpush1.msra.mxu0 0.0
      %3959 = vmatprep.subr.mxu0 0.0
      %3960 = vmatpush1.msra.mxu0 0.0
      %3961 = vmatprep.subr.mxu0 0.0
      %3962 = vmatpush1.msra.mxu0 0.0
      %3963 = vmatprep.subr.mxu0 0.0
      %3964 = vmatpush1.msra.mxu0 0.0
      %3965 = vmatprep.subr.mxu0 0.0
      %3966 = vmatpush1.msra.mxu0 0.0
      %3967 = vmatprep.subr.mxu0 0.0
      %3968 = vmatpush1.msra.mxu0 0.0
      %3969 = vmatprep.subr.mxu0 0.0
      %3970 = vmatpush1.msra.mxu0 0.0
      %3971 = vmatprep.subr.mxu0 0.0
      %3972 = vmatpush1.msra.mxu0 0.0
      %3973 = vmatprep.subr.mxu0 0.0
      %3974 = vmatpush1.msra.mxu0 0.0
      %3975 = vmatprep.subr.mxu0 0.0
      %3976 = vmatpush1.msra.mxu0 0.0
      %3977 = vmatprep.subr.mxu0 0.0
      %3978 = vmatpush1.msra.mxu0 0.0
      %3979 = vmatprep.subr.mxu0 0.0
      %3980 = vmatpush1.msra.mxu0 0.0
      %3981 = vmatprep.subr.mxu0 0.0
      %3982 = vmatpush1.msra.mxu0 0.0
      %3983 = vmatprep.subr.mxu0 0.0
      %3984 = vmatpush1.msra.mxu0 0.0
      %3985 = vmatprep.subr.mxu0 0.0
      %3986 = vmatpush1.msra.mxu0 0.0
      %3987 = vmatprep.subr.mxu0 0.0
      %3988 = vmatpush1.msra.mxu0 0.0
      %3989 = vmatprep.subr.mxu0 0.0
      %3990 = vmatpush1.msra.mxu0 0.0
      %3991 = vmatprep.subr.mxu0 0.0
      %3992 = vmatpush1.msra.mxu0 0.0
      %3993 = vmatprep.subr.mxu0 0.0
      %3994 = vmatpush1.msra.mxu0 0.0
      %3995 = vmatprep.subr.mxu0 0.0
      %3996 = vmatpush1.msra.mxu0 0.0
      %3997 = vmatprep.subr.mxu0 0.0
      %3998 = vmatpush1.msra.mxu0 0.0
      %3999 = vmatprep.subr.mxu0 0.0
      %4000 = vmatpush1.msra.mxu0 0.0
      %4001 = vmatprep.subr.mxu0 0.0
      %4002 = vmatpush1.msra.mxu0 0.0
      %4003 = vmatprep.mubr.f32.mxu0 0.0
      %v4004 = vand.u32 %v3554, 4294901760
      %v4005 = vsub.f32 %v3554, %v4004
      %v4006 = vand.u32 %v4005, 4294901760
      %4007 = vmatmul.mubr.f32.gmra.mrb[0].mxu0 %v4006
      %v4008 = vpop.f32.mrb[0].mxu0
      %v4009 = vadd.f32 %v3917, %v4008
      %v4010 = vpop.f32.mrb[0].mxu0
      %v4011 = vadd.f32 %v3919, %v4010
      %4012 = vdwg.mxu0
      %v4013 = vand.u32 %v3529, 4294901760
      %v4014 = vsub.f32 %v3529, %v4013
      %v4015 = vand.u32 %v4014, 4294901760
      %4016 = vmatprep.subr.mxu0 %v4015
      %v4017 = vand.u32 %v3528, 4294901760
      %v4018 = vsub.f32 %v3528, %v4017
      %v4019 = vand.u32 %v4018, 4294901760
      %4020 = vmatpush1.msra.mxu0 %v4019
      %v4021 = vand.u32 %v3531, 4294901760
      %v4022 = vsub.f32 %v3531, %v4021
      %v4023 = vand.u32 %v4022, 4294901760
      %4024 = vmatprep.subr.mxu0 %v4023
      %v4025 = vand.u32 %v3530, 4294901760
      %v4026 = vsub.f32 %v3530, %v4025
      %v4027 = vand.u32 %v4026, 4294901760
      %4028 = vmatpush1.msra.mxu0 %v4027
      %v4029 = vand.u32 %v3533, 4294901760
      %v4030 = vsub.f32 %v3533, %v4029
      %v4031 = vand.u32 %v4030, 4294901760
      %4032 = vmatprep.subr.mxu0 %v4031
      %v4033 = vand.u32 %v3532, 4294901760
      %v4034 = vsub.f32 %v3532, %v4033
      %v4035 = vand.u32 %v4034, 4294901760
      %4036 = vmatpush1.msra.mxu0 %v4035
      %v4037 = vand.u32 %v3535, 4294901760
      %v4038 = vsub.f32 %v3535, %v4037
      %v4039 = vand.u32 %v4038, 4294901760
      %4040 = vmatprep.subr.mxu0 %v4039
      %v4041 = vand.u32 %v3534, 4294901760
      %v4042 = vsub.f32 %v3534, %v4041
      %v4043 = vand.u32 %v4042, 4294901760
      %4044 = vmatpush1.msra.mxu0 %v4043
      %v4045 = vand.u32 %v3537, 4294901760
      %v4046 = vsub.f32 %v3537, %v4045
      %v4047 = vand.u32 %v4046, 4294901760
      %4048 = vmatprep.subr.mxu0 %v4047
      %v4049 = vand.u32 %v3536, 4294901760
      %v4050 = vsub.f32 %v3536, %v4049
      %v4051 = vand.u32 %v4050, 4294901760
      %4052 = vmatpush1.msra.mxu0 %v4051
      %v4053 = vand.u32 %v3539, 4294901760
      %v4054 = vsub.f32 %v3539, %v4053
      %v4055 = vand.u32 %v4054, 4294901760
      %4056 = vmatprep.subr.mxu0 %v4055
      %v4057 = vand.u32 %v3538, 4294901760
      %v4058 = vsub.f32 %v3538, %v4057
      %v4059 = vand.u32 %v4058, 4294901760
      %4060 = vmatpush1.msra.mxu0 %v4059
      %v4061 = vand.u32 %v3541, 4294901760
      %v4062 = vsub.f32 %v3541, %v4061
      %v4063 = vand.u32 %v4062, 4294901760
      %4064 = vmatprep.subr.mxu0 %v4063
      %v4065 = vand.u32 %v3540, 4294901760
      %v4066 = vsub.f32 %v3540, %v4065
      %v4067 = vand.u32 %v4066, 4294901760
      %4068 = vmatpush1.msra.mxu0 %v4067
      %v4069 = vand.u32 %v3543, 4294901760
      %v4070 = vsub.f32 %v3543, %v4069
      %v4071 = vand.u32 %v4070, 4294901760
      %4072 = vmatprep.subr.mxu0 %v4071
      %v4073 = vand.u32 %v3542, 4294901760
      %v4074 = vsub.f32 %v3542, %v4073
      %v4075 = vand.u32 %v4074, 4294901760
      %4076 = vmatpush1.msra.mxu0 %v4075
      %v4077 = vand.u32 %v3545, 4294901760
      %v4078 = vsub.f32 %v3545, %v4077
      %v4079 = vand.u32 %v4078, 4294901760
      %4080 = vmatprep.subr.mxu0 %v4079
      %v4081 = vand.u32 %v3544, 4294901760
      %v4082 = vsub.f32 %v3544, %v4081
      %v4083 = vand.u32 %v4082, 4294901760
      %4084 = vmatpush1.msra.mxu0 %v4083
      %4085 = vmatprep.subr.mxu0 0.0
      %4086 = vmatpush1.msra.mxu0 0.0
      %4087 = vmatprep.subr.mxu0 0.0
      %4088 = vmatpush1.msra.mxu0 0.0
      %4089 = vmatprep.subr.mxu0 0.0
      %4090 = vmatpush1.msra.mxu0 0.0
      %4091 = vmatprep.subr.mxu0 0.0
      %4092 = vmatpush1.msra.mxu0 0.0
      %4093 = vmatprep.subr.mxu0 0.0
      %4094 = vmatpush1.msra.mxu0 0.0
      %4095 = vmatprep.subr.mxu0 0.0
      %4096 = vmatpush1.msra.mxu0 0.0
      %4097 = vmatprep.subr.mxu0 0.0
      %4098 = vmatpush1.msra.mxu0 0.0
      %4099 = vmatprep.subr.mxu0 0.0
      %4100 = vmatpush1.msra.mxu0 0.0
      %4101 = vmatprep.subr.mxu0 0.0
      %4102 = vmatpush1.msra.mxu0 0.0
      %4103 = vmatprep.subr.mxu0 0.0
      %4104 = vmatpush1.msra.mxu0 0.0
      %4105 = vmatprep.subr.mxu0 0.0
      %4106 = vmatpush1.msra.mxu0 0.0
      %4107 = vmatprep.subr.mxu0 0.0
      %4108 = vmatpush1.msra.mxu0 0.0
      %4109 = vmatprep.subr.mxu0 0.0
      %4110 = vmatpush1.msra.mxu0 0.0
      %4111 = vmatprep.subr.mxu0 0.0
      %4112 = vmatpush1.msra.mxu0 0.0
      %4113 = vmatprep.subr.mxu0 0.0
      %4114 = vmatpush1.msra.mxu0 0.0
      %4115 = vmatprep.subr.mxu0 0.0
      %4116 = vmatpush1.msra.mxu0 0.0
      %4117 = vmatprep.subr.mxu0 0.0
      %4118 = vmatpush1.msra.mxu0 0.0
      %4119 = vmatprep.subr.mxu0 0.0
      %4120 = vmatpush1.msra.mxu0 0.0
      %4121 = vmatprep.subr.mxu0 0.0
      %4122 = vmatpush1.msra.mxu0 0.0
      %4123 = vmatprep.subr.mxu0 0.0
      %4124 = vmatpush1.msra.mxu0 0.0
      %4125 = vmatprep.subr.mxu0 0.0
      %4126 = vmatpush1.msra.mxu0 0.0
      %4127 = vmatprep.subr.mxu0 0.0
      %4128 = vmatpush1.msra.mxu0 0.0
      %4129 = vmatprep.subr.mxu0 0.0
      %4130 = vmatpush1.msra.mxu0 0.0
      %4131 = vmatprep.mubr.f32.mxu0 0.0
      %v4132 = vand.u32 %v3554, 4294901760
      %4133 = vmatmul.mubr.f32.gmra.mrb[0].mxu0 %v4132
      %v4134 = vpop.f32.mrb[0].mxu0
      %v4135 = vadd.f32 %v4009, %v4134
      %v4136 = vpop.f32.mrb[0].mxu0
      %v4137 = vadd.f32 %v4011, %v4136
      %4138 = vdwg.mxu0
      %v4139 = vand.u32 %v3529, 4294901760
      %4140 = vmatprep.subr.mxu0 %v4139
      %v4141 = vand.u32 %v3528, 4294901760
      %4142 = vmatpush1.msra.mxu0 %v4141
      %v4143 = vand.u32 %v3531, 4294901760
      %4144 = vmatprep.subr.mxu0 %v4143
      %v4145 = vand.u32 %v3530, 4294901760
      %4146 = vmatpush1.msra.mxu0 %v4145
      %v4147 = vand.u32 %v3533, 4294901760
      %4148 = vmatprep.subr.mxu0 %v4147
      %v4149 = vand.u32 %v3532, 4294901760
      %4150 = vmatpush1.msra.mxu0 %v4149
      %v4151 = vand.u32 %v3535, 4294901760
      %4152 = vmatprep.subr.mxu0 %v4151
      %v4153 = vand.u32 %v3534, 4294901760
      %4154 = vmatpush1.msra.mxu0 %v4153
      %v4155 = vand.u32 %v3537, 4294901760
      %4156 = vmatprep.subr.mxu0 %v4155
      %v4157 = vand.u32 %v3536, 4294901760
      %4158 = vmatpush1.msra.mxu0 %v4157
      %v4159 = vand.u32 %v3539, 4294901760
      %4160 = vmatprep.subr.mxu0 %v4159
      %v4161 = vand.u32 %v3538, 4294901760
      %4162 = vmatpush1.msra.mxu0 %v4161
      %v4163 = vand.u32 %v3541, 4294901760
      %4164 = vmatprep.subr.mxu0 %v4163
      %v4165 = vand.u32 %v3540, 4294901760
      %4166 = vmatpush1.msra.mxu0 %v4165
      %v4167 = vand.u32 %v3543, 4294901760
      %4168 = vmatprep.subr.mxu0 %v4167
      %v4169 = vand.u32 %v3542, 4294901760
      %4170 = vmatpush1.msra.mxu0 %v4169
      %v4171 = vand.u32 %v3545, 4294901760
      %4172 = vmatprep.subr.mxu0 %v4171
      %v4173 = vand.u32 %v3544, 4294901760
      %4174 = vmatpush1.msra.mxu0 %v4173
      %4175 = vmatprep.subr.mxu0 0.0
      %4176 = vmatpush1.msra.mxu0 0.0
      %4177 = vmatprep.subr.mxu0 0.0
      %4178 = vmatpush1.msra.mxu0 0.0
      %4179 = vmatprep.subr.mxu0 0.0
      %4180 = vmatpush1.msra.mxu0 0.0
      %4181 = vmatprep.subr.mxu0 0.0
      %4182 = vmatpush1.msra.mxu0 0.0
      %4183 = vmatprep.subr.mxu0 0.0
      %4184 = vmatpush1.msra.mxu0 0.0
      %4185 = vmatprep.subr.mxu0 0.0
      %4186 = vmatpush1.msra.mxu0 0.0
      %4187 = vmatprep.subr.mxu0 0.0
      %4188 = vmatpush1.msra.mxu0 0.0
      %4189 = vmatprep.subr.mxu0 0.0
      %4190 = vmatpush1.msra.mxu0 0.0
      %4191 = vmatprep.subr.mxu0 0.0
      %4192 = vmatpush1.msra.mxu0 0.0
      %4193 = vmatprep.subr.mxu0 0.0
      %4194 = vmatpush1.msra.mxu0 0.0
      %4195 = vmatprep.subr.mxu0 0.0
      %4196 = vmatpush1.msra.mxu0 0.0
      %4197 = vmatprep.subr.mxu0 0.0
      %4198 = vmatpush1.msra.mxu0 0.0
      %4199 = vmatprep.subr.mxu0 0.0
      %4200 = vmatpush1.msra.mxu0 0.0
      %4201 = vmatprep.subr.mxu0 0.0
      %4202 = vmatpush1.msra.mxu0 0.0
      %4203 = vmatprep.subr.mxu0 0.0
      %4204 = vmatpush1.msra.mxu0 0.0
      %4205 = vmatprep.subr.mxu0 0.0
      %4206 = vmatpush1.msra.mxu0 0.0
      %4207 = vmatprep.subr.mxu0 0.0
      %4208 = vmatpush1.msra.mxu0 0.0
      %4209 = vmatprep.subr.mxu0 0.0
      %4210 = vmatpush1.msra.mxu0 0.0
      %4211 = vmatprep.subr.mxu0 0.0
      %4212 = vmatpush1.msra.mxu0 0.0
      %4213 = vmatprep.subr.mxu0 0.0
      %4214 = vmatpush1.msra.mxu0 0.0
      %4215 = vmatprep.subr.mxu0 0.0
      %4216 = vmatpush1.msra.mxu0 0.0
      %4217 = vmatprep.subr.mxu0 0.0
      %4218 = vmatpush1.msra.mxu0 0.0
      %4219 = vmatprep.subr.mxu0 0.0
      %4220 = vmatpush1.msra.mxu0 0.0
      %4221 = vmatprep.mubr.f32.mxu0 0.0
      %v4222 = vand.u32 %v3554, 4294901760
      %4223 = vmatmul.mubr.f32.gmra.mrb[0].mxu0 %v4222
      %v4224 = vpop.f32.mrb[0].mxu0
      %v4225 = vadd.f32 %v4135, %v4224
      %v4226 = vpop.f32.mrb[0].mxu0
      %v4227 = vadd.f32 %v4137, %v4226
      %4228 = vdwg.mxu0
      %vm4229 = vcmp.ge.f32.partialorder %v4225, 0.0
      %vm4230 = vcmp.ge.f32.partialorder %v4227, 0.0
      %v4231 = vmul.f32 %v4225, 0.01
      %v4232 = vmul.f32 %v4227, 0.01
      %v4233 = vsel %vm4229, %v4225, %v4231
      %v4234 = vsel %vm4230, %v4227, %v4232
      %4235 = vrot.lane.b32.xlu0 %v4233, 17
      %v4236 = vpop.permute.xlu0 %4235
      %4237 = vrot.lane.b32.xlu0 %v4234, 17
      %v4238 = vpop.permute.xlu0 %4237
      %v4239 = vsel %vm206, %v4236, %v4238
      %v4240 = vsel %vm206, %v4238, %v4236
      %v4241 = vld [vmem:[%s3] sm:$0xff]
      %v4242 = vld [vmem:[%s3 + $0x8] sm:$0xff]
      %v4243 = vmul.f32 %v4240, %v4241
      %v4244 = vmul.f32 %v4239, %v4242
      %4245 = vst [vmem:[#allocation2] sm:$0xff] %v4243
      %4246 = vst [vmem:[#allocation2 + $0x8] sm:$0xff] %v4244
      %4247 = vrot.lane.b32.xlu0 %v4233, 16
      %v4248 = vpop.permute.xlu0 %4247
      %4249 = vrot.lane.b32.xlu0 %v4234, 16
      %v4250 = vpop.permute.xlu0 %4249
      %v4251 = vsel %vm219, %v4248, %v4250
      %v4252 = vsel %vm219, %v4250, %v4248
      %v4253 = vld [vmem:[%s222] sm:$0xff]
      %v4254 = vld [vmem:[%s222 + $0x8] sm:$0xff]
      %v4255 = vmul.f32 %v4252, %v4253
      %v4256 = vmul.f32 %v4251, %v4254
      %4257 = vst [vmem:[#allocation2 + $0x10] sm:$0xff] %v4255
      %4258 = vst [vmem:[#allocation2 + $0x18] sm:$0xff] %v4256
      %4259 = vrot.lane.b32.xlu0 %v4233, 15
      %v4260 = vpop.permute.xlu0 %4259
      %4261 = vrot.lane.b32.xlu0 %v4234, 15
      %v4262 = vpop.permute.xlu0 %4261
      %v4263 = vsel %vm233, %v4260, %v4262
      %v4264 = vsel %vm233, %v4262, %v4260
      %v4265 = vld [vmem:[%s236] sm:$0xff]
      %v4266 = vld [vmem:[%s236 + $0x8] sm:$0xff]
      %v4267 = vmul.f32 %v4264, %v4265
      %v4268 = vmul.f32 %v4263, %v4266
      %4269 = vst [vmem:[#allocation2 + $0x20] sm:$0xff] %v4267
      %4270 = vst [vmem:[#allocation2 + $0x28] sm:$0xff] %v4268
      %4271 = vrot.lane.b32.xlu0 %v4233, 1
      %v4272 = vpop.permute.xlu0 %4271
      %4273 = vrot.lane.b32.xlu0 %v4234, 1
      %v4274 = vpop.permute.xlu0 %4273
      %v4275 = vsel %vm247, %v4272, %v4274
      %v4276 = vsel %vm247, %v4274, %v4272
      %v4277 = vld [vmem:[%s250] sm:$0xff]
      %v4278 = vld [vmem:[%s250 + $0x8] sm:$0xff]
      %v4279 = vmul.f32 %v4276, %v4277
      %v4280 = vmul.f32 %v4275, %v4278
      %4281 = vst [vmem:[#allocation2 + $0x30] sm:$0xff] %v4279
      %4282 = vst [vmem:[#allocation2 + $0x38] sm:$0xff] %v4280
      %4283 = vst [vmem:[#allocation2 + $0x40] sm:$0xff] %v4233
      %4284 = vst [vmem:[#allocation2 + $0x48] sm:$0xff] %v4234
      %4285 = vrot.lane.b32.xlu0 %v4233, 127
      %v4286 = vpop.permute.xlu0 %4285
      %4287 = vrot.lane.b32.xlu0 %v4234, 127
      %v4288 = vpop.permute.xlu0 %4287
      %v4289 = vsel %vm263, %v4286, %v4288
      %v4290 = vsel %vm263, %v4288, %v4286
      %v4291 = vld [vmem:[%s266] sm:$0xff]
      %v4292 = vld [vmem:[%s266 + $0x8] sm:$0xff]
      %v4293 = vmul.f32 %v4289, %v4291
      %v4294 = vmul.f32 %v4290, %v4292
      %4295 = vst [vmem:[#allocation2 + $0x50] sm:$0xff] %v4293
      %4296 = vst [vmem:[#allocation2 + $0x58] sm:$0xff] %v4294
      %4297 = vrot.lane.b32.xlu0 %v4233, 113
      %v4298 = vpop.permute.xlu0 %4297
      %4299 = vrot.lane.b32.xlu0 %v4234, 113
      %v4300 = vpop.permute.xlu0 %4299
      %v4301 = vsel %vm277, %v4298, %v4300
      %v4302 = vsel %vm277, %v4300, %v4298
      %v4303 = vld [vmem:[%s280] sm:$0xff]
      %v4304 = vld [vmem:[%s280 + $0x8] sm:$0xff]
      %v4305 = vmul.f32 %v4301, %v4303
      %v4306 = vmul.f32 %v4302, %v4304
      %4307 = vst [vmem:[#allocation2 + $0x60] sm:$0xff] %v4305
      %4308 = vst [vmem:[#allocation2 + $0x68] sm:$0xff] %v4306
      %4309 = vrot.lane.b32.xlu0 %v4233, 112
      %v4310 = vpop.permute.xlu0 %4309
      %4311 = vrot.lane.b32.xlu0 %v4234, 112
      %v4312 = vpop.permute.xlu0 %4311
      %v4313 = vsel %vm291, %v4310, %v4312
      %v4314 = vsel %vm291, %v4312, %v4310
      %v4315 = vld [vmem:[%s294] sm:$0xff]
      %v4316 = vld [vmem:[%s294 + $0x8] sm:$0xff]
      %v4317 = vmul.f32 %v4313, %v4315
      %v4318 = vmul.f32 %v4314, %v4316
      %4319 = vst [vmem:[#allocation2 + $0x70] sm:$0xff] %v4317
      %4320 = vst [vmem:[#allocation2 + $0x78] sm:$0xff] %v4318
      %4321 = vrot.lane.b32.xlu0 %v4233, 111
      %v4322 = vpop.permute.xlu0 %4321
      %4323 = vrot.lane.b32.xlu0 %v4234, 111
      %v4324 = vpop.permute.xlu0 %4323
      %v4325 = vsel %vm305, %v4322, %v4324
      %v4326 = vsel %vm305, %v4324, %v4322
      %v4327 = vld [vmem:[%s308] sm:$0xff]
      %v4328 = vld [vmem:[%s308 + $0x8] sm:$0xff]
      %v4329 = vmul.f32 %v4325, %v4327
      %v4330 = vmul.f32 %v4326, %v4328
      %4331 = vst [vmem:[#allocation2 + $0x80] sm:$0xff] %v4329
      %4332 = vst [vmem:[#allocation2 + $0x88] sm:$0xff] %v4330
      %s4333 = scalar_lea.vmem %s1, 40
      %v4334 = vld [vmem:[%s4333] sm:$0xff]
      %v4335 = vld [vmem:[#allocation2] sm:$0xff]
      %v4336 = vld [vmem:[#allocation2 + $0x8] sm:$0xff]
      %v4337 = vld [vmem:[#allocation2 + $0x10] sm:$0xff]
      %v4338 = vld [vmem:[#allocation2 + $0x18] sm:$0xff]
      %v4339 = vld [vmem:[#allocation2 + $0x20] sm:$0xff]
      %v4340 = vld [vmem:[#allocation2 + $0x28] sm:$0xff]
      %v4341 = vld [vmem:[#allocation2 + $0x30] sm:$0xff]
      %v4342 = vld [vmem:[#allocation2 + $0x38] sm:$0xff]
      %v4343 = vld [vmem:[#allocation2 + $0x40] sm:$0xff]
      %v4344 = vld [vmem:[#allocation2 + $0x48] sm:$0xff]
      %v4345 = vld [vmem:[#allocation2 + $0x50] sm:$0xff]
      %v4346 = vld [vmem:[#allocation2 + $0x58] sm:$0xff]
      %v4347 = vld [vmem:[#allocation2 + $0x60] sm:$0xff]
      %v4348 = vld [vmem:[#allocation2 + $0x68] sm:$0xff]
      %v4349 = vld [vmem:[#allocation2 + $0x70] sm:$0xff]
      %v4350 = vld [vmem:[#allocation2 + $0x78] sm:$0xff]
      %v4351 = vld [vmem:[#allocation2 + $0x80] sm:$0xff]
      %v4352 = vld [vmem:[#allocation2 + $0x88] sm:$0xff]
      %s4353 = scalar_lea.vmem %s2, 40
      %v4354 = vld [vmem:[%s4353] sm:$0xff]
      %4356 = vset.pattern.permute.xlu0 0
      %4357 = vperm.xlu0 %4356, %v4354
      %v4358 = vpop.permute.xlu0 %4357
      %v4361 = vsel %vm340, %v4334, 0
      %v4363 = vand.u32 %v4336, 4294901760
      %4364 = vmatprep.subr.mxu0 %v4363
      %v4365 = vand.u32 %v4335, 4294901760
      %4366 = vmatpush1.msra.mxu0 %v4365
      %v4367 = vand.u32 %v4338, 4294901760
      %4368 = vmatprep.subr.mxu0 %v4367
      %v4369 = vand.u32 %v4337, 4294901760
      %4370 = vmatpush1.msra.mxu0 %v4369
      %v4371 = vand.u32 %v4340, 4294901760
      %4372 = vmatprep.subr.mxu0 %v4371
      %v4373 = vand.u32 %v4339, 4294901760
      %4374 = vmatpush1.msra.mxu0 %v4373
      %v4375 = vand.u32 %v4342, 4294901760
      %4376 = vmatprep.subr.mxu0 %v4375
      %v4377 = vand.u32 %v4341, 4294901760
      %4378 = vmatpush1.msra.mxu0 %v4377
      %v4379 = vand.u32 %v4344, 4294901760
      %4380 = vmatprep.subr.mxu0 %v4379
      %v4381 = vand.u32 %v4343, 4294901760
      %4382 = vmatpush1.msra.mxu0 %v4381
      %v4383 = vand.u32 %v4346, 4294901760
      %4384 = vmatprep.subr.mxu0 %v4383
      %v4385 = vand.u32 %v4345, 4294901760
      %4386 = vmatpush1.msra.mxu0 %v4385
      %v4387 = vand.u32 %v4348, 4294901760
      %4388 = vmatprep.subr.mxu0 %v4387
      %v4389 = vand.u32 %v4347, 4294901760
      %4390 = vmatpush1.msra.mxu0 %v4389
      %v4391 = vand.u32 %v4350, 4294901760
      %4392 = vmatprep.subr.mxu0 %v4391
      %v4393 = vand.u32 %v4349, 4294901760
      %4394 = vmatpush1.msra.mxu0 %v4393
      %v4395 = vand.u32 %v4352, 4294901760
      %4396 = vmatprep.subr.mxu0 %v4395
      %v4397 = vand.u32 %v4351, 4294901760
      %4398 = vmatpush1.msra.mxu0 %v4397
      %4399 = vmatprep.subr.mxu0 0.0
      %4400 = vmatpush1.msra.mxu0 0.0
      %4401 = vmatprep.subr.mxu0 0.0
      %4402 = vmatpush1.msra.mxu0 0.0
      %4403 = vmatprep.subr.mxu0 0.0
      %4404 = vmatpush1.msra.mxu0 0.0
      %4405 = vmatprep.subr.mxu0 0.0
      %4406 = vmatpush1.msra.mxu0 0.0
      %4407 = vmatprep.subr.mxu0 0.0
      %4408 = vmatpush1.msra.mxu0 0.0
      %4409 = vmatprep.subr.mxu0 0.0
      %4410 = vmatpush1.msra.mxu0 0.0
      %4411 = vmatprep.subr.mxu0 0.0
      %4412 = vmatpush1.msra.mxu0 0.0
      %4413 = vmatprep.subr.mxu0 0.0
      %4414 = vmatpush1.msra.mxu0 0.0
      %4415 = vmatprep.subr.mxu0 0.0
      %4416 = vmatpush1.msra.mxu0 0.0
      %4417 = vmatprep.subr.mxu0 0.0
      %4418 = vmatpush1.msra.mxu0 0.0
      %4419 = vmatprep.subr.mxu0 0.0
      %4420 = vmatpush1.msra.mxu0 0.0
      %4421 = vmatprep.subr.mxu0 0.0
      %4422 = vmatpush1.msra.mxu0 0.0
      %4423 = vmatprep.subr.mxu0 0.0
      %4424 = vmatpush1.msra.mxu0 0.0
      %4425 = vmatprep.subr.mxu0 0.0
      %4426 = vmatpush1.msra.mxu0 0.0
      %4427 = vmatprep.subr.mxu0 0.0
      %4428 = vmatpush1.msra.mxu0 0.0
      %4429 = vmatprep.subr.mxu0 0.0
      %4430 = vmatpush1.msra.mxu0 0.0
      %4431 = vmatprep.subr.mxu0 0.0
      %4432 = vmatpush1.msra.mxu0 0.0
      %4433 = vmatprep.subr.mxu0 0.0
      %4434 = vmatpush1.msra.mxu0 0.0
      %4435 = vmatprep.subr.mxu0 0.0
      %4436 = vmatpush1.msra.mxu0 0.0
      %4437 = vmatprep.subr.mxu0 0.0
      %4438 = vmatpush1.msra.mxu0 0.0
      %4439 = vmatprep.subr.mxu0 0.0
      %4440 = vmatpush1.msra.mxu0 0.0
      %4441 = vmatprep.subr.mxu0 0.0
      %4442 = vmatpush1.msra.mxu0 0.0
      %4443 = vmatprep.subr.mxu0 0.0
      %4444 = vmatpush1.msra.mxu0 0.0
      %4445 = vmatprep.mubr.f32.mxu0 0.0
      %v4446 = vand.u32 %v4361, 4294901760
      %v4447 = vsub.f32 %v4361, %v4446
      %v4448 = vand.u32 %v4447, 4294901760
      %v4449 = vsub.f32 %v4447, %v4448
      %v4450 = vand.u32 %v4449, 4294901760
      %4451 = vmatmul.mubr.f32.gmra.mrb[0].mxu0 %v4450
      %v4452 = vpop.f32.mrb[0].mxu0
      %v4453 = vadd.f32 %v4358, %v4452
      %v4454 = vpop.f32.mrb[0].mxu0
      %v4455 = vadd.f32 %v4358, %v4454
      %4456 = vdwg.mxu0
      %v4457 = vand.u32 %v4336, 4294901760
      %v4458 = vsub.f32 %v4336, %v4457
      %v4459 = vand.u32 %v4458, 4294901760
      %v4460 = vsub.f32 %v4458, %v4459
      %v4461 = vand.u32 %v4460, 4294901760
      %4462 = vmatprep.subr.mxu0 %v4461
      %v4463 = vand.u32 %v4335, 4294901760
      %v4464 = vsub.f32 %v4335, %v4463
      %v4465 = vand.u32 %v4464, 4294901760
      %v4466 = vsub.f32 %v4464, %v4465
      %v4467 = vand.u32 %v4466, 4294901760
      %4468 = vmatpush1.msra.mxu0 %v4467
      %v4469 = vand.u32 %v4338, 4294901760
      %v4470 = vsub.f32 %v4338, %v4469
      %v4471 = vand.u32 %v4470, 4294901760
      %v4472 = vsub.f32 %v4470, %v4471
      %v4473 = vand.u32 %v4472, 4294901760
      %4474 = vmatprep.subr.mxu0 %v4473
      %v4475 = vand.u32 %v4337, 4294901760
      %v4476 = vsub.f32 %v4337, %v4475
      %v4477 = vand.u32 %v4476, 4294901760
      %v4478 = vsub.f32 %v4476, %v4477
      %v4479 = vand.u32 %v4478, 4294901760
      %4480 = vmatpush1.msra.mxu0 %v4479
      %v4481 = vand.u32 %v4340, 4294901760
      %v4482 = vsub.f32 %v4340, %v4481
      %v4483 = vand.u32 %v4482, 4294901760
      %v4484 = vsub.f32 %v4482, %v4483
      %v4485 = vand.u32 %v4484, 4294901760
      %4486 = vmatprep.subr.mxu0 %v4485
      %v4487 = vand.u32 %v4339, 4294901760
      %v4488 = vsub.f32 %v4339, %v4487
      %v4489 = vand.u32 %v4488, 4294901760
      %v4490 = vsub.f32 %v4488, %v4489
      %v4491 = vand.u32 %v4490, 4294901760
      %4492 = vmatpush1.msra.mxu0 %v4491
      %v4493 = vand.u32 %v4342, 4294901760
      %v4494 = vsub.f32 %v4342, %v4493
      %v4495 = vand.u32 %v4494, 4294901760
      %v4496 = vsub.f32 %v4494, %v4495
      %v4497 = vand.u32 %v4496, 4294901760
      %4498 = vmatprep.subr.mxu0 %v4497
      %v4499 = vand.u32 %v4341, 4294901760
      %v4500 = vsub.f32 %v4341, %v4499
      %v4501 = vand.u32 %v4500, 4294901760
      %v4502 = vsub.f32 %v4500, %v4501
      %v4503 = vand.u32 %v4502, 4294901760
      %4504 = vmatpush1.msra.mxu0 %v4503
      %v4505 = vand.u32 %v4344, 4294901760
      %v4506 = vsub.f32 %v4344, %v4505
      %v4507 = vand.u32 %v4506, 4294901760
      %v4508 = vsub.f32 %v4506, %v4507
      %v4509 = vand.u32 %v4508, 4294901760
      %4510 = vmatprep.subr.mxu0 %v4509
      %v4511 = vand.u32 %v4343, 4294901760
      %v4512 = vsub.f32 %v4343, %v4511
      %v4513 = vand.u32 %v4512, 4294901760
      %v4514 = vsub.f32 %v4512, %v4513
      %v4515 = vand.u32 %v4514, 4294901760
      %4516 = vmatpush1.msra.mxu0 %v4515
      %v4517 = vand.u32 %v4346, 4294901760
      %v4518 = vsub.f32 %v4346, %v4517
      %v4519 = vand.u32 %v4518, 4294901760
      %v4520 = vsub.f32 %v4518, %v4519
      %v4521 = vand.u32 %v4520, 4294901760
      %4522 = vmatprep.subr.mxu0 %v4521
      %v4523 = vand.u32 %v4345, 4294901760
      %v4524 = vsub.f32 %v4345, %v4523
      %v4525 = vand.u32 %v4524, 4294901760
      %v4526 = vsub.f32 %v4524, %v4525
      %v4527 = vand.u32 %v4526, 4294901760
      %4528 = vmatpush1.msra.mxu0 %v4527
      %v4529 = vand.u32 %v4348, 4294901760
      %v4530 = vsub.f32 %v4348, %v4529
      %v4531 = vand.u32 %v4530, 4294901760
      %v4532 = vsub.f32 %v4530, %v4531
      %v4533 = vand.u32 %v4532, 4294901760
      %4534 = vmatprep.subr.mxu0 %v4533
      %v4535 = vand.u32 %v4347, 4294901760
      %v4536 = vsub.f32 %v4347, %v4535
      %v4537 = vand.u32 %v4536, 4294901760
      %v4538 = vsub.f32 %v4536, %v4537
      %v4539 = vand.u32 %v4538, 4294901760
      %4540 = vmatpush1.msra.mxu0 %v4539
      %v4541 = vand.u32 %v4350, 4294901760
      %v4542 = vsub.f32 %v4350, %v4541
      %v4543 = vand.u32 %v4542, 4294901760
      %v4544 = vsub.f32 %v4542, %v4543
      %v4545 = vand.u32 %v4544, 4294901760
      %4546 = vmatprep.subr.mxu0 %v4545
      %v4547 = vand.u32 %v4349, 4294901760
      %v4548 = vsub.f32 %v4349, %v4547
      %v4549 = vand.u32 %v4548, 4294901760
      %v4550 = vsub.f32 %v4548, %v4549
      %v4551 = vand.u32 %v4550, 4294901760
      %4552 = vmatpush1.msra.mxu0 %v4551
      %v4553 = vand.u32 %v4352, 4294901760
      %v4554 = vsub.f32 %v4352, %v4553
      %v4555 = vand.u32 %v4554, 4294901760
      %v4556 = vsub.f32 %v4554, %v4555
      %v4557 = vand.u32 %v4556, 4294901760
      %4558 = vmatprep.subr.mxu0 %v4557
      %v4559 = vand.u32 %v4351, 4294901760
      %v4560 = vsub.f32 %v4351, %v4559
      %v4561 = vand.u32 %v4560, 4294901760
      %v4562 = vsub.f32 %v4560, %v4561
      %v4563 = vand.u32 %v4562, 4294901760
      %4564 = vmatpush1.msra.mxu0 %v4563
      %4565 = vmatprep.subr.mxu0 0.0
      %4566 = vmatpush1.msra.mxu0 0.0
      %4567 = vmatprep.subr.mxu0 0.0
      %4568 = vmatpush1.msra.mxu0 0.0
      %4569 = vmatprep.subr.mxu0 0.0
      %4570 = vmatpush1.msra.mxu0 0.0
      %4571 = vmatprep.subr.mxu0 0.0
      %4572 = vmatpush1.msra.mxu0 0.0
      %4573 = vmatprep.subr.mxu0 0.0
      %4574 = vmatpush1.msra.mxu0 0.0
      %4575 = vmatprep.subr.mxu0 0.0
      %4576 = vmatpush1.msra.mxu0 0.0
      %4577 = vmatprep.subr.mxu0 0.0
      %4578 = vmatpush1.msra.mxu0 0.0
      %4579 = vmatprep.subr.mxu0 0.0
      %4580 = vmatpush1.msra.mxu0 0.0
      %4581 = vmatprep.subr.mxu0 0.0
      %4582 = vmatpush1.msra.mxu0 0.0
      %4583 = vmatprep.subr.mxu0 0.0
      %4584 = vmatpush1.msra.mxu0 0.0
      %4585 = vmatprep.subr.mxu0 0.0
      %4586 = vmatpush1.msra.mxu0 0.0
      %4587 = vmatprep.subr.mxu0 0.0
      %4588 = vmatpush1.msra.mxu0 0.0
      %4589 = vmatprep.subr.mxu0 0.0
      %4590 = vmatpush1.msra.mxu0 0.0
      %4591 = vmatprep.subr.mxu0 0.0
      %4592 = vmatpush1.msra.mxu0 0.0
      %4593 = vmatprep.subr.mxu0 0.0
      %4594 = vmatpush1.msra.mxu0 0.0
      %4595 = vmatprep.subr.mxu0 0.0
      %4596 = vmatpush1.msra.mxu0 0.0
      %4597 = vmatprep.subr.mxu0 0.0
      %4598 = vmatpush1.msra.mxu0 0.0
      %4599 = vmatprep.subr.mxu0 0.0
      %4600 = vmatpush1.msra.mxu0 0.0
      %4601 = vmatprep.subr.mxu0 0.0
      %4602 = vmatpush1.msra.mxu0 0.0
      %4603 = vmatprep.subr.mxu0 0.0
      %4604 = vmatpush1.msra.mxu0 0.0
      %4605 = vmatprep.subr.mxu0 0.0
      %4606 = vmatpush1.msra.mxu0 0.0
      %4607 = vmatprep.subr.mxu0 0.0
      %4608 = vmatpush1.msra.mxu0 0.0
      %4609 = vmatprep.subr.mxu0 0.0
      %4610 = vmatpush1.msra.mxu0 0.0
      %4611 = vmatprep.mubr.f32.mxu0 0.0
      %v4612 = vand.u32 %v4361, 4294901760
      %4613 = vmatmul.mubr.f32.gmra.mrb[0].mxu0 %v4612
      %v4614 = vpop.f32.mrb[0].mxu0
      %v4615 = vadd.f32 %v4453, %v4614
      %v4616 = vpop.f32.mrb[0].mxu0
      %v4617 = vadd.f32 %v4455, %v4616
      %4618 = vdwg.mxu0
      %v4619 = vand.u32 %v4336, 4294901760
      %v4620 = vsub.f32 %v4336, %v4619
      %4621 = vmatprep.subr.mxu0 %v4620
      %v4622 = vand.u32 %v4335, 4294901760
      %v4623 = vsub.f32 %v4335, %v4622
      %4624 = vmatpush1.msra.mxu0 %v4623
      %v4625 = vand.u32 %v4338, 4294901760
      %v4626 = vsub.f32 %v4338, %v4625
      %4627 = vmatprep.subr.mxu0 %v4626
      %v4628 = vand.u32 %v4337, 4294901760
      %v4629 = vsub.f32 %v4337, %v4628
      %4630 = vmatpush1.msra.mxu0 %v4629
      %v4631 = vand.u32 %v4340, 4294901760
      %v4632 = vsub.f32 %v4340, %v4631
      %4633 = vmatprep.subr.mxu0 %v4632
      %v4634 = vand.u32 %v4339, 4294901760
      %v4635 = vsub.f32 %v4339, %v4634
      %4636 = vmatpush1.msra.mxu0 %v4635
      %v4637 = vand.u32 %v4342, 4294901760
      %v4638 = vsub.f32 %v4342, %v4637
      %4639 = vmatprep.subr.mxu0 %v4638
      %v4640 = vand.u32 %v4341, 4294901760
      %v4641 = vsub.f32 %v4341, %v4640
      %4642 = vmatpush1.msra.mxu0 %v4641
      %v4643 = vand.u32 %v4344, 4294901760
      %v4644 = vsub.f32 %v4344, %v4643
      %4645 = vmatprep.subr.mxu0 %v4644
      %v4646 = vand.u32 %v4343, 4294901760
      %v4647 = vsub.f32 %v4343, %v4646
      %4648 = vmatpush1.msra.mxu0 %v4647
      %v4649 = vand.u32 %v4346, 4294901760
      %v4650 = vsub.f32 %v4346, %v4649
      %4651 = vmatprep.subr.mxu0 %v4650
      %v4652 = vand.u32 %v4345, 4294901760
      %v4653 = vsub.f32 %v4345, %v4652
      %4654 = vmatpush1.msra.mxu0 %v4653
      %v4655 = vand.u32 %v4348, 4294901760
      %v4656 = vsub.f32 %v4348, %v4655
      %4657 = vmatprep.subr.mxu0 %v4656
      %v4658 = vand.u32 %v4347, 4294901760
      %v4659 = vsub.f32 %v4347, %v4658
      %4660 = vmatpush1.msra.mxu0 %v4659
      %v4661 = vand.u32 %v4350, 4294901760
      %v4662 = vsub.f32 %v4350, %v4661
      %4663 = vmatprep.subr.mxu0 %v4662
      %v4664 = vand.u32 %v4349, 4294901760
      %v4665 = vsub.f32 %v4349, %v4664
      %4666 = vmatpush1.msra.mxu0 %v4665
      %v4667 = vand.u32 %v4352, 4294901760
      %v4668 = vsub.f32 %v4352, %v4667
      %4669 = vmatprep.subr.mxu0 %v4668
      %v4670 = vand.u32 %v4351, 4294901760
      %v4671 = vsub.f32 %v4351, %v4670
      %4672 = vmatpush1.msra.mxu0 %v4671
      %4673 = vmatprep.subr.mxu0 0.0
      %4674 = vmatpush1.msra.mxu0 0.0
      %4675 = vmatprep.subr.mxu0 0.0
      %4676 = vmatpush1.msra.mxu0 0.0
      %4677 = vmatprep.subr.mxu0 0.0
      %4678 = vmatpush1.msra.mxu0 0.0
      %4679 = vmatprep.subr.mxu0 0.0
      %4680 = vmatpush1.msra.mxu0 0.0
      %4681 = vmatprep.subr.mxu0 0.0
      %4682 = vmatpush1.msra.mxu0 0.0
      %4683 = vmatprep.subr.mxu0 0.0
      %4684 = vmatpush1.msra.mxu0 0.0
      %4685 = vmatprep.subr.mxu0 0.0
      %4686 = vmatpush1.msra.mxu0 0.0
      %4687 = vmatprep.subr.mxu0 0.0
      %4688 = vmatpush1.msra.mxu0 0.0
      %4689 = vmatprep.subr.mxu0 0.0
      %4690 = vmatpush1.msra.mxu0 0.0
      %4691 = vmatprep.subr.mxu0 0.0
      %4692 = vmatpush1.msra.mxu0 0.0
      %4693 = vmatprep.subr.mxu0 0.0
      %4694 = vmatpush1.msra.mxu0 0.0
      %4695 = vmatprep.subr.mxu0 0.0
      %4696 = vmatpush1.msra.mxu0 0.0
      %4697 = vmatprep.subr.mxu0 0.0
      %4698 = vmatpush1.msra.mxu0 0.0
      %4699 = vmatprep.subr.mxu0 0.0
      %4700 = vmatpush1.msra.mxu0 0.0
      %4701 = vmatprep.subr.mxu0 0.0
      %4702 = vmatpush1.msra.mxu0 0.0
      %4703 = vmatprep.subr.mxu0 0.0
      %4704 = vmatpush1.msra.mxu0 0.0
      %4705 = vmatprep.subr.mxu0 0.0
      %4706 = vmatpush1.msra.mxu0 0.0
      %4707 = vmatprep.subr.mxu0 0.0
      %4708 = vmatpush1.msra.mxu0 0.0
      %4709 = vmatprep.subr.mxu0 0.0
      %4710 = vmatpush1.msra.mxu0 0.0
      %4711 = vmatprep.subr.mxu0 0.0
      %4712 = vmatpush1.msra.mxu0 0.0
      %4713 = vmatprep.subr.mxu0 0.0
      %4714 = vmatpush1.msra.mxu0 0.0
      %4715 = vmatprep.subr.mxu0 0.0
      %4716 = vmatpush1.msra.mxu0 0.0
      %4717 = vmatprep.subr.mxu0 0.0
      %4718 = vmatpush1.msra.mxu0 0.0
      %4719 = vmatprep.mubr.f32.mxu0 0.0
      %v4720 = vand.u32 %v4361, 4294901760
      %v4721 = vsub.f32 %v4361, %v4720
      %4722 = vmatmul.mubr.f32.gmra.mrb[0].mxu0 %v4721
      %v4723 = vpop.f32.mrb[0].mxu0
      %v4724 = vadd.f32 %v4615, %v4723
      %v4725 = vpop.f32.mrb[0].mxu0
      %v4726 = vadd.f32 %v4617, %v4725
      %4727 = vdwg.mxu0
      %v4728 = vand.u32 %v4336, 4294901760
      %4729 = vmatprep.subr.mxu0 %v4728
      %v4730 = vand.u32 %v4335, 4294901760
      %4731 = vmatpush1.msra.mxu0 %v4730
      %v4732 = vand.u32 %v4338, 4294901760
      %4733 = vmatprep.subr.mxu0 %v4732
      %v4734 = vand.u32 %v4337, 4294901760
      %4735 = vmatpush1.msra.mxu0 %v4734
      %v4736 = vand.u32 %v4340, 4294901760
      %4737 = vmatprep.subr.mxu0 %v4736
      %v4738 = vand.u32 %v4339, 4294901760
      %4739 = vmatpush1.msra.mxu0 %v4738
      %v4740 = vand.u32 %v4342, 4294901760
      %4741 = vmatprep.subr.mxu0 %v4740
      %v4742 = vand.u32 %v4341, 4294901760
      %4743 = vmatpush1.msra.mxu0 %v4742
      %v4744 = vand.u32 %v4344, 4294901760
      %4745 = vmatprep.subr.mxu0 %v4744
      %v4746 = vand.u32 %v4343, 4294901760
      %4747 = vmatpush1.msra.mxu0 %v4746
      %v4748 = vand.u32 %v4346, 4294901760
      %4749 = vmatprep.subr.mxu0 %v4748
      %v4750 = vand.u32 %v4345, 4294901760
      %4751 = vmatpush1.msra.mxu0 %v4750
      %v4752 = vand.u32 %v4348, 4294901760
      %4753 = vmatprep.subr.mxu0 %v4752
      %v4754 = vand.u32 %v4347, 4294901760
      %4755 = vmatpush1.msra.mxu0 %v4754
      %v4756 = vand.u32 %v4350, 4294901760
      %4757 = vmatprep.subr.mxu0 %v4756
      %v4758 = vand.u32 %v4349, 4294901760
      %4759 = vmatpush1.msra.mxu0 %v4758
      %v4760 = vand.u32 %v4352, 4294901760
      %4761 = vmatprep.subr.mxu0 %v4760
      %v4762 = vand.u32 %v4351, 4294901760
      %4763 = vmatpush1.msra.mxu0 %v4762
      %4764 = vmatprep.subr.mxu0 0.0
      %4765 = vmatpush1.msra.mxu0 0.0
      %4766 = vmatprep.subr.mxu0 0.0
      %4767 = vmatpush1.msra.mxu0 0.0
      %4768 = vmatprep.subr.mxu0 0.0
      %4769 = vmatpush1.msra.mxu0 0.0
      %4770 = vmatprep.subr.mxu0 0.0
      %4771 = vmatpush1.msra.mxu0 0.0
      %4772 = vmatprep.subr.mxu0 0.0
      %4773 = vmatpush1.msra.mxu0 0.0
      %4774 = vmatprep.subr.mxu0 0.0
      %4775 = vmatpush1.msra.mxu0 0.0
      %4776 = vmatprep.subr.mxu0 0.0
      %4777 = vmatpush1.msra.mxu0 0.0
      %4778 = vmatprep.subr.mxu0 0.0
      %4779 = vmatpush1.msra.mxu0 0.0
      %4780 = vmatprep.subr.mxu0 0.0
      %4781 = vmatpush1.msra.mxu0 0.0
      %4782 = vmatprep.subr.mxu0 0.0
      %4783 = vmatpush1.msra.mxu0 0.0
      %4784 = vmatprep.subr.mxu0 0.0
      %4785 = vmatpush1.msra.mxu0 0.0
      %4786 = vmatprep.subr.mxu0 0.0
      %4787 = vmatpush1.msra.mxu0 0.0
      %4788 = vmatprep.subr.mxu0 0.0
      %4789 = vmatpush1.msra.mxu0 0.0
      %4790 = vmatprep.subr.mxu0 0.0
      %4791 = vmatpush1.msra.mxu0 0.0
      %4792 = vmatprep.subr.mxu0 0.0
      %4793 = vmatpush1.msra.mxu0 0.0
      %4794 = vmatprep.subr.mxu0 0.0
      %4795 = vmatpush1.msra.mxu0 0.0
      %4796 = vmatprep.subr.mxu0 0.0
      %4797 = vmatpush1.msra.mxu0 0.0
      %4798 = vmatprep.subr.mxu0 0.0
      %4799 = vmatpush1.msra.mxu0 0.0
      %4800 = vmatprep.subr.mxu0 0.0
      %4801 = vmatpush1.msra.mxu0 0.0
      %4802 = vmatprep.subr.mxu0 0.0
      %4803 = vmatpush1.msra.mxu0 0.0
      %4804 = vmatprep.subr.mxu0 0.0
      %4805 = vmatpush1.msra.mxu0 0.0
      %4806 = vmatprep.subr.mxu0 0.0
      %4807 = vmatpush1.msra.mxu0 0.0
      %4808 = vmatprep.subr.mxu0 0.0
      %4809 = vmatpush1.msra.mxu0 0.0
      %4810 = vmatprep.mubr.f32.mxu0 0.0
      %v4811 = vand.u32 %v4361, 4294901760
      %v4812 = vsub.f32 %v4361, %v4811
      %v4813 = vand.u32 %v4812, 4294901760
      %4814 = vmatmul.mubr.f32.gmra.mrb[0].mxu0 %v4813
      %v4815 = vpop.f32.mrb[0].mxu0
      %v4816 = vadd.f32 %v4724, %v4815
      %v4817 = vpop.f32.mrb[0].mxu0
      %v4818 = vadd.f32 %v4726, %v4817
      %4819 = vdwg.mxu0
      %v4820 = vand.u32 %v4336, 4294901760
      %v4821 = vsub.f32 %v4336, %v4820
      %v4822 = vand.u32 %v4821, 4294901760
      %4823 = vmatprep.subr.mxu0 %v4822
      %v4824 = vand.u32 %v4335, 4294901760
      %v4825 = vsub.f32 %v4335, %v4824
      %v4826 = vand.u32 %v4825, 4294901760
      %4827 = vmatpush1.msra.mxu0 %v4826
      %v4828 = vand.u32 %v4338, 4294901760
      %v4829 = vsub.f32 %v4338, %v4828
      %v4830 = vand.u32 %v4829, 4294901760
      %4831 = vmatprep.subr.mxu0 %v4830
      %v4832 = vand.u32 %v4337, 4294901760
      %v4833 = vsub.f32 %v4337, %v4832
      %v4834 = vand.u32 %v4833, 4294901760
      %4835 = vmatpush1.msra.mxu0 %v4834
      %v4836 = vand.u32 %v4340, 4294901760
      %v4837 = vsub.f32 %v4340, %v4836
      %v4838 = vand.u32 %v4837, 4294901760
      %4839 = vmatprep.subr.mxu0 %v4838
      %v4840 = vand.u32 %v4339, 4294901760
      %v4841 = vsub.f32 %v4339, %v4840
      %v4842 = vand.u32 %v4841, 4294901760
      %4843 = vmatpush1.msra.mxu0 %v4842
      %v4844 = vand.u32 %v4342, 4294901760
      %v4845 = vsub.f32 %v4342, %v4844
      %v4846 = vand.u32 %v4845, 4294901760
      %4847 = vmatprep.subr.mxu0 %v4846
      %v4848 = vand.u32 %v4341, 4294901760
      %v4849 = vsub.f32 %v4341, %v4848
      %v4850 = vand.u32 %v4849, 4294901760
      %4851 = vmatpush1.msra.mxu0 %v4850
      %v4852 = vand.u32 %v4344, 4294901760
      %v4853 = vsub.f32 %v4344, %v4852
      %v4854 = vand.u32 %v4853, 4294901760
      %4855 = vmatprep.subr.mxu0 %v4854
      %v4856 = vand.u32 %v4343, 4294901760
      %v4857 = vsub.f32 %v4343, %v4856
      %v4858 = vand.u32 %v4857, 4294901760
      %4859 = vmatpush1.msra.mxu0 %v4858
      %v4860 = vand.u32 %v4346, 4294901760
      %v4861 = vsub.f32 %v4346, %v4860
      %v4862 = vand.u32 %v4861, 4294901760
      %4863 = vmatprep.subr.mxu0 %v4862
      %v4864 = vand.u32 %v4345, 4294901760
      %v4865 = vsub.f32 %v4345, %v4864
      %v4866 = vand.u32 %v4865, 4294901760
      %4867 = vmatpush1.msra.mxu0 %v4866
      %v4868 = vand.u32 %v4348, 4294901760
      %v4869 = vsub.f32 %v4348, %v4868
      %v4870 = vand.u32 %v4869, 4294901760
      %4871 = vmatprep.subr.mxu0 %v4870
      %v4872 = vand.u32 %v4347, 4294901760
      %v4873 = vsub.f32 %v4347, %v4872
      %v4874 = vand.u32 %v4873, 4294901760
      %4875 = vmatpush1.msra.mxu0 %v4874
      %v4876 = vand.u32 %v4350, 4294901760
      %v4877 = vsub.f32 %v4350, %v4876
      %v4878 = vand.u32 %v4877, 4294901760
      %4879 = vmatprep.subr.mxu0 %v4878
      %v4880 = vand.u32 %v4349, 4294901760
      %v4881 = vsub.f32 %v4349, %v4880
      %v4882 = vand.u32 %v4881, 4294901760
      %4883 = vmatpush1.msra.mxu0 %v4882
      %v4884 = vand.u32 %v4352, 4294901760
      %v4885 = vsub.f32 %v4352, %v4884
      %v4886 = vand.u32 %v4885, 4294901760
      %4887 = vmatprep.subr.mxu0 %v4886
      %v4888 = vand.u32 %v4351, 4294901760
      %v4889 = vsub.f32 %v4351, %v4888
      %v4890 = vand.u32 %v4889, 4294901760
      %4891 = vmatpush1.msra.mxu0 %v4890
      %4892 = vmatprep.subr.mxu0 0.0
      %4893 = vmatpush1.msra.mxu0 0.0
      %4894 = vmatprep.subr.mxu0 0.0
      %4895 = vmatpush1.msra.mxu0 0.0
      %4896 = vmatprep.subr.mxu0 0.0
      %4897 = vmatpush1.msra.mxu0 0.0
      %4898 = vmatprep.subr.mxu0 0.0
      %4899 = vmatpush1.msra.mxu0 0.0
      %4900 = vmatprep.subr.mxu0 0.0
      %4901 = vmatpush1.msra.mxu0 0.0
      %4902 = vmatprep.subr.mxu0 0.0
      %4903 = vmatpush1.msra.mxu0 0.0
      %4904 = vmatprep.subr.mxu0 0.0
      %4905 = vmatpush1.msra.mxu0 0.0
      %4906 = vmatprep.subr.mxu0 0.0
      %4907 = vmatpush1.msra.mxu0 0.0
      %4908 = vmatprep.subr.mxu0 0.0
      %4909 = vmatpush1.msra.mxu0 0.0
      %4910 = vmatprep.subr.mxu0 0.0
      %4911 = vmatpush1.msra.mxu0 0.0
      %4912 = vmatprep.subr.mxu0 0.0
      %4913 = vmatpush1.msra.mxu0 0.0
      %4914 = vmatprep.subr.mxu0 0.0
      %4915 = vmatpush1.msra.mxu0 0.0
      %4916 = vmatprep.subr.mxu0 0.0
      %4917 = vmatpush1.msra.mxu0 0.0
      %4918 = vmatprep.subr.mxu0 0.0
      %4919 = vmatpush1.msra.mxu0 0.0
      %4920 = vmatprep.subr.mxu0 0.0
      %4921 = vmatpush1.msra.mxu0 0.0
      %4922 = vmatprep.subr.mxu0 0.0
      %4923 = vmatpush1.msra.mxu0 0.0
      %4924 = vmatprep.subr.mxu0 0.0
      %4925 = vmatpush1.msra.mxu0 0.0
      %4926 = vmatprep.subr.mxu0 0.0
      %4927 = vmatpush1.msra.mxu0 0.0
      %4928 = vmatprep.subr.mxu0 0.0
      %4929 = vmatpush1.msra.mxu0 0.0
      %4930 = vmatprep.subr.mxu0 0.0
      %4931 = vmatpush1.msra.mxu0 0.0
      %4932 = vmatprep.subr.mxu0 0.0
      %4933 = vmatpush1.msra.mxu0 0.0
      %4934 = vmatprep.subr.mxu0 0.0
      %4935 = vmatpush1.msra.mxu0 0.0
      %4936 = vmatprep.subr.mxu0 0.0
      %4937 = vmatpush1.msra.mxu0 0.0
      %4938 = vmatprep.mubr.f32.mxu0 0.0
      %v4939 = vand.u32 %v4361, 4294901760
      %4940 = vmatmul.mubr.f32.gmra.mrb[0].mxu0 %v4939
      %v4941 = vpop.f32.mrb[0].mxu0
      %v4942 = vadd.f32 %v4816, %v4941
      %v4943 = vpop.f32.mrb[0].mxu0
      %v4944 = vadd.f32 %v4818, %v4943
      %4945 = vdwg.mxu0
      %v4946 = vand.u32 %v4336, 4294901760
      %4947 = vmatprep.subr.mxu0 %v4946
      %v4948 = vand.u32 %v4335, 4294901760
      %4949 = vmatpush1.msra.mxu0 %v4948
      %v4950 = vand.u32 %v4338, 4294901760
      %4951 = vmatprep.subr.mxu0 %v4950
      %v4952 = vand.u32 %v4337, 4294901760
      %4953 = vmatpush1.msra.mxu0 %v4952
      %v4954 = vand.u32 %v4340, 4294901760
      %4955 = vmatprep.subr.mxu0 %v4954
      %v4956 = vand.u32 %v4339, 4294901760
      %4957 = vmatpush1.msra.mxu0 %v4956
      %v4958 = vand.u32 %v4342, 4294901760
      %4959 = vmatprep.subr.mxu0 %v4958
      %v4960 = vand.u32 %v4341, 4294901760
      %4961 = vmatpush1.msra.mxu0 %v4960
      %v4962 = vand.u32 %v4344, 4294901760
      %4963 = vmatprep.subr.mxu0 %v4962
      %v4964 = vand.u32 %v4343, 4294901760
      %4965 = vmatpush1.msra.mxu0 %v4964
      %v4966 = vand.u32 %v4346, 4294901760
      %4967 = vmatprep.subr.mxu0 %v4966
      %v4968 = vand.u32 %v4345, 4294901760
      %4969 = vmatpush1.msra.mxu0 %v4968
      %v4970 = vand.u32 %v4348, 4294901760
      %4971 = vmatprep.subr.mxu0 %v4970
      %v4972 = vand.u32 %v4347, 4294901760
      %4973 = vmatpush1.msra.mxu0 %v4972
      %v4974 = vand.u32 %v4350, 4294901760
      %4975 = vmatprep.subr.mxu0 %v4974
      %v4976 = vand.u32 %v4349, 4294901760
      %4977 = vmatpush1.msra.mxu0 %v4976
      %v4978 = vand.u32 %v4352, 4294901760
      %4979 = vmatprep.subr.mxu0 %v4978
      %v4980 = vand.u32 %v4351, 4294901760
      %4981 = vmatpush1.msra.mxu0 %v4980
      %4982 = vmatprep.subr.mxu0 0.0
      %4983 = vmatpush1.msra.mxu0 0.0
      %4984 = vmatprep.subr.mxu0 0.0
      %4985 = vmatpush1.msra.mxu0 0.0
      %4986 = vmatprep.subr.mxu0 0.0
      %4987 = vmatpush1.msra.mxu0 0.0
      %4988 = vmatprep.subr.mxu0 0.0
      %4989 = vmatpush1.msra.mxu0 0.0
      %4990 = vmatprep.subr.mxu0 0.0
      %4991 = vmatpush1.msra.mxu0 0.0
      %4992 = vmatprep.subr.mxu0 0.0
      %4993 = vmatpush1.msra.mxu0 0.0
      %4994 = vmatprep.subr.mxu0 0.0
      %4995 = vmatpush1.msra.mxu0 0.0
      %4996 = vmatprep.subr.mxu0 0.0
      %4997 = vmatpush1.msra.mxu0 0.0
      %4998 = vmatprep.subr.mxu0 0.0
      %4999 = vmatpush1.msra.mxu0 0.0
      %5000 = vmatprep.subr.mxu0 0.0
      %5001 = vmatpush1.msra.mxu0 0.0
      %5002 = vmatprep.subr.mxu0 0.0
      %5003 = vmatpush1.msra.mxu0 0.0
      %5004 = vmatprep.subr.mxu0 0.0
      %5005 = vmatpush1.msra.mxu0 0.0
      %5006 = vmatprep.subr.mxu0 0.0
      %5007 = vmatpush1.msra.mxu0 0.0
      %5008 = vmatprep.subr.mxu0 0.0
      %5009 = vmatpush1.msra.mxu0 0.0
      %5010 = vmatprep.subr.mxu0 0.0
      %5011 = vmatpush1.msra.mxu0 0.0
      %5012 = vmatprep.subr.mxu0 0.0
      %5013 = vmatpush1.msra.mxu0 0.0
      %5014 = vmatprep.subr.mxu0 0.0
      %5015 = vmatpush1.msra.mxu0 0.0
      %5016 = vmatprep.subr.mxu0 0.0
      %5017 = vmatpush1.msra.mxu0 0.0
      %5018 = vmatprep.subr.mxu0 0.0
      %5019 = vmatpush1.msra.mxu0 0.0
      %5020 = vmatprep.subr.mxu0 0.0
      %5021 = vmatpush1.msra.mxu0 0.0
      %5022 = vmatprep.subr.mxu0 0.0
      %5023 = vmatpush1.msra.mxu0 0.0
      %5024 = vmatprep.subr.mxu0 0.0
      %5025 = vmatpush1.msra.mxu0 0.0
      %5026 = vmatprep.subr.mxu0 0.0
      %5027 = vmatpush1.msra.mxu0 0.0
      %5028 = vmatprep.mubr.f32.mxu0 0.0
      %v5029 = vand.u32 %v4361, 4294901760
      %5030 = vmatmul.mubr.f32.gmra.mrb[0].mxu0 %v5029
      %v5031 = vpop.f32.mrb[0].mxu0
      %v5032 = vadd.f32 %v4942, %v5031
      %v5033 = vpop.f32.mrb[0].mxu0
      %v5034 = vadd.f32 %v4944, %v5033
      %5035 = vdwg.mxu0
      %v5036 = vadd.f32 %v3424, %v5032
      %v5037 = vadd.f32 %v3426, %v5034
      %5038 = vrot.lane.b32.xlu0 %v5036, 17
      %v5039 = vpop.permute.xlu0 %5038
      %5040 = vrot.lane.b32.xlu0 %v5037, 17
      %v5041 = vpop.permute.xlu0 %5040
      %v5042 = vsel %vm206, %v5039, %v5041
      %v5043 = vsel %vm206, %v5041, %v5039
      %v5044 = vld [vmem:[%s3] sm:$0xff]
      %v5045 = vld [vmem:[%s3 + $0x8] sm:$0xff]
      %v5046 = vmul.f32 %v5043, %v5044
      %v5047 = vmul.f32 %v5042, %v5045
      %5048 = vst [vmem:[#allocation2] sm:$0xff] %v5046
      %5049 = vst [vmem:[#allocation2 + $0x8] sm:$0xff] %v5047
      %5050 = vrot.lane.b32.xlu0 %v5036, 16
      %v5051 = vpop.permute.xlu0 %5050
      %5052 = vrot.lane.b32.xlu0 %v5037, 16
      %v5053 = vpop.permute.xlu0 %5052
      %v5054 = vsel %vm219, %v5051, %v5053
      %v5055 = vsel %vm219, %v5053, %v5051
      %v5056 = vld [vmem:[%s222] sm:$0xff]
      %v5057 = vld [vmem:[%s222 + $0x8] sm:$0xff]
      %v5058 = vmul.f32 %v5055, %v5056
      %v5059 = vmul.f32 %v5054, %v5057
      %5060 = vst [vmem:[#allocation2 + $0x10] sm:$0xff] %v5058
      %5061 = vst [vmem:[#allocation2 + $0x18] sm:$0xff] %v5059
      %5062 = vrot.lane.b32.xlu0 %v5036, 15
      %v5063 = vpop.permute.xlu0 %5062
      %5064 = vrot.lane.b32.xlu0 %v5037, 15
      %v5065 = vpop.permute.xlu0 %5064
      %v5066 = vsel %vm233, %v5063, %v5065
      %v5067 = vsel %vm233, %v5065, %v5063
      %v5068 = vld [vmem:[%s236] sm:$0xff]
      %v5069 = vld [vmem:[%s236 + $0x8] sm:$0xff]
      %v5070 = vmul.f32 %v5067, %v5068
      %v5071 = vmul.f32 %v5066, %v5069
      %5072 = vst [vmem:[#allocation2 + $0x20] sm:$0xff] %v5070
      %5073 = vst [vmem:[#allocation2 + $0x28] sm:$0xff] %v5071
      %5074 = vrot.lane.b32.xlu0 %v5036, 1
      %v5075 = vpop.permute.xlu0 %5074
      %5076 = vrot.lane.b32.xlu0 %v5037, 1
      %v5077 = vpop.permute.xlu0 %5076
      %v5078 = vsel %vm247, %v5075, %v5077
      %v5079 = vsel %vm247, %v5077, %v5075
      %v5080 = vld [vmem:[%s250] sm:$0xff]
      %v5081 = vld [vmem:[%s250 + $0x8] sm:$0xff]
      %v5082 = vmul.f32 %v5079, %v5080
      %v5083 = vmul.f32 %v5078, %v5081
      %5084 = vst [vmem:[#allocation2 + $0x30] sm:$0xff] %v5082
      %5085 = vst [vmem:[#allocation2 + $0x38] sm:$0xff] %v5083
      %5086 = vst [vmem:[#allocation2 + $0x40] sm:$0xff] %v5036
      %5087 = vst [vmem:[#allocation2 + $0x48] sm:$0xff] %v5037
      %5088 = vrot.lane.b32.xlu0 %v5036, 127
      %v5089 = vpop.permute.xlu0 %5088
      %5090 = vrot.lane.b32.xlu0 %v5037, 127
      %v5091 = vpop.permute.xlu0 %5090
      %v5092 = vsel %vm263, %v5089, %v5091
      %v5093 = vsel %vm263, %v5091, %v5089
      %v5094 = vld [vmem:[%s266] sm:$0xff]
      %v5095 = vld [vmem:[%s266 + $0x8] sm:$0xff]
      %v5096 = vmul.f32 %v5092, %v5094
      %v5097 = vmul.f32 %v5093, %v5095
      %5098 = vst [vmem:[#allocation2 + $0x50] sm:$0xff] %v5096
      %5099 = vst [vmem:[#allocation2 + $0x58] sm:$0xff] %v5097
      %5100 = vrot.lane.b32.xlu0 %v5036, 113
      %v5101 = vpop.permute.xlu0 %5100
      %5102 = vrot.lane.b32.xlu0 %v5037, 113
      %v5103 = vpop.permute.xlu0 %5102
      %v5104 = vsel %vm277, %v5101, %v5103
      %v5105 = vsel %vm277, %v5103, %v5101
      %v5106 = vld [vmem:[%s280] sm:$0xff]
      %v5107 = vld [vmem:[%s280 + $0x8] sm:$0xff]
      %v5108 = vmul.f32 %v5104, %v5106
      %v5109 = vmul.f32 %v5105, %v5107
      %5110 = vst [vmem:[#allocation2 + $0x60] sm:$0xff] %v5108
      %5111 = vst [vmem:[#allocation2 + $0x68] sm:$0xff] %v5109
      %5112 = vrot.lane.b32.xlu0 %v5036, 112
      %v5113 = vpop.permute.xlu0 %5112
      %5114 = vrot.lane.b32.xlu0 %v5037, 112
      %v5115 = vpop.permute.xlu0 %5114
      %v5116 = vsel %vm291, %v5113, %v5115
      %v5117 = vsel %vm291, %v5115, %v5113
      %v5118 = vld [vmem:[%s294] sm:$0xff]
      %v5119 = vld [vmem:[%s294 + $0x8] sm:$0xff]
      %v5120 = vmul.f32 %v5116, %v5118
      %v5121 = vmul.f32 %v5117, %v5119
      %5122 = vst [vmem:[#allocation2 + $0x70] sm:$0xff] %v5120
      %5123 = vst [vmem:[#allocation2 + $0x78] sm:$0xff] %v5121
      %5124 = vrot.lane.b32.xlu0 %v5036, 111
      %v5125 = vpop.permute.xlu0 %5124
      %5126 = vrot.lane.b32.xlu0 %v5037, 111
      %v5127 = vpop.permute.xlu0 %5126
      %v5128 = vsel %vm305, %v5125, %v5127
      %v5129 = vsel %vm305, %v5127, %v5125
      %v5130 = vld [vmem:[%s308] sm:$0xff]
      %v5131 = vld [vmem:[%s308 + $0x8] sm:$0xff]
      %v5132 = vmul.f32 %v5128, %v5130
      %v5133 = vmul.f32 %v5129, %v5131
      %5134 = vst [vmem:[#allocation2 + $0x80] sm:$0xff] %v5132
      %5135 = vst [vmem:[#allocation2 + $0x88] sm:$0xff] %v5133
      %s5136 = scalar_lea.vmem %s1, 48
      %v5137 = vld [vmem:[%s5136] sm:$0xff]
      %v5138 = vld [vmem:[#allocation2] sm:$0xff]
      %v5139 = vld [vmem:[#allocation2 + $0x8] sm:$0xff]
      %v5140 = vld [vmem:[#allocation2 + $0x10] sm:$0xff]
      %v5141 = vld [vmem:[#allocation2 + $0x18] sm:$0xff]
      %v5142 = vld [vmem:[#allocation2 + $0x20] sm:$0xff]
      %v5143 = vld [vmem:[#allocation2 + $0x28] sm:$0xff]
      %v5144 = vld [vmem:[#allocation2 + $0x30] sm:$0xff]
      %v5145 = vld [vmem:[#allocation2 + $0x38] sm:$0xff]
      %v5146 = vld [vmem:[#allocation2 + $0x40] sm:$0xff]
      %v5147 = vld [vmem:[#allocation2 + $0x48] sm:$0xff]
      %v5148 = vld [vmem:[#allocation2 + $0x50] sm:$0xff]
      %v5149 = vld [vmem:[#allocation2 + $0x58] sm:$0xff]
      %v5150 = vld [vmem:[#allocation2 + $0x60] sm:$0xff]
      %v5151 = vld [vmem:[#allocation2 + $0x68] sm:$0xff]
      %v5152 = vld [vmem:[#allocation2 + $0x70] sm:$0xff]
      %v5153 = vld [vmem:[#allocation2 + $0x78] sm:$0xff]
      %v5154 = vld [vmem:[#allocation2 + $0x80] sm:$0xff]
      %v5155 = vld [vmem:[#allocation2 + $0x88] sm:$0xff]
      %s5156 = scalar_lea.vmem %s2, 48
      %v5157 = vld [vmem:[%s5156] sm:$0xff]
      %5159 = vset.pattern.permute.xlu0 0
      %5160 = vperm.xlu0 %5159, %v5157
      %v5161 = vpop.permute.xlu0 %5160
      %v5164 = vsel %vm340, %v5137, 0
      %v5166 = vand.u32 %v5139, 4294901760
      %5167 = vmatprep.subr.mxu0 %v5166
      %v5168 = vand.u32 %v5138, 4294901760
      %5169 = vmatpush1.msra.mxu0 %v5168
      %v5170 = vand.u32 %v5141, 4294901760
      %5171 = vmatprep.subr.mxu0 %v5170
      %v5172 = vand.u32 %v5140, 4294901760
      %5173 = vmatpush1.msra.mxu0 %v5172
      %v5174 = vand.u32 %v5143, 4294901760
      %5175 = vmatprep.subr.mxu0 %v5174
      %v5176 = vand.u32 %v5142, 4294901760
      %5177 = vmatpush1.msra.mxu0 %v5176
      %v5178 = vand.u32 %v5145, 4294901760
      %5179 = vmatprep.subr.mxu0 %v5178
      %v5180 = vand.u32 %v5144, 4294901760
      %5181 = vmatpush1.msra.mxu0 %v5180
      %v5182 = vand.u32 %v5147, 4294901760
      %5183 = vmatprep.subr.mxu0 %v5182
      %v5184 = vand.u32 %v5146, 4294901760
      %5185 = vmatpush1.msra.mxu0 %v5184
      %v5186 = vand.u32 %v5149, 4294901760
      %5187 = vmatprep.subr.mxu0 %v5186
      %v5188 = vand.u32 %v5148, 4294901760
      %5189 = vmatpush1.msra.mxu0 %v5188
      %v5190 = vand.u32 %v5151, 4294901760
      %5191 = vmatprep.subr.mxu0 %v5190
      %v5192 = vand.u32 %v5150, 4294901760
      %5193 = vmatpush1.msra.mxu0 %v5192
      %v5194 = vand.u32 %v5153, 4294901760
      %5195 = vmatprep.subr.mxu0 %v5194
      %v5196 = vand.u32 %v5152, 4294901760
      %5197 = vmatpush1.msra.mxu0 %v5196
      %v5198 = vand.u32 %v5155, 4294901760
      %5199 = vmatprep.subr.mxu0 %v5198
      %v5200 = vand.u32 %v5154, 4294901760
      %5201 = vmatpush1.msra.mxu0 %v5200
      %5202 = vmatprep.subr.mxu0 0.0
      %5203 = vmatpush1.msra.mxu0 0.0
      %5204 = vmatprep.subr.mxu0 0.0
      %5205 = vmatpush1.msra.mxu0 0.0
      %5206 = vmatprep.subr.mxu0 0.0
      %5207 = vmatpush1.msra.mxu0 0.0
      %5208 = vmatprep.subr.mxu0 0.0
      %5209 = vmatpush1.msra.mxu0 0.0
      %5210 = vmatprep.subr.mxu0 0.0
      %5211 = vmatpush1.msra.mxu0 0.0
      %5212 = vmatprep.subr.mxu0 0.0
      %5213 = vmatpush1.msra.mxu0 0.0
      %5214 = vmatprep.subr.mxu0 0.0
      %5215 = vmatpush1.msra.mxu0 0.0
      %5216 = vmatprep.subr.mxu0 0.0
      %5217 = vmatpush1.msra.mxu0 0.0
      %5218 = vmatprep.subr.mxu0 0.0
      %5219 = vmatpush1.msra.mxu0 0.0
      %5220 = vmatprep.subr.mxu0 0.0
      %5221 = vmatpush1.msra.mxu0 0.0
      %5222 = vmatprep.subr.mxu0 0.0
      %5223 = vmatpush1.msra.mxu0 0.0
      %5224 = vmatprep.subr.mxu0 0.0
      %5225 = vmatpush1.msra.mxu0 0.0
      %5226 = vmatprep.subr.mxu0 0.0
      %5227 = vmatpush1.msra.mxu0 0.0
      %5228 = vmatprep.subr.mxu0 0.0
      %5229 = vmatpush1.msra.mxu0 0.0
      %5230 = vmatprep.subr.mxu0 0.0
      %5231 = vmatpush1.msra.mxu0 0.0
      %5232 = vmatprep.subr.mxu0 0.0
      %5233 = vmatpush1.msra.mxu0 0.0
      %5234 = vmatprep.subr.mxu0 0.0
      %5235 = vmatpush1.msra.mxu0 0.0
      %5236 = vmatprep.subr.mxu0 0.0
      %5237 = vmatpush1.msra.mxu0 0.0
      %5238 = vmatprep.subr.mxu0 0.0
      %5239 = vmatpush1.msra.mxu0 0.0
      %5240 = vmatprep.subr.mxu0 0.0
      %5241 = vmatpush1.msra.mxu0 0.0
      %5242 = vmatprep.subr.mxu0 0.0
      %5243 = vmatpush1.msra.mxu0 0.0
      %5244 = vmatprep.subr.mxu0 0.0
      %5245 = vmatpush1.msra.mxu0 0.0
      %5246 = vmatprep.subr.mxu0 0.0
      %5247 = vmatpush1.msra.mxu0 0.0
      %5248 = vmatprep.mubr.f32.mxu0 0.0
      %v5249 = vand.u32 %v5164, 4294901760
      %v5250 = vsub.f32 %v5164, %v5249
      %v5251 = vand.u32 %v5250, 4294901760
      %v5252 = vsub.f32 %v5250, %v5251
      %v5253 = vand.u32 %v5252, 4294901760
      %5254 = vmatmul.mubr.f32.gmra.mrb[0].mxu0 %v5253
      %v5255 = vpop.f32.mrb[0].mxu0
      %v5256 = vadd.f32 %v5161, %v5255
      %v5257 = vpop.f32.mrb[0].mxu0
      %v5258 = vadd.f32 %v5161, %v5257
      %5259 = vdwg.mxu0
      %v5260 = vand.u32 %v5139, 4294901760
      %v5261 = vsub.f32 %v5139, %v5260
      %v5262 = vand.u32 %v5261, 4294901760
      %v5263 = vsub.f32 %v5261, %v5262
      %v5264 = vand.u32 %v5263, 4294901760
      %5265 = vmatprep.subr.mxu0 %v5264
      %v5266 = vand.u32 %v5138, 4294901760
      %v5267 = vsub.f32 %v5138, %v5266
      %v5268 = vand.u32 %v5267, 4294901760
      %v5269 = vsub.f32 %v5267, %v5268
      %v5270 = vand.u32 %v5269, 4294901760
      %5271 = vmatpush1.msra.mxu0 %v5270
      %v5272 = vand.u32 %v5141, 4294901760
      %v5273 = vsub.f32 %v5141, %v5272
      %v5274 = vand.u32 %v5273, 4294901760
      %v5275 = vsub.f32 %v5273, %v5274
      %v5276 = vand.u32 %v5275, 4294901760
      %5277 = vmatprep.subr.mxu0 %v5276
      %v5278 = vand.u32 %v5140, 4294901760
      %v5279 = vsub.f32 %v5140, %v5278
      %v5280 = vand.u32 %v5279, 4294901760
      %v5281 = vsub.f32 %v5279, %v5280
      %v5282 = vand.u32 %v5281, 4294901760
      %5283 = vmatpush1.msra.mxu0 %v5282
      %v5284 = vand.u32 %v5143, 4294901760
      %v5285 = vsub.f32 %v5143, %v5284
      %v5286 = vand.u32 %v5285, 4294901760
      %v5287 = vsub.f32 %v5285, %v5286
      %v5288 = vand.u32 %v5287, 4294901760
      %5289 = vmatprep.subr.mxu0 %v5288
      %v5290 = vand.u32 %v5142, 4294901760
      %v5291 = vsub.f32 %v5142, %v5290
      %v5292 = vand.u32 %v5291, 4294901760
      %v5293 = vsub.f32 %v5291, %v5292
      %v5294 = vand.u32 %v5293, 4294901760
      %5295 = vmatpush1.msra.mxu0 %v5294
      %v5296 = vand.u32 %v5145, 4294901760
      %v5297 = vsub.f32 %v5145, %v5296
      %v5298 = vand.u32 %v5297, 4294901760
      %v5299 = vsub.f32 %v5297, %v5298
      %v5300 = vand.u32 %v5299, 4294901760
      %5301 = vmatprep.subr.mxu0 %v5300
      %v5302 = vand.u32 %v5144, 4294901760
      %v5303 = vsub.f32 %v5144, %v5302
      %v5304 = vand.u32 %v5303, 4294901760
      %v5305 = vsub.f32 %v5303, %v5304
      %v5306 = vand.u32 %v5305, 4294901760
      %5307 = vmatpush1.msra.mxu0 %v5306
      %v5308 = vand.u32 %v5147, 4294901760
      %v5309 = vsub.f32 %v5147, %v5308
      %v5310 = vand.u32 %v5309, 4294901760
      %v5311 = vsub.f32 %v5309, %v5310
      %v5312 = vand.u32 %v5311, 4294901760
      %5313 = vmatprep.subr.mxu0 %v5312
      %v5314 = vand.u32 %v5146, 4294901760
      %v5315 = vsub.f32 %v5146, %v5314
      %v5316 = vand.u32 %v5315, 4294901760
      %v5317 = vsub.f32 %v5315, %v5316
      %v5318 = vand.u32 %v5317, 4294901760
      %5319 = vmatpush1.msra.mxu0 %v5318
      %v5320 = vand.u32 %v5149, 4294901760
      %v5321 = vsub.f32 %v5149, %v5320
      %v5322 = vand.u32 %v5321, 4294901760
      %v5323 = vsub.f32 %v5321, %v5322
      %v5324 = vand.u32 %v5323, 4294901760
      %5325 = vmatprep.subr.mxu0 %v5324
      %v5326 = vand.u32 %v5148, 4294901760
      %v5327 = vsub.f32 %v5148, %v5326
      %v5328 = vand.u32 %v5327, 4294901760
      %v5329 = vsub.f32 %v5327, %v5328
      %v5330 = vand.u32 %v5329, 4294901760
      %5331 = vmatpush1.msra.mxu0 %v5330
      %v5332 = vand.u32 %v5151, 4294901760
      %v5333 = vsub.f32 %v5151, %v5332
      %v5334 = vand.u32 %v5333, 4294901760
      %v5335 = vsub.f32 %v5333, %v5334
      %v5336 = vand.u32 %v5335, 4294901760
      %5337 = vmatprep.subr.mxu0 %v5336
      %v5338 = vand.u32 %v5150, 4294901760
      %v5339 = vsub.f32 %v5150, %v5338
      %v5340 = vand.u32 %v5339, 4294901760
      %v5341 = vsub.f32 %v5339, %v5340
      %v5342 = vand.u32 %v5341, 4294901760
      %5343 = vmatpush1.msra.mxu0 %v5342
      %v5344 = vand.u32 %v5153, 4294901760
      %v5345 = vsub.f32 %v5153, %v5344
      %v5346 = vand.u32 %v5345, 4294901760
      %v5347 = vsub.f32 %v5345, %v5346
      %v5348 = vand.u32 %v5347, 4294901760
      %5349 = vmatprep.subr.mxu0 %v5348
      %v5350 = vand.u32 %v5152, 4294901760
      %v5351 = vsub.f32 %v5152, %v5350
      %v5352 = vand.u32 %v5351, 4294901760
      %v5353 = vsub.f32 %v5351, %v5352
      %v5354 = vand.u32 %v5353, 4294901760
      %5355 = vmatpush1.msra.mxu0 %v5354
      %v5356 = vand.u32 %v5155, 4294901760
      %v5357 = vsub.f32 %v5155, %v5356
      %v5358 = vand.u32 %v5357, 4294901760
      %v5359 = vsub.f32 %v5357, %v5358
      %v5360 = vand.u32 %v5359, 4294901760
      %5361 = vmatprep.subr.mxu0 %v5360
      %v5362 = vand.u32 %v5154, 4294901760
      %v5363 = vsub.f32 %v5154, %v5362
      %v5364 = vand.u32 %v5363, 4294901760
      %v5365 = vsub.f32 %v5363, %v5364
      %v5366 = vand.u32 %v5365, 4294901760
      %5367 = vmatpush1.msra.mxu0 %v5366
      %5368 = vmatprep.subr.mxu0 0.0
      %5369 = vmatpush1.msra.mxu0 0.0
      %5370 = vmatprep.subr.mxu0 0.0
      %5371 = vmatpush1.msra.mxu0 0.0
      %5372 = vmatprep.subr.mxu0 0.0
      %5373 = vmatpush1.msra.mxu0 0.0
      %5374 = vmatprep.subr.mxu0 0.0
      %5375 = vmatpush1.msra.mxu0 0.0
      %5376 = vmatprep.subr.mxu0 0.0
      %5377 = vmatpush1.msra.mxu0 0.0
      %5378 = vmatprep.subr.mxu0 0.0
      %5379 = vmatpush1.msra.mxu0 0.0
      %5380 = vmatprep.subr.mxu0 0.0
      %5381 = vmatpush1.msra.mxu0 0.0
      %5382 = vmatprep.subr.mxu0 0.0
      %5383 = vmatpush1.msra.mxu0 0.0
      %5384 = vmatprep.subr.mxu0 0.0
      %5385 = vmatpush1.msra.mxu0 0.0
      %5386 = vmatprep.subr.mxu0 0.0
      %5387 = vmatpush1.msra.mxu0 0.0
      %5388 = vmatprep.subr.mxu0 0.0
      %5389 = vmatpush1.msra.mxu0 0.0
      %5390 = vmatprep.subr.mxu0 0.0
      %5391 = vmatpush1.msra.mxu0 0.0
      %5392 = vmatprep.subr.mxu0 0.0
      %5393 = vmatpush1.msra.mxu0 0.0
      %5394 = vmatprep.subr.mxu0 0.0
      %5395 = vmatpush1.msra.mxu0 0.0
      %5396 = vmatprep.subr.mxu0 0.0
      %5397 = vmatpush1.msra.mxu0 0.0
      %5398 = vmatprep.subr.mxu0 0.0
      %5399 = vmatpush1.msra.mxu0 0.0
      %5400 = vmatprep.subr.mxu0 0.0
      %5401 = vmatpush1.msra.mxu0 0.0
      %5402 = vmatprep.subr.mxu0 0.0
      %5403 = vmatpush1.msra.mxu0 0.0
      %5404 = vmatprep.subr.mxu0 0.0
      %5405 = vmatpush1.msra.mxu0 0.0
      %5406 = vmatprep.subr.mxu0 0.0
      %5407 = vmatpush1.msra.mxu0 0.0
      %5408 = vmatprep.subr.mxu0 0.0
      %5409 = vmatpush1.msra.mxu0 0.0
      %5410 = vmatprep.subr.mxu0 0.0
      %5411 = vmatpush1.msra.mxu0 0.0
      %5412 = vmatprep.subr.mxu0 0.0
      %5413 = vmatpush1.msra.mxu0 0.0
      %5414 = vmatprep.mubr.f32.mxu0 0.0
      %v5415 = vand.u32 %v5164, 4294901760
      %5416 = vmatmul.mubr.f32.gmra.mrb[0].mxu0 %v5415
      %v5417 = vpop.f32.mrb[0].mxu0
      %v5418 = vadd.f32 %v5256, %v5417
      %v5419 = vpop.f32.mrb[0].mxu0
      %v5420 = vadd.f32 %v5258, %v5419
      %5421 = vdwg.mxu0
      %v5422 = vand.u32 %v5139, 4294901760
      %v5423 = vsub.f32 %v5139, %v5422
      %5424 = vmatprep.subr.mxu0 %v5423
      %v5425 = vand.u32 %v5138, 4294901760
      %v5426 = vsub.f32 %v5138, %v5425
      %5427 = vmatpush1.msra.mxu0 %v5426
      %v5428 = vand.u32 %v5141, 4294901760
      %v5429 = vsub.f32 %v5141, %v5428
      %5430 = vmatprep.subr.mxu0 %v5429
      %v5431 = vand.u32 %v5140, 4294901760
      %v5432 = vsub.f32 %v5140, %v5431
      %5433 = vmatpush1.msra.mxu0 %v5432
      %v5434 = vand.u32 %v5143, 4294901760
      %v5435 = vsub.f32 %v5143, %v5434
      %5436 = vmatprep.subr.mxu0 %v5435
      %v5437 = vand.u32 %v5142, 4294901760
      %v5438 = vsub.f32 %v5142, %v5437
      %5439 = vmatpush1.msra.mxu0 %v5438
      %v5440 = vand.u32 %v5145, 4294901760
      %v5441 = vsub.f32 %v5145, %v5440
      %5442 = vmatprep.subr.mxu0 %v5441
      %v5443 = vand.u32 %v5144, 4294901760
      %v5444 = vsub.f32 %v5144, %v5443
      %5445 = vmatpush1.msra.mxu0 %v5444
      %v5446 = vand.u32 %v5147, 4294901760
      %v5447 = vsub.f32 %v5147, %v5446
      %5448 = vmatprep.subr.mxu0 %v5447
      %v5449 = vand.u32 %v5146, 4294901760
      %v5450 = vsub.f32 %v5146, %v5449
      %5451 = vmatpush1.msra.mxu0 %v5450
      %v5452 = vand.u32 %v5149, 4294901760
      %v5453 = vsub.f32 %v5149, %v5452
      %5454 = vmatprep.subr.mxu0 %v5453
      %v5455 = vand.u32 %v5148, 4294901760
      %v5456 = vsub.f32 %v5148, %v5455
      %5457 = vmatpush1.msra.mxu0 %v5456
      %v5458 = vand.u32 %v5151, 4294901760
      %v5459 = vsub.f32 %v5151, %v5458
      %5460 = vmatprep.subr.mxu0 %v5459
      %v5461 = vand.u32 %v5150, 4294901760
      %v5462 = vsub.f32 %v5150, %v5461
      %5463 = vmatpush1.msra.mxu0 %v5462
      %v5464 = vand.u32 %v5153, 4294901760
      %v5465 = vsub.f32 %v5153, %v5464
      %5466 = vmatprep.subr.mxu0 %v5465
      %v5467 = vand.u32 %v5152, 4294901760
      %v5468 = vsub.f32 %v5152, %v5467
      %5469 = vmatpush1.msra.mxu0 %v5468
      %v5470 = vand.u32 %v5155, 4294901760
      %v5471 = vsub.f32 %v5155, %v5470
      %5472 = vmatprep.subr.mxu0 %v5471
      %v5473 = vand.u32 %v5154, 4294901760
      %v5474 = vsub.f32 %v5154, %v5473
      %5475 = vmatpush1.msra.mxu0 %v5474
      %5476 = vmatprep.subr.mxu0 0.0
      %5477 = vmatpush1.msra.mxu0 0.0
      %5478 = vmatprep.subr.mxu0 0.0
      %5479 = vmatpush1.msra.mxu0 0.0
      %5480 = vmatprep.subr.mxu0 0.0
      %5481 = vmatpush1.msra.mxu0 0.0
      %5482 = vmatprep.subr.mxu0 0.0
      %5483 = vmatpush1.msra.mxu0 0.0
      %5484 = vmatprep.subr.mxu0 0.0
      %5485 = vmatpush1.msra.mxu0 0.0
      %5486 = vmatprep.subr.mxu0 0.0
      %5487 = vmatpush1.msra.mxu0 0.0
      %5488 = vmatprep.subr.mxu0 0.0
      %5489 = vmatpush1.msra.mxu0 0.0
      %5490 = vmatprep.subr.mxu0 0.0
      %5491 = vmatpush1.msra.mxu0 0.0
      %5492 = vmatprep.subr.mxu0 0.0
      %5493 = vmatpush1.msra.mxu0 0.0
      %5494 = vmatprep.subr.mxu0 0.0
      %5495 = vmatpush1.msra.mxu0 0.0
      %5496 = vmatprep.subr.mxu0 0.0
      %5497 = vmatpush1.msra.mxu0 0.0
      %5498 = vmatprep.subr.mxu0 0.0
      %5499 = vmatpush1.msra.mxu0 0.0
      %5500 = vmatprep.subr.mxu0 0.0
      %5501 = vmatpush1.msra.mxu0 0.0
      %5502 = vmatprep.subr.mxu0 0.0
      %5503 = vmatpush1.msra.mxu0 0.0
      %5504 = vmatprep.subr.mxu0 0.0
      %5505 = vmatpush1.msra.mxu0 0.0
      %5506 = vmatprep.subr.mxu0 0.0
      %5507 = vmatpush1.msra.mxu0 0.0
      %5508 = vmatprep.subr.mxu0 0.0
      %5509 = vmatpush1.msra.mxu0 0.0
      %5510 = vmatprep.subr.mxu0 0.0
      %5511 = vmatpush1.msra.mxu0 0.0
      %5512 = vmatprep.subr.mxu0 0.0
      %5513 = vmatpush1.msra.mxu0 0.0
      %5514 = vmatprep.subr.mxu0 0.0
      %5515 = vmatpush1.msra.mxu0 0.0
      %5516 = vmatprep.subr.mxu0 0.0
      %5517 = vmatpush1.msra.mxu0 0.0
      %5518 = vmatprep.subr.mxu0 0.0
      %5519 = vmatpush1.msra.mxu0 0.0
      %5520 = vmatprep.subr.mxu0 0.0
      %5521 = vmatpush1.msra.mxu0 0.0
      %5522 = vmatprep.mubr.f32.mxu0 0.0
      %v5523 = vand.u32 %v5164, 4294901760
      %v5524 = vsub.f32 %v5164, %v5523
      %5525 = vmatmul.mubr.f32.gmra.mrb[0].mxu0 %v5524
      %v5526 = vpop.f32.mrb[0].mxu0
      %v5527 = vadd.f32 %v5418, %v5526
      %v5528 = vpop.f32.mrb[0].mxu0
      %v5529 = vadd.f32 %v5420, %v5528
      %5530 = vdwg.mxu0
      %v5531 = vand.u32 %v5139, 4294901760
      %5532 = vmatprep.subr.mxu0 %v5531
      %v5533 = vand.u32 %v5138, 4294901760
      %5534 = vmatpush1.msra.mxu0 %v5533
      %v5535 = vand.u32 %v5141, 4294901760
      %5536 = vmatprep.subr.mxu0 %v5535
      %v5537 = vand.u32 %v5140, 4294901760
      %5538 = vmatpush1.msra.mxu0 %v5537
      %v5539 = vand.u32 %v5143, 4294901760
      %5540 = vmatprep.subr.mxu0 %v5539
      %v5541 = vand.u32 %v5142, 4294901760
      %5542 = vmatpush1.msra.mxu0 %v5541
      %v5543 = vand.u32 %v5145, 4294901760
      %5544 = vmatprep.subr.mxu0 %v5543
      %v5545 = vand.u32 %v5144, 4294901760
      %5546 = vmatpush1.msra.mxu0 %v5545
      %v5547 = vand.u32 %v5147, 4294901760
      %5548 = vmatprep.subr.mxu0 %v5547
      %v5549 = vand.u32 %v5146, 4294901760
      %5550 = vmatpush1.msra.mxu0 %v5549
      %v5551 = vand.u32 %v5149, 4294901760
      %5552 = vmatprep.subr.mxu0 %v5551
      %v5553 = vand.u32 %v5148, 4294901760
      %5554 = vmatpush1.msra.mxu0 %v5553
      %v5555 = vand.u32 %v5151, 4294901760
      %5556 = vmatprep.subr.mxu0 %v5555
      %v5557 = vand.u32 %v5150, 4294901760
      %5558 = vmatpush1.msra.mxu0 %v5557
      %v5559 = vand.u32 %v5153, 4294901760
      %5560 = vmatprep.subr.mxu0 %v5559
      %v5561 = vand.u32 %v5152, 4294901760
      %5562 = vmatpush1.msra.mxu0 %v5561
      %v5563 = vand.u32 %v5155, 4294901760
      %5564 = vmatprep.subr.mxu0 %v5563
      %v5565 = vand.u32 %v5154, 4294901760
      %5566 = vmatpush1.msra.mxu0 %v5565
      %5567 = vmatprep.subr.mxu0 0.0
      %5568 = vmatpush1.msra.mxu0 0.0
      %5569 = vmatprep.subr.mxu0 0.0
      %5570 = vmatpush1.msra.mxu0 0.0
      %5571 = vmatprep.subr.mxu0 0.0
      %5572 = vmatpush1.msra.mxu0 0.0
      %5573 = vmatprep.subr.mxu0 0.0
      %5574 = vmatpush1.msra.mxu0 0.0
      %5575 = vmatprep.subr.mxu0 0.0
      %5576 = vmatpush1.msra.mxu0 0.0
      %5577 = vmatprep.subr.mxu0 0.0
      %5578 = vmatpush1.msra.mxu0 0.0
      %5579 = vmatprep.subr.mxu0 0.0
      %5580 = vmatpush1.msra.mxu0 0.0
      %5581 = vmatprep.subr.mxu0 0.0
      %5582 = vmatpush1.msra.mxu0 0.0
      %5583 = vmatprep.subr.mxu0 0.0
      %5584 = vmatpush1.msra.mxu0 0.0
      %5585 = vmatprep.subr.mxu0 0.0
      %5586 = vmatpush1.msra.mxu0 0.0
      %5587 = vmatprep.subr.mxu0 0.0
      %5588 = vmatpush1.msra.mxu0 0.0
      %5589 = vmatprep.subr.mxu0 0.0
      %5590 = vmatpush1.msra.mxu0 0.0
      %5591 = vmatprep.subr.mxu0 0.0
      %5592 = vmatpush1.msra.mxu0 0.0
      %5593 = vmatprep.subr.mxu0 0.0
      %5594 = vmatpush1.msra.mxu0 0.0
      %5595 = vmatprep.subr.mxu0 0.0
      %5596 = vmatpush1.msra.mxu0 0.0
      %5597 = vmatprep.subr.mxu0 0.0
      %5598 = vmatpush1.msra.mxu0 0.0
      %5599 = vmatprep.subr.mxu0 0.0
      %5600 = vmatpush1.msra.mxu0 0.0
      %5601 = vmatprep.subr.mxu0 0.0
      %5602 = vmatpush1.msra.mxu0 0.0
      %5603 = vmatprep.subr.mxu0 0.0
      %5604 = vmatpush1.msra.mxu0 0.0
      %5605 = vmatprep.subr.mxu0 0.0
      %5606 = vmatpush1.msra.mxu0 0.0
      %5607 = vmatprep.subr.mxu0 0.0
      %5608 = vmatpush1.msra.mxu0 0.0
      %5609 = vmatprep.subr.mxu0 0.0
      %5610 = vmatpush1.msra.mxu0 0.0
      %5611 = vmatprep.subr.mxu0 0.0
      %5612 = vmatpush1.msra.mxu0 0.0
      %5613 = vmatprep.mubr.f32.mxu0 0.0
      %v5614 = vand.u32 %v5164, 4294901760
      %v5615 = vsub.f32 %v5164, %v5614
      %v5616 = vand.u32 %v5615, 4294901760
      %5617 = vmatmul.mubr.f32.gmra.mrb[0].mxu0 %v5616
      %v5618 = vpop.f32.mrb[0].mxu0
      %v5619 = vadd.f32 %v5527, %v5618
      %v5620 = vpop.f32.mrb[0].mxu0
      %v5621 = vadd.f32 %v5529, %v5620
      %5622 = vdwg.mxu0
      %v5623 = vand.u32 %v5139, 4294901760
      %v5624 = vsub.f32 %v5139, %v5623
      %v5625 = vand.u32 %v5624, 4294901760
      %5626 = vmatprep.subr.mxu0 %v5625
      %v5627 = vand.u32 %v5138, 4294901760
      %v5628 = vsub.f32 %v5138, %v5627
      %v5629 = vand.u32 %v5628, 4294901760
      %5630 = vmatpush1.msra.mxu0 %v5629
      %v5631 = vand.u32 %v5141, 4294901760
      %v5632 = vsub.f32 %v5141, %v5631
      %v5633 = vand.u32 %v5632, 4294901760
      %5634 = vmatprep.subr.mxu0 %v5633
      %v5635 = vand.u32 %v5140, 4294901760
      %v5636 = vsub.f32 %v5140, %v5635
      %v5637 = vand.u32 %v5636, 4294901760
      %5638 = vmatpush1.msra.mxu0 %v5637
      %v5639 = vand.u32 %v5143, 4294901760
      %v5640 = vsub.f32 %v5143, %v5639
      %v5641 = vand.u32 %v5640, 4294901760
      %5642 = vmatprep.subr.mxu0 %v5641
      %v5643 = vand.u32 %v5142, 4294901760
      %v5644 = vsub.f32 %v5142, %v5643
      %v5645 = vand.u32 %v5644, 4294901760
      %5646 = vmatpush1.msra.mxu0 %v5645
      %v5647 = vand.u32 %v5145, 4294901760
      %v5648 = vsub.f32 %v5145, %v5647
      %v5649 = vand.u32 %v5648, 4294901760
      %5650 = vmatprep.subr.mxu0 %v5649
      %v5651 = vand.u32 %v5144, 4294901760
      %v5652 = vsub.f32 %v5144, %v5651
      %v5653 = vand.u32 %v5652, 4294901760
      %5654 = vmatpush1.msra.mxu0 %v5653
      %v5655 = vand.u32 %v5147, 4294901760
      %v5656 = vsub.f32 %v5147, %v5655
      %v5657 = vand.u32 %v5656, 4294901760
      %5658 = vmatprep.subr.mxu0 %v5657
      %v5659 = vand.u32 %v5146, 4294901760
      %v5660 = vsub.f32 %v5146, %v5659
      %v5661 = vand.u32 %v5660, 4294901760
      %5662 = vmatpush1.msra.mxu0 %v5661
      %v5663 = vand.u32 %v5149, 4294901760
      %v5664 = vsub.f32 %v5149, %v5663
      %v5665 = vand.u32 %v5664, 4294901760
      %5666 = vmatprep.subr.mxu0 %v5665
      %v5667 = vand.u32 %v5148, 4294901760
      %v5668 = vsub.f32 %v5148, %v5667
      %v5669 = vand.u32 %v5668, 4294901760
      %5670 = vmatpush1.msra.mxu0 %v5669
      %v5671 = vand.u32 %v5151, 4294901760
      %v5672 = vsub.f32 %v5151, %v5671
      %v5673 = vand.u32 %v5672, 4294901760
      %5674 = vmatprep.subr.mxu0 %v5673
      %v5675 = vand.u32 %v5150, 4294901760
      %v5676 = vsub.f32 %v5150, %v5675
      %v5677 = vand.u32 %v5676, 4294901760
      %5678 = vmatpush1.msra.mxu0 %v5677
      %v5679 = vand.u32 %v5153, 4294901760
      %v5680 = vsub.f32 %v5153, %v5679
      %v5681 = vand.u32 %v5680, 4294901760
      %5682 = vmatprep.subr.mxu0 %v5681
      %v5683 = vand.u32 %v5152, 4294901760
      %v5684 = vsub.f32 %v5152, %v5683
      %v5685 = vand.u32 %v5684, 4294901760
      %5686 = vmatpush1.msra.mxu0 %v5685
      %v5687 = vand.u32 %v5155, 4294901760
      %v5688 = vsub.f32 %v5155, %v5687
      %v5689 = vand.u32 %v5688, 4294901760
      %5690 = vmatprep.subr.mxu0 %v5689
      %v5691 = vand.u32 %v5154, 4294901760
      %v5692 = vsub.f32 %v5154, %v5691
      %v5693 = vand.u32 %v5692, 4294901760
      %5694 = vmatpush1.msra.mxu0 %v5693
      %5695 = vmatprep.subr.mxu0 0.0
      %5696 = vmatpush1.msra.mxu0 0.0
      %5697 = vmatprep.subr.mxu0 0.0
      %5698 = vmatpush1.msra.mxu0 0.0
      %5699 = vmatprep.subr.mxu0 0.0
      %5700 = vmatpush1.msra.mxu0 0.0
      %5701 = vmatprep.subr.mxu0 0.0
      %5702 = vmatpush1.msra.mxu0 0.0
      %5703 = vmatprep.subr.mxu0 0.0
      %5704 = vmatpush1.msra.mxu0 0.0
      %5705 = vmatprep.subr.mxu0 0.0
      %5706 = vmatpush1.msra.mxu0 0.0
      %5707 = vmatprep.subr.mxu0 0.0
      %5708 = vmatpush1.msra.mxu0 0.0
      %5709 = vmatprep.subr.mxu0 0.0
      %5710 = vmatpush1.msra.mxu0 0.0
      %5711 = vmatprep.subr.mxu0 0.0
      %5712 = vmatpush1.msra.mxu0 0.0
      %5713 = vmatprep.subr.mxu0 0.0
      %5714 = vmatpush1.msra.mxu0 0.0
      %5715 = vmatprep.subr.mxu0 0.0
      %5716 = vmatpush1.msra.mxu0 0.0
      %5717 = vmatprep.subr.mxu0 0.0
      %5718 = vmatpush1.msra.mxu0 0.0
      %5719 = vmatprep.subr.mxu0 0.0
      %5720 = vmatpush1.msra.mxu0 0.0
      %5721 = vmatprep.subr.mxu0 0.0
      %5722 = vmatpush1.msra.mxu0 0.0
      %5723 = vmatprep.subr.mxu0 0.0
      %5724 = vmatpush1.msra.mxu0 0.0
      %5725 = vmatprep.subr.mxu0 0.0
      %5726 = vmatpush1.msra.mxu0 0.0
      %5727 = vmatprep.subr.mxu0 0.0
      %5728 = vmatpush1.msra.mxu0 0.0
      %5729 = vmatprep.subr.mxu0 0.0
      %5730 = vmatpush1.msra.mxu0 0.0
      %5731 = vmatprep.subr.mxu0 0.0
      %5732 = vmatpush1.msra.mxu0 0.0
      %5733 = vmatprep.subr.mxu0 0.0
      %5734 = vmatpush1.msra.mxu0 0.0
      %5735 = vmatprep.subr.mxu0 0.0
      %5736 = vmatpush1.msra.mxu0 0.0
      %5737 = vmatprep.subr.mxu0 0.0
      %5738 = vmatpush1.msra.mxu0 0.0
      %5739 = vmatprep.subr.mxu0 0.0
      %5740 = vmatpush1.msra.mxu0 0.0
      %5741 = vmatprep.mubr.f32.mxu0 0.0
      %v5742 = vand.u32 %v5164, 4294901760
      %5743 = vmatmul.mubr.f32.gmra.mrb[0].mxu0 %v5742
      %v5744 = vpop.f32.mrb[0].mxu0
      %v5745 = vadd.f32 %v5619, %v5744
      %v5746 = vpop.f32.mrb[0].mxu0
      %v5747 = vadd.f32 %v5621, %v5746
      %5748 = vdwg.mxu0
      %v5749 = vand.u32 %v5139, 4294901760
      %5750 = vmatprep.subr.mxu0 %v5749
      %v5751 = vand.u32 %v5138, 4294901760
      %5752 = vmatpush1.msra.mxu0 %v5751
      %v5753 = vand.u32 %v5141, 4294901760
      %5754 = vmatprep.subr.mxu0 %v5753
      %v5755 = vand.u32 %v5140, 4294901760
      %5756 = vmatpush1.msra.mxu0 %v5755
      %v5757 = vand.u32 %v5143, 4294901760
      %5758 = vmatprep.subr.mxu0 %v5757
      %v5759 = vand.u32 %v5142, 4294901760
      %5760 = vmatpush1.msra.mxu0 %v5759
      %v5761 = vand.u32 %v5145, 4294901760
      %5762 = vmatprep.subr.mxu0 %v5761
      %v5763 = vand.u32 %v5144, 4294901760
      %5764 = vmatpush1.msra.mxu0 %v5763
      %v5765 = vand.u32 %v5147, 4294901760
      %5766 = vmatprep.subr.mxu0 %v5765
      %v5767 = vand.u32 %v5146, 4294901760
      %5768 = vmatpush1.msra.mxu0 %v5767
      %v5769 = vand.u32 %v5149, 4294901760
      %5770 = vmatprep.subr.mxu0 %v5769
      %v5771 = vand.u32 %v5148, 4294901760
      %5772 = vmatpush1.msra.mxu0 %v5771
      %v5773 = vand.u32 %v5151, 4294901760
      %5774 = vmatprep.subr.mxu0 %v5773
      %v5775 = vand.u32 %v5150, 4294901760
      %5776 = vmatpush1.msra.mxu0 %v5775
      %v5777 = vand.u32 %v5153, 4294901760
      %5778 = vmatprep.subr.mxu0 %v5777
      %v5779 = vand.u32 %v5152, 4294901760
      %5780 = vmatpush1.msra.mxu0 %v5779
      %v5781 = vand.u32 %v5155, 4294901760
      %5782 = vmatprep.subr.mxu0 %v5781
      %v5783 = vand.u32 %v5154, 4294901760
      %5784 = vmatpush1.msra.mxu0 %v5783
      %5785 = vmatprep.subr.mxu0 0.0
      %5786 = vmatpush1.msra.mxu0 0.0
      %5787 = vmatprep.subr.mxu0 0.0
      %5788 = vmatpush1.msra.mxu0 0.0
      %5789 = vmatprep.subr.mxu0 0.0
      %5790 = vmatpush1.msra.mxu0 0.0
      %5791 = vmatprep.subr.mxu0 0.0
      %5792 = vmatpush1.msra.mxu0 0.0
      %5793 = vmatprep.subr.mxu0 0.0
      %5794 = vmatpush1.msra.mxu0 0.0
      %5795 = vmatprep.subr.mxu0 0.0
      %5796 = vmatpush1.msra.mxu0 0.0
      %5797 = vmatprep.subr.mxu0 0.0
      %5798 = vmatpush1.msra.mxu0 0.0
      %5799 = vmatprep.subr.mxu0 0.0
      %5800 = vmatpush1.msra.mxu0 0.0
      %5801 = vmatprep.subr.mxu0 0.0
      %5802 = vmatpush1.msra.mxu0 0.0
      %5803 = vmatprep.subr.mxu0 0.0
      %5804 = vmatpush1.msra.mxu0 0.0
      %5805 = vmatprep.subr.mxu0 0.0
      %5806 = vmatpush1.msra.mxu0 0.0
      %5807 = vmatprep.subr.mxu0 0.0
      %5808 = vmatpush1.msra.mxu0 0.0
      %5809 = vmatprep.subr.mxu0 0.0
      %5810 = vmatpush1.msra.mxu0 0.0
      %5811 = vmatprep.subr.mxu0 0.0
      %5812 = vmatpush1.msra.mxu0 0.0
      %5813 = vmatprep.subr.mxu0 0.0
      %5814 = vmatpush1.msra.mxu0 0.0
      %5815 = vmatprep.subr.mxu0 0.0
      %5816 = vmatpush1.msra.mxu0 0.0
      %5817 = vmatprep.subr.mxu0 0.0
      %5818 = vmatpush1.msra.mxu0 0.0
      %5819 = vmatprep.subr.mxu0 0.0
      %5820 = vmatpush1.msra.mxu0 0.0
      %5821 = vmatprep.subr.mxu0 0.0
      %5822 = vmatpush1.msra.mxu0 0.0
      %5823 = vmatprep.subr.mxu0 0.0
      %5824 = vmatpush1.msra.mxu0 0.0
      %5825 = vmatprep.subr.mxu0 0.0
      %5826 = vmatpush1.msra.mxu0 0.0
      %5827 = vmatprep.subr.mxu0 0.0
      %5828 = vmatpush1.msra.mxu0 0.0
      %5829 = vmatprep.subr.mxu0 0.0
      %5830 = vmatpush1.msra.mxu0 0.0
      %5831 = vmatprep.mubr.f32.mxu0 0.0
      %v5832 = vand.u32 %v5164, 4294901760
      %5833 = vmatmul.mubr.f32.gmra.mrb[0].mxu0 %v5832
      %v5834 = vpop.f32.mrb[0].mxu0
      %v5835 = vadd.f32 %v5745, %v5834
      %v5836 = vpop.f32.mrb[0].mxu0
      %v5837 = vadd.f32 %v5747, %v5836
      %5838 = vdwg.mxu0
      %5839 = vrot.lane.b32.xlu0 %v5835, 17
      %v5840 = vpop.permute.xlu0 %5839
      %5841 = vrot.lane.b32.xlu0 %v5837, 17
      %v5842 = vpop.permute.xlu0 %5841
      %v5843 = vsel %vm206, %v5840, %v5842
      %v5844 = vsel %vm206, %v5842, %v5840
      %v5845 = vld [vmem:[%s3] sm:$0xff]
      %v5846 = vld [vmem:[%s3 + $0x8] sm:$0xff]
      %v5847 = vmul.f32 %v5844, %v5845
      %v5848 = vmul.f32 %v5843, %v5846
      %5849 = vst [vmem:[#allocation2] sm:$0xff] %v5847
      %5850 = vst [vmem:[#allocation2 + $0x8] sm:$0xff] %v5848
      %5851 = vrot.lane.b32.xlu0 %v5835, 16
      %v5852 = vpop.permute.xlu0 %5851
      %5853 = vrot.lane.b32.xlu0 %v5837, 16
      %v5854 = vpop.permute.xlu0 %5853
      %v5855 = vsel %vm219, %v5852, %v5854
      %v5856 = vsel %vm219, %v5854, %v5852
      %v5857 = vld [vmem:[%s222] sm:$0xff]
      %v5858 = vld [vmem:[%s222 + $0x8] sm:$0xff]
      %v5859 = vmul.f32 %v5856, %v5857
      %v5860 = vmul.f32 %v5855, %v5858
      %5861 = vst [vmem:[#allocation2 + $0x10] sm:$0xff] %v5859
      %5862 = vst [vmem:[#allocation2 + $0x18] sm:$0xff] %v5860
      %5863 = vrot.lane.b32.xlu0 %v5835, 15
      %v5864 = vpop.permute.xlu0 %5863
      %5865 = vrot.lane.b32.xlu0 %v5837, 15
      %v5866 = vpop.permute.xlu0 %5865
      %v5867 = vsel %vm233, %v5864, %v5866
      %v5868 = vsel %vm233, %v5866, %v5864
      %v5869 = vld [vmem:[%s236] sm:$0xff]
      %v5870 = vld [vmem:[%s236 + $0x8] sm:$0xff]
      %v5871 = vmul.f32 %v5868, %v5869
      %v5872 = vmul.f32 %v5867, %v5870
      %5873 = vst [vmem:[#allocation2 + $0x20] sm:$0xff] %v5871
      %5874 = vst [vmem:[#allocation2 + $0x28] sm:$0xff] %v5872
      %5875 = vrot.lane.b32.xlu0 %v5835, 1
      %v5876 = vpop.permute.xlu0 %5875
      %5877 = vrot.lane.b32.xlu0 %v5837, 1
      %v5878 = vpop.permute.xlu0 %5877
      %v5879 = vsel %vm247, %v5876, %v5878
      %v5880 = vsel %vm247, %v5878, %v5876
      %v5881 = vld [vmem:[%s250] sm:$0xff]
      %v5882 = vld [vmem:[%s250 + $0x8] sm:$0xff]
      %v5883 = vmul.f32 %v5880, %v5881
      %v5884 = vmul.f32 %v5879, %v5882
      %5885 = vst [vmem:[#allocation2 + $0x30] sm:$0xff] %v5883
      %5886 = vst [vmem:[#allocation2 + $0x38] sm:$0xff] %v5884
      %5887 = vst [vmem:[#allocation2 + $0x40] sm:$0xff] %v5835
      %5888 = vst [vmem:[#allocation2 + $0x48] sm:$0xff] %v5837
      %5889 = vrot.lane.b32.xlu0 %v5835, 127
      %v5890 = vpop.permute.xlu0 %5889
      %5891 = vrot.lane.b32.xlu0 %v5837, 127
      %v5892 = vpop.permute.xlu0 %5891
      %v5893 = vsel %vm263, %v5890, %v5892
      %v5894 = vsel %vm263, %v5892, %v5890
      %v5895 = vld [vmem:[%s266] sm:$0xff]
      %v5896 = vld [vmem:[%s266 + $0x8] sm:$0xff]
      %v5897 = vmul.f32 %v5893, %v5895
      %v5898 = vmul.f32 %v5894, %v5896
      %5899 = vst [vmem:[#allocation2 + $0x50] sm:$0xff] %v5897
      %5900 = vst [vmem:[#allocation2 + $0x58] sm:$0xff] %v5898
      %5901 = vrot.lane.b32.xlu0 %v5835, 113
      %v5902 = vpop.permute.xlu0 %5901
      %5903 = vrot.lane.b32.xlu0 %v5837, 113
      %v5904 = vpop.permute.xlu0 %5903
      %v5905 = vsel %vm277, %v5902, %v5904
      %v5906 = vsel %vm277, %v5904, %v5902
      %v5907 = vld [vmem:[%s280] sm:$0xff]
      %v5908 = vld [vmem:[%s280 + $0x8] sm:$0xff]
      %v5909 = vmul.f32 %v5905, %v5907
      %v5910 = vmul.f32 %v5906, %v5908
      %5911 = vst [vmem:[#allocation2 + $0x60] sm:$0xff] %v5909
      %5912 = vst [vmem:[#allocation2 + $0x68] sm:$0xff] %v5910
      %5913 = vrot.lane.b32.xlu0 %v5835, 112
      %v5914 = vpop.permute.xlu0 %5913
      %5915 = vrot.lane.b32.xlu0 %v5837, 112
      %v5916 = vpop.permute.xlu0 %5915
      %v5917 = vsel %vm291, %v5914, %v5916
      %v5918 = vsel %vm291, %v5916, %v5914
      %v5919 = vld [vmem:[%s294] sm:$0xff]
      %v5920 = vld [vmem:[%s294 + $0x8] sm:$0xff]
      %v5921 = vmul.f32 %v5917, %v5919
      %v5922 = vmul.f32 %v5918, %v5920
      %5923 = vst [vmem:[#allocation2 + $0x70] sm:$0xff] %v5921
      %5924 = vst [vmem:[#allocation2 + $0x78] sm:$0xff] %v5922
      %5925 = vrot.lane.b32.xlu0 %v5835, 111
      %v5926 = vpop.permute.xlu0 %5925
      %5927 = vrot.lane.b32.xlu0 %v5837, 111
      %v5928 = vpop.permute.xlu0 %5927
      %v5929 = vsel %vm305, %v5926, %v5928
      %v5930 = vsel %vm305, %v5928, %v5926
      %v5931 = vld [vmem:[%s308] sm:$0xff]
      %v5932 = vld [vmem:[%s308 + $0x8] sm:$0xff]
      %v5933 = vmul.f32 %v5929, %v5931
      %v5934 = vmul.f32 %v5930, %v5932
      %5935 = vst [vmem:[#allocation2 + $0x80] sm:$0xff] %v5933
      %5936 = vst [vmem:[#allocation2 + $0x88] sm:$0xff] %v5934
      %s5937 = scalar_lea.vmem %s1, 56
      %v5938 = vld [vmem:[%s5937] sm:$0xff]
      %v5939 = vld [vmem:[#allocation2] sm:$0xff]
      %v5940 = vld [vmem:[#allocation2 + $0x8] sm:$0xff]
      %v5941 = vld [vmem:[#allocation2 + $0x10] sm:$0xff]
      %v5942 = vld [vmem:[#allocation2 + $0x18] sm:$0xff]
      %v5943 = vld [vmem:[#allocation2 + $0x20] sm:$0xff]
      %v5944 = vld [vmem:[#allocation2 + $0x28] sm:$0xff]
      %v5945 = vld [vmem:[#allocation2 + $0x30] sm:$0xff]
      %v5946 = vld [vmem:[#allocation2 + $0x38] sm:$0xff]
      %v5947 = vld [vmem:[#allocation2 + $0x40] sm:$0xff]
      %v5948 = vld [vmem:[#allocation2 + $0x48] sm:$0xff]
      %v5949 = vld [vmem:[#allocation2 + $0x50] sm:$0xff]
      %v5950 = vld [vmem:[#allocation2 + $0x58] sm:$0xff]
      %v5951 = vld [vmem:[#allocation2 + $0x60] sm:$0xff]
      %v5952 = vld [vmem:[#allocation2 + $0x68] sm:$0xff]
      %v5953 = vld [vmem:[#allocation2 + $0x70] sm:$0xff]
      %v5954 = vld [vmem:[#allocation2 + $0x78] sm:$0xff]
      %v5955 = vld [vmem:[#allocation2 + $0x80] sm:$0xff]
      %v5956 = vld [vmem:[#allocation2 + $0x88] sm:$0xff]
      %s5957 = scalar_lea.vmem %s2, 56
      %v5958 = vld [vmem:[%s5957] sm:$0xff]
      %5960 = vset.pattern.permute.xlu0 0
      %5961 = vperm.xlu0 %5960, %v5958
      %v5962 = vpop.permute.xlu0 %5961
      %v5965 = vsel %vm340, %v5938, 0
      %v5967 = vand.u32 %v5940, 4294901760
      %5968 = vmatprep.subr.mxu0 %v5967
      %v5969 = vand.u32 %v5939, 4294901760
      %5970 = vmatpush1.msra.mxu0 %v5969
      %v5971 = vand.u32 %v5942, 4294901760
      %5972 = vmatprep.subr.mxu0 %v5971
      %v5973 = vand.u32 %v5941, 4294901760
      %5974 = vmatpush1.msra.mxu0 %v5973
      %v5975 = vand.u32 %v5944, 4294901760
      %5976 = vmatprep.subr.mxu0 %v5975
      %v5977 = vand.u32 %v5943, 4294901760
      %5978 = vmatpush1.msra.mxu0 %v5977
      %v5979 = vand.u32 %v5946, 4294901760
      %5980 = vmatprep.subr.mxu0 %v5979
      %v5981 = vand.u32 %v5945, 4294901760
      %5982 = vmatpush1.msra.mxu0 %v5981
      %v5983 = vand.u32 %v5948, 4294901760
      %5984 = vmatprep.subr.mxu0 %v5983
      %v5985 = vand.u32 %v5947, 4294901760
      %5986 = vmatpush1.msra.mxu0 %v5985
      %v5987 = vand.u32 %v5950, 4294901760
      %5988 = vmatprep.subr.mxu0 %v5987
      %v5989 = vand.u32 %v5949, 4294901760
      %5990 = vmatpush1.msra.mxu0 %v5989
      %v5991 = vand.u32 %v5952, 4294901760
      %5992 = vmatprep.subr.mxu0 %v5991
      %v5993 = vand.u32 %v5951, 4294901760
      %5994 = vmatpush1.msra.mxu0 %v5993
      %v5995 = vand.u32 %v5954, 4294901760
      %5996 = vmatprep.subr.mxu0 %v5995
      %v5997 = vand.u32 %v5953, 4294901760
      %5998 = vmatpush1.msra.mxu0 %v5997
      %v5999 = vand.u32 %v5956, 4294901760
      %6000 = vmatprep.subr.mxu0 %v5999
      %v6001 = vand.u32 %v5955, 4294901760
      %6002 = vmatpush1.msra.mxu0 %v6001
      %6003 = vmatprep.subr.mxu0 0.0
      %6004 = vmatpush1.msra.mxu0 0.0
      %6005 = vmatprep.subr.mxu0 0.0
      %6006 = vmatpush1.msra.mxu0 0.0
      %6007 = vmatprep.subr.mxu0 0.0
      %6008 = vmatpush1.msra.mxu0 0.0
      %6009 = vmatprep.subr.mxu0 0.0
      %6010 = vmatpush1.msra.mxu0 0.0
      %6011 = vmatprep.subr.mxu0 0.0
      %6012 = vmatpush1.msra.mxu0 0.0
      %6013 = vmatprep.subr.mxu0 0.0
      %6014 = vmatpush1.msra.mxu0 0.0
      %6015 = vmatprep.subr.mxu0 0.0
      %6016 = vmatpush1.msra.mxu0 0.0
      %6017 = vmatprep.subr.mxu0 0.0
      %6018 = vmatpush1.msra.mxu0 0.0
      %6019 = vmatprep.subr.mxu0 0.0
      %6020 = vmatpush1.msra.mxu0 0.0
      %6021 = vmatprep.subr.mxu0 0.0
      %6022 = vmatpush1.msra.mxu0 0.0
      %6023 = vmatprep.subr.mxu0 0.0
      %6024 = vmatpush1.msra.mxu0 0.0
      %6025 = vmatprep.subr.mxu0 0.0
      %6026 = vmatpush1.msra.mxu0 0.0
      %6027 = vmatprep.subr.mxu0 0.0
      %6028 = vmatpush1.msra.mxu0 0.0
      %6029 = vmatprep.subr.mxu0 0.0
      %6030 = vmatpush1.msra.mxu0 0.0
      %6031 = vmatprep.subr.mxu0 0.0
      %6032 = vmatpush1.msra.mxu0 0.0
      %6033 = vmatprep.subr.mxu0 0.0
      %6034 = vmatpush1.msra.mxu0 0.0
      %6035 = vmatprep.subr.mxu0 0.0
      %6036 = vmatpush1.msra.mxu0 0.0
      %6037 = vmatprep.subr.mxu0 0.0
      %6038 = vmatpush1.msra.mxu0 0.0
      %6039 = vmatprep.subr.mxu0 0.0
      %6040 = vmatpush1.msra.mxu0 0.0
      %6041 = vmatprep.subr.mxu0 0.0
      %6042 = vmatpush1.msra.mxu0 0.0
      %6043 = vmatprep.subr.mxu0 0.0
      %6044 = vmatpush1.msra.mxu0 0.0
      %6045 = vmatprep.subr.mxu0 0.0
      %6046 = vmatpush1.msra.mxu0 0.0
      %6047 = vmatprep.subr.mxu0 0.0
      %6048 = vmatpush1.msra.mxu0 0.0
      %6049 = vmatprep.mubr.f32.mxu0 0.0
      %v6050 = vand.u32 %v5965, 4294901760
      %v6051 = vsub.f32 %v5965, %v6050
      %v6052 = vand.u32 %v6051, 4294901760
      %v6053 = vsub.f32 %v6051, %v6052
      %v6054 = vand.u32 %v6053, 4294901760
      %6055 = vmatmul.mubr.f32.gmra.mrb[0].mxu0 %v6054
      %v6056 = vpop.f32.mrb[0].mxu0
      %v6057 = vadd.f32 %v5962, %v6056
      %v6058 = vpop.f32.mrb[0].mxu0
      %v6059 = vadd.f32 %v5962, %v6058
      %6060 = vdwg.mxu0
      %v6061 = vand.u32 %v5940, 4294901760
      %v6062 = vsub.f32 %v5940, %v6061
      %v6063 = vand.u32 %v6062, 4294901760
      %v6064 = vsub.f32 %v6062, %v6063
      %v6065 = vand.u32 %v6064, 4294901760
      %6066 = vmatprep.subr.mxu0 %v6065
      %v6067 = vand.u32 %v5939, 4294901760
      %v6068 = vsub.f32 %v5939, %v6067
      %v6069 = vand.u32 %v6068, 4294901760
      %v6070 = vsub.f32 %v6068, %v6069
      %v6071 = vand.u32 %v6070, 4294901760
      %6072 = vmatpush1.msra.mxu0 %v6071
      %v6073 = vand.u32 %v5942, 4294901760
      %v6074 = vsub.f32 %v5942, %v6073
      %v6075 = vand.u32 %v6074, 4294901760
      %v6076 = vsub.f32 %v6074, %v6075
      %v6077 = vand.u32 %v6076, 4294901760
      %6078 = vmatprep.subr.mxu0 %v6077
      %v6079 = vand.u32 %v5941, 4294901760
      %v6080 = vsub.f32 %v5941, %v6079
      %v6081 = vand.u32 %v6080, 4294901760
      %v6082 = vsub.f32 %v6080, %v6081
      %v6083 = vand.u32 %v6082, 4294901760
      %6084 = vmatpush1.msra.mxu0 %v6083
      %v6085 = vand.u32 %v5944, 4294901760
      %v6086 = vsub.f32 %v5944, %v6085
      %v6087 = vand.u32 %v6086, 4294901760
      %v6088 = vsub.f32 %v6086, %v6087
      %v6089 = vand.u32 %v6088, 4294901760
      %6090 = vmatprep.subr.mxu0 %v6089
      %v6091 = vand.u32 %v5943, 4294901760
      %v6092 = vsub.f32 %v5943, %v6091
      %v6093 = vand.u32 %v6092, 4294901760
      %v6094 = vsub.f32 %v6092, %v6093
      %v6095 = vand.u32 %v6094, 4294901760
      %6096 = vmatpush1.msra.mxu0 %v6095
      %v6097 = vand.u32 %v5946, 4294901760
      %v6098 = vsub.f32 %v5946, %v6097
      %v6099 = vand.u32 %v6098, 4294901760
      %v6100 = vsub.f32 %v6098, %v6099
      %v6101 = vand.u32 %v6100, 4294901760
      %6102 = vmatprep.subr.mxu0 %v6101
      %v6103 = vand.u32 %v5945, 4294901760
      %v6104 = vsub.f32 %v5945, %v6103
      %v6105 = vand.u32 %v6104, 4294901760
      %v6106 = vsub.f32 %v6104, %v6105
      %v6107 = vand.u32 %v6106, 4294901760
      %6108 = vmatpush1.msra.mxu0 %v6107
      %v6109 = vand.u32 %v5948, 4294901760
      %v6110 = vsub.f32 %v5948, %v6109
      %v6111 = vand.u32 %v6110, 4294901760
      %v6112 = vsub.f32 %v6110, %v6111
      %v6113 = vand.u32 %v6112, 4294901760
      %6114 = vmatprep.subr.mxu0 %v6113
      %v6115 = vand.u32 %v5947, 4294901760
      %v6116 = vsub.f32 %v5947, %v6115
      %v6117 = vand.u32 %v6116, 4294901760
      %v6118 = vsub.f32 %v6116, %v6117
      %v6119 = vand.u32 %v6118, 4294901760
      %6120 = vmatpush1.msra.mxu0 %v6119
      %v6121 = vand.u32 %v5950, 4294901760
      %v6122 = vsub.f32 %v5950, %v6121
      %v6123 = vand.u32 %v6122, 4294901760
      %v6124 = vsub.f32 %v6122, %v6123
      %v6125 = vand.u32 %v6124, 4294901760
      %6126 = vmatprep.subr.mxu0 %v6125
      %v6127 = vand.u32 %v5949, 4294901760
      %v6128 = vsub.f32 %v5949, %v6127
      %v6129 = vand.u32 %v6128, 4294901760
      %v6130 = vsub.f32 %v6128, %v6129
      %v6131 = vand.u32 %v6130, 4294901760
      %6132 = vmatpush1.msra.mxu0 %v6131
      %v6133 = vand.u32 %v5952, 4294901760
      %v6134 = vsub.f32 %v5952, %v6133
      %v6135 = vand.u32 %v6134, 4294901760
      %v6136 = vsub.f32 %v6134, %v6135
      %v6137 = vand.u32 %v6136, 4294901760
      %6138 = vmatprep.subr.mxu0 %v6137
      %v6139 = vand.u32 %v5951, 4294901760
      %v6140 = vsub.f32 %v5951, %v6139
      %v6141 = vand.u32 %v6140, 4294901760
      %v6142 = vsub.f32 %v6140, %v6141
      %v6143 = vand.u32 %v6142, 4294901760
      %6144 = vmatpush1.msra.mxu0 %v6143
      %v6145 = vand.u32 %v5954, 4294901760
      %v6146 = vsub.f32 %v5954, %v6145
      %v6147 = vand.u32 %v6146, 4294901760
      %v6148 = vsub.f32 %v6146, %v6147
      %v6149 = vand.u32 %v6148, 4294901760
      %6150 = vmatprep.subr.mxu0 %v6149
      %v6151 = vand.u32 %v5953, 4294901760
      %v6152 = vsub.f32 %v5953, %v6151
      %v6153 = vand.u32 %v6152, 4294901760
      %v6154 = vsub.f32 %v6152, %v6153
      %v6155 = vand.u32 %v6154, 4294901760
      %6156 = vmatpush1.msra.mxu0 %v6155
      %v6157 = vand.u32 %v5956, 4294901760
      %v6158 = vsub.f32 %v5956, %v6157
      %v6159 = vand.u32 %v6158, 4294901760
      %v6160 = vsub.f32 %v6158, %v6159
      %v6161 = vand.u32 %v6160, 4294901760
      %6162 = vmatprep.subr.mxu0 %v6161
      %v6163 = vand.u32 %v5955, 4294901760
      %v6164 = vsub.f32 %v5955, %v6163
      %v6165 = vand.u32 %v6164, 4294901760
      %v6166 = vsub.f32 %v6164, %v6165
      %v6167 = vand.u32 %v6166, 4294901760
      %6168 = vmatpush1.msra.mxu0 %v6167
      %6169 = vmatprep.subr.mxu0 0.0
      %6170 = vmatpush1.msra.mxu0 0.0
      %6171 = vmatprep.subr.mxu0 0.0
      %6172 = vmatpush1.msra.mxu0 0.0
      %6173 = vmatprep.subr.mxu0 0.0
      %6174 = vmatpush1.msra.mxu0 0.0
      %6175 = vmatprep.subr.mxu0 0.0
      %6176 = vmatpush1.msra.mxu0 0.0
      %6177 = vmatprep.subr.mxu0 0.0
      %6178 = vmatpush1.msra.mxu0 0.0
      %6179 = vmatprep.subr.mxu0 0.0
      %6180 = vmatpush1.msra.mxu0 0.0
      %6181 = vmatprep.subr.mxu0 0.0
      %6182 = vmatpush1.msra.mxu0 0.0
      %6183 = vmatprep.subr.mxu0 0.0
      %6184 = vmatpush1.msra.mxu0 0.0
      %6185 = vmatprep.subr.mxu0 0.0
      %6186 = vmatpush1.msra.mxu0 0.0
      %6187 = vmatprep.subr.mxu0 0.0
      %6188 = vmatpush1.msra.mxu0 0.0
      %6189 = vmatprep.subr.mxu0 0.0
      %6190 = vmatpush1.msra.mxu0 0.0
      %6191 = vmatprep.subr.mxu0 0.0
      %6192 = vmatpush1.msra.mxu0 0.0
      %6193 = vmatprep.subr.mxu0 0.0
      %6194 = vmatpush1.msra.mxu0 0.0
      %6195 = vmatprep.subr.mxu0 0.0
      %6196 = vmatpush1.msra.mxu0 0.0
      %6197 = vmatprep.subr.mxu0 0.0
      %6198 = vmatpush1.msra.mxu0 0.0
      %6199 = vmatprep.subr.mxu0 0.0
      %6200 = vmatpush1.msra.mxu0 0.0
      %6201 = vmatprep.subr.mxu0 0.0
      %6202 = vmatpush1.msra.mxu0 0.0
      %6203 = vmatprep.subr.mxu0 0.0
      %6204 = vmatpush1.msra.mxu0 0.0
      %6205 = vmatprep.subr.mxu0 0.0
      %6206 = vmatpush1.msra.mxu0 0.0
      %6207 = vmatprep.subr.mxu0 0.0
      %6208 = vmatpush1.msra.mxu0 0.0
      %6209 = vmatprep.subr.mxu0 0.0
      %6210 = vmatpush1.msra.mxu0 0.0
      %6211 = vmatprep.subr.mxu0 0.0
      %6212 = vmatpush1.msra.mxu0 0.0
      %6213 = vmatprep.subr.mxu0 0.0
      %6214 = vmatpush1.msra.mxu0 0.0
      %6215 = vmatprep.mubr.f32.mxu0 0.0
      %v6216 = vand.u32 %v5965, 4294901760
      %6217 = vmatmul.mubr.f32.gmra.mrb[0].mxu0 %v6216
      %v6218 = vpop.f32.mrb[0].mxu0
      %v6219 = vadd.f32 %v6057, %v6218
      %v6220 = vpop.f32.mrb[0].mxu0
      %v6221 = vadd.f32 %v6059, %v6220
      %6222 = vdwg.mxu0
      %v6223 = vand.u32 %v5940, 4294901760
      %v6224 = vsub.f32 %v5940, %v6223
      %6225 = vmatprep.subr.mxu0 %v6224
      %v6226 = vand.u32 %v5939, 4294901760
      %v6227 = vsub.f32 %v5939, %v6226
      %6228 = vmatpush1.msra.mxu0 %v6227
      %v6229 = vand.u32 %v5942, 4294901760
      %v6230 = vsub.f32 %v5942, %v6229
      %6231 = vmatprep.subr.mxu0 %v6230
      %v6232 = vand.u32 %v5941, 4294901760
      %v6233 = vsub.f32 %v5941, %v6232
      %6234 = vmatpush1.msra.mxu0 %v6233
      %v6235 = vand.u32 %v5944, 4294901760
      %v6236 = vsub.f32 %v5944, %v6235
      %6237 = vmatprep.subr.mxu0 %v6236
      %v6238 = vand.u32 %v5943, 4294901760
      %v6239 = vsub.f32 %v5943, %v6238
      %6240 = vmatpush1.msra.mxu0 %v6239
      %v6241 = vand.u32 %v5946, 4294901760
      %v6242 = vsub.f32 %v5946, %v6241
      %6243 = vmatprep.subr.mxu0 %v6242
      %v6244 = vand.u32 %v5945, 4294901760
      %v6245 = vsub.f32 %v5945, %v6244
      %6246 = vmatpush1.msra.mxu0 %v6245
      %v6247 = vand.u32 %v5948, 4294901760
      %v6248 = vsub.f32 %v5948, %v6247
      %6249 = vmatprep.subr.mxu0 %v6248
      %v6250 = vand.u32 %v5947, 4294901760
      %v6251 = vsub.f32 %v5947, %v6250
      %6252 = vmatpush1.msra.mxu0 %v6251
      %v6253 = vand.u32 %v5950, 4294901760
      %v6254 = vsub.f32 %v5950, %v6253
      %6255 = vmatprep.subr.mxu0 %v6254
      %v6256 = vand.u32 %v5949, 4294901760
      %v6257 = vsub.f32 %v5949, %v6256
      %6258 = vmatpush1.msra.mxu0 %v6257
      %v6259 = vand.u32 %v5952, 4294901760
      %v6260 = vsub.f32 %v5952, %v6259
      %6261 = vmatprep.subr.mxu0 %v6260
      %v6262 = vand.u32 %v5951, 4294901760
      %v6263 = vsub.f32 %v5951, %v6262
      %6264 = vmatpush1.msra.mxu0 %v6263
      %v6265 = vand.u32 %v5954, 4294901760
      %v6266 = vsub.f32 %v5954, %v6265
      %6267 = vmatprep.subr.mxu0 %v6266
      %v6268 = vand.u32 %v5953, 4294901760
      %v6269 = vsub.f32 %v5953, %v6268
      %6270 = vmatpush1.msra.mxu0 %v6269
      %v6271 = vand.u32 %v5956, 4294901760
      %v6272 = vsub.f32 %v5956, %v6271
      %6273 = vmatprep.subr.mxu0 %v6272
      %v6274 = vand.u32 %v5955, 4294901760
      %v6275 = vsub.f32 %v5955, %v6274
      %6276 = vmatpush1.msra.mxu0 %v6275
      %6277 = vmatprep.subr.mxu0 0.0
      %6278 = vmatpush1.msra.mxu0 0.0
      %6279 = vmatprep.subr.mxu0 0.0
      %6280 = vmatpush1.msra.mxu0 0.0
      %6281 = vmatprep.subr.mxu0 0.0
      %6282 = vmatpush1.msra.mxu0 0.0
      %6283 = vmatprep.subr.mxu0 0.0
      %6284 = vmatpush1.msra.mxu0 0.0
      %6285 = vmatprep.subr.mxu0 0.0
      %6286 = vmatpush1.msra.mxu0 0.0
      %6287 = vmatprep.subr.mxu0 0.0
      %6288 = vmatpush1.msra.mxu0 0.0
      %6289 = vmatprep.subr.mxu0 0.0
      %6290 = vmatpush1.msra.mxu0 0.0
      %6291 = vmatprep.subr.mxu0 0.0
      %6292 = vmatpush1.msra.mxu0 0.0
      %6293 = vmatprep.subr.mxu0 0.0
      %6294 = vmatpush1.msra.mxu0 0.0
      %6295 = vmatprep.subr.mxu0 0.0
      %6296 = vmatpush1.msra.mxu0 0.0
      %6297 = vmatprep.subr.mxu0 0.0
      %6298 = vmatpush1.msra.mxu0 0.0
      %6299 = vmatprep.subr.mxu0 0.0
      %6300 = vmatpush1.msra.mxu0 0.0
      %6301 = vmatprep.subr.mxu0 0.0
      %6302 = vmatpush1.msra.mxu0 0.0
      %6303 = vmatprep.subr.mxu0 0.0
      %6304 = vmatpush1.msra.mxu0 0.0
      %6305 = vmatprep.subr.mxu0 0.0
      %6306 = vmatpush1.msra.mxu0 0.0
      %6307 = vmatprep.subr.mxu0 0.0
      %6308 = vmatpush1.msra.mxu0 0.0
      %6309 = vmatprep.subr.mxu0 0.0
      %6310 = vmatpush1.msra.mxu0 0.0
      %6311 = vmatprep.subr.mxu0 0.0
      %6312 = vmatpush1.msra.mxu0 0.0
      %6313 = vmatprep.subr.mxu0 0.0
      %6314 = vmatpush1.msra.mxu0 0.0
      %6315 = vmatprep.subr.mxu0 0.0
      %6316 = vmatpush1.msra.mxu0 0.0
      %6317 = vmatprep.subr.mxu0 0.0
      %6318 = vmatpush1.msra.mxu0 0.0
      %6319 = vmatprep.subr.mxu0 0.0
      %6320 = vmatpush1.msra.mxu0 0.0
      %6321 = vmatprep.subr.mxu0 0.0
      %6322 = vmatpush1.msra.mxu0 0.0
      %6323 = vmatprep.mubr.f32.mxu0 0.0
      %v6324 = vand.u32 %v5965, 4294901760
      %v6325 = vsub.f32 %v5965, %v6324
      %6326 = vmatmul.mubr.f32.gmra.mrb[0].mxu0 %v6325
      %v6327 = vpop.f32.mrb[0].mxu0
      %v6328 = vadd.f32 %v6219, %v6327
      %v6329 = vpop.f32.mrb[0].mxu0
      %v6330 = vadd.f32 %v6221, %v6329
      %6331 = vdwg.mxu0
      %v6332 = vand.u32 %v5940, 4294901760
      %6333 = vmatprep.subr.mxu0 %v6332
      %v6334 = vand.u32 %v5939, 4294901760
      %6335 = vmatpush1.msra.mxu0 %v6334
      %v6336 = vand.u32 %v5942, 4294901760
      %6337 = vmatprep.subr.mxu0 %v6336
      %v6338 = vand.u32 %v5941, 4294901760
      %6339 = vmatpush1.msra.mxu0 %v6338
      %v6340 = vand.u32 %v5944, 4294901760
      %6341 = vmatprep.subr.mxu0 %v6340
      %v6342 = vand.u32 %v5943, 4294901760
      %6343 = vmatpush1.msra.mxu0 %v6342
      %v6344 = vand.u32 %v5946, 4294901760
      %6345 = vmatprep.subr.mxu0 %v6344
      %v6346 = vand.u32 %v5945, 4294901760
      %6347 = vmatpush1.msra.mxu0 %v6346
      %v6348 = vand.u32 %v5948, 4294901760
      %6349 = vmatprep.subr.mxu0 %v6348
      %v6350 = vand.u32 %v5947, 4294901760
      %6351 = vmatpush1.msra.mxu0 %v6350
      %v6352 = vand.u32 %v5950, 4294901760
      %6353 = vmatprep.subr.mxu0 %v6352
      %v6354 = vand.u32 %v5949, 4294901760
      %6355 = vmatpush1.msra.mxu0 %v6354
      %v6356 = vand.u32 %v5952, 4294901760
      %6357 = vmatprep.subr.mxu0 %v6356
      %v6358 = vand.u32 %v5951, 4294901760
      %6359 = vmatpush1.msra.mxu0 %v6358
      %v6360 = vand.u32 %v5954, 4294901760
      %6361 = vmatprep.subr.mxu0 %v6360
      %v6362 = vand.u32 %v5953, 4294901760
      %6363 = vmatpush1.msra.mxu0 %v6362
      %v6364 = vand.u32 %v5956, 4294901760
      %6365 = vmatprep.subr.mxu0 %v6364
      %v6366 = vand.u32 %v5955, 4294901760
      %6367 = vmatpush1.msra.mxu0 %v6366
      %6368 = vmatprep.subr.mxu0 0.0
      %6369 = vmatpush1.msra.mxu0 0.0
      %6370 = vmatprep.subr.mxu0 0.0
      %6371 = vmatpush1.msra.mxu0 0.0
      %6372 = vmatprep.subr.mxu0 0.0
      %6373 = vmatpush1.msra.mxu0 0.0
      %6374 = vmatprep.subr.mxu0 0.0
      %6375 = vmatpush1.msra.mxu0 0.0
      %6376 = vmatprep.subr.mxu0 0.0
      %6377 = vmatpush1.msra.mxu0 0.0
      %6378 = vmatprep.subr.mxu0 0.0
      %6379 = vmatpush1.msra.mxu0 0.0
      %6380 = vmatprep.subr.mxu0 0.0
      %6381 = vmatpush1.msra.mxu0 0.0
      %6382 = vmatprep.subr.mxu0 0.0
      %6383 = vmatpush1.msra.mxu0 0.0
      %6384 = vmatprep.subr.mxu0 0.0
      %6385 = vmatpush1.msra.mxu0 0.0
      %6386 = vmatprep.subr.mxu0 0.0
      %6387 = vmatpush1.msra.mxu0 0.0
      %6388 = vmatprep.subr.mxu0 0.0
      %6389 = vmatpush1.msra.mxu0 0.0
      %6390 = vmatprep.subr.mxu0 0.0
      %6391 = vmatpush1.msra.mxu0 0.0
      %6392 = vmatprep.subr.mxu0 0.0
      %6393 = vmatpush1.msra.mxu0 0.0
      %6394 = vmatprep.subr.mxu0 0.0
      %6395 = vmatpush1.msra.mxu0 0.0
      %6396 = vmatprep.subr.mxu0 0.0
      %6397 = vmatpush1.msra.mxu0 0.0
      %6398 = vmatprep.subr.mxu0 0.0
      %6399 = vmatpush1.msra.mxu0 0.0
      %6400 = vmatprep.subr.mxu0 0.0
      %6401 = vmatpush1.msra.mxu0 0.0
      %6402 = vmatprep.subr.mxu0 0.0
      %6403 = vmatpush1.msra.mxu0 0.0
      %6404 = vmatprep.subr.mxu0 0.0
      %6405 = vmatpush1.msra.mxu0 0.0
      %6406 = vmatprep.subr.mxu0 0.0
      %6407 = vmatpush1.msra.mxu0 0.0
      %6408 = vmatprep.subr.mxu0 0.0
      %6409 = vmatpush1.msra.mxu0 0.0
      %6410 = vmatprep.subr.mxu0 0.0
      %6411 = vmatpush1.msra.mxu0 0.0
      %6412 = vmatprep.subr.mxu0 0.0
      %6413 = vmatpush1.msra.mxu0 0.0
      %6414 = vmatprep.mubr.f32.mxu0 0.0
      %v6415 = vand.u32 %v5965, 4294901760
      %v6416 = vsub.f32 %v5965, %v6415
      %v6417 = vand.u32 %v6416, 4294901760
      %6418 = vmatmul.mubr.f32.gmra.mrb[0].mxu0 %v6417
      %v6419 = vpop.f32.mrb[0].mxu0
      %v6420 = vadd.f32 %v6328, %v6419
      %v6421 = vpop.f32.mrb[0].mxu0
      %v6422 = vadd.f32 %v6330, %v6421
      %6423 = vdwg.mxu0
      %v6424 = vand.u32 %v5940, 4294901760
      %v6425 = vsub.f32 %v5940, %v6424
      %v6426 = vand.u32 %v6425, 4294901760
      %6427 = vmatprep.subr.mxu0 %v6426
      %v6428 = vand.u32 %v5939, 4294901760
      %v6429 = vsub.f32 %v5939, %v6428
      %v6430 = vand.u32 %v6429, 4294901760
      %6431 = vmatpush1.msra.mxu0 %v6430
      %v6432 = vand.u32 %v5942, 4294901760
      %v6433 = vsub.f32 %v5942, %v6432
      %v6434 = vand.u32 %v6433, 4294901760
      %6435 = vmatprep.subr.mxu0 %v6434
      %v6436 = vand.u32 %v5941, 4294901760
      %v6437 = vsub.f32 %v5941, %v6436
      %v6438 = vand.u32 %v6437, 4294901760
      %6439 = vmatpush1.msra.mxu0 %v6438
      %v6440 = vand.u32 %v5944, 4294901760
      %v6441 = vsub.f32 %v5944, %v6440
      %v6442 = vand.u32 %v6441, 4294901760
      %6443 = vmatprep.subr.mxu0 %v6442
      %v6444 = vand.u32 %v5943, 4294901760
      %v6445 = vsub.f32 %v5943, %v6444
      %v6446 = vand.u32 %v6445, 4294901760
      %6447 = vmatpush1.msra.mxu0 %v6446
      %v6448 = vand.u32 %v5946, 4294901760
      %v6449 = vsub.f32 %v5946, %v6448
      %v6450 = vand.u32 %v6449, 4294901760
      %6451 = vmatprep.subr.mxu0 %v6450
      %v6452 = vand.u32 %v5945, 4294901760
      %v6453 = vsub.f32 %v5945, %v6452
      %v6454 = vand.u32 %v6453, 4294901760
      %6455 = vmatpush1.msra.mxu0 %v6454
      %v6456 = vand.u32 %v5948, 4294901760
      %v6457 = vsub.f32 %v5948, %v6456
      %v6458 = vand.u32 %v6457, 4294901760
      %6459 = vmatprep.subr.mxu0 %v6458
      %v6460 = vand.u32 %v5947, 4294901760
      %v6461 = vsub.f32 %v5947, %v6460
      %v6462 = vand.u32 %v6461, 4294901760
      %6463 = vmatpush1.msra.mxu0 %v6462
      %v6464 = vand.u32 %v5950, 4294901760
      %v6465 = vsub.f32 %v5950, %v6464
      %v6466 = vand.u32 %v6465, 4294901760
      %6467 = vmatprep.subr.mxu0 %v6466
      %v6468 = vand.u32 %v5949, 4294901760
      %v6469 = vsub.f32 %v5949, %v6468
      %v6470 = vand.u32 %v6469, 4294901760
      %6471 = vmatpush1.msra.mxu0 %v6470
      %v6472 = vand.u32 %v5952, 4294901760
      %v6473 = vsub.f32 %v5952, %v6472
      %v6474 = vand.u32 %v6473, 4294901760
      %6475 = vmatprep.subr.mxu0 %v6474
      %v6476 = vand.u32 %v5951, 4294901760
      %v6477 = vsub.f32 %v5951, %v6476
      %v6478 = vand.u32 %v6477, 4294901760
      %6479 = vmatpush1.msra.mxu0 %v6478
      %v6480 = vand.u32 %v5954, 4294901760
      %v6481 = vsub.f32 %v5954, %v6480
      %v6482 = vand.u32 %v6481, 4294901760
      %6483 = vmatprep.subr.mxu0 %v6482
      %v6484 = vand.u32 %v5953, 4294901760
      %v6485 = vsub.f32 %v5953, %v6484
      %v6486 = vand.u32 %v6485, 4294901760
      %6487 = vmatpush1.msra.mxu0 %v6486
      %v6488 = vand.u32 %v5956, 4294901760
      %v6489 = vsub.f32 %v5956, %v6488
      %v6490 = vand.u32 %v6489, 4294901760
      %6491 = vmatprep.subr.mxu0 %v6490
      %v6492 = vand.u32 %v5955, 4294901760
      %v6493 = vsub.f32 %v5955, %v6492
      %v6494 = vand.u32 %v6493, 4294901760
      %6495 = vmatpush1.msra.mxu0 %v6494
      %6496 = vmatprep.subr.mxu0 0.0
      %6497 = vmatpush1.msra.mxu0 0.0
      %6498 = vmatprep.subr.mxu0 0.0
      %6499 = vmatpush1.msra.mxu0 0.0
      %6500 = vmatprep.subr.mxu0 0.0
      %6501 = vmatpush1.msra.mxu0 0.0
      %6502 = vmatprep.subr.mxu0 0.0
      %6503 = vmatpush1.msra.mxu0 0.0
      %6504 = vmatprep.subr.mxu0 0.0
      %6505 = vmatpush1.msra.mxu0 0.0
      %6506 = vmatprep.subr.mxu0 0.0
      %6507 = vmatpush1.msra.mxu0 0.0
      %6508 = vmatprep.subr.mxu0 0.0
      %6509 = vmatpush1.msra.mxu0 0.0
      %6510 = vmatprep.subr.mxu0 0.0
      %6511 = vmatpush1.msra.mxu0 0.0
      %6512 = vmatprep.subr.mxu0 0.0
      %6513 = vmatpush1.msra.mxu0 0.0
      %6514 = vmatprep.subr.mxu0 0.0
      %6515 = vmatpush1.msra.mxu0 0.0
      %6516 = vmatprep.subr.mxu0 0.0
      %6517 = vmatpush1.msra.mxu0 0.0
      %6518 = vmatprep.subr.mxu0 0.0
      %6519 = vmatpush1.msra.mxu0 0.0
      %6520 = vmatprep.subr.mxu0 0.0
      %6521 = vmatpush1.msra.mxu0 0.0
      %6522 = vmatprep.subr.mxu0 0.0
      %6523 = vmatpush1.msra.mxu0 0.0
      %6524 = vmatprep.subr.mxu0 0.0
      %6525 = vmatpush1.msra.mxu0 0.0
      %6526 = vmatprep.subr.mxu0 0.0
      %6527 = vmatpush1.msra.mxu0 0.0
      %6528 = vmatprep.subr.mxu0 0.0
      %6529 = vmatpush1.msra.mxu0 0.0
      %6530 = vmatprep.subr.mxu0 0.0
      %6531 = vmatpush1.msra.mxu0 0.0
      %6532 = vmatprep.subr.mxu0 0.0
      %6533 = vmatpush1.msra.mxu0 0.0
      %6534 = vmatprep.subr.mxu0 0.0
      %6535 = vmatpush1.msra.mxu0 0.0
      %6536 = vmatprep.subr.mxu0 0.0
      %6537 = vmatpush1.msra.mxu0 0.0
      %6538 = vmatprep.subr.mxu0 0.0
      %6539 = vmatpush1.msra.mxu0 0.0
      %6540 = vmatprep.subr.mxu0 0.0
      %6541 = vmatpush1.msra.mxu0 0.0
      %6542 = vmatprep.mubr.f32.mxu0 0.0
      %v6543 = vand.u32 %v5965, 4294901760
      %6544 = vmatmul.mubr.f32.gmra.mrb[0].mxu0 %v6543
      %v6545 = vpop.f32.mrb[0].mxu0
      %v6546 = vadd.f32 %v6420, %v6545
      %v6547 = vpop.f32.mrb[0].mxu0
      %v6548 = vadd.f32 %v6422, %v6547
      %6549 = vdwg.mxu0
      %v6550 = vand.u32 %v5940, 4294901760
      %6551 = vmatprep.subr.mxu0 %v6550
      %v6552 = vand.u32 %v5939, 4294901760
      %6553 = vmatpush1.msra.mxu0 %v6552
      %v6554 = vand.u32 %v5942, 4294901760
      %6555 = vmatprep.subr.mxu0 %v6554
      %v6556 = vand.u32 %v5941, 4294901760
      %6557 = vmatpush1.msra.mxu0 %v6556
      %v6558 = vand.u32 %v5944, 4294901760
      %6559 = vmatprep.subr.mxu0 %v6558
      %v6560 = vand.u32 %v5943, 4294901760
      %6561 = vmatpush1.msra.mxu0 %v6560
      %v6562 = vand.u32 %v5946, 4294901760
      %6563 = vmatprep.subr.mxu0 %v6562
      %v6564 = vand.u32 %v5945, 4294901760
      %6565 = vmatpush1.msra.mxu0 %v6564
      %v6566 = vand.u32 %v5948, 4294901760
      %6567 = vmatprep.subr.mxu0 %v6566
      %v6568 = vand.u32 %v5947, 4294901760
      %6569 = vmatpush1.msra.mxu0 %v6568
      %v6570 = vand.u32 %v5950, 4294901760
      %6571 = vmatprep.subr.mxu0 %v6570
      %v6572 = vand.u32 %v5949, 4294901760
      %6573 = vmatpush1.msra.mxu0 %v6572
      %v6574 = vand.u32 %v5952, 4294901760
      %6575 = vmatprep.subr.mxu0 %v6574
      %v6576 = vand.u32 %v5951, 4294901760
      %6577 = vmatpush1.msra.mxu0 %v6576
      %v6578 = vand.u32 %v5954, 4294901760
      %6579 = vmatprep.subr.mxu0 %v6578
      %v6580 = vand.u32 %v5953, 4294901760
      %6581 = vmatpush1.msra.mxu0 %v6580
      %v6582 = vand.u32 %v5956, 4294901760
      %6583 = vmatprep.subr.mxu0 %v6582
      %v6584 = vand.u32 %v5955, 4294901760
      %6585 = vmatpush1.msra.mxu0 %v6584
      %6586 = vmatprep.subr.mxu0 0.0
      %6587 = vmatpush1.msra.mxu0 0.0
      %6588 = vmatprep.subr.mxu0 0.0
      %6589 = vmatpush1.msra.mxu0 0.0
      %6590 = vmatprep.subr.mxu0 0.0
      %6591 = vmatpush1.msra.mxu0 0.0
      %6592 = vmatprep.subr.mxu0 0.0
      %6593 = vmatpush1.msra.mxu0 0.0
      %6594 = vmatprep.subr.mxu0 0.0
      %6595 = vmatpush1.msra.mxu0 0.0
      %6596 = vmatprep.subr.mxu0 0.0
      %6597 = vmatpush1.msra.mxu0 0.0
      %6598 = vmatprep.subr.mxu0 0.0
      %6599 = vmatpush1.msra.mxu0 0.0
      %6600 = vmatprep.subr.mxu0 0.0
      %6601 = vmatpush1.msra.mxu0 0.0
      %6602 = vmatprep.subr.mxu0 0.0
      %6603 = vmatpush1.msra.mxu0 0.0
      %6604 = vmatprep.subr.mxu0 0.0
      %6605 = vmatpush1.msra.mxu0 0.0
      %6606 = vmatprep.subr.mxu0 0.0
      %6607 = vmatpush1.msra.mxu0 0.0
      %6608 = vmatprep.subr.mxu0 0.0
      %6609 = vmatpush1.msra.mxu0 0.0
      %6610 = vmatprep.subr.mxu0 0.0
      %6611 = vmatpush1.msra.mxu0 0.0
      %6612 = vmatprep.subr.mxu0 0.0
      %6613 = vmatpush1.msra.mxu0 0.0
      %6614 = vmatprep.subr.mxu0 0.0
      %6615 = vmatpush1.msra.mxu0 0.0
      %6616 = vmatprep.subr.mxu0 0.0
      %6617 = vmatpush1.msra.mxu0 0.0
      %6618 = vmatprep.subr.mxu0 0.0
      %6619 = vmatpush1.msra.mxu0 0.0
      %6620 = vmatprep.subr.mxu0 0.0
      %6621 = vmatpush1.msra.mxu0 0.0
      %6622 = vmatprep.subr.mxu0 0.0
      %6623 = vmatpush1.msra.mxu0 0.0
      %6624 = vmatprep.subr.mxu0 0.0
      %6625 = vmatpush1.msra.mxu0 0.0
      %6626 = vmatprep.subr.mxu0 0.0
      %6627 = vmatpush1.msra.mxu0 0.0
      %6628 = vmatprep.subr.mxu0 0.0
      %6629 = vmatpush1.msra.mxu0 0.0
      %6630 = vmatprep.subr.mxu0 0.0
      %6631 = vmatpush1.msra.mxu0 0.0
      %6632 = vmatprep.mubr.f32.mxu0 0.0
      %v6633 = vand.u32 %v5965, 4294901760
      %6634 = vmatmul.mubr.f32.gmra.mrb[0].mxu0 %v6633
      %v6635 = vpop.f32.mrb[0].mxu0
      %v6636 = vadd.f32 %v6546, %v6635
      %v6637 = vpop.f32.mrb[0].mxu0
      %v6638 = vadd.f32 %v6548, %v6637
      %6639 = vdwg.mxu0
      %vm6640 = vcmp.ge.f32.partialorder %v6636, 0.0
      %vm6641 = vcmp.ge.f32.partialorder %v6638, 0.0
      %v6642 = vmul.f32 %v6636, 0.01
      %v6643 = vmul.f32 %v6638, 0.01
      %v6644 = vsel %vm6640, %v6636, %v6642
      %v6645 = vsel %vm6641, %v6638, %v6643
      %6646 = vrot.lane.b32.xlu0 %v6644, 17
      %v6647 = vpop.permute.xlu0 %6646
      %6648 = vrot.lane.b32.xlu0 %v6645, 17
      %v6649 = vpop.permute.xlu0 %6648
      %v6650 = vsel %vm206, %v6647, %v6649
      %v6651 = vsel %vm206, %v6649, %v6647
      %v6652 = vld [vmem:[%s3] sm:$0xff]
      %v6653 = vld [vmem:[%s3 + $0x8] sm:$0xff]
      %v6654 = vmul.f32 %v6651, %v6652
      %v6655 = vmul.f32 %v6650, %v6653
      %6656 = vst [vmem:[#allocation2] sm:$0xff] %v6654
      %6657 = vst [vmem:[#allocation2 + $0x8] sm:$0xff] %v6655
      %6658 = vrot.lane.b32.xlu0 %v6644, 16
      %v6659 = vpop.permute.xlu0 %6658
      %6660 = vrot.lane.b32.xlu0 %v6645, 16
      %v6661 = vpop.permute.xlu0 %6660
      %v6662 = vsel %vm219, %v6659, %v6661
      %v6663 = vsel %vm219, %v6661, %v6659
      %v6664 = vld [vmem:[%s222] sm:$0xff]
      %v6665 = vld [vmem:[%s222 + $0x8] sm:$0xff]
      %v6666 = vmul.f32 %v6663, %v6664
      %v6667 = vmul.f32 %v6662, %v6665
      %6668 = vst [vmem:[#allocation2 + $0x10] sm:$0xff] %v6666
      %6669 = vst [vmem:[#allocation2 + $0x18] sm:$0xff] %v6667
      %6670 = vrot.lane.b32.xlu0 %v6644, 15
      %v6671 = vpop.permute.xlu0 %6670
      %6672 = vrot.lane.b32.xlu0 %v6645, 15
      %v6673 = vpop.permute.xlu0 %6672
      %v6674 = vsel %vm233, %v6671, %v6673
      %v6675 = vsel %vm233, %v6673, %v6671
      %v6676 = vld [vmem:[%s236] sm:$0xff]
      %v6677 = vld [vmem:[%s236 + $0x8] sm:$0xff]
      %v6678 = vmul.f32 %v6675, %v6676
      %v6679 = vmul.f32 %v6674, %v6677
      %6680 = vst [vmem:[#allocation2 + $0x20] sm:$0xff] %v6678
      %6681 = vst [vmem:[#allocation2 + $0x28] sm:$0xff] %v6679
      %6682 = vrot.lane.b32.xlu0 %v6644, 1
      %v6683 = vpop.permute.xlu0 %6682
      %6684 = vrot.lane.b32.xlu0 %v6645, 1
      %v6685 = vpop.permute.xlu0 %6684
      %v6686 = vsel %vm247, %v6683, %v6685
      %v6687 = vsel %vm247, %v6685, %v6683
      %v6688 = vld [vmem:[%s250] sm:$0xff]
      %v6689 = vld [vmem:[%s250 + $0x8] sm:$0xff]
      %v6690 = vmul.f32 %v6687, %v6688
      %v6691 = vmul.f32 %v6686, %v6689
      %6692 = vst [vmem:[#allocation2 + $0x30] sm:$0xff] %v6690
      %6693 = vst [vmem:[#allocation2 + $0x38] sm:$0xff] %v6691
      %6694 = vst [vmem:[#allocation2 + $0x40] sm:$0xff] %v6644
      %6695 = vst [vmem:[#allocation2 + $0x48] sm:$0xff] %v6645
      %6696 = vrot.lane.b32.xlu0 %v6644, 127
      %v6697 = vpop.permute.xlu0 %6696
      %6698 = vrot.lane.b32.xlu0 %v6645, 127
      %v6699 = vpop.permute.xlu0 %6698
      %v6700 = vsel %vm263, %v6697, %v6699
      %v6701 = vsel %vm263, %v6699, %v6697
      %v6702 = vld [vmem:[%s266] sm:$0xff]
      %v6703 = vld [vmem:[%s266 + $0x8] sm:$0xff]
      %v6704 = vmul.f32 %v6700, %v6702
      %v6705 = vmul.f32 %v6701, %v6703
      %6706 = vst [vmem:[#allocation2 + $0x50] sm:$0xff] %v6704
      %6707 = vst [vmem:[#allocation2 + $0x58] sm:$0xff] %v6705
      %6708 = vrot.lane.b32.xlu0 %v6644, 113
      %v6709 = vpop.permute.xlu0 %6708
      %6710 = vrot.lane.b32.xlu0 %v6645, 113
      %v6711 = vpop.permute.xlu0 %6710
      %v6712 = vsel %vm277, %v6709, %v6711
      %v6713 = vsel %vm277, %v6711, %v6709
      %v6714 = vld [vmem:[%s280] sm:$0xff]
      %v6715 = vld [vmem:[%s280 + $0x8] sm:$0xff]
      %v6716 = vmul.f32 %v6712, %v6714
      %v6717 = vmul.f32 %v6713, %v6715
      %6718 = vst [vmem:[#allocation2 + $0x60] sm:$0xff] %v6716
      %6719 = vst [vmem:[#allocation2 + $0x68] sm:$0xff] %v6717
      %6720 = vrot.lane.b32.xlu0 %v6644, 112
      %v6721 = vpop.permute.xlu0 %6720
      %6722 = vrot.lane.b32.xlu0 %v6645, 112
      %v6723 = vpop.permute.xlu0 %6722
      %v6724 = vsel %vm291, %v6721, %v6723
      %v6725 = vsel %vm291, %v6723, %v6721
      %v6726 = vld [vmem:[%s294] sm:$0xff]
      %v6727 = vld [vmem:[%s294 + $0x8] sm:$0xff]
      %v6728 = vmul.f32 %v6724, %v6726
      %v6729 = vmul.f32 %v6725, %v6727
      %6730 = vst [vmem:[#allocation2 + $0x70] sm:$0xff] %v6728
      %6731 = vst [vmem:[#allocation2 + $0x78] sm:$0xff] %v6729
      %6732 = vrot.lane.b32.xlu0 %v6644, 111
      %v6733 = vpop.permute.xlu0 %6732
      %6734 = vrot.lane.b32.xlu0 %v6645, 111
      %v6735 = vpop.permute.xlu0 %6734
      %v6736 = vsel %vm305, %v6733, %v6735
      %v6737 = vsel %vm305, %v6735, %v6733
      %v6738 = vld [vmem:[%s308] sm:$0xff]
      %v6739 = vld [vmem:[%s308 + $0x8] sm:$0xff]
      %v6740 = vmul.f32 %v6736, %v6738
      %v6741 = vmul.f32 %v6737, %v6739
      %6742 = vst [vmem:[#allocation2 + $0x80] sm:$0xff] %v6740
      %6743 = vst [vmem:[#allocation2 + $0x88] sm:$0xff] %v6741
      %s6744 = scalar_lea.vmem %s1, 64
      %v6745 = vld [vmem:[%s6744] sm:$0xff]
      %v6746 = vld [vmem:[#allocation2] sm:$0xff]
      %v6747 = vld [vmem:[#allocation2 + $0x8] sm:$0xff]
      %v6748 = vld [vmem:[#allocation2 + $0x10] sm:$0xff]
      %v6749 = vld [vmem:[#allocation2 + $0x18] sm:$0xff]
      %v6750 = vld [vmem:[#allocation2 + $0x20] sm:$0xff]
      %v6751 = vld [vmem:[#allocation2 + $0x28] sm:$0xff]
      %v6752 = vld [vmem:[#allocation2 + $0x30] sm:$0xff]
      %v6753 = vld [vmem:[#allocation2 + $0x38] sm:$0xff]
      %v6754 = vld [vmem:[#allocation2 + $0x40] sm:$0xff]
      %v6755 = vld [vmem:[#allocation2 + $0x48] sm:$0xff]
      %v6756 = vld [vmem:[#allocation2 + $0x50] sm:$0xff]
      %v6757 = vld [vmem:[#allocation2 + $0x58] sm:$0xff]
      %v6758 = vld [vmem:[#allocation2 + $0x60] sm:$0xff]
      %v6759 = vld [vmem:[#allocation2 + $0x68] sm:$0xff]
      %v6760 = vld [vmem:[#allocation2 + $0x70] sm:$0xff]
      %v6761 = vld [vmem:[#allocation2 + $0x78] sm:$0xff]
      %v6762 = vld [vmem:[#allocation2 + $0x80] sm:$0xff]
      %v6763 = vld [vmem:[#allocation2 + $0x88] sm:$0xff]
      %s6764 = scalar_lea.vmem %s2, 64
      %v6765 = vld [vmem:[%s6764] sm:$0xff]
      %6767 = vset.pattern.permute.xlu0 0
      %6768 = vperm.xlu0 %6767, %v6765
      %v6769 = vpop.permute.xlu0 %6768
      %v6772 = vsel %vm340, %v6745, 0
      %v6774 = vand.u32 %v6747, 4294901760
      %6775 = vmatprep.subr.mxu0 %v6774
      %v6776 = vand.u32 %v6746, 4294901760
      %6777 = vmatpush1.msra.mxu0 %v6776
      %v6778 = vand.u32 %v6749, 4294901760
      %6779 = vmatprep.subr.mxu0 %v6778
      %v6780 = vand.u32 %v6748, 4294901760
      %6781 = vmatpush1.msra.mxu0 %v6780
      %v6782 = vand.u32 %v6751, 4294901760
      %6783 = vmatprep.subr.mxu0 %v6782
      %v6784 = vand.u32 %v6750, 4294901760
      %6785 = vmatpush1.msra.mxu0 %v6784
      %v6786 = vand.u32 %v6753, 4294901760
      %6787 = vmatprep.subr.mxu0 %v6786
      %v6788 = vand.u32 %v6752, 4294901760
      %6789 = vmatpush1.msra.mxu0 %v6788
      %v6790 = vand.u32 %v6755, 4294901760
      %6791 = vmatprep.subr.mxu0 %v6790
      %v6792 = vand.u32 %v6754, 4294901760
      %6793 = vmatpush1.msra.mxu0 %v6792
      %v6794 = vand.u32 %v6757, 4294901760
      %6795 = vmatprep.subr.mxu0 %v6794
      %v6796 = vand.u32 %v6756, 4294901760
      %6797 = vmatpush1.msra.mxu0 %v6796
      %v6798 = vand.u32 %v6759, 4294901760
      %6799 = vmatprep.subr.mxu0 %v6798
      %v6800 = vand.u32 %v6758, 4294901760
      %6801 = vmatpush1.msra.mxu0 %v6800
      %v6802 = vand.u32 %v6761, 4294901760
      %6803 = vmatprep.subr.mxu0 %v6802
      %v6804 = vand.u32 %v6760, 4294901760
      %6805 = vmatpush1.msra.mxu0 %v6804
      %v6806 = vand.u32 %v6763, 4294901760
      %6807 = vmatprep.subr.mxu0 %v6806
      %v6808 = vand.u32 %v6762, 4294901760
      %6809 = vmatpush1.msra.mxu0 %v6808
      %6810 = vmatprep.subr.mxu0 0.0
      %6811 = vmatpush1.msra.mxu0 0.0
      %6812 = vmatprep.subr.mxu0 0.0
      %6813 = vmatpush1.msra.mxu0 0.0
      %6814 = vmatprep.subr.mxu0 0.0
      %6815 = vmatpush1.msra.mxu0 0.0
      %6816 = vmatprep.subr.mxu0 0.0
      %6817 = vmatpush1.msra.mxu0 0.0
      %6818 = vmatprep.subr.mxu0 0.0
      %6819 = vmatpush1.msra.mxu0 0.0
      %6820 = vmatprep.subr.mxu0 0.0
      %6821 = vmatpush1.msra.mxu0 0.0
      %6822 = vmatprep.subr.mxu0 0.0
      %6823 = vmatpush1.msra.mxu0 0.0
      %6824 = vmatprep.subr.mxu0 0.0
      %6825 = vmatpush1.msra.mxu0 0.0
      %6826 = vmatprep.subr.mxu0 0.0
      %6827 = vmatpush1.msra.mxu0 0.0
      %6828 = vmatprep.subr.mxu0 0.0
      %6829 = vmatpush1.msra.mxu0 0.0
      %6830 = vmatprep.subr.mxu0 0.0
      %6831 = vmatpush1.msra.mxu0 0.0
      %6832 = vmatprep.subr.mxu0 0.0
      %6833 = vmatpush1.msra.mxu0 0.0
      %6834 = vmatprep.subr.mxu0 0.0
      %6835 = vmatpush1.msra.mxu0 0.0
      %6836 = vmatprep.subr.mxu0 0.0
      %6837 = vmatpush1.msra.mxu0 0.0
      %6838 = vmatprep.subr.mxu0 0.0
      %6839 = vmatpush1.msra.mxu0 0.0
      %6840 = vmatprep.subr.mxu0 0.0
      %6841 = vmatpush1.msra.mxu0 0.0
      %6842 = vmatprep.subr.mxu0 0.0
      %6843 = vmatpush1.msra.mxu0 0.0
      %6844 = vmatprep.subr.mxu0 0.0
      %6845 = vmatpush1.msra.mxu0 0.0
      %6846 = vmatprep.subr.mxu0 0.0
      %6847 = vmatpush1.msra.mxu0 0.0
      %6848 = vmatprep.subr.mxu0 0.0
      %6849 = vmatpush1.msra.mxu0 0.0
      %6850 = vmatprep.subr.mxu0 0.0
      %6851 = vmatpush1.msra.mxu0 0.0
      %6852 = vmatprep.subr.mxu0 0.0
      %6853 = vmatpush1.msra.mxu0 0.0
      %6854 = vmatprep.subr.mxu0 0.0
      %6855 = vmatpush1.msra.mxu0 0.0
      %6856 = vmatprep.mubr.f32.mxu0 0.0
      %v6857 = vand.u32 %v6772, 4294901760
      %v6858 = vsub.f32 %v6772, %v6857
      %v6859 = vand.u32 %v6858, 4294901760
      %v6860 = vsub.f32 %v6858, %v6859
      %v6861 = vand.u32 %v6860, 4294901760
      %6862 = vmatmul.mubr.f32.gmra.mrb[0].mxu0 %v6861
      %v6863 = vpop.f32.mrb[0].mxu0
      %v6864 = vadd.f32 %v6769, %v6863
      %v6865 = vpop.f32.mrb[0].mxu0
      %v6866 = vadd.f32 %v6769, %v6865
      %6867 = vdwg.mxu0
      %v6868 = vand.u32 %v6747, 4294901760
      %v6869 = vsub.f32 %v6747, %v6868
      %v6870 = vand.u32 %v6869, 4294901760
      %v6871 = vsub.f32 %v6869, %v6870
      %v6872 = vand.u32 %v6871, 4294901760
      %6873 = vmatprep.subr.mxu0 %v6872
      %v6874 = vand.u32 %v6746, 4294901760
      %v6875 = vsub.f32 %v6746, %v6874
      %v6876 = vand.u32 %v6875, 4294901760
      %v6877 = vsub.f32 %v6875, %v6876
      %v6878 = vand.u32 %v6877, 4294901760
      %6879 = vmatpush1.msra.mxu0 %v6878
      %v6880 = vand.u32 %v6749, 4294901760
      %v6881 = vsub.f32 %v6749, %v6880
      %v6882 = vand.u32 %v6881, 4294901760
      %v6883 = vsub.f32 %v6881, %v6882
      %v6884 = vand.u32 %v6883, 4294901760
      %6885 = vmatprep.subr.mxu0 %v6884
      %v6886 = vand.u32 %v6748, 4294901760
      %v6887 = vsub.f32 %v6748, %v6886
      %v6888 = vand.u32 %v6887, 4294901760
      %v6889 = vsub.f32 %v6887, %v6888
      %v6890 = vand.u32 %v6889, 4294901760
      %6891 = vmatpush1.msra.mxu0 %v6890
      %v6892 = vand.u32 %v6751, 4294901760
      %v6893 = vsub.f32 %v6751, %v6892
      %v6894 = vand.u32 %v6893, 4294901760
      %v6895 = vsub.f32 %v6893, %v6894
      %v6896 = vand.u32 %v6895, 4294901760
      %6897 = vmatprep.subr.mxu0 %v6896
      %v6898 = vand.u32 %v6750, 4294901760
      %v6899 = vsub.f32 %v6750, %v6898
      %v6900 = vand.u32 %v6899, 4294901760
      %v6901 = vsub.f32 %v6899, %v6900
      %v6902 = vand.u32 %v6901, 4294901760
      %6903 = vmatpush1.msra.mxu0 %v6902
      %v6904 = vand.u32 %v6753, 4294901760
      %v6905 = vsub.f32 %v6753, %v6904
      %v6906 = vand.u32 %v6905, 4294901760
      %v6907 = vsub.f32 %v6905, %v6906
      %v6908 = vand.u32 %v6907, 4294901760
      %6909 = vmatprep.subr.mxu0 %v6908
      %v6910 = vand.u32 %v6752, 4294901760
      %v6911 = vsub.f32 %v6752, %v6910
      %v6912 = vand.u32 %v6911, 4294901760
      %v6913 = vsub.f32 %v6911, %v6912
      %v6914 = vand.u32 %v6913, 4294901760
      %6915 = vmatpush1.msra.mxu0 %v6914
      %v6916 = vand.u32 %v6755, 4294901760
      %v6917 = vsub.f32 %v6755, %v6916
      %v6918 = vand.u32 %v6917, 4294901760
      %v6919 = vsub.f32 %v6917, %v6918
      %v6920 = vand.u32 %v6919, 4294901760
      %6921 = vmatprep.subr.mxu0 %v6920
      %v6922 = vand.u32 %v6754, 4294901760
      %v6923 = vsub.f32 %v6754, %v6922
      %v6924 = vand.u32 %v6923, 4294901760
      %v6925 = vsub.f32 %v6923, %v6924
      %v6926 = vand.u32 %v6925, 4294901760
      %6927 = vmatpush1.msra.mxu0 %v6926
      %v6928 = vand.u32 %v6757, 4294901760
      %v6929 = vsub.f32 %v6757, %v6928
      %v6930 = vand.u32 %v6929, 4294901760
      %v6931 = vsub.f32 %v6929, %v6930
      %v6932 = vand.u32 %v6931, 4294901760
      %6933 = vmatprep.subr.mxu0 %v6932
      %v6934 = vand.u32 %v6756, 4294901760
      %v6935 = vsub.f32 %v6756, %v6934
      %v6936 = vand.u32 %v6935, 4294901760
      %v6937 = vsub.f32 %v6935, %v6936
      %v6938 = vand.u32 %v6937, 4294901760
      %6939 = vmatpush1.msra.mxu0 %v6938
      %v6940 = vand.u32 %v6759, 4294901760
      %v6941 = vsub.f32 %v6759, %v6940
      %v6942 = vand.u32 %v6941, 4294901760
      %v6943 = vsub.f32 %v6941, %v6942
      %v6944 = vand.u32 %v6943, 4294901760
      %6945 = vmatprep.subr.mxu0 %v6944
      %v6946 = vand.u32 %v6758, 4294901760
      %v6947 = vsub.f32 %v6758, %v6946
      %v6948 = vand.u32 %v6947, 4294901760
      %v6949 = vsub.f32 %v6947, %v6948
      %v6950 = vand.u32 %v6949, 4294901760
      %6951 = vmatpush1.msra.mxu0 %v6950
      %v6952 = vand.u32 %v6761, 4294901760
      %v6953 = vsub.f32 %v6761, %v6952
      %v6954 = vand.u32 %v6953, 4294901760
      %v6955 = vsub.f32 %v6953, %v6954
      %v6956 = vand.u32 %v6955, 4294901760
      %6957 = vmatprep.subr.mxu0 %v6956
      %v6958 = vand.u32 %v6760, 4294901760
      %v6959 = vsub.f32 %v6760, %v6958
      %v6960 = vand.u32 %v6959, 4294901760
      %v6961 = vsub.f32 %v6959, %v6960
      %v6962 = vand.u32 %v6961, 4294901760
      %6963 = vmatpush1.msra.mxu0 %v6962
      %v6964 = vand.u32 %v6763, 4294901760
      %v6965 = vsub.f32 %v6763, %v6964
      %v6966 = vand.u32 %v6965, 4294901760
      %v6967 = vsub.f32 %v6965, %v6966
      %v6968 = vand.u32 %v6967, 4294901760
      %6969 = vmatprep.subr.mxu0 %v6968
      %v6970 = vand.u32 %v6762, 4294901760
      %v6971 = vsub.f32 %v6762, %v6970
      %v6972 = vand.u32 %v6971, 4294901760
      %v6973 = vsub.f32 %v6971, %v6972
      %v6974 = vand.u32 %v6973, 4294901760
      %6975 = vmatpush1.msra.mxu0 %v6974
      %6976 = vmatprep.subr.mxu0 0.0
      %6977 = vmatpush1.msra.mxu0 0.0
      %6978 = vmatprep.subr.mxu0 0.0
      %6979 = vmatpush1.msra.mxu0 0.0
      %6980 = vmatprep.subr.mxu0 0.0
      %6981 = vmatpush1.msra.mxu0 0.0
      %6982 = vmatprep.subr.mxu0 0.0
      %6983 = vmatpush1.msra.mxu0 0.0
      %6984 = vmatprep.subr.mxu0 0.0
      %6985 = vmatpush1.msra.mxu0 0.0
      %6986 = vmatprep.subr.mxu0 0.0
      %6987 = vmatpush1.msra.mxu0 0.0
      %6988 = vmatprep.subr.mxu0 0.0
      %6989 = vmatpush1.msra.mxu0 0.0
      %6990 = vmatprep.subr.mxu0 0.0
      %6991 = vmatpush1.msra.mxu0 0.0
      %6992 = vmatprep.subr.mxu0 0.0
      %6993 = vmatpush1.msra.mxu0 0.0
      %6994 = vmatprep.subr.mxu0 0.0
      %6995 = vmatpush1.msra.mxu0 0.0
      %6996 = vmatprep.subr.mxu0 0.0
      %6997 = vmatpush1.msra.mxu0 0.0
      %6998 = vmatprep.subr.mxu0 0.0
      %6999 = vmatpush1.msra.mxu0 0.0
      %7000 = vmatprep.subr.mxu0 0.0
      %7001 = vmatpush1.msra.mxu0 0.0
      %7002 = vmatprep.subr.mxu0 0.0
      %7003 = vmatpush1.msra.mxu0 0.0
      %7004 = vmatprep.subr.mxu0 0.0
      %7005 = vmatpush1.msra.mxu0 0.0
      %7006 = vmatprep.subr.mxu0 0.0
      %7007 = vmatpush1.msra.mxu0 0.0
      %7008 = vmatprep.subr.mxu0 0.0
      %7009 = vmatpush1.msra.mxu0 0.0
      %7010 = vmatprep.subr.mxu0 0.0
      %7011 = vmatpush1.msra.mxu0 0.0
      %7012 = vmatprep.subr.mxu0 0.0
      %7013 = vmatpush1.msra.mxu0 0.0
      %7014 = vmatprep.subr.mxu0 0.0
      %7015 = vmatpush1.msra.mxu0 0.0
      %7016 = vmatprep.subr.mxu0 0.0
      %7017 = vmatpush1.msra.mxu0 0.0
      %7018 = vmatprep.subr.mxu0 0.0
      %7019 = vmatpush1.msra.mxu0 0.0
      %7020 = vmatprep.subr.mxu0 0.0
      %7021 = vmatpush1.msra.mxu0 0.0
      %7022 = vmatprep.mubr.f32.mxu0 0.0
      %v7023 = vand.u32 %v6772, 4294901760
      %7024 = vmatmul.mubr.f32.gmra.mrb[0].mxu0 %v7023
      %v7025 = vpop.f32.mrb[0].mxu0
      %v7026 = vadd.f32 %v6864, %v7025
      %v7027 = vpop.f32.mrb[0].mxu0
      %v7028 = vadd.f32 %v6866, %v7027
      %7029 = vdwg.mxu0
      %v7030 = vand.u32 %v6747, 4294901760
      %v7031 = vsub.f32 %v6747, %v7030
      %7032 = vmatprep.subr.mxu0 %v7031
      %v7033 = vand.u32 %v6746, 4294901760
      %v7034 = vsub.f32 %v6746, %v7033
      %7035 = vmatpush1.msra.mxu0 %v7034
      %v7036 = vand.u32 %v6749, 4294901760
      %v7037 = vsub.f32 %v6749, %v7036
      %7038 = vmatprep.subr.mxu0 %v7037
      %v7039 = vand.u32 %v6748, 4294901760
      %v7040 = vsub.f32 %v6748, %v7039
      %7041 = vmatpush1.msra.mxu0 %v7040
      %v7042 = vand.u32 %v6751, 4294901760
      %v7043 = vsub.f32 %v6751, %v7042
      %7044 = vmatprep.subr.mxu0 %v7043
      %v7045 = vand.u32 %v6750, 4294901760
      %v7046 = vsub.f32 %v6750, %v7045
      %7047 = vmatpush1.msra.mxu0 %v7046
      %v7048 = vand.u32 %v6753, 4294901760
      %v7049 = vsub.f32 %v6753, %v7048
      %7050 = vmatprep.subr.mxu0 %v7049
      %v7051 = vand.u32 %v6752, 4294901760
      %v7052 = vsub.f32 %v6752, %v7051
      %7053 = vmatpush1.msra.mxu0 %v7052
      %v7054 = vand.u32 %v6755, 4294901760
      %v7055 = vsub.f32 %v6755, %v7054
      %7056 = vmatprep.subr.mxu0 %v7055
      %v7057 = vand.u32 %v6754, 4294901760
      %v7058 = vsub.f32 %v6754, %v7057
      %7059 = vmatpush1.msra.mxu0 %v7058
      %v7060 = vand.u32 %v6757, 4294901760
      %v7061 = vsub.f32 %v6757, %v7060
      %7062 = vmatprep.subr.mxu0 %v7061
      %v7063 = vand.u32 %v6756, 4294901760
      %v7064 = vsub.f32 %v6756, %v7063
      %7065 = vmatpush1.msra.mxu0 %v7064
      %v7066 = vand.u32 %v6759, 4294901760
      %v7067 = vsub.f32 %v6759, %v7066
      %7068 = vmatprep.subr.mxu0 %v7067
      %v7069 = vand.u32 %v6758, 4294901760
      %v7070 = vsub.f32 %v6758, %v7069
      %7071 = vmatpush1.msra.mxu0 %v7070
      %v7072 = vand.u32 %v6761, 4294901760
      %v7073 = vsub.f32 %v6761, %v7072
      %7074 = vmatprep.subr.mxu0 %v7073
      %v7075 = vand.u32 %v6760, 4294901760
      %v7076 = vsub.f32 %v6760, %v7075
      %7077 = vmatpush1.msra.mxu0 %v7076
      %v7078 = vand.u32 %v6763, 4294901760
      %v7079 = vsub.f32 %v6763, %v7078
      %7080 = vmatprep.subr.mxu0 %v7079
      %v7081 = vand.u32 %v6762, 4294901760
      %v7082 = vsub.f32 %v6762, %v7081
      %7083 = vmatpush1.msra.mxu0 %v7082
      %7084 = vmatprep.subr.mxu0 0.0
      %7085 = vmatpush1.msra.mxu0 0.0
      %7086 = vmatprep.subr.mxu0 0.0
      %7087 = vmatpush1.msra.mxu0 0.0
      %7088 = vmatprep.subr.mxu0 0.0
      %7089 = vmatpush1.msra.mxu0 0.0
      %7090 = vmatprep.subr.mxu0 0.0
      %7091 = vmatpush1.msra.mxu0 0.0
      %7092 = vmatprep.subr.mxu0 0.0
      %7093 = vmatpush1.msra.mxu0 0.0
      %7094 = vmatprep.subr.mxu0 0.0
      %7095 = vmatpush1.msra.mxu0 0.0
      %7096 = vmatprep.subr.mxu0 0.0
      %7097 = vmatpush1.msra.mxu0 0.0
      %7098 = vmatprep.subr.mxu0 0.0
      %7099 = vmatpush1.msra.mxu0 0.0
      %7100 = vmatprep.subr.mxu0 0.0
      %7101 = vmatpush1.msra.mxu0 0.0
      %7102 = vmatprep.subr.mxu0 0.0
      %7103 = vmatpush1.msra.mxu0 0.0
      %7104 = vmatprep.subr.mxu0 0.0
      %7105 = vmatpush1.msra.mxu0 0.0
      %7106 = vmatprep.subr.mxu0 0.0
      %7107 = vmatpush1.msra.mxu0 0.0
      %7108 = vmatprep.subr.mxu0 0.0
      %7109 = vmatpush1.msra.mxu0 0.0
      %7110 = vmatprep.subr.mxu0 0.0
      %7111 = vmatpush1.msra.mxu0 0.0
      %7112 = vmatprep.subr.mxu0 0.0
      %7113 = vmatpush1.msra.mxu0 0.0
      %7114 = vmatprep.subr.mxu0 0.0
      %7115 = vmatpush1.msra.mxu0 0.0
      %7116 = vmatprep.subr.mxu0 0.0
      %7117 = vmatpush1.msra.mxu0 0.0
      %7118 = vmatprep.subr.mxu0 0.0
      %7119 = vmatpush1.msra.mxu0 0.0
      %7120 = vmatprep.subr.mxu0 0.0
      %7121 = vmatpush1.msra.mxu0 0.0
      %7122 = vmatprep.subr.mxu0 0.0
      %7123 = vmatpush1.msra.mxu0 0.0
      %7124 = vmatprep.subr.mxu0 0.0
      %7125 = vmatpush1.msra.mxu0 0.0
      %7126 = vmatprep.subr.mxu0 0.0
      %7127 = vmatpush1.msra.mxu0 0.0
      %7128 = vmatprep.subr.mxu0 0.0
      %7129 = vmatpush1.msra.mxu0 0.0
      %7130 = vmatprep.mubr.f32.mxu0 0.0
      %v7131 = vand.u32 %v6772, 4294901760
      %v7132 = vsub.f32 %v6772, %v7131
      %7133 = vmatmul.mubr.f32.gmra.mrb[0].mxu0 %v7132
      %v7134 = vpop.f32.mrb[0].mxu0
      %v7135 = vadd.f32 %v7026, %v7134
      %v7136 = vpop.f32.mrb[0].mxu0
      %v7137 = vadd.f32 %v7028, %v7136
      %7138 = vdwg.mxu0
      %v7139 = vand.u32 %v6747, 4294901760
      %7140 = vmatprep.subr.mxu0 %v7139
      %v7141 = vand.u32 %v6746, 4294901760
      %7142 = vmatpush1.msra.mxu0 %v7141
      %v7143 = vand.u32 %v6749, 4294901760
      %7144 = vmatprep.subr.mxu0 %v7143
      %v7145 = vand.u32 %v6748, 4294901760
      %7146 = vmatpush1.msra.mxu0 %v7145
      %v7147 = vand.u32 %v6751, 4294901760
      %7148 = vmatprep.subr.mxu0 %v7147
      %v7149 = vand.u32 %v6750, 4294901760
      %7150 = vmatpush1.msra.mxu0 %v7149
      %v7151 = vand.u32 %v6753, 4294901760
      %7152 = vmatprep.subr.mxu0 %v7151
      %v7153 = vand.u32 %v6752, 4294901760
      %7154 = vmatpush1.msra.mxu0 %v7153
      %v7155 = vand.u32 %v6755, 4294901760
      %7156 = vmatprep.subr.mxu0 %v7155
      %v7157 = vand.u32 %v6754, 4294901760
      %7158 = vmatpush1.msra.mxu0 %v7157
      %v7159 = vand.u32 %v6757, 4294901760
      %7160 = vmatprep.subr.mxu0 %v7159
      %v7161 = vand.u32 %v6756, 4294901760
      %7162 = vmatpush1.msra.mxu0 %v7161
      %v7163 = vand.u32 %v6759, 4294901760
      %7164 = vmatprep.subr.mxu0 %v7163
      %v7165 = vand.u32 %v6758, 4294901760
      %7166 = vmatpush1.msra.mxu0 %v7165
      %v7167 = vand.u32 %v6761, 4294901760
      %7168 = vmatprep.subr.mxu0 %v7167
      %v7169 = vand.u32 %v6760, 4294901760
      %7170 = vmatpush1.msra.mxu0 %v7169
      %v7171 = vand.u32 %v6763, 4294901760
      %7172 = vmatprep.subr.mxu0 %v7171
      %v7173 = vand.u32 %v6762, 4294901760
      %7174 = vmatpush1.msra.mxu0 %v7173
      %7175 = vmatprep.subr.mxu0 0.0
      %7176 = vmatpush1.msra.mxu0 0.0
      %7177 = vmatprep.subr.mxu0 0.0
      %7178 = vmatpush1.msra.mxu0 0.0
      %7179 = vmatprep.subr.mxu0 0.0
      %7180 = vmatpush1.msra.mxu0 0.0
      %7181 = vmatprep.subr.mxu0 0.0
      %7182 = vmatpush1.msra.mxu0 0.0
      %7183 = vmatprep.subr.mxu0 0.0
      %7184 = vmatpush1.msra.mxu0 0.0
      %7185 = vmatprep.subr.mxu0 0.0
      %7186 = vmatpush1.msra.mxu0 0.0
      %7187 = vmatprep.subr.mxu0 0.0
      %7188 = vmatpush1.msra.mxu0 0.0
      %7189 = vmatprep.subr.mxu0 0.0
      %7190 = vmatpush1.msra.mxu0 0.0
      %7191 = vmatprep.subr.mxu0 0.0
      %7192 = vmatpush1.msra.mxu0 0.0
      %7193 = vmatprep.subr.mxu0 0.0
      %7194 = vmatpush1.msra.mxu0 0.0
      %7195 = vmatprep.subr.mxu0 0.0
      %7196 = vmatpush1.msra.mxu0 0.0
      %7197 = vmatprep.subr.mxu0 0.0
      %7198 = vmatpush1.msra.mxu0 0.0
      %7199 = vmatprep.subr.mxu0 0.0
      %7200 = vmatpush1.msra.mxu0 0.0
      %7201 = vmatprep.subr.mxu0 0.0
      %7202 = vmatpush1.msra.mxu0 0.0
      %7203 = vmatprep.subr.mxu0 0.0
      %7204 = vmatpush1.msra.mxu0 0.0
      %7205 = vmatprep.subr.mxu0 0.0
      %7206 = vmatpush1.msra.mxu0 0.0
      %7207 = vmatprep.subr.mxu0 0.0
      %7208 = vmatpush1.msra.mxu0 0.0
      %7209 = vmatprep.subr.mxu0 0.0
      %7210 = vmatpush1.msra.mxu0 0.0
      %7211 = vmatprep.subr.mxu0 0.0
      %7212 = vmatpush1.msra.mxu0 0.0
      %7213 = vmatprep.subr.mxu0 0.0
      %7214 = vmatpush1.msra.mxu0 0.0
      %7215 = vmatprep.subr.mxu0 0.0
      %7216 = vmatpush1.msra.mxu0 0.0
      %7217 = vmatprep.subr.mxu0 0.0
      %7218 = vmatpush1.msra.mxu0 0.0
      %7219 = vmatprep.subr.mxu0 0.0
      %7220 = vmatpush1.msra.mxu0 0.0
      %7221 = vmatprep.mubr.f32.mxu0 0.0
      %v7222 = vand.u32 %v6772, 4294901760
      %v7223 = vsub.f32 %v6772, %v7222
      %v7224 = vand.u32 %v7223, 4294901760
      %7225 = vmatmul.mubr.f32.gmra.mrb[0].mxu0 %v7224
      %v7226 = vpop.f32.mrb[0].mxu0
      %v7227 = vadd.f32 %v7135, %v7226
      %v7228 = vpop.f32.mrb[0].mxu0
      %v7229 = vadd.f32 %v7137, %v7228
      %7230 = vdwg.mxu0
      %v7231 = vand.u32 %v6747, 4294901760
      %v7232 = vsub.f32 %v6747, %v7231
      %v7233 = vand.u32 %v7232, 4294901760
      %7234 = vmatprep.subr.mxu0 %v7233
      %v7235 = vand.u32 %v6746, 4294901760
      %v7236 = vsub.f32 %v6746, %v7235
      %v7237 = vand.u32 %v7236, 4294901760
      %7238 = vmatpush1.msra.mxu0 %v7237
      %v7239 = vand.u32 %v6749, 4294901760
      %v7240 = vsub.f32 %v6749, %v7239
      %v7241 = vand.u32 %v7240, 4294901760
      %7242 = vmatprep.subr.mxu0 %v7241
      %v7243 = vand.u32 %v6748, 4294901760
      %v7244 = vsub.f32 %v6748, %v7243
      %v7245 = vand.u32 %v7244, 4294901760
      %7246 = vmatpush1.msra.mxu0 %v7245
      %v7247 = vand.u32 %v6751, 4294901760
      %v7248 = vsub.f32 %v6751, %v7247
      %v7249 = vand.u32 %v7248, 4294901760
      %7250 = vmatprep.subr.mxu0 %v7249
      %v7251 = vand.u32 %v6750, 4294901760
      %v7252 = vsub.f32 %v6750, %v7251
      %v7253 = vand.u32 %v7252, 4294901760
      %7254 = vmatpush1.msra.mxu0 %v7253
      %v7255 = vand.u32 %v6753, 4294901760
      %v7256 = vsub.f32 %v6753, %v7255
      %v7257 = vand.u32 %v7256, 4294901760
      %7258 = vmatprep.subr.mxu0 %v7257
      %v7259 = vand.u32 %v6752, 4294901760
      %v7260 = vsub.f32 %v6752, %v7259
      %v7261 = vand.u32 %v7260, 4294901760
      %7262 = vmatpush1.msra.mxu0 %v7261
      %v7263 = vand.u32 %v6755, 4294901760
      %v7264 = vsub.f32 %v6755, %v7263
      %v7265 = vand.u32 %v7264, 4294901760
      %7266 = vmatprep.subr.mxu0 %v7265
      %v7267 = vand.u32 %v6754, 4294901760
      %v7268 = vsub.f32 %v6754, %v7267
      %v7269 = vand.u32 %v7268, 4294901760
      %7270 = vmatpush1.msra.mxu0 %v7269
      %v7271 = vand.u32 %v6757, 4294901760
      %v7272 = vsub.f32 %v6757, %v7271
      %v7273 = vand.u32 %v7272, 4294901760
      %7274 = vmatprep.subr.mxu0 %v7273
      %v7275 = vand.u32 %v6756, 4294901760
      %v7276 = vsub.f32 %v6756, %v7275
      %v7277 = vand.u32 %v7276, 4294901760
      %7278 = vmatpush1.msra.mxu0 %v7277
      %v7279 = vand.u32 %v6759, 4294901760
      %v7280 = vsub.f32 %v6759, %v7279
      %v7281 = vand.u32 %v7280, 4294901760
      %7282 = vmatprep.subr.mxu0 %v7281
      %v7283 = vand.u32 %v6758, 4294901760
      %v7284 = vsub.f32 %v6758, %v7283
      %v7285 = vand.u32 %v7284, 4294901760
      %7286 = vmatpush1.msra.mxu0 %v7285
      %v7287 = vand.u32 %v6761, 4294901760
      %v7288 = vsub.f32 %v6761, %v7287
      %v7289 = vand.u32 %v7288, 4294901760
      %7290 = vmatprep.subr.mxu0 %v7289
      %v7291 = vand.u32 %v6760, 4294901760
      %v7292 = vsub.f32 %v6760, %v7291
      %v7293 = vand.u32 %v7292, 4294901760
      %7294 = vmatpush1.msra.mxu0 %v7293
      %v7295 = vand.u32 %v6763, 4294901760
      %v7296 = vsub.f32 %v6763, %v7295
      %v7297 = vand.u32 %v7296, 4294901760
      %7298 = vmatprep.subr.mxu0 %v7297
      %v7299 = vand.u32 %v6762, 4294901760
      %v7300 = vsub.f32 %v6762, %v7299
      %v7301 = vand.u32 %v7300, 4294901760
      %7302 = vmatpush1.msra.mxu0 %v7301
      %7303 = vmatprep.subr.mxu0 0.0
      %7304 = vmatpush1.msra.mxu0 0.0
      %7305 = vmatprep.subr.mxu0 0.0
      %7306 = vmatpush1.msra.mxu0 0.0
      %7307 = vmatprep.subr.mxu0 0.0
      %7308 = vmatpush1.msra.mxu0 0.0
      %7309 = vmatprep.subr.mxu0 0.0
      %7310 = vmatpush1.msra.mxu0 0.0
      %7311 = vmatprep.subr.mxu0 0.0
      %7312 = vmatpush1.msra.mxu0 0.0
      %7313 = vmatprep.subr.mxu0 0.0
      %7314 = vmatpush1.msra.mxu0 0.0
      %7315 = vmatprep.subr.mxu0 0.0
      %7316 = vmatpush1.msra.mxu0 0.0
      %7317 = vmatprep.subr.mxu0 0.0
      %7318 = vmatpush1.msra.mxu0 0.0
      %7319 = vmatprep.subr.mxu0 0.0
      %7320 = vmatpush1.msra.mxu0 0.0
      %7321 = vmatprep.subr.mxu0 0.0
      %7322 = vmatpush1.msra.mxu0 0.0
      %7323 = vmatprep.subr.mxu0 0.0
      %7324 = vmatpush1.msra.mxu0 0.0
      %7325 = vmatprep.subr.mxu0 0.0
      %7326 = vmatpush1.msra.mxu0 0.0
      %7327 = vmatprep.subr.mxu0 0.0
      %7328 = vmatpush1.msra.mxu0 0.0
      %7329 = vmatprep.subr.mxu0 0.0
      %7330 = vmatpush1.msra.mxu0 0.0
      %7331 = vmatprep.subr.mxu0 0.0
      %7332 = vmatpush1.msra.mxu0 0.0
      %7333 = vmatprep.subr.mxu0 0.0
      %7334 = vmatpush1.msra.mxu0 0.0
      %7335 = vmatprep.subr.mxu0 0.0
      %7336 = vmatpush1.msra.mxu0 0.0
      %7337 = vmatprep.subr.mxu0 0.0
      %7338 = vmatpush1.msra.mxu0 0.0
      %7339 = vmatprep.subr.mxu0 0.0
      %7340 = vmatpush1.msra.mxu0 0.0
      %7341 = vmatprep.subr.mxu0 0.0
      %7342 = vmatpush1.msra.mxu0 0.0
      %7343 = vmatprep.subr.mxu0 0.0
      %7344 = vmatpush1.msra.mxu0 0.0
      %7345 = vmatprep.subr.mxu0 0.0
      %7346 = vmatpush1.msra.mxu0 0.0
      %7347 = vmatprep.subr.mxu0 0.0
      %7348 = vmatpush1.msra.mxu0 0.0
      %7349 = vmatprep.mubr.f32.mxu0 0.0
      %v7350 = vand.u32 %v6772, 4294901760
      %7351 = vmatmul.mubr.f32.gmra.mrb[0].mxu0 %v7350
      %v7352 = vpop.f32.mrb[0].mxu0
      %v7353 = vadd.f32 %v7227, %v7352
      %v7354 = vpop.f32.mrb[0].mxu0
      %v7355 = vadd.f32 %v7229, %v7354
      %7356 = vdwg.mxu0
      %v7357 = vand.u32 %v6747, 4294901760
      %7358 = vmatprep.subr.mxu0 %v7357
      %v7359 = vand.u32 %v6746, 4294901760
      %7360 = vmatpush1.msra.mxu0 %v7359
      %v7361 = vand.u32 %v6749, 4294901760
      %7362 = vmatprep.subr.mxu0 %v7361
      %v7363 = vand.u32 %v6748, 4294901760
      %7364 = vmatpush1.msra.mxu0 %v7363
      %v7365 = vand.u32 %v6751, 4294901760
      %7366 = vmatprep.subr.mxu0 %v7365
      %v7367 = vand.u32 %v6750, 4294901760
      %7368 = vmatpush1.msra.mxu0 %v7367
      %v7369 = vand.u32 %v6753, 4294901760
      %7370 = vmatprep.subr.mxu0 %v7369
      %v7371 = vand.u32 %v6752, 4294901760
      %7372 = vmatpush1.msra.mxu0 %v7371
      %v7373 = vand.u32 %v6755, 4294901760
      %7374 = vmatprep.subr.mxu0 %v7373
      %v7375 = vand.u32 %v6754, 4294901760
      %7376 = vmatpush1.msra.mxu0 %v7375
      %v7377 = vand.u32 %v6757, 4294901760
      %7378 = vmatprep.subr.mxu0 %v7377
      %v7379 = vand.u32 %v6756, 4294901760
      %7380 = vmatpush1.msra.mxu0 %v7379
      %v7381 = vand.u32 %v6759, 4294901760
      %7382 = vmatprep.subr.mxu0 %v7381
      %v7383 = vand.u32 %v6758, 4294901760
      %7384 = vmatpush1.msra.mxu0 %v7383
      %v7385 = vand.u32 %v6761, 4294901760
      %7386 = vmatprep.subr.mxu0 %v7385
      %v7387 = vand.u32 %v6760, 4294901760
      %7388 = vmatpush1.msra.mxu0 %v7387
      %v7389 = vand.u32 %v6763, 4294901760
      %7390 = vmatprep.subr.mxu0 %v7389
      %v7391 = vand.u32 %v6762, 4294901760
      %7392 = vmatpush1.msra.mxu0 %v7391
      %7393 = vmatprep.subr.mxu0 0.0
      %7394 = vmatpush1.msra.mxu0 0.0
      %7395 = vmatprep.subr.mxu0 0.0
      %7396 = vmatpush1.msra.mxu0 0.0
      %7397 = vmatprep.subr.mxu0 0.0
      %7398 = vmatpush1.msra.mxu0 0.0
      %7399 = vmatprep.subr.mxu0 0.0
      %7400 = vmatpush1.msra.mxu0 0.0
      %7401 = vmatprep.subr.mxu0 0.0
      %7402 = vmatpush1.msra.mxu0 0.0
      %7403 = vmatprep.subr.mxu0 0.0
      %7404 = vmatpush1.msra.mxu0 0.0
      %7405 = vmatprep.subr.mxu0 0.0
      %7406 = vmatpush1.msra.mxu0 0.0
      %7407 = vmatprep.subr.mxu0 0.0
      %7408 = vmatpush1.msra.mxu0 0.0
      %7409 = vmatprep.subr.mxu0 0.0
      %7410 = vmatpush1.msra.mxu0 0.0
      %7411 = vmatprep.subr.mxu0 0.0
      %7412 = vmatpush1.msra.mxu0 0.0
      %7413 = vmatprep.subr.mxu0 0.0
      %7414 = vmatpush1.msra.mxu0 0.0
      %7415 = vmatprep.subr.mxu0 0.0
      %7416 = vmatpush1.msra.mxu0 0.0
      %7417 = vmatprep.subr.mxu0 0.0
      %7418 = vmatpush1.msra.mxu0 0.0
      %7419 = vmatprep.subr.mxu0 0.0
      %7420 = vmatpush1.msra.mxu0 0.0
      %7421 = vmatprep.subr.mxu0 0.0
      %7422 = vmatpush1.msra.mxu0 0.0
      %7423 = vmatprep.subr.mxu0 0.0
      %7424 = vmatpush1.msra.mxu0 0.0
      %7425 = vmatprep.subr.mxu0 0.0
      %7426 = vmatpush1.msra.mxu0 0.0
      %7427 = vmatprep.subr.mxu0 0.0
      %7428 = vmatpush1.msra.mxu0 0.0
      %7429 = vmatprep.subr.mxu0 0.0
      %7430 = vmatpush1.msra.mxu0 0.0
      %7431 = vmatprep.subr.mxu0 0.0
      %7432 = vmatpush1.msra.mxu0 0.0
      %7433 = vmatprep.subr.mxu0 0.0
      %7434 = vmatpush1.msra.mxu0 0.0
      %7435 = vmatprep.subr.mxu0 0.0
      %7436 = vmatpush1.msra.mxu0 0.0
      %7437 = vmatprep.subr.mxu0 0.0
      %7438 = vmatpush1.msra.mxu0 0.0
      %7439 = vmatprep.mubr.f32.mxu0 0.0
      %v7440 = vand.u32 %v6772, 4294901760
      %7441 = vmatmul.mubr.f32.gmra.mrb[0].mxu0 %v7440
      %v7442 = vpop.f32.mrb[0].mxu0
      %v7443 = vadd.f32 %v7353, %v7442
      %v7444 = vpop.f32.mrb[0].mxu0
      %v7445 = vadd.f32 %v7355, %v7444
      %7446 = vdwg.mxu0
      %v7447 = vadd.f32 %v5835, %v7443
      %v7448 = vadd.f32 %v5837, %v7445
      %v7451 = vcombine.low %v7447, %v7448
      %7453 = vst [vmem:[%s197] sm:$0xff] %v7451
      %p7454 = scmp.lt.s32.totalorder %s15, 1
      %s7455 = scalar_select %p7454, %s15, 1
      %s7456 = smul.addr %s7455, 2
      %s7457 = smul.addr %s7456, 4
      %s7458 = scalar_lea.vmem %s4, %s7457
      // Predicated region
      $region37: #{feature_extract_forward.1} parent=35 // pred_check
        %p7459 = pneg %p122
      $region38: #{feature_extract_forward.1} parent=35 // pred_check_branch
        %7461 = sbr.rel (%p7459) target = $region40
      $region39: #{feature_extract_forward.1} parent=35 // pred_region
        _
      $region40: #{feature_extract_forward.1} parent=35 // pred_fallthru
        _
    $region36: #{feature_extract_forward.1} parent=5 // pred_fallthru
      _
    %p7462 = scmp.le.s32.totalorder 2, %s10
    // Predicated region
    $region41: #{feature_extract_forward.1} parent=5 // pred_check
      %p7463 = pneg %p7462
    $region42: #{feature_extract_forward.1} parent=5 // pred_check_branch
      %7465 = sbr.rel (%p7463) target = $region44
    $region43: #{feature_extract_forward.1} parent=5 // pred_region
      %s7466 = ssub.s32 %s10, 2
      // Predicated region
      $region45: #{feature_extract_forward.1} parent=43 // pred_check
        %p7467 = pneg %p128
      $region46: #{feature_extract_forward.1} parent=43 // pred_check_branch
        %7469 = sbr.rel (%p7467) target = $region48
      $region47: #{feature_extract_forward.1} parent=43 // pred_region
        %p7470 = scmp.lt.s32.totalorder %s16, 1
        %s7471 = scalar_select %p7470, %s16, 1
        %s7472 = smul.addr %s7471, 2
        %s7473 = smul.addr %s7472, 4
        %s7474 = scalar_lea.vmem %s4, %s7473
      $region48: #{feature_extract_forward.1} parent=43 // pred_fallthru
        _
    $region44: #{feature_extract_forward.1} parent=5 // pred_fallthru
      _
  $region6: #{feature_extract_forward.1} parent=0 // loop_footer
    %s14 = sadd.s32 1, %s10
  $region7: #{feature_extract_forward.1} parent=0 // loop_footer_branch
    %9 = sbr.rel target = $region3
  $region8: #{feature_extract_forward.1} parent=0 // loop_exit
    _

</llo_original>
